<compile_context>
chip_gen: v5e
topology: v5e:2x2
jax: 0.10.0
libtpu: 0.0.40
codegen_flags: <defaults>
</compile_context>

<pallas_src>
import jax
import jax.numpy as jnp
from jax.experimental import pallas as pl
from jax.experimental.pallas import tpu as pltpu

_VMEM_TILE_BUDGET = 4 * 1024 * 1024      # per-step working-set target (bytes)
_VMEM_LIMIT = 32 * 1024 * 1024           # scoped VMEM limit (raise vs v5e default)


def _largest_tile(n, cap, quantum=1):
    """Largest t <= cap with t % quantum == 0 and n % t == 0 (t >= quantum)."""
    cap = max(quantum, min(n, cap))
    t = (cap // quantum) * quantum
    while t >= quantum:
        if n % t == 0:
            return t
        t -= quantum
    return n


# --------------------------- conv3x3 + bias + ReLU -------------------------- #
def conv3x3_relu(x, w, b):
    # x: (N, H, W, Cin), w: (3, 3, Cin, Cout), b: (Cout,)  -> bf16 (N, H, W, Cout)
    N, H, W, Cin = x.shape
    Cout = w.shape[-1]
    x = x.astype(jnp.bfloat16)
    w = w.astype(jnp.bfloat16)
    b2 = b.astype(jnp.float32).reshape(1, Cout)

    # pad Cin to a multiple of 8 (zeros -> no effect on the result)
    cin_p = ((Cin + 7) // 8) * 8
    if cin_p != Cin:
        x = jnp.pad(x, ((0, 0), (0, 0), (0, 0), (0, cin_p - Cin)))
        w = jnp.pad(w, ((0, 0), (0, 0), (0, cin_p - Cin), (0, 0)))
        Cin = cin_p

    # weights as (3, 3*Cin, Cout): K index = dx*Cin + cin (matches patch concat)
    w_r = w.reshape(3, 3 * Cin, Cout)
    xp = jnp.pad(x, ((0, 0), (1, 1), (1, 1), (0, 0)))  # "same" spatial padding

    # wide layers: 3 matmuls with K=3*Cin (lane concat of the 3 kw taps);
    # narrow first layer keeps the simple 9-matmul path.
    fuse_k = Cin >= 64

    # row tile: biggest divisor of H whose per-step working set fits the budget
    bytes_per_row = ((W + 2) * Cin * 2 * 3        # 2x dbl-buffered input + window scratch (bf16)
                     + (W * 3 * Cin * 2 if fuse_k else W * Cin * 2)  # patch buffer (bf16)
                     + W * Cout * 4               # fp32 accumulator
                     + W * Cout * 2 * 3)          # 2x dbl-buffered output + cast temp (bf16)
    TH = _largest_tile(H, max(1, _VMEM_TILE_BUDGET // bytes_per_row))

    def kernel(a_ref, b1_ref, b2_ref, w_ref, bias_ref, o_ref, xw_ref):
        # a_ref   : (1, TH, W+2, Cin)  top TH rows of the (TH+2)-row halo window (bf16)
        # b1_ref  : (1, 1,  W+2, Cin)  halo row TH
        # b2_ref  : (1, 1,  W+2, Cin)  halo row TH+1
        # w_ref   : (3, 3*Cin, Cout)   weights, K = dx*Cin + cin (bf16)
        # bias_ref: (1, Cout)          f32
        # o_ref   : (1, TH, W, Cout)   bf16 output tile
        # xw_ref  : (TH+2, W+2, Cin)   VMEM scratch: assembled halo window
        xw_ref[0:TH] = a_ref[0]
        xw_ref[TH] = b1_ref[0, 0]
        xw_ref[TH + 1] = b2_ref[0, 0]

        acc = jnp.zeros((TH * W, Cout), jnp.float32)
        if fuse_k:
            for dy in range(3):                       # 3 matmuls, K = 3*Cin
                patch = jnp.concatenate(
                    [xw_ref[dy:dy + TH, 0:W, :],
                     xw_ref[dy:dy + TH, 1:W + 1, :],
                     xw_ref[dy:dy + TH, 2:W + 2, :]], axis=-1)   # (TH, W, 3*Cin)
                acc = acc + jnp.dot(patch.reshape(TH * W, 3 * Cin), w_ref[dy],
                                    preferred_element_type=jnp.float32)
        else:
            for dy in range(3):                       # 9 shifted matmuls == 3x3 conv
                for dx in range(3):
                    patch = xw_ref[dy:dy + TH, dx:dx + W, :]     # (TH, W, Cin)
                    acc = acc + jnp.dot(patch.reshape(TH * W, Cin),
                                        w_ref[dy, dx * Cin:(dx + 1) * Cin, :],
                                        preferred_element_type=jnp.float32)

        out = jnp.maximum(acc + bias_ref[...], 0.0)   # bias + ReLU epilogue (once)
        o_ref[0] = out.reshape(TH, W, Cout).astype(o_ref.dtype)

    return pl.pallas_call(
        kernel,
        out_shape=jax.ShapeDtypeStruct((N, H, W, Cout), jnp.bfloat16),
        grid=(N, H // TH),
        in_specs=[
            # main TH rows of the halo window
            pl.BlockSpec((1, TH, W + 2, Cin), lambda n, r: (n, r, 0, 0)),
            # bottom two halo rows as single-row side streams (block size 1 ->
            # block index == element row index)
            pl.BlockSpec((1, 1, W + 2, Cin), lambda n, r: (n, r * TH + TH, 0, 0)),
            pl.BlockSpec((1, 1, W + 2, Cin), lambda n, r: (n, r * TH + TH + 1, 0, 0)),
            pl.BlockSpec((3, 3 * Cin, Cout), lambda n, r: (0, 0, 0)),
            pl.BlockSpec((1, Cout), lambda n, r: (0, 0)),
        ],
        out_specs=pl.BlockSpec((1, TH, W, Cout), lambda n, r: (n, r, 0, 0)),
        scratch_shapes=[pltpu.VMEM((TH + 2, W + 2, Cin), jnp.bfloat16)],
        compiler_params=pltpu.CompilerParams(
            dimension_semantics=("parallel", "parallel"),
            vmem_limit_bytes=_VMEM_LIMIT),
    )(xp, xp, xp, w_r, b2)


# ------------------------------ maxpool 2x2 s2 ------------------------------ #
def _maxpool2x2_kernel(x_ref, o_ref):
    # x_ref: (1, THo, 2, Wo, 2*C) ; o_ref: (1, THo, Wo, C)
    C = o_ref.shape[-1]
    rows = jnp.maximum(x_ref[0, :, 0, :, :], x_ref[0, :, 1, :, :])   # H-pairs
    o_ref[0] = jnp.maximum(rows[:, :, :C], rows[:, :, C:])           # W-pairs (lane halves)


def maxpool2x2(x):
    # x: (N, H, W, C) -> (N, H//2, W//2, C)  (floor mode: crops odd edge like torch)
    N, H, W, C = x.shape
    Ho, Wo = H // 2, W // 2
    x = x[:, :2 * Ho, :2 * Wo, :]
    # contiguous (free) reshape: W-pairs become the two lane-halves of the last dim
    xr = x.reshape(N, Ho, 2, Wo, 2 * C)
    bytes_per_row = 2 * (2 * Wo * 2 * C * 2) + 2 * (Wo * C * 2)
    THo = _largest_tile(Ho, max(1, _VMEM_TILE_BUDGET // bytes_per_row))
    return pl.pallas_call(
        _maxpool2x2_kernel,
        out_shape=jax.ShapeDtypeStruct((N, Ho, Wo, C), x.dtype),
        grid=(N, Ho // THo),
        in_specs=[pl.BlockSpec((1, THo, 2, Wo, 2 * C), lambda n, r: (n, r, 0, 0, 0))],
        out_specs=pl.BlockSpec((1, THo, Wo, C), lambda n, r: (n, r, 0, 0)),
        compiler_params=pltpu.CompilerParams(
            dimension_semantics=("parallel", "parallel"),
            vmem_limit_bytes=_VMEM_LIMIT),
    )(xr)


# ------------------- streaming MSE (tiled sum of squares) ------------------- #
def _sse_kernel(a_ref, b_ref, o_ref):
    @pl.when(pl.program_id(0) == 0)
    def _():
        o_ref[0, 0] = 0.0
    d = a_ref[...].astype(jnp.float32) - b_ref[...].astype(jnp.float32)
    o_ref[0, 0] += jnp.sum(d * d)


def mse_paired(h, n):
    """h: (2n, H, W, C) with h[:n]=features(x), h[n:]=features(target).
    Returns mean((h[:n]-h[n:])**2) as an f32 scalar via a tiled reduction."""
    B2, H, W, C = h.shape
    rows = n * H * W                          # rows per half after flattening
    hf = h.reshape(B2 * H * W, C)             # contiguous reshape
    if rows % 8 == 0:
        tr = _largest_tile(rows, max(8, _VMEM_TILE_BUDGET // (8 * C)), quantum=8)
        nblk = rows // tr
        sse = pl.pallas_call(
            _sse_kernel,
            out_shape=jax.ShapeDtypeStruct((1, 1), jnp.float32),
            grid=(nblk,),
            in_specs=[pl.BlockSpec((tr, C), lambda i: (i, 0)),
                      pl.BlockSpec((tr, C), lambda i: (i + nblk, 0))],
            out_specs=pl.BlockSpec(memory_space=pltpu.MemorySpace.SMEM),
            compiler_params=pltpu.CompilerParams(
                dimension_semantics=("arbitrary",),
                vmem_limit_bytes=_VMEM_LIMIT),
        )(hf, hf)
    else:
        # fallback for shapes with no 8-aligned row tiling: single-block reduce
        a = hf[:rows]
        b = hf[rows:]
        sse = pl.pallas_call(
            _sse_kernel,
            out_shape=jax.ShapeDtypeStruct((1, 1), jnp.float32),
            grid=(1,),
            in_specs=[pl.BlockSpec((rows, C), lambda i: (0, 0)),
                      pl.BlockSpec((rows, C), lambda i: (0, 0))],
            out_specs=pl.BlockSpec(memory_space=pltpu.MemorySpace.SMEM),
            compiler_params=pltpu.CompilerParams(
                dimension_semantics=("arbitrary",),
                vmem_limit_bytes=_VMEM_LIMIT),
        )(a, b)
    return sse[0, 0] / jnp.float32(rows * C)


# ------------------------------- model wrapper ------------------------------ #
def init_params(key):
    def conv_init(k, cin, cout):
        kw, kb = jax.random.split(k)
        w = jax.random.normal(kw, (3, 3, cin, cout), jnp.float32) * 0.1
        b = jax.random.normal(kb, (cout,), jnp.float32) * 0.1
        return w, b
    ks = jax.random.split(key, 4)
    return {
        "conv1_1": conv_init(ks[0], 3, 64),     # vgg.features[0]
        "conv1_2": conv_init(ks[1], 64, 64),    # vgg.features[2]
        "conv2_1": conv_init(ks[2], 64, 128),   # vgg.features[5]
        "conv2_2": conv_init(ks[3], 128, 128),  # vgg.features[7]
    }


def slice1(x, params):
    h = conv3x3_relu(x, *params["conv1_1"])
    h = conv3x3_relu(h, *params["conv1_2"])
    return h


def slice2(h, params):
    h = maxpool2x2(h)
    h = conv3x3_relu(h, *params["conv2_1"])
    h = conv3x3_relu(h, *params["conv2_2"])
    return h


def perceptual_loss(x_nchw, target_nchw, params):
    # accept PyTorch NCHW; kernels run NHWC bf16 with fp32 accumulation.
    x = jnp.transpose(x_nchw, (0, 2, 3, 1))
    t = jnp.transpose(target_nchw, (0, 2, 3, 1))
    n = x.shape[0]
    xt = jnp.concatenate([x, t], axis=0).astype(jnp.bfloat16)   # one pass over 2N images
    h1 = slice1(xt, params)            # (2N, H,   W,   64)
    h2 = slice2(h1, params)            # (2N, H/2, W/2, 128)
    return mse_paired(h1, n) + mse_paired(h2, n)


if __name__ == "__main__":
    key = jax.random.PRNGKey(0)
    kp, kx, kt = jax.random.split(key, 3)
    params = init_params(kp)
    x = jax.random.normal(kx, (2, 3, 16, 16), jnp.float32)       # NCHW like PyTorch
    target = jax.random.normal(kt, (2, 3, 16, 16), jnp.float32)  # NCHW like PyTorch

    loss_fn = jax.jit(lambda a, b: perceptual_loss(a, b, params))
    loss = loss_fn(x, target)
    jax.block_until_ready(loss)
    assert loss.shape == () and jnp.isfinite(loss)
    print("KERNEL_OK")
</pallas_src>

<mosaic_0001>
module attributes {stable_mosaic.version = 11 : i64} {
  func.func @kernel(%arg0: i32, %arg1: i32, %arg2: memref<1x16x18x8xbf16, #tpu.memory_space<vmem>>, %arg3: memref<1x1x18x8xbf16, #tpu.memory_space<vmem>>, %arg4: memref<1x1x18x8xbf16, #tpu.memory_space<vmem>>, %arg5: memref<3x24x64xbf16, #tpu.memory_space<vmem>>, %arg6: memref<1x64xf32, #tpu.memory_space<vmem>>, %arg7: memref<1x16x16x64xbf16, #tpu.memory_space<vmem>>, %arg8: memref<18x18x8xbf16, #tpu.memory_space<vmem>>) attributes {dimension_semantics = [#tpu.dimension_semantics<parallel>, #tpu.dimension_semantics<parallel>], iteration_bounds = array<i64: 4, 1>, scalar_prefetch = 0 : i64, scratch_operands = 1 : i64, tpu.core_type = #tpu.core_type<tc>, window_params = [{transform_indices = @transform_0, window_bounds = array<i64: 1, 16, 18, 8>}, {transform_indices = @transform_1, window_bounds = array<i64: 1, 1, 18, 8>}, {transform_indices = @transform_2, window_bounds = array<i64: 1, 1, 18, 8>}, {pipeline_mode = #tpu.pipeline_mode<synchronous>, transform_indices = @transform_3, window_bounds = array<i64: 3, 24, 64>}, {pipeline_mode = #tpu.pipeline_mode<synchronous>, transform_indices = @transform_4, window_bounds = array<i64: 1, 64>}, {transform_indices = @transform_5, window_bounds = array<i64: 1, 16, 16, 64>}]} {
    %c0 = arith.constant 0 : index
    %c0_0 = arith.constant 0 : index
    %c0_1 = arith.constant 0 : index
    %c0_2 = arith.constant 0 : index
    %0 = vector.load %arg2[%c0, %c0_0, %c0_1, %c0_2] : memref<1x16x18x8xbf16, #tpu.memory_space<vmem>>, vector<1x16x18x8xbf16>
    %1 = vector.shape_cast %0 : vector<1x16x18x8xbf16> to vector<16x18x8xbf16>
    %c0_3 = arith.constant 0 : index
    %c0_4 = arith.constant 0 : index
    %c0_5 = arith.constant 0 : index
    %2 = vector.load %arg8[%c0_3, %c0_4, %c0_5] : memref<18x18x8xbf16, #tpu.memory_space<vmem>>, vector<16x18x8xbf16>
    tpu.vector_store %arg8[%c0_3, %c0_4, %c0_5], %1 {strides = array<i32>} : memref<18x18x8xbf16, #tpu.memory_space<vmem>>, vector<16x18x8xbf16>,
    %c0_6 = arith.constant 0 : index
    %c0_7 = arith.constant 0 : index
    %c0_8 = arith.constant 0 : index
    %c0_9 = arith.constant 0 : index
    %3 = vector.load %arg3[%c0_6, %c0_7, %c0_8, %c0_9] : memref<1x1x18x8xbf16, #tpu.memory_space<vmem>>, vector<1x1x18x8xbf16>
    %4 = vector.shape_cast %3 : vector<1x1x18x8xbf16> to vector<18x8xbf16>
    %c16 = arith.constant 16 : index
    %c0_10 = arith.constant 0 : index
    %c0_11 = arith.constant 0 : index
    %5 = vector.load %arg8[%c16, %c0_10, %c0_11] : memref<18x18x8xbf16, #tpu.memory_space<vmem>>, vector<1x18x8xbf16>
    %6 = vector.shape_cast %5 : vector<1x18x8xbf16> to vector<18x8xbf16>
    %7 = vector.shape_cast %4 : vector<18x8xbf16> to vector<1x18x8xbf16>
    tpu.vector_store %arg8[%c16, %c0_10, %c0_11], %7 {strides = array<i32>} : memref<18x18x8xbf16, #tpu.memory_space<vmem>>, vector<1x18x8xbf16>,
    %c0_12 = arith.constant 0 : index
    %c0_13 = arith.constant 0 : index
    %c0_14 = arith.constant 0 : index
    %c0_15 = arith.constant 0 : index
    %8 = vector.load %arg4[%c0_12, %c0_13, %c0_14, %c0_15] : memref<1x1x18x8xbf16, #tpu.memory_space<vmem>>, vector<1x1x18x8xbf16>
    %9 = vector.shape_cast %8 : vector<1x1x18x8xbf16> to vector<18x8xbf16>
    %c17 = arith.constant 17 : index
    %c0_16 = arith.constant 0 : index
    %c0_17 = arith.constant 0 : index
    %10 = vector.load %arg8[%c17, %c0_16, %c0_17] : memref<18x18x8xbf16, #tpu.memory_space<vmem>>, vector<1x18x8xbf16>
    %11 = vector.shape_cast %10 : vector<1x18x8xbf16> to vector<18x8xbf16>
    %12 = vector.shape_cast %9 : vector<18x8xbf16> to vector<1x18x8xbf16>
    tpu.vector_store %arg8[%c17, %c0_16, %c0_17], %12 {strides = array<i32>} : memref<18x18x8xbf16, #tpu.memory_space<vmem>>, vector<1x18x8xbf16>,
    %cst = arith.constant 0.000000e+00 : f32
    %13 = vector.broadcast %cst : f32 to vector<256x64xf32>
    %c0_18 = arith.constant 0 : index
    %c0_19 = arith.constant 0 : index
    %c0_20 = arith.constant 0 : index
    %14 = vector.load %arg8[%c0_18, %c0_19, %c0_20] : memref<18x18x8xbf16, #tpu.memory_space<vmem>>, vector<16x16x8xbf16>
    %15 = vector.shape_cast %14 : vector<16x16x8xbf16> to vector<256x8xbf16>
    %c0_21 = arith.constant 0 : index
    %c0_22 = arith.constant 0 : index
    %c0_23 = arith.constant 0 : index
    %16 = vector.load %arg5[%c0_21, %c0_22, %c0_23] : memref<3x24x64xbf16, #tpu.memory_space<vmem>>, vector<1x8x64xbf16>
    %17 = vector.shape_cast %16 : vector<1x8x64xbf16> to vector<8x64xbf16>
    %cst_24 = arith.constant dense<0.000000e+00> : vector<256x64xf32>
    %18 = tpu.matmul %15, %17, %cst_24 {dimension_numbers = #tpu.dot_dimension_numbers<[1], [0], [0], [1], [0, 0, 1, 1], [], []>} : vector<256x8xbf16>, vector<8x64xbf16>, vector<256x64xf32> -> vector<256x64xf32>
    %19 = arith.addf %13, %18 : vector<256x64xf32>
    %c0_25 = arith.constant 0 : index
    %c1 = arith.constant 1 : index
    %c0_26 = arith.constant 0 : index
    %20 = vector.load %arg8[%c0_25, %c1, %c0_26] : memref<18x18x8xbf16, #tpu.memory_space<vmem>>, vector<16x16x8xbf16>
    %21 = vector.shape_cast %20 : vector<16x16x8xbf16> to vector<256x8xbf16>
    %c0_27 = arith.constant 0 : index
    %c8 = arith.constant 8 : index
    %c0_28 = arith.constant 0 : index
    %22 = vector.load %arg5[%c0_27, %c8, %c0_28] : memref<3x24x64xbf16, #tpu.memory_space<vmem>>, vector<1x8x64xbf16>
    %23 = vector.shape_cast %22 : vector<1x8x64xbf16> to vector<8x64xbf16>
    %cst_29 = arith.constant dense<0.000000e+00> : vector<256x64xf32>
    %24 = tpu.matmul %21, %23, %cst_29 {dimension_numbers = #tpu.dot_dimension_numbers<[1], [0], [0], [1], [0, 0, 1, 1], [], []>} : vector<256x8xbf16>, vector<8x64xbf16>, vector<256x64xf32> -> vector<256x64xf32>
    %25 = arith.addf %19, %24 : vector<256x64xf32>
    %c0_30 = arith.constant 0 : index
    %c2 = arith.constant 2 : index
    %c0_31 = arith.constant 0 : index
    %26 = vector.load %arg8[%c0_30, %c2, %c0_31] : memref<18x18x8xbf16, #tpu.memory_space<vmem>>, vector<16x16x8xbf16>
    %27 = vector.shape_cast %26 : vector<16x16x8xbf16> to vector<256x8xbf16>
    %c0_32 = arith.constant 0 : index
    %c16_33 = arith.constant 16 : index
    %c0_34 = arith.constant 0 : index
    %28 = vector.load %arg5[%c0_32, %c16_33, %c0_34] : memref<3x24x64xbf16, #tpu.memory_space<vmem>>, vector<1x8x64xbf16>
    %29 = vector.shape_cast %28 : vector<1x8x64xbf16> to vector<8x64xbf16>
    %cst_35 = arith.constant dense<0.000000e+00> : vector<256x64xf32>
    %30 = tpu.matmul %27, %29, %cst_35 {dimension_numbers = #tpu.dot_dimension_numbers<[1], [0], [0], [1], [0, 0, 1, 1], [], []>} : vector<256x8xbf16>, vector<8x64xbf16>, vector<256x64xf32> -> vector<256x64xf32>
    %31 = arith.addf %25, %30 : vector<256x64xf32>
    %c1_36 = arith.constant 1 : index
    %c0_37 = arith.constant 0 : index
    %c0_38 = arith.constant 0 : index
    %32 = vector.load %arg8[%c1_36, %c0_37, %c0_38] : memref<18x18x8xbf16, #tpu.memory_space<vmem>>, vector<16x16x8xbf16>
    %33 = vector.shape_cast %32 : vector<16x16x8xbf16> to vector<256x8xbf16>
    %c1_39 = arith.constant 1 : index
    %c0_40 = arith.constant 0 : index
    %c0_41 = arith.constant 0 : index
    %34 = vector.load %arg5[%c1_39, %c0_40, %c0_41] : memref<3x24x64xbf16, #tpu.memory_space<vmem>>, vector<1x8x64xbf16>
    %35 = vector.shape_cast %34 : vector<1x8x64xbf16> to vector<8x64xbf16>
    %cst_42 = arith.constant dense<0.000000e+00> : vector<256x64xf32>
    %36 = tpu.matmul %33, %35, %cst_42 {dimension_numbers = #tpu.dot_dimension_numbers<[1], [0], [0], [1], [0, 0, 1, 1], [], []>} : vector<256x8xbf16>, vector<8x64xbf16>, vector<256x64xf32> -> vector<256x64xf32>
    %37 = arith.addf %31, %36 : vector<256x64xf32>
    %c1_43 = arith.constant 1 : index
    %c1_44 = arith.constant 1 : index
    %c0_45 = arith.constant 0 : index
    %38 = vector.load %arg8[%c1_43, %c1_44, %c0_45] : memref<18x18x8xbf16, #tpu.memory_space<vmem>>, vector<16x16x8xbf16>
    %39 = vector.shape_cast %38 : vector<16x16x8xbf16> to vector<256x8xbf16>
    %c1_46 = arith.constant 1 : index
    %c8_47 = arith.constant 8 : index
    %c0_48 = arith.constant 0 : index
    %40 = vector.load %arg5[%c1_46, %c8_47, %c0_48] : memref<3x24x64xbf16, #tpu.memory_space<vmem>>, vector<1x8x64xbf16>
    %41 = vector.shape_cast %40 : vector<1x8x64xbf16> to vector<8x64xbf16>
    %cst_49 = arith.constant dense<0.000000e+00> : vector<256x64xf32>
    %42 = tpu.matmul %39, %41, %cst_49 {dimension_numbers = #tpu.dot_dimension_numbers<[1], [0], [0], [1], [0, 0, 1, 1], [], []>} : vector<256x8xbf16>, vector<8x64xbf16>, vector<256x64xf32> -> vector<256x64xf32>
    %43 = arith.addf %37, %42 : vector<256x64xf32>
    %c1_50 = arith.constant 1 : index
    %c2_51 = arith.constant 2 : index
    %c0_52 = arith.constant 0 : index
    %44 = vector.load %arg8[%c1_50, %c2_51, %c0_52] : memref<18x18x8xbf16, #tpu.memory_space<vmem>>, vector<16x16x8xbf16>
    %45 = vector.shape_cast %44 : vector<16x16x8xbf16> to vector<256x8xbf16>
    %c1_53 = arith.constant 1 : index
    %c16_54 = arith.constant 16 : index
    %c0_55 = arith.constant 0 : index
    %46 = vector.load %arg5[%c1_53, %c16_54, %c0_55] : memref<3x24x64xbf16, #tpu.memory_space<vmem>>, vector<1x8x64xbf16>
    %47 = vector.shape_cast %46 : vector<1x8x64xbf16> to vector<8x64xbf16>
    %cst_56 = arith.constant dense<0.000000e+00> : vector<256x64xf32>
    %48 = tpu.matmul %45, %47, %cst_56 {dimension_numbers = #tpu.dot_dimension_numbers<[1], [0], [0], [1], [0, 0, 1, 1], [], []>} : vector<256x8xbf16>, vector<8x64xbf16>, vector<256x64xf32> -> vector<256x64xf32>
    %49 = arith.addf %43, %48 : vector<256x64xf32>
    %c2_57 = arith.constant 2 : index
    %c0_58 = arith.constant 0 : index
    %c0_59 = arith.constant 0 : index
    %50 = vector.load %arg8[%c2_57, %c0_58, %c0_59] : memref<18x18x8xbf16, #tpu.memory_space<vmem>>, vector<16x16x8xbf16>
    %51 = vector.shape_cast %50 : vector<16x16x8xbf16> to vector<256x8xbf16>
    %c2_60 = arith.constant 2 : index
    %c0_61 = arith.constant 0 : index
    %c0_62 = arith.constant 0 : index
    %52 = vector.load %arg5[%c2_60, %c0_61, %c0_62] : memref<3x24x64xbf16, #tpu.memory_space<vmem>>, vector<1x8x64xbf16>
    %53 = vector.shape_cast %52 : vector<1x8x64xbf16> to vector<8x64xbf16>
    %cst_63 = arith.constant dense<0.000000e+00> : vector<256x64xf32>
    %54 = tpu.matmul %51, %53, %cst_63 {dimension_numbers = #tpu.dot_dimension_numbers<[1], [0], [0], [1], [0, 0, 1, 1], [], []>} : vector<256x8xbf16>, vector<8x64xbf16>, vector<256x64xf32> -> vector<256x64xf32>
    %55 = arith.addf %49, %54 : vector<256x64xf32>
    %c2_64 = arith.constant 2 : index
    %c1_65 = arith.constant 1 : index
    %c0_66 = arith.constant 0 : index
    %56 = vector.load %arg8[%c2_64, %c1_65, %c0_66] : memref<18x18x8xbf16, #tpu.memory_space<vmem>>, vector<16x16x8xbf16>
    %57 = vector.shape_cast %56 : vector<16x16x8xbf16> to vector<256x8xbf16>
    %c2_67 = arith.constant 2 : index
    %c8_68 = arith.constant 8 : index
    %c0_69 = arith.constant 0 : index
    %58 = vector.load %arg5[%c2_67, %c8_68, %c0_69] : memref<3x24x64xbf16, #tpu.memory_space<vmem>>, vector<1x8x64xbf16>
    %59 = vector.shape_cast %58 : vector<1x8x64xbf16> to vector<8x64xbf16>
    %cst_70 = arith.constant dense<0.000000e+00> : vector<256x64xf32>
    %60 = tpu.matmul %57, %59, %cst_70 {dimension_numbers = #tpu.dot_dimension_numbers<[1], [0], [0], [1], [0, 0, 1, 1], [], []>} : vector<256x8xbf16>, vector<8x64xbf16>, vector<256x64xf32> -> vector<256x64xf32>
    %61 = arith.addf %55, %60 : vector<256x64xf32>
    %c2_71 = arith.constant 2 : index
    %c2_72 = arith.constant 2 : index
    %c0_73 = arith.constant 0 : index
    %62 = vector.load %arg8[%c2_71, %c2_72, %c0_73] : memref<18x18x8xbf16, #tpu.memory_space<vmem>>, vector<16x16x8xbf16>
    %63 = vector.shape_cast %62 : vector<16x16x8xbf16> to vector<256x8xbf16>
    %c2_74 = arith.constant 2 : index
    %c16_75 = arith.constant 16 : index
    %c0_76 = arith.constant 0 : index
    %64 = vector.load %arg5[%c2_74, %c16_75, %c0_76] : memref<3x24x64xbf16, #tpu.memory_space<vmem>>, vector<1x8x64xbf16>
    %65 = vector.shape_cast %64 : vector<1x8x64xbf16> to vector<8x64xbf16>
    %cst_77 = arith.constant dense<0.000000e+00> : vector<256x64xf32>
    %66 = tpu.matmul %63, %65, %cst_77 {dimension_numbers = #tpu.dot_dimension_numbers<[1], [0], [0], [1], [0, 0, 1, 1], [], []>} : vector<256x8xbf16>, vector<8x64xbf16>, vector<256x64xf32> -> vector<256x64xf32>
    %67 = arith.addf %61, %66 : vector<256x64xf32>
    %c0_78 = arith.constant 0 : index
    %c0_79 = arith.constant 0 : index
    %68 = vector.load %arg6[%c0_78, %c0_79] : memref<1x64xf32, #tpu.memory_space<vmem>>, vector<1x64xf32>
    %69 = vector.broadcast %68 : vector<1x64xf32> to vector<256x64xf32>
    %70 = arith.addf %67, %69 : vector<256x64xf32>
    %cst_80 = arith.constant 0.000000e+00 : f32
    %71 = vector.broadcast %cst_80 : f32 to vector<256x64xf32>
    %72 = arith.maximumf %70, %71 : vector<256x64xf32>
    %73 = vector.shape_cast %72 : vector<256x64xf32> to vector<16x16x64xf32>
    %74 = arith.truncf %73 : vector<16x16x64xf32> to vector<16x16x64xbf16>
    %c0_81 = arith.constant 0 : index
    %c0_82 = arith.constant 0 : index
    %c0_83 = arith.constant 0 : index
    %c0_84 = arith.constant 0 : index
    %75 = vector.load %arg7[%c0_81, %c0_82, %c0_83, %c0_84] : memref<1x16x16x64xbf16, #tpu.memory_space<vmem>>, vector<1x16x16x64xbf16>
    %76 = vector.shape_cast %75 : vector<1x16x16x64xbf16> to vector<16x16x64xbf16>
    %77 = vector.shape_cast %74 : vector<16x16x64xbf16> to vector<1x16x16x64xbf16>
    tpu.vector_store %arg7[%c0_81, %c0_82, %c0_83, %c0_84], %77 {strides = array<i32>} : memref<1x16x16x64xbf16, #tpu.memory_space<vmem>>, vector<1x16x16x64xbf16>,
    return
  }
  func.func @transform_0(%arg0: i32, %arg1: i32) -> (i32, i32, i32, i32) {
    %c0_i32 = arith.constant 0 : i32
    %c0_i32_0 = arith.constant 0 : i32
    %c0_i32_1 = arith.constant 0 : i32
    return %arg0, %arg1, %c0_i32, %c0_i32_0 : i32, i32, i32, i32
  }
  func.func @transform_1(%arg0: i32, %arg1: i32) -> (i32, i32, i32, i32) {
    %c16_i32 = arith.constant 16 : i32
    %0 = arith.muli %arg1, %c16_i32 : i32
    %c16_i32_0 = arith.constant 16 : i32
    %1 = arith.addi %0, %c16_i32_0 : i32
    %c0_i32 = arith.constant 0 : i32
    %c0_i32_1 = arith.constant 0 : i32
    %c0_i32_2 = arith.constant 0 : i32
    return %arg0, %1, %c0_i32, %c0_i32_1 : i32, i32, i32, i32
  }
  func.func @transform_2(%arg0: i32, %arg1: i32) -> (i32, i32, i32, i32) {
    %c16_i32 = arith.constant 16 : i32
    %0 = arith.muli %arg1, %c16_i32 : i32
    %c16_i32_0 = arith.constant 16 : i32
    %1 = arith.addi %0, %c16_i32_0 : i32
    %c1_i32 = arith.constant 1 : i32
    %2 = arith.addi %1, %c1_i32 : i32
    %c0_i32 = arith.constant 0 : i32
    %c0_i32_1 = arith.constant 0 : i32
    %c0_i32_2 = arith.constant 0 : i32
    return %arg0, %2, %c0_i32, %c0_i32_1 : i32, i32, i32, i32
  }
  func.func @transform_3(%arg0: i32, %arg1: i32) -> (i32, i32, i32) {
    %c0_i32 = arith.constant 0 : i32
    %c0_i32_0 = arith.constant 0 : i32
    %c0_i32_1 = arith.constant 0 : i32
    %c0_i32_2 = arith.constant 0 : i32
    return %c0_i32, %c0_i32_0, %c0_i32_1 : i32, i32, i32
  }
  func.func @transform_4(%arg0: i32, %arg1: i32) -> (i32, i32) {
    %c0_i32 = arith.constant 0 : i32
    %c0_i32_0 = arith.constant 0 : i32
    %c0_i32_1 = arith.constant 0 : i32
    return %c0_i32, %c0_i32_0 : i32, i32
  }
  func.func @transform_5(%arg0: i32, %arg1: i32) -> (i32, i32, i32, i32) {
    %c0_i32 = arith.constant 0 : i32
    %c0_i32_0 = arith.constant 0 : i32
    %c0_i32_1 = arith.constant 0 : i32
    return %arg0, %arg1, %c0_i32, %c0_i32_0 : i32, i32, i32, i32
  }
}

module attributes {stable_mosaic.version = 11 : i64} {
  func.func @kernel(%arg0: i32, %arg1: i32, %arg2: memref<1x16x18x64xbf16, #tpu.memory_space<vmem>>, %arg3: memref<1x1x18x64xbf16, #tpu.memory_space<vmem>>, %arg4: memref<1x1x18x64xbf16, #tpu.memory_space<vmem>>, %arg5: memref<3x192x64xbf16, #tpu.memory_space<vmem>>, %arg6: memref<1x64xf32, #tpu.memory_space<vmem>>, %arg7: memref<1x16x16x64xbf16, #tpu.memory_space<vmem>>, %arg8: memref<18x18x64xbf16, #tpu.memory_space<vmem>>) attributes {dimension_semantics = [#tpu.dimension_semantics<parallel>, #tpu.dimension_semantics<parallel>], iteration_bounds = array<i64: 4, 1>, scalar_prefetch = 0 : i64, scratch_operands = 1 : i64, tpu.core_type = #tpu.core_type<tc>, window_params = [{transform_indices = @transform_0, window_bounds = array<i64: 1, 16, 18, 64>}, {transform_indices = @transform_1, window_bounds = array<i64: 1, 1, 18, 64>}, {transform_indices = @transform_2, window_bounds = array<i64: 1, 1, 18, 64>}, {pipeline_mode = #tpu.pipeline_mode<synchronous>, transform_indices = @transform_3, window_bounds = array<i64: 3, 192, 64>}, {pipeline_mode = #tpu.pipeline_mode<synchronous>, transform_indices = @transform_4, window_bounds = array<i64: 1, 64>}, {transform_indices = @transform_5, window_bounds = array<i64: 1, 16, 16, 64>}]} {
    %c0 = arith.constant 0 : index
    %c0_0 = arith.constant 0 : index
    %c0_1 = arith.constant 0 : index
    %c0_2 = arith.constant 0 : index
    %0 = vector.load %arg2[%c0, %c0_0, %c0_1, %c0_2] : memref<1x16x18x64xbf16, #tpu.memory_space<vmem>>, vector<1x16x18x64xbf16>
    %1 = vector.shape_cast %0 : vector<1x16x18x64xbf16> to vector<16x18x64xbf16>
    %c0_3 = arith.constant 0 : index
    %c0_4 = arith.constant 0 : index
    %c0_5 = arith.constant 0 : index
    %2 = vector.load %arg8[%c0_3, %c0_4, %c0_5] : memref<18x18x64xbf16, #tpu.memory_space<vmem>>, vector<16x18x64xbf16>
    tpu.vector_store %arg8[%c0_3, %c0_4, %c0_5], %1 {strides = array<i32>} : memref<18x18x64xbf16, #tpu.memory_space<vmem>>, vector<16x18x64xbf16>,
    %c0_6 = arith.constant 0 : index
    %c0_7 = arith.constant 0 : index
    %c0_8 = arith.constant 0 : index
    %c0_9 = arith.constant 0 : index
    %3 = vector.load %arg3[%c0_6, %c0_7, %c0_8, %c0_9] : memref<1x1x18x64xbf16, #tpu.memory_space<vmem>>, vector<1x1x18x64xbf16>
    %4 = vector.shape_cast %3 : vector<1x1x18x64xbf16> to vector<18x64xbf16>
    %c16 = arith.constant 16 : index
    %c0_10 = arith.constant 0 : index
    %c0_11 = arith.constant 0 : index
    %5 = vector.load %arg8[%c16, %c0_10, %c0_11] : memref<18x18x64xbf16, #tpu.memory_space<vmem>>, vector<1x18x64xbf16>
    %6 = vector.shape_cast %5 : vector<1x18x64xbf16> to vector<18x64xbf16>
    %7 = vector.shape_cast %4 : vector<18x64xbf16> to vector<1x18x64xbf16>
    tpu.vector_store %arg8[%c16, %c0_10, %c0_11], %7 {strides = array<i32>} : memref<18x18x64xbf16, #tpu.memory_space<vmem>>, vector<1x18x64xbf16>,
    %c0_12 = arith.constant 0 : index
    %c0_13 = arith.constant 0 : index
    %c0_14 = arith.constant 0 : index
    %c0_15 = arith.constant 0 : index
    %8 = vector.load %arg4[%c0_12, %c0_13, %c0_14, %c0_15] : memref<1x1x18x64xbf16, #tpu.memory_space<vmem>>, vector<1x1x18x64xbf16>
    %9 = vector.shape_cast %8 : vector<1x1x18x64xbf16> to vector<18x64xbf16>
    %c17 = arith.constant 17 : index
    %c0_16 = arith.constant 0 : index
    %c0_17 = arith.constant 0 : index
    %10 = vector.load %arg8[%c17, %c0_16, %c0_17] : memref<18x18x64xbf16, #tpu.memory_space<vmem>>, vector<1x18x64xbf16>
    %11 = vector.shape_cast %10 : vector<1x18x64xbf16> to vector<18x64xbf16>
    %12 = vector.shape_cast %9 : vector<18x64xbf16> to vector<1x18x64xbf16>
    tpu.vector_store %arg8[%c17, %c0_16, %c0_17], %12 {strides = array<i32>} : memref<18x18x64xbf16, #tpu.memory_space<vmem>>, vector<1x18x64xbf16>,
    %cst = arith.constant 0.000000e+00 : f32
    %13 = vector.broadcast %cst : f32 to vector<256x64xf32>
    %c0_18 = arith.constant 0 : index
    %c0_19 = arith.constant 0 : index
    %c0_20 = arith.constant 0 : index
    %14 = vector.load %arg8[%c0_18, %c0_19, %c0_20] : memref<18x18x64xbf16, #tpu.memory_space<vmem>>, vector<16x16x64xbf16>
    %c0_21 = arith.constant 0 : index
    %c1 = arith.constant 1 : index
    %c0_22 = arith.constant 0 : index
    %15 = vector.load %arg8[%c0_21, %c1, %c0_22] : memref<18x18x64xbf16, #tpu.memory_space<vmem>>, vector<16x16x64xbf16>
    %c0_23 = arith.constant 0 : index
    %c2 = arith.constant 2 : index
    %c0_24 = arith.constant 0 : index
    %16 = vector.load %arg8[%c0_23, %c2, %c0_24] : memref<18x18x64xbf16, #tpu.memory_space<vmem>>, vector<16x16x64xbf16>
    %17 = tpu.concatenate %14, %15, %16 in 2 : vector<16x16x64xbf16>, vector<16x16x64xbf16>, vector<16x16x64xbf16> -> vector<16x16x192xbf16>
    %18 = vector.shape_cast %17 : vector<16x16x192xbf16> to vector<256x192xbf16>
    %c0_25 = arith.constant 0 : index
    %c0_26 = arith.constant 0 : index
    %c0_27 = arith.constant 0 : index
    %19 = vector.load %arg5[%c0_25, %c0_26, %c0_27] : memref<3x192x64xbf16, #tpu.memory_space<vmem>>, vector<1x192x64xbf16>
    %20 = vector.shape_cast %19 : vector<1x192x64xbf16> to vector<192x64xbf16>
    %cst_28 = arith.constant dense<0.000000e+00> : vector<256x64xf32>
    %21 = tpu.matmul %18, %20, %cst_28 {dimension_numbers = #tpu.dot_dimension_numbers<[1], [0], [0], [1], [0, 0, 1, 1], [], []>} : vector<256x192xbf16>, vector<192x64xbf16>, vector<256x64xf32> -> vector<256x64xf32>
    %22 = arith.addf %13, %21 : vector<256x64xf32>
    %c1_29 = arith.constant 1 : index
    %c0_30 = arith.constant 0 : index
    %c0_31 = arith.constant 0 : index
    %23 = vector.load %arg8[%c1_29, %c0_30, %c0_31] : memref<18x18x64xbf16, #tpu.memory_space<vmem>>, vector<16x16x64xbf16>
    %c1_32 = arith.constant 1 : index
    %c1_33 = arith.constant 1 : index
    %c0_34 = arith.constant 0 : index
    %24 = vector.load %arg8[%c1_32, %c1_33, %c0_34] : memref<18x18x64xbf16, #tpu.memory_space<vmem>>, vector<16x16x64xbf16>
    %c1_35 = arith.constant 1 : index
    %c2_36 = arith.constant 2 : index
    %c0_37 = arith.constant 0 : index
    %25 = vector.load %arg8[%c1_35, %c2_36, %c0_37] : memref<18x18x64xbf16, #tpu.memory_space<vmem>>, vector<16x16x64xbf16>
    %26 = tpu.concatenate %23, %24, %25 in 2 : vector<16x16x64xbf16>, vector<16x16x64xbf16>, vector<16x16x64xbf16> -> vector<16x16x192xbf16>
    %27 = vector.shape_cast %26 : vector<16x16x192xbf16> to vector<256x192xbf16>
    %c1_38 = arith.constant 1 : index
    %c0_39 = arith.constant 0 : index
    %c0_40 = arith.constant 0 : index
    %28 = vector.load %arg5[%c1_38, %c0_39, %c0_40] : memref<3x192x64xbf16, #tpu.memory_space<vmem>>, vector<1x192x64xbf16>
    %29 = vector.shape_cast %28 : vector<1x192x64xbf16> to vector<192x64xbf16>
    %cst_41 = arith.constant dense<0.000000e+00> : vector<256x64xf32>
    %30 = tpu.matmul %27, %29, %cst_41 {dimension_numbers = #tpu.dot_dimension_numbers<[1], [0], [0], [1], [0, 0, 1, 1], [], []>} : vector<256x192xbf16>, vector<192x64xbf16>, vector<256x64xf32> -> vector<256x64xf32>
    %31 = arith.addf %22, %30 : vector<256x64xf32>
    %c2_42 = arith.constant 2 : index
    %c0_43 = arith.constant 0 : index
    %c0_44 = arith.constant 0 : index
    %32 = vector.load %arg8[%c2_42, %c0_43, %c0_44] : memref<18x18x64xbf16, #tpu.memory_space<vmem>>, vector<16x16x64xbf16>
    %c2_45 = arith.constant 2 : index
    %c1_46 = arith.constant 1 : index
    %c0_47 = arith.constant 0 : index
    %33 = vector.load %arg8[%c2_45, %c1_46, %c0_47] : memref<18x18x64xbf16, #tpu.memory_space<vmem>>, vector<16x16x64xbf16>
    %c2_48 = arith.constant 2 : index
    %c2_49 = arith.constant 2 : index
    %c0_50 = arith.constant 0 : index
    %34 = vector.load %arg8[%c2_48, %c2_49, %c0_50] : memref<18x18x64xbf16, #tpu.memory_space<vmem>>, vector<16x16x64xbf16>
    %35 = tpu.concatenate %32, %33, %34 in 2 : vector<16x16x64xbf16>, vector<16x16x64xbf16>, vector<16x16x64xbf16> -> vector<16x16x192xbf16>
    %36 = vector.shape_cast %35 : vector<16x16x192xbf16> to vector<256x192xbf16>
    %c2_51 = arith.constant 2 : index
    %c0_52 = arith.constant 0 : index
    %c0_53 = arith.constant 0 : index
    %37 = vector.load %arg5[%c2_51, %c0_52, %c0_53] : memref<3x192x64xbf16, #tpu.memory_space<vmem>>, vector<1x192x64xbf16>
    %38 = vector.shape_cast %37 : vector<1x192x64xbf16> to vector<192x64xbf16>
    %cst_54 = arith.constant dense<0.000000e+00> : vector<256x64xf32>
    %39 = tpu.matmul %36, %38, %cst_54 {dimension_numbers = #tpu.dot_dimension_numbers<[1], [0], [0], [1], [0, 0, 1, 1], [], []>} : vector<256x192xbf16>, vector<192x64xbf16>, vector<256x64xf32> -> vector<256x64xf32>
    %40 = arith.addf %31, %39 : vector<256x64xf32>
    %c0_55 = arith.constant 0 : index
    %c0_56 = arith.constant 0 : index
    %41 = vector.load %arg6[%c0_55, %c0_56] : memref<1x64xf32, #tpu.memory_space<vmem>>, vector<1x64xf32>
    %42 = vector.broadcast %41 : vector<1x64xf32> to vector<256x64xf32>
    %43 = arith.addf %40, %42 : vector<256x64xf32>
    %cst_57 = arith.constant 0.000000e+00 : f32
    %44 = vector.broadcast %cst_57 : f32 to vector<256x64xf32>
    %45 = arith.maximumf %43, %44 : vector<256x64xf32>
    %46 = vector.shape_cast %45 : vector<256x64xf32> to vector<16x16x64xf32>
    %47 = arith.truncf %46 : vector<16x16x64xf32> to vector<16x16x64xbf16>
    %c0_58 = arith.constant 0 : index
    %c0_59 = arith.constant 0 : index
    %c0_60 = arith.constant 0 : index
    %c0_61 = arith.constant 0 : index
    %48 = vector.load %arg7[%c0_58, %c0_59, %c0_60, %c0_61] : memref<1x16x16x64xbf16, #tpu.memory_space<vmem>>, vector<1x16x16x64xbf16>
    %49 = vector.shape_cast %48 : vector<1x16x16x64xbf16> to vector<16x16x64xbf16>
    %50 = vector.shape_cast %47 : vector<16x16x64xbf16> to vector<1x16x16x64xbf16>
    tpu.vector_store %arg7[%c0_58, %c0_59, %c0_60, %c0_61], %50 {strides = array<i32>} : memref<1x16x16x64xbf16, #tpu.memory_space<vmem>>, vector<1x16x16x64xbf16>,
    return
  }
  func.func @transform_0(%arg0: i32, %arg1: i32) -> (i32, i32, i32, i32) {
    %c0_i32 = arith.constant 0 : i32
    %c0_i32_0 = arith.constant 0 : i32
    %c0_i32_1 = arith.constant 0 : i32
    return %arg0, %arg1, %c0_i32, %c0_i32_0 : i32, i32, i32, i32
  }
  func.func @transform_1(%arg0: i32, %arg1: i32) -> (i32, i32, i32, i32) {
    %c16_i32 = arith.constant 16 : i32
    %0 = arith.muli %arg1, %c16_i32 : i32
    %c16_i32_0 = arith.constant 16 : i32
    %1 = arith.addi %0, %c16_i32_0 : i32
    %c0_i32 = arith.constant 0 : i32
    %c0_i32_1 = arith.constant 0 : i32
    %c0_i32_2 = arith.constant 0 : i32
    return %arg0, %1, %c0_i32, %c0_i32_1 : i32, i32, i32, i32
  }
  func.func @transform_2(%arg0: i32, %arg1: i32) -> (i32, i32, i32, i32) {
    %c16_i32 = arith.constant 16 : i32
    %0 = arith.muli %arg1, %c16_i32 : i32
    %c16_i32_0 = arith.constant 16 : i32
    %1 = arith.addi %0, %c16_i32_0 : i32
    %c1_i32 = arith.constant 1 : i32
    %2 = arith.addi %1, %c1_i32 : i32
    %c0_i32 = arith.constant 0 : i32
    %c0_i32_1 = arith.constant 0 : i32
    %c0_i32_2 = arith.constant 0 : i32
    return %arg0, %2, %c0_i32, %c0_i32_1 : i32, i32, i32, i32
  }
  func.func @transform_3(%arg0: i32, %arg1: i32) -> (i32, i32, i32) {
    %c0_i32 = arith.constant 0 : i32
    %c0_i32_0 = arith.constant 0 : i32
    %c0_i32_1 = arith.constant 0 : i32
    %c0_i32_2 = arith.constant 0 : i32
    return %c0_i32, %c0_i32_0, %c0_i32_1 : i32, i32, i32
  }
  func.func @transform_4(%arg0: i32, %arg1: i32) -> (i32, i32) {
    %c0_i32 = arith.constant 0 : i32
    %c0_i32_0 = arith.constant 0 : i32
    %c0_i32_1 = arith.constant 0 : i32
    return %c0_i32, %c0_i32_0 : i32, i32
  }
  func.func @transform_5(%arg0: i32, %arg1: i32) -> (i32, i32, i32, i32) {
    %c0_i32 = arith.constant 0 : i32
    %c0_i32_0 = arith.constant 0 : i32
    %c0_i32_1 = arith.constant 0 : i32
    return %arg0, %arg1, %c0_i32, %c0_i32_0 : i32, i32, i32, i32
  }
}

module attributes {stable_mosaic.version = 11 : i64} {
  func.func @_sse_kernel(%arg0: i32, %arg1: memref<512x64xbf16, #tpu.memory_space<vmem>>, %arg2: memref<512x64xbf16, #tpu.memory_space<vmem>>, %arg3: memref<1x1xf32, #tpu.memory_space<smem>>) attributes {dimension_semantics = [#tpu.dimension_semantics<arbitrary>], iteration_bounds = array<i64: 1>, scalar_prefetch = 0 : i64, scratch_operands = 0 : i64, tpu.core_type = #tpu.core_type<tc>, window_params = [{transform_indices = @transform_0, window_bounds = array<i64: 512, 64>}, {transform_indices = @transform_1, window_bounds = array<i64: 512, 64>}, {transform_indices = @transform_2, window_bounds = array<i64: 1, 1>}]} {
    %c0_i32 = arith.constant 0 : i32
    %0 = arith.cmpi eq, %arg0, %c0_i32 : i32
    %1 = arith.extui %0 : i1 to i32
    %c0_i32_0 = arith.constant 0 : i32
    %2 = arith.cmpi ne, %1, %c0_i32_0 : i32
    scf.if %2 {
      %cst_8 = arith.constant 0.000000e+00 : f32
      %c0_9 = arith.constant 0 : index
      %c0_10 = arith.constant 0 : index
      %16 = memref.load %arg3[%c0_9, %c0_10] : memref<1x1xf32, #tpu.memory_space<smem>>
      memref.store %cst_8, %arg3[%c0_9, %c0_10] : memref<1x1xf32, #tpu.memory_space<smem>>
    } else {
    }
    %c0 = arith.constant 0 : index
    %c0_1 = arith.constant 0 : index
    %3 = vector.load %arg1[%c0, %c0_1] : memref<512x64xbf16, #tpu.memory_space<vmem>>, vector<512x64xbf16>
    %4 = arith.extf %3 : vector<512x64xbf16> to vector<512x64xf32>
    %c0_2 = arith.constant 0 : index
    %c0_3 = arith.constant 0 : index
    %5 = vector.load %arg2[%c0_2, %c0_3] : memref<512x64xbf16, #tpu.memory_space<vmem>>, vector<512x64xbf16>
    %6 = arith.extf %5 : vector<512x64xbf16> to vector<512x64xf32>
    %7 = arith.subf %4, %6 : vector<512x64xf32>
    %c0_4 = arith.constant 0 : index
    %c0_5 = arith.constant 0 : index
    %8 = memref.load %arg3[%c0_4, %c0_5] : memref<1x1xf32, #tpu.memory_space<smem>>
    %9 = arith.mulf %7, %7 : vector<512x64xf32>
    %10 = vector.shape_cast %9 : vector<512x64xf32> to vector<1x512x64xf32>
    %cst = arith.constant dense<0.000000e+00> : vector<1xf32>
    %11 = vector.multi_reduction <add>, %10, %cst [1, 2] : vector<1x512x64xf32> to vector<1xf32>
    %12 = vector.shape_cast %11 : vector<1xf32> to vector<1x1x1xf32>
    %13 = vector.extract %12[0, 0, 0] : f32 from vector<1x1x1xf32>
    %14 = arith.addf %8, %13 : f32
    %c0_6 = arith.constant 0 : index
    %c0_7 = arith.constant 0 : index
    %15 = memref.load %arg3[%c0_6, %c0_7] : memref<1x1xf32, #tpu.memory_space<smem>>
    memref.store %14, %arg3[%c0_6, %c0_7] : memref<1x1xf32, #tpu.memory_space<smem>>
    return
  }
  func.func @transform_0(%arg0: i32) -> (i32, i32) {
    %c0_i32 = arith.constant 0 : i32
    %c0_i32_0 = arith.constant 0 : i32
    return %arg0, %c0_i32 : i32, i32
  }
  func.func @transform_1(%arg0: i32) -> (i32, i32) {
    %c1_i32 = arith.constant 1 : i32
    %0 = arith.addi %arg0, %c1_i32 : i32
    %c0_i32 = arith.constant 0 : i32
    %c0_i32_0 = arith.constant 0 : i32
    return %0, %c0_i32 : i32, i32
  }
  func.func @transform_2(%arg0: i32) -> (i32, i32) {
    %c0_i32 = arith.constant 0 : i32
    %c0_i32_0 = arith.constant 0 : i32
    %c0_i32_1 = arith.constant 0 : i32
    return %c0_i32, %c0_i32_0 : i32, i32
  }
}

module attributes {stable_mosaic.version = 11 : i64} {
  func.func @_maxpool2x2_kernel(%arg0: i32, %arg1: i32, %arg2: memref<1x8x2x8x128xbf16, #tpu.memory_space<vmem>>, %arg3: memref<1x8x8x64xbf16, #tpu.memory_space<vmem>>) attributes {dimension_semantics = [#tpu.dimension_semantics<parallel>, #tpu.dimension_semantics<parallel>], iteration_bounds = array<i64: 4, 1>, scalar_prefetch = 0 : i64, scratch_operands = 0 : i64, tpu.core_type = #tpu.core_type<tc>, window_params = [{transform_indices = @transform_0, window_bounds = array<i64: 1, 8, 2, 8, 128>}, {transform_indices = @transform_1, window_bounds = array<i64: 1, 8, 8, 64>}]} {
    %c0 = arith.constant 0 : index
    %c0_0 = arith.constant 0 : index
    %c0_1 = arith.constant 0 : index
    %c0_2 = arith.constant 0 : index
    %c0_3 = arith.constant 0 : index
    %0 = vector.load %arg2[%c0, %c0_0, %c0_1, %c0_2, %c0_3] : memref<1x8x2x8x128xbf16, #tpu.memory_space<vmem>>, vector<1x8x1x8x128xbf16>
    %1 = vector.shape_cast %0 : vector<1x8x1x8x128xbf16> to vector<8x8x128xbf16>
    %c0_4 = arith.constant 0 : index
    %c0_5 = arith.constant 0 : index
    %c1 = arith.constant 1 : index
    %c0_6 = arith.constant 0 : index
    %c0_7 = arith.constant 0 : index
    %2 = vector.load %arg2[%c0_4, %c0_5, %c1, %c0_6, %c0_7] : memref<1x8x2x8x128xbf16, #tpu.memory_space<vmem>>, vector<1x8x1x8x128xbf16>
    %3 = vector.shape_cast %2 : vector<1x8x1x8x128xbf16> to vector<8x8x128xbf16>
    %4 = arith.maximumf %1, %3 : vector<8x8x128xbf16>
    %5 = vector.extract_strided_slice %4 {offsets = [0, 0, 0], sizes = [8, 8, 64], strides = [1, 1, 1]} : vector<8x8x128xbf16> to vector<8x8x64xbf16>
    %6 = vector.extract_strided_slice %4 {offsets = [0, 0, 64], sizes = [8, 8, 64], strides = [1, 1, 1]} : vector<8x8x128xbf16> to vector<8x8x64xbf16>
    %7 = arith.maximumf %5, %6 : vector<8x8x64xbf16>
    %c0_8 = arith.constant 0 : index
    %c0_9 = arith.constant 0 : index
    %c0_10 = arith.constant 0 : index
    %c0_11 = arith.constant 0 : index
    %8 = vector.load %arg3[%c0_8, %c0_9, %c0_10, %c0_11] : memref<1x8x8x64xbf16, #tpu.memory_space<vmem>>, vector<1x8x8x64xbf16>
    %9 = vector.shape_cast %8 : vector<1x8x8x64xbf16> to vector<8x8x64xbf16>
    %10 = vector.shape_cast %7 : vector<8x8x64xbf16> to vector<1x8x8x64xbf16>
    tpu.vector_store %arg3[%c0_8, %c0_9, %c0_10, %c0_11], %10 {strides = array<i32>} : memref<1x8x8x64xbf16, #tpu.memory_space<vmem>>, vector<1x8x8x64xbf16>,
    return
  }
  func.func @transform_0(%arg0: i32, %arg1: i32) -> (i32, i32, i32, i32, i32) {
    %c0_i32 = arith.constant 0 : i32
    %c0_i32_0 = arith.constant 0 : i32
    %c0_i32_1 = arith.constant 0 : i32
    %c0_i32_2 = arith.constant 0 : i32
    return %arg0, %arg1, %c0_i32, %c0_i32_0, %c0_i32_1 : i32, i32, i32, i32, i32
  }
  func.func @transform_1(%arg0: i32, %arg1: i32) -> (i32, i32, i32, i32) {
    %c0_i32 = arith.constant 0 : i32
    %c0_i32_0 = arith.constant 0 : i32
    %c0_i32_1 = arith.constant 0 : i32
    return %arg0, %arg1, %c0_i32, %c0_i32_0 : i32, i32, i32, i32
  }
}

module attributes {stable_mosaic.version = 11 : i64} {
  func.func @kernel(%arg0: i32, %arg1: i32, %arg2: memref<1x8x10x64xbf16, #tpu.memory_space<vmem>>, %arg3: memref<1x1x10x64xbf16, #tpu.memory_space<vmem>>, %arg4: memref<1x1x10x64xbf16, #tpu.memory_space<vmem>>, %arg5: memref<3x192x128xbf16, #tpu.memory_space<vmem>>, %arg6: memref<1x128xf32, #tpu.memory_space<vmem>>, %arg7: memref<1x8x8x128xbf16, #tpu.memory_space<vmem>>, %arg8: memref<10x10x64xbf16, #tpu.memory_space<vmem>>) attributes {dimension_semantics = [#tpu.dimension_semantics<parallel>, #tpu.dimension_semantics<parallel>], iteration_bounds = array<i64: 4, 1>, scalar_prefetch = 0 : i64, scratch_operands = 1 : i64, tpu.core_type = #tpu.core_type<tc>, window_params = [{transform_indices = @transform_0, window_bounds = array<i64: 1, 8, 10, 64>}, {transform_indices = @transform_1, window_bounds = array<i64: 1, 1, 10, 64>}, {transform_indices = @transform_2, window_bounds = array<i64: 1, 1, 10, 64>}, {pipeline_mode = #tpu.pipeline_mode<synchronous>, transform_indices = @transform_3, window_bounds = array<i64: 3, 192, 128>}, {pipeline_mode = #tpu.pipeline_mode<synchronous>, transform_indices = @transform_4, window_bounds = array<i64: 1, 128>}, {transform_indices = @transform_5, window_bounds = array<i64: 1, 8, 8, 128>}]} {
    %c0 = arith.constant 0 : index
    %c0_0 = arith.constant 0 : index
    %c0_1 = arith.constant 0 : index
    %c0_2 = arith.constant 0 : index
    %0 = vector.load %arg2[%c0, %c0_0, %c0_1, %c0_2] : memref<1x8x10x64xbf16, #tpu.memory_space<vmem>>, vector<1x8x10x64xbf16>
    %1 = vector.shape_cast %0 : vector<1x8x10x64xbf16> to vector<8x10x64xbf16>
    %c0_3 = arith.constant 0 : index
    %c0_4 = arith.constant 0 : index
    %c0_5 = arith.constant 0 : index
    %2 = vector.load %arg8[%c0_3, %c0_4, %c0_5] : memref<10x10x64xbf16, #tpu.memory_space<vmem>>, vector<8x10x64xbf16>
    tpu.vector_store %arg8[%c0_3, %c0_4, %c0_5], %1 {strides = array<i32>} : memref<10x10x64xbf16, #tpu.memory_space<vmem>>, vector<8x10x64xbf16>,
    %c0_6 = arith.constant 0 : index
    %c0_7 = arith.constant 0 : index
    %c0_8 = arith.constant 0 : index
    %c0_9 = arith.constant 0 : index
    %3 = vector.load %arg3[%c0_6, %c0_7, %c0_8, %c0_9] : memref<1x1x10x64xbf16, #tpu.memory_space<vmem>>, vector<1x1x10x64xbf16>
    %4 = vector.shape_cast %3 : vector<1x1x10x64xbf16> to vector<10x64xbf16>
    %c8 = arith.constant 8 : index
    %c0_10 = arith.constant 0 : index
    %c0_11 = arith.constant 0 : index
    %5 = vector.load %arg8[%c8, %c0_10, %c0_11] : memref<10x10x64xbf16, #tpu.memory_space<vmem>>, vector<1x10x64xbf16>
    %6 = vector.shape_cast %5 : vector<1x10x64xbf16> to vector<10x64xbf16>
    %7 = vector.shape_cast %4 : vector<10x64xbf16> to vector<1x10x64xbf16>
    tpu.vector_store %arg8[%c8, %c0_10, %c0_11], %7 {strides = array<i32>} : memref<10x10x64xbf16, #tpu.memory_space<vmem>>, vector<1x10x64xbf16>,
    %c0_12 = arith.constant 0 : index
    %c0_13 = arith.constant 0 : index
    %c0_14 = arith.constant 0 : index
    %c0_15 = arith.constant 0 : index
    %8 = vector.load %arg4[%c0_12, %c0_13, %c0_14, %c0_15] : memref<1x1x10x64xbf16, #tpu.memory_space<vmem>>, vector<1x1x10x64xbf16>
    %9 = vector.shape_cast %8 : vector<1x1x10x64xbf16> to vector<10x64xbf16>
    %c9 = arith.constant 9 : index
    %c0_16 = arith.constant 0 : index
    %c0_17 = arith.constant 0 : index
    %10 = vector.load %arg8[%c9, %c0_16, %c0_17] : memref<10x10x64xbf16, #tpu.memory_space<vmem>>, vector<1x10x64xbf16>
    %11 = vector.shape_cast %10 : vector<1x10x64xbf16> to vector<10x64xbf16>
    %12 = vector.shape_cast %9 : vector<10x64xbf16> to vector<1x10x64xbf16>
    tpu.vector_store %arg8[%c9, %c0_16, %c0_17], %12 {strides = array<i32>} : memref<10x10x64xbf16, #tpu.memory_space<vmem>>, vector<1x10x64xbf16>,
    %cst = arith.constant 0.000000e+00 : f32
    %13 = vector.broadcast %cst : f32 to vector<64x128xf32>
    %c0_18 = arith.constant 0 : index
    %c0_19 = arith.constant 0 : index
    %c0_20 = arith.constant 0 : index
    %14 = vector.load %arg8[%c0_18, %c0_19, %c0_20] : memref<10x10x64xbf16, #tpu.memory_space<vmem>>, vector<8x8x64xbf16>
    %c0_21 = arith.constant 0 : index
    %c1 = arith.constant 1 : index
    %c0_22 = arith.constant 0 : index
    %15 = vector.load %arg8[%c0_21, %c1, %c0_22] : memref<10x10x64xbf16, #tpu.memory_space<vmem>>, vector<8x8x64xbf16>
    %c0_23 = arith.constant 0 : index
    %c2 = arith.constant 2 : index
    %c0_24 = arith.constant 0 : index
    %16 = vector.load %arg8[%c0_23, %c2, %c0_24] : memref<10x10x64xbf16, #tpu.memory_space<vmem>>, vector<8x8x64xbf16>
    %17 = tpu.concatenate %14, %15, %16 in 2 : vector<8x8x64xbf16>, vector<8x8x64xbf16>, vector<8x8x64xbf16> -> vector<8x8x192xbf16>
    %18 = vector.shape_cast %17 : vector<8x8x192xbf16> to vector<64x192xbf16>
    %c0_25 = arith.constant 0 : index
    %c0_26 = arith.constant 0 : index
    %c0_27 = arith.constant 0 : index
    %19 = vector.load %arg5[%c0_25, %c0_26, %c0_27] : memref<3x192x128xbf16, #tpu.memory_space<vmem>>, vector<1x192x128xbf16>
    %20 = vector.shape_cast %19 : vector<1x192x128xbf16> to vector<192x128xbf16>
    %cst_28 = arith.constant dense<0.000000e+00> : vector<64x128xf32>
    %21 = tpu.matmul %18, %20, %cst_28 {dimension_numbers = #tpu.dot_dimension_numbers<[1], [0], [0], [1], [0, 0, 1, 1], [], []>} : vector<64x192xbf16>, vector<192x128xbf16>, vector<64x128xf32> -> vector<64x128xf32>
    %22 = arith.addf %13, %21 : vector<64x128xf32>
    %c1_29 = arith.constant 1 : index
    %c0_30 = arith.constant 0 : index
    %c0_31 = arith.constant 0 : index
    %23 = vector.load %arg8[%c1_29, %c0_30, %c0_31] : memref<10x10x64xbf16, #tpu.memory_space<vmem>>, vector<8x8x64xbf16>
    %c1_32 = arith.constant 1 : index
    %c1_33 = arith.constant 1 : index
    %c0_34 = arith.constant 0 : index
    %24 = vector.load %arg8[%c1_32, %c1_33, %c0_34] : memref<10x10x64xbf16, #tpu.memory_space<vmem>>, vector<8x8x64xbf16>
    %c1_35 = arith.constant 1 : index
    %c2_36 = arith.constant 2 : index
    %c0_37 = arith.constant 0 : index
    %25 = vector.load %arg8[%c1_35, %c2_36, %c0_37] : memref<10x10x64xbf16, #tpu.memory_space<vmem>>, vector<8x8x64xbf16>
    %26 = tpu.concatenate %23, %24, %25 in 2 : vector<8x8x64xbf16>, vector<8x8x64xbf16>, vector<8x8x64xbf16> -> vector<8x8x192xbf16>
    %27 = vector.shape_cast %26 : vector<8x8x192xbf16> to vector<64x192xbf16>
    %c1_38 = arith.constant 1 : index
    %c0_39 = arith.constant 0 : index
    %c0_40 = arith.constant 0 : index
    %28 = vector.load %arg5[%c1_38, %c0_39, %c0_40] : memref<3x192x128xbf16, #tpu.memory_space<vmem>>, vector<1x192x128xbf16>
    %29 = vector.shape_cast %28 : vector<1x192x128xbf16> to vector<192x128xbf16>
    %cst_41 = arith.constant dense<0.000000e+00> : vector<64x128xf32>
    %30 = tpu.matmul %27, %29, %cst_41 {dimension_numbers = #tpu.dot_dimension_numbers<[1], [0], [0], [1], [0, 0, 1, 1], [], []>} : vector<64x192xbf16>, vector<192x128xbf16>, vector<64x128xf32> -> vector<64x128xf32>
    %31 = arith.addf %22, %30 : vector<64x128xf32>
    %c2_42 = arith.constant 2 : index
    %c0_43 = arith.constant 0 : index
    %c0_44 = arith.constant 0 : index
    %32 = vector.load %arg8[%c2_42, %c0_43, %c0_44] : memref<10x10x64xbf16, #tpu.memory_space<vmem>>, vector<8x8x64xbf16>
    %c2_45 = arith.constant 2 : index
    %c1_46 = arith.constant 1 : index
    %c0_47 = arith.constant 0 : index
    %33 = vector.load %arg8[%c2_45, %c1_46, %c0_47] : memref<10x10x64xbf16, #tpu.memory_space<vmem>>, vector<8x8x64xbf16>
    %c2_48 = arith.constant 2 : index
    %c2_49 = arith.constant 2 : index
    %c0_50 = arith.constant 0 : index
    %34 = vector.load %arg8[%c2_48, %c2_49, %c0_50] : memref<10x10x64xbf16, #tpu.memory_space<vmem>>, vector<8x8x64xbf16>
    %35 = tpu.concatenate %32, %33, %34 in 2 : vector<8x8x64xbf16>, vector<8x8x64xbf16>, vector<8x8x64xbf16> -> vector<8x8x192xbf16>
    %36 = vector.shape_cast %35 : vector<8x8x192xbf16> to vector<64x192xbf16>
    %c2_51 = arith.constant 2 : index
    %c0_52 = arith.constant 0 : index
    %c0_53 = arith.constant 0 : index
    %37 = vector.load %arg5[%c2_51, %c0_52, %c0_53] : memref<3x192x128xbf16, #tpu.memory_space<vmem>>, vector<1x192x128xbf16>
    %38 = vector.shape_cast %37 : vector<1x192x128xbf16> to vector<192x128xbf16>
    %cst_54 = arith.constant dense<0.000000e+00> : vector<64x128xf32>
    %39 = tpu.matmul %36, %38, %cst_54 {dimension_numbers = #tpu.dot_dimension_numbers<[1], [0], [0], [1], [0, 0, 1, 1], [], []>} : vector<64x192xbf16>, vector<192x128xbf16>, vector<64x128xf32> -> vector<64x128xf32>
    %40 = arith.addf %31, %39 : vector<64x128xf32>
    %c0_55 = arith.constant 0 : index
    %c0_56 = arith.constant 0 : index
    %41 = vector.load %arg6[%c0_55, %c0_56] : memref<1x128xf32, #tpu.memory_space<vmem>>, vector<1x128xf32>
    %42 = vector.broadcast %41 : vector<1x128xf32> to vector<64x128xf32>
    %43 = arith.addf %40, %42 : vector<64x128xf32>
    %cst_57 = arith.constant 0.000000e+00 : f32
    %44 = vector.broadcast %cst_57 : f32 to vector<64x128xf32>
    %45 = arith.maximumf %43, %44 : vector<64x128xf32>
    %46 = vector.shape_cast %45 : vector<64x128xf32> to vector<8x8x128xf32>
    %47 = arith.truncf %46 : vector<8x8x128xf32> to vector<8x8x128xbf16>
    %c0_58 = arith.constant 0 : index
    %c0_59 = arith.constant 0 : index
    %c0_60 = arith.constant 0 : index
    %c0_61 = arith.constant 0 : index
    %48 = vector.load %arg7[%c0_58, %c0_59, %c0_60, %c0_61] : memref<1x8x8x128xbf16, #tpu.memory_space<vmem>>, vector<1x8x8x128xbf16>
    %49 = vector.shape_cast %48 : vector<1x8x8x128xbf16> to vector<8x8x128xbf16>
    %50 = vector.shape_cast %47 : vector<8x8x128xbf16> to vector<1x8x8x128xbf16>
    tpu.vector_store %arg7[%c0_58, %c0_59, %c0_60, %c0_61], %50 {strides = array<i32>} : memref<1x8x8x128xbf16, #tpu.memory_space<vmem>>, vector<1x8x8x128xbf16>,
    return
  }
  func.func @transform_0(%arg0: i32, %arg1: i32) -> (i32, i32, i32, i32) {
    %c0_i32 = arith.constant 0 : i32
    %c0_i32_0 = arith.constant 0 : i32
    %c0_i32_1 = arith.constant 0 : i32
    return %arg0, %arg1, %c0_i32, %c0_i32_0 : i32, i32, i32, i32
  }
  func.func @transform_1(%arg0: i32, %arg1: i32) -> (i32, i32, i32, i32) {
    %c8_i32 = arith.constant 8 : i32
    %0 = arith.muli %arg1, %c8_i32 : i32
    %c8_i32_0 = arith.constant 8 : i32
    %1 = arith.addi %0, %c8_i32_0 : i32
    %c0_i32 = arith.constant 0 : i32
    %c0_i32_1 = arith.constant 0 : i32
    %c0_i32_2 = arith.constant 0 : i32
    return %arg0, %1, %c0_i32, %c0_i32_1 : i32, i32, i32, i32
  }
  func.func @transform_2(%arg0: i32, %arg1: i32) -> (i32, i32, i32, i32) {
    %c8_i32 = arith.constant 8 : i32
    %0 = arith.muli %arg1, %c8_i32 : i32
    %c8_i32_0 = arith.constant 8 : i32
    %1 = arith.addi %0, %c8_i32_0 : i32
    %c1_i32 = arith.constant 1 : i32
    %2 = arith.addi %1, %c1_i32 : i32
    %c0_i32 = arith.constant 0 : i32
    %c0_i32_1 = arith.constant 0 : i32
    %c0_i32_2 = arith.constant 0 : i32
    return %arg0, %2, %c0_i32, %c0_i32_1 : i32, i32, i32, i32
  }
  func.func @transform_3(%arg0: i32, %arg1: i32) -> (i32, i32, i32) {
    %c0_i32 = arith.constant 0 : i32
    %c0_i32_0 = arith.constant 0 : i32
    %c0_i32_1 = arith.constant 0 : i32
    %c0_i32_2 = arith.constant 0 : i32
    return %c0_i32, %c0_i32_0, %c0_i32_1 : i32, i32, i32
  }
  func.func @transform_4(%arg0: i32, %arg1: i32) -> (i32, i32) {
    %c0_i32 = arith.constant 0 : i32
    %c0_i32_0 = arith.constant 0 : i32
    %c0_i32_1 = arith.constant 0 : i32
    return %c0_i32, %c0_i32_0 : i32, i32
  }
  func.func @transform_5(%arg0: i32, %arg1: i32) -> (i32, i32, i32, i32) {
    %c0_i32 = arith.constant 0 : i32
    %c0_i32_0 = arith.constant 0 : i32
    %c0_i32_1 = arith.constant 0 : i32
    return %arg0, %arg1, %c0_i32, %c0_i32_0 : i32, i32, i32, i32
  }
}

module attributes {stable_mosaic.version = 11 : i64} {
  func.func @kernel(%arg0: i32, %arg1: i32, %arg2: memref<1x8x10x128xbf16, #tpu.memory_space<vmem>>, %arg3: memref<1x1x10x128xbf16, #tpu.memory_space<vmem>>, %arg4: memref<1x1x10x128xbf16, #tpu.memory_space<vmem>>, %arg5: memref<3x384x128xbf16, #tpu.memory_space<vmem>>, %arg6: memref<1x128xf32, #tpu.memory_space<vmem>>, %arg7: memref<1x8x8x128xbf16, #tpu.memory_space<vmem>>, %arg8: memref<10x10x128xbf16, #tpu.memory_space<vmem>>) attributes {dimension_semantics = [#tpu.dimension_semantics<parallel>, #tpu.dimension_semantics<parallel>], iteration_bounds = array<i64: 4, 1>, scalar_prefetch = 0 : i64, scratch_operands = 1 : i64, tpu.core_type = #tpu.core_type<tc>, window_params = [{transform_indices = @transform_0, window_bounds = array<i64: 1, 8, 10, 128>}, {transform_indices = @transform_1, window_bounds = array<i64: 1, 1, 10, 128>}, {transform_indices = @transform_2, window_bounds = array<i64: 1, 1, 10, 128>}, {pipeline_mode = #tpu.pipeline_mode<synchronous>, transform_indices = @transform_3, window_bounds = array<i64: 3, 384, 128>}, {pipeline_mode = #tpu.pipeline_mode<synchronous>, transform_indices = @transform_4, window_bounds = array<i64: 1, 128>}, {transform_indices = @transform_5, window_bounds = array<i64: 1, 8, 8, 128>}]} {
    %c0 = arith.constant 0 : index
    %c0_0 = arith.constant 0 : index
    %c0_1 = arith.constant 0 : index
    %c0_2 = arith.constant 0 : index
    %0 = vector.load %arg2[%c0, %c0_0, %c0_1, %c0_2] : memref<1x8x10x128xbf16, #tpu.memory_space<vmem>>, vector<1x8x10x128xbf16>
    %1 = vector.shape_cast %0 : vector<1x8x10x128xbf16> to vector<8x10x128xbf16>
    %c0_3 = arith.constant 0 : index
    %c0_4 = arith.constant 0 : index
    %c0_5 = arith.constant 0 : index
    %2 = vector.load %arg8[%c0_3, %c0_4, %c0_5] : memref<10x10x128xbf16, #tpu.memory_space<vmem>>, vector<8x10x128xbf16>
    tpu.vector_store %arg8[%c0_3, %c0_4, %c0_5], %1 {strides = array<i32>} : memref<10x10x128xbf16, #tpu.memory_space<vmem>>, vector<8x10x128xbf16>,
    %c0_6 = arith.constant 0 : index
    %c0_7 = arith.constant 0 : index
    %c0_8 = arith.constant 0 : index
    %c0_9 = arith.constant 0 : index
    %3 = vector.load %arg3[%c0_6, %c0_7, %c0_8, %c0_9] : memref<1x1x10x128xbf16, #tpu.memory_space<vmem>>, vector<1x1x10x128xbf16>
    %4 = vector.shape_cast %3 : vector<1x1x10x128xbf16> to vector<10x128xbf16>
    %c8 = arith.constant 8 : index
    %c0_10 = arith.constant 0 : index
    %c0_11 = arith.constant 0 : index
    %5 = vector.load %arg8[%c8, %c0_10, %c0_11] : memref<10x10x128xbf16, #tpu.memory_space<vmem>>, vector<1x10x128xbf16>
    %6 = vector.shape_cast %5 : vector<1x10x128xbf16> to vector<10x128xbf16>
    %7 = vector.shape_cast %4 : vector<10x128xbf16> to vector<1x10x128xbf16>
    tpu.vector_store %arg8[%c8, %c0_10, %c0_11], %7 {strides = array<i32>} : memref<10x10x128xbf16, #tpu.memory_space<vmem>>, vector<1x10x128xbf16>,
    %c0_12 = arith.constant 0 : index
    %c0_13 = arith.constant 0 : index
    %c0_14 = arith.constant 0 : index
    %c0_15 = arith.constant 0 : index
    %8 = vector.load %arg4[%c0_12, %c0_13, %c0_14, %c0_15] : memref<1x1x10x128xbf16, #tpu.memory_space<vmem>>, vector<1x1x10x128xbf16>
    %9 = vector.shape_cast %8 : vector<1x1x10x128xbf16> to vector<10x128xbf16>
    %c9 = arith.constant 9 : index
    %c0_16 = arith.constant 0 : index
    %c0_17 = arith.constant 0 : index
    %10 = vector.load %arg8[%c9, %c0_16, %c0_17] : memref<10x10x128xbf16, #tpu.memory_space<vmem>>, vector<1x10x128xbf16>
    %11 = vector.shape_cast %10 : vector<1x10x128xbf16> to vector<10x128xbf16>
    %12 = vector.shape_cast %9 : vector<10x128xbf16> to vector<1x10x128xbf16>
    tpu.vector_store %arg8[%c9, %c0_16, %c0_17], %12 {strides = array<i32>} : memref<10x10x128xbf16, #tpu.memory_space<vmem>>, vector<1x10x128xbf16>,
    %cst = arith.constant 0.000000e+00 : f32
    %13 = vector.broadcast %cst : f32 to vector<64x128xf32>
    %c0_18 = arith.constant 0 : index
    %c0_19 = arith.constant 0 : index
    %c0_20 = arith.constant 0 : index
    %14 = vector.load %arg8[%c0_18, %c0_19, %c0_20] : memref<10x10x128xbf16, #tpu.memory_space<vmem>>, vector<8x8x128xbf16>
    %c0_21 = arith.constant 0 : index
    %c1 = arith.constant 1 : index
    %c0_22 = arith.constant 0 : index
    %15 = vector.load %arg8[%c0_21, %c1, %c0_22] : memref<10x10x128xbf16, #tpu.memory_space<vmem>>, vector<8x8x128xbf16>
    %c0_23 = arith.constant 0 : index
    %c2 = arith.constant 2 : index
    %c0_24 = arith.constant 0 : index
    %16 = vector.load %arg8[%c0_23, %c2, %c0_24] : memref<10x10x128xbf16, #tpu.memory_space<vmem>>, vector<8x8x128xbf16>
    %17 = tpu.concatenate %14, %15, %16 in 2 : vector<8x8x128xbf16>, vector<8x8x128xbf16>, vector<8x8x128xbf16> -> vector<8x8x384xbf16>
    %18 = vector.shape_cast %17 : vector<8x8x384xbf16> to vector<64x384xbf16>
    %c0_25 = arith.constant 0 : index
    %c0_26 = arith.constant 0 : index
    %c0_27 = arith.constant 0 : index
    %19 = vector.load %arg5[%c0_25, %c0_26, %c0_27] : memref<3x384x128xbf16, #tpu.memory_space<vmem>>, vector<1x384x128xbf16>
    %20 = vector.shape_cast %19 : vector<1x384x128xbf16> to vector<384x128xbf16>
    %cst_28 = arith.constant dense<0.000000e+00> : vector<64x128xf32>
    %21 = tpu.matmul %18, %20, %cst_28 {dimension_numbers = #tpu.dot_dimension_numbers<[1], [0], [0], [1], [0, 0, 1, 1], [], []>} : vector<64x384xbf16>, vector<384x128xbf16>, vector<64x128xf32> -> vector<64x128xf32>
    %22 = arith.addf %13, %21 : vector<64x128xf32>
    %c1_29 = arith.constant 1 : index
    %c0_30 = arith.constant 0 : index
    %c0_31 = arith.constant 0 : index
    %23 = vector.load %arg8[%c1_29, %c0_30, %c0_31] : memref<10x10x128xbf16, #tpu.memory_space<vmem>>, vector<8x8x128xbf16>
    %c1_32 = arith.constant 1 : index
    %c1_33 = arith.constant 1 : index
    %c0_34 = arith.constant 0 : index
    %24 = vector.load %arg8[%c1_32, %c1_33, %c0_34] : memref<10x10x128xbf16, #tpu.memory_space<vmem>>, vector<8x8x128xbf16>
    %c1_35 = arith.constant 1 : index
    %c2_36 = arith.constant 2 : index
    %c0_37 = arith.constant 0 : index
    %25 = vector.load %arg8[%c1_35, %c2_36, %c0_37] : memref<10x10x128xbf16, #tpu.memory_space<vmem>>, vector<8x8x128xbf16>
    %26 = tpu.concatenate %23, %24, %25 in 2 : vector<8x8x128xbf16>, vector<8x8x128xbf16>, vector<8x8x128xbf16> -> vector<8x8x384xbf16>
    %27 = vector.shape_cast %26 : vector<8x8x384xbf16> to vector<64x384xbf16>
    %c1_38 = arith.constant 1 : index
    %c0_39 = arith.constant 0 : index
    %c0_40 = arith.constant 0 : index
    %28 = vector.load %arg5[%c1_38, %c0_39, %c0_40] : memref<3x384x128xbf16, #tpu.memory_space<vmem>>, vector<1x384x128xbf16>
    %29 = vector.shape_cast %28 : vector<1x384x128xbf16> to vector<384x128xbf16>
    %cst_41 = arith.constant dense<0.000000e+00> : vector<64x128xf32>
    %30 = tpu.matmul %27, %29, %cst_41 {dimension_numbers = #tpu.dot_dimension_numbers<[1], [0], [0], [1], [0, 0, 1, 1], [], []>} : vector<64x384xbf16>, vector<384x128xbf16>, vector<64x128xf32> -> vector<64x128xf32>
    %31 = arith.addf %22, %30 : vector<64x128xf32>
    %c2_42 = arith.constant 2 : index
    %c0_43 = arith.constant 0 : index
    %c0_44 = arith.constant 0 : index
    %32 = vector.load %arg8[%c2_42, %c0_43, %c0_44] : memref<10x10x128xbf16, #tpu.memory_space<vmem>>, vector<8x8x128xbf16>
    %c2_45 = arith.constant 2 : index
    %c1_46 = arith.constant 1 : index
    %c0_47 = arith.constant 0 : index
    %33 = vector.load %arg8[%c2_45, %c1_46, %c0_47] : memref<10x10x128xbf16, #tpu.memory_space<vmem>>, vector<8x8x128xbf16>
    %c2_48 = arith.constant 2 : index
    %c2_49 = arith.constant 2 : index
    %c0_50 = arith.constant 0 : index
    %34 = vector.load %arg8[%c2_48, %c2_49, %c0_50] : memref<10x10x128xbf16, #tpu.memory_space<vmem>>, vector<8x8x128xbf16>
    %35 = tpu.concatenate %32, %33, %34 in 2 : vector<8x8x128xbf16>, vector<8x8x128xbf16>, vector<8x8x128xbf16> -> vector<8x8x384xbf16>
    %36 = vector.shape_cast %35 : vector<8x8x384xbf16> to vector<64x384xbf16>
    %c2_51 = arith.constant 2 : index
    %c0_52 = arith.constant 0 : index
    %c0_53 = arith.constant 0 : index
    %37 = vector.load %arg5[%c2_51, %c0_52, %c0_53] : memref<3x384x128xbf16, #tpu.memory_space<vmem>>, vector<1x384x128xbf16>
    %38 = vector.shape_cast %37 : vector<1x384x128xbf16> to vector<384x128xbf16>
    %cst_54 = arith.constant dense<0.000000e+00> : vector<64x128xf32>
    %39 = tpu.matmul %36, %38, %cst_54 {dimension_numbers = #tpu.dot_dimension_numbers<[1], [0], [0], [1], [0, 0, 1, 1], [], []>} : vector<64x384xbf16>, vector<384x128xbf16>, vector<64x128xf32> -> vector<64x128xf32>
    %40 = arith.addf %31, %39 : vector<64x128xf32>
    %c0_55 = arith.constant 0 : index
    %c0_56 = arith.constant 0 : index
    %41 = vector.load %arg6[%c0_55, %c0_56] : memref<1x128xf32, #tpu.memory_space<vmem>>, vector<1x128xf32>
    %42 = vector.broadcast %41 : vector<1x128xf32> to vector<64x128xf32>
    %43 = arith.addf %40, %42 : vector<64x128xf32>
    %cst_57 = arith.constant 0.000000e+00 : f32
    %44 = vector.broadcast %cst_57 : f32 to vector<64x128xf32>
    %45 = arith.maximumf %43, %44 : vector<64x128xf32>
    %46 = vector.shape_cast %45 : vector<64x128xf32> to vector<8x8x128xf32>
    %47 = arith.truncf %46 : vector<8x8x128xf32> to vector<8x8x128xbf16>
    %c0_58 = arith.constant 0 : index
    %c0_59 = arith.constant 0 : index
    %c0_60 = arith.constant 0 : index
    %c0_61 = arith.constant 0 : index
    %48 = vector.load %arg7[%c0_58, %c0_59, %c0_60, %c0_61] : memref<1x8x8x128xbf16, #tpu.memory_space<vmem>>, vector<1x8x8x128xbf16>
    %49 = vector.shape_cast %48 : vector<1x8x8x128xbf16> to vector<8x8x128xbf16>
    %50 = vector.shape_cast %47 : vector<8x8x128xbf16> to vector<1x8x8x128xbf16>
    tpu.vector_store %arg7[%c0_58, %c0_59, %c0_60, %c0_61], %50 {strides = array<i32>} : memref<1x8x8x128xbf16, #tpu.memory_space<vmem>>, vector<1x8x8x128xbf16>,
    return
  }
  func.func @transform_0(%arg0: i32, %arg1: i32) -> (i32, i32, i32, i32) {
    %c0_i32 = arith.constant 0 : i32
    %c0_i32_0 = arith.constant 0 : i32
    %c0_i32_1 = arith.constant 0 : i32
    return %arg0, %arg1, %c0_i32, %c0_i32_0 : i32, i32, i32, i32
  }
  func.func @transform_1(%arg0: i32, %arg1: i32) -> (i32, i32, i32, i32) {
    %c8_i32 = arith.constant 8 : i32
    %0 = arith.muli %arg1, %c8_i32 : i32
    %c8_i32_0 = arith.constant 8 : i32
    %1 = arith.addi %0, %c8_i32_0 : i32
    %c0_i32 = arith.constant 0 : i32
    %c0_i32_1 = arith.constant 0 : i32
    %c0_i32_2 = arith.constant 0 : i32
    return %arg0, %1, %c0_i32, %c0_i32_1 : i32, i32, i32, i32
  }
  func.func @transform_2(%arg0: i32, %arg1: i32) -> (i32, i32, i32, i32) {
    %c8_i32 = arith.constant 8 : i32
    %0 = arith.muli %arg1, %c8_i32 : i32
    %c8_i32_0 = arith.constant 8 : i32
    %1 = arith.addi %0, %c8_i32_0 : i32
    %c1_i32 = arith.constant 1 : i32
    %2 = arith.addi %1, %c1_i32 : i32
    %c0_i32 = arith.constant 0 : i32
    %c0_i32_1 = arith.constant 0 : i32
    %c0_i32_2 = arith.constant 0 : i32
    return %arg0, %2, %c0_i32, %c0_i32_1 : i32, i32, i32, i32
  }
  func.func @transform_3(%arg0: i32, %arg1: i32) -> (i32, i32, i32) {
    %c0_i32 = arith.constant 0 : i32
    %c0_i32_0 = arith.constant 0 : i32
    %c0_i32_1 = arith.constant 0 : i32
    %c0_i32_2 = arith.constant 0 : i32
    return %c0_i32, %c0_i32_0, %c0_i32_1 : i32, i32, i32
  }
  func.func @transform_4(%arg0: i32, %arg1: i32) -> (i32, i32) {
    %c0_i32 = arith.constant 0 : i32
    %c0_i32_0 = arith.constant 0 : i32
    %c0_i32_1 = arith.constant 0 : i32
    return %c0_i32, %c0_i32_0 : i32, i32
  }
  func.func @transform_5(%arg0: i32, %arg1: i32) -> (i32, i32, i32, i32) {
    %c0_i32 = arith.constant 0 : i32
    %c0_i32_0 = arith.constant 0 : i32
    %c0_i32_1 = arith.constant 0 : i32
    return %arg0, %arg1, %c0_i32, %c0_i32_0 : i32, i32, i32, i32
  }
}

module attributes {stable_mosaic.version = 11 : i64} {
  func.func @_sse_kernel(%arg0: i32, %arg1: memref<128x128xbf16, #tpu.memory_space<vmem>>, %arg2: memref<128x128xbf16, #tpu.memory_space<vmem>>, %arg3: memref<1x1xf32, #tpu.memory_space<smem>>) attributes {dimension_semantics = [#tpu.dimension_semantics<arbitrary>], iteration_bounds = array<i64: 1>, scalar_prefetch = 0 : i64, scratch_operands = 0 : i64, tpu.core_type = #tpu.core_type<tc>, window_params = [{transform_indices = @transform_0, window_bounds = array<i64: 128, 128>}, {transform_indices = @transform_1, window_bounds = array<i64: 128, 128>}, {transform_indices = @transform_2, window_bounds = array<i64: 1, 1>}]} {
    %c0_i32 = arith.constant 0 : i32
    %0 = arith.cmpi eq, %arg0, %c0_i32 : i32
    %1 = arith.extui %0 : i1 to i32
    %c0_i32_0 = arith.constant 0 : i32
    %2 = arith.cmpi ne, %1, %c0_i32_0 : i32
    scf.if %2 {
      %cst_8 = arith.constant 0.000000e+00 : f32
      %c0_9 = arith.constant 0 : index
      %c0_10 = arith.constant 0 : index
      %16 = memref.load %arg3[%c0_9, %c0_10] : memref<1x1xf32, #tpu.memory_space<smem>>
      memref.store %cst_8, %arg3[%c0_9, %c0_10] : memref<1x1xf32, #tpu.memory_space<smem>>
    } else {
    }
    %c0 = arith.constant 0 : index
    %c0_1 = arith.constant 0 : index
    %3 = vector.load %arg1[%c0, %c0_1] : memref<128x128xbf16, #tpu.memory_space<vmem>>, vector<128x128xbf16>
    %4 = arith.extf %3 : vector<128x128xbf16> to vector<128x128xf32>
    %c0_2 = arith.constant 0 : index
    %c0_3 = arith.constant 0 : index
    %5 = vector.load %arg2[%c0_2, %c0_3] : memref<128x128xbf16, #tpu.memory_space<vmem>>, vector<128x128xbf16>
    %6 = arith.extf %5 : vector<128x128xbf16> to vector<128x128xf32>
    %7 = arith.subf %4, %6 : vector<128x128xf32>
    %c0_4 = arith.constant 0 : index
    %c0_5 = arith.constant 0 : index
    %8 = memref.load %arg3[%c0_4, %c0_5] : memref<1x1xf32, #tpu.memory_space<smem>>
    %9 = arith.mulf %7, %7 : vector<128x128xf32>
    %10 = vector.shape_cast %9 : vector<128x128xf32> to vector<1x128x128xf32>
    %cst = arith.constant dense<0.000000e+00> : vector<1xf32>
    %11 = vector.multi_reduction <add>, %10, %cst [1, 2] : vector<1x128x128xf32> to vector<1xf32>
    %12 = vector.shape_cast %11 : vector<1xf32> to vector<1x1x1xf32>
    %13 = vector.extract %12[0, 0, 0] : f32 from vector<1x1x1xf32>
    %14 = arith.addf %8, %13 : f32
    %c0_6 = arith.constant 0 : index
    %c0_7 = arith.constant 0 : index
    %15 = memref.load %arg3[%c0_6, %c0_7] : memref<1x1xf32, #tpu.memory_space<smem>>
    memref.store %14, %arg3[%c0_6, %c0_7] : memref<1x1xf32, #tpu.memory_space<smem>>
    return
  }
  func.func @transform_0(%arg0: i32) -> (i32, i32) {
    %c0_i32 = arith.constant 0 : i32
    %c0_i32_0 = arith.constant 0 : i32
    return %arg0, %c0_i32 : i32, i32
  }
  func.func @transform_1(%arg0: i32) -> (i32, i32) {
    %c1_i32 = arith.constant 1 : i32
    %0 = arith.addi %arg0, %c1_i32 : i32
    %c0_i32 = arith.constant 0 : i32
    %c0_i32_0 = arith.constant 0 : i32
    return %0, %c0_i32 : i32, i32
  }
  func.func @transform_2(%arg0: i32) -> (i32, i32) {
    %c0_i32 = arith.constant 0 : i32
    %c0_i32_0 = arith.constant 0 : i32
    %c0_i32_1 = arith.constant 0 : i32
    return %c0_i32, %c0_i32_0 : i32, i32
  }
}

</mosaic_0001>

<llo_original>
// kernel: _lambda_.12
$region0: #{_lambda_.12}
  #allocation0 [shape = 'u32[]', space=smem, size = 0x4, offset = 0x4, fixed_abs, tag = 'smem constant byte address 0x4 - core index']
  #allocation1 [shape = 'u32[72,128]{1,0:T(1,128)}', space=vmem, size = 0x9000, scoped, tag = 'internal scratch']
  %s0 = inlined_call_operand.vmem [shape: bf16[1024,64], index: 0, kind: input, shape index: {}, may-alias: {0,1}]
  %s1 = inlined_call_operand.vmem [shape: bf16[1024,64], index: 1, kind: input, shape index: {}, may-alias: {0,1}]
  %s2 = inlined_call_operand.hbm [shape: f32[1,1], index: 2, kind: output, shape index: {}]
  %s3 = sld [smem:[#allocation0]]
  $region22: #{_lambda_.12} parent=0
    _
  %s5 = ssub.s32 1, %s3
  %s6 = scalar_select 0, %s5, %s3
  $region1: #{_lambda_.12} parent=0
    #allocation2 [shape = 'u8[512]{0}', space=smem, size = 0x200, scoped, tag = 'output window, operand 0, single buffered']
    #allocation3 [shape = 's32[1]{0}', space=sflag, size = 0x4, scoped, tag = 'scoped memory for _lambda_.12']
    %7 = vsyncpa [#allocation3], 0
    // Predicated region
    $region2: #{_lambda_.12} parent=1 // pred_check
      _
    $region3: #{_lambda_.12} parent=1 // pred_check_branch
      %9 = sbr.rel (0) target = $region5
    $region4: #{_lambda_.12} parent=1 // pred_region
      _
    $region5: #{_lambda_.12} parent=1 // pred_fallthru
      _
    // Predicated region
    $region6: #{_lambda_.12} parent=1 // pred_check
      _
    $region7: #{_lambda_.12} parent=1 // pred_check_branch
      %11 = sbr.rel (0) target = $region9
    $region8: #{_lambda_.12} parent=1 // pred_region
      %s12 = sadd.s32 0, 1
      %s13 = smul.u32 64, %s12
      %p14 = scmp.lt.s32.totalorder %s13, 127
      %s15 = scalar_select %p14, %s13, 127
      %s16 = smul.addr %s15, 4
      %s17 = scalar_lea.vmem %s1, %s16
      %s18 = sadd.s32 0, 1
      %s19 = smul.u32 64, %s18
    $region9: #{_lambda_.12} parent=1 // pred_fallthru
      _
    %s20 = sadd.s32 0, 1
    %s21 = smul.u32 64, %s20
    %p22 = scmp.lt.s32.totalorder %s21, 127
    %s23 = scalar_select %p22, %s21, 127
    %s24 = smul.addr %s23, 4
    %s25 = scalar_lea.vmem %s1, %s24
    %s26 = sadd.s32 0, 1
    %s27 = smul.u32 64, %s26
    %p28 = scmp.lt.s32.totalorder %s27, 127
    %s29 = scalar_select %p28, %s27, 127
    %s30 = smul.addr %s29, 4
    %s31 = scalar_lea.vmem %s1, %s30
    %s32 = sadd.s32 0, 1
    %s33 = smul.u32 64, %s32
    %p34 = scmp.eq.s32.totalorder 0, 0
    // Predicated region
    $region10: #{_lambda_.12} parent=1 // pred_check
      %p35 = pneg %p34
    $region11: #{_lambda_.12} parent=1 // pred_check_branch
      %37 = sbr.rel (%p35) target = $region13
    $region12: #{_lambda_.12} parent=1 // pred_region
      %s38 = scalar_lea.smem [#allocation2], 0
      %39 = sst [smem:[%s38]] 0.0
    $region13: #{_lambda_.12} parent=1 // pred_fallthru
      _
    %v40 = vld [vmem:[%s0] sm:$0xf]
    %v41 = vld [vmem:[%s0 + $0x4] sm:$0xf]
    %v42 = vld [vmem:[%s0 + $0x8] sm:$0xf]
    %v43 = vld [vmem:[%s0 + $0xc] sm:$0xf]
    %v44 = vld [vmem:[%s0 + $0x10] sm:$0xf]
    %v45 = vld [vmem:[%s0 + $0x14] sm:$0xf]
    %v46 = vld [vmem:[%s0 + $0x18] sm:$0xf]
    %v47 = vld [vmem:[%s0 + $0x1c] sm:$0xf]
    %v48 = vld [vmem:[%s0 + $0x20] sm:$0xf]
    %v49 = vld [vmem:[%s0 + $0x24] sm:$0xf]
    %v50 = vld [vmem:[%s0 + $0x28] sm:$0xf]
    %v51 = vld [vmem:[%s0 + $0x2c] sm:$0xf]
    %v52 = vld [vmem:[%s0 + $0x30] sm:$0xf]
    %v53 = vld [vmem:[%s0 + $0x34] sm:$0xf]
    %v54 = vld [vmem:[%s0 + $0x38] sm:$0xf]
    %v55 = vld [vmem:[%s0 + $0x3c] sm:$0xf]
    %v56 = vld [vmem:[%s0 + $0x40] sm:$0xf]
    %v57 = vld [vmem:[%s0 + $0x44] sm:$0xf]
    %v58 = vld [vmem:[%s0 + $0x48] sm:$0xf]
    %v59 = vld [vmem:[%s0 + $0x4c] sm:$0xf]
    %v60 = vld [vmem:[%s0 + $0x50] sm:$0xf]
    %v61 = vld [vmem:[%s0 + $0x54] sm:$0xf]
    %v62 = vld [vmem:[%s0 + $0x58] sm:$0xf]
    %v63 = vld [vmem:[%s0 + $0x5c] sm:$0xf]
    %v64 = vld [vmem:[%s0 + $0x60] sm:$0xf]
    %v65 = vld [vmem:[%s0 + $0x64] sm:$0xf]
    %v66 = vld [vmem:[%s0 + $0x68] sm:$0xf]
    %v67 = vld [vmem:[%s0 + $0x6c] sm:$0xf]
    %v68 = vld [vmem:[%s0 + $0x70] sm:$0xf]
    %v69 = vld [vmem:[%s0 + $0x74] sm:$0xf]
    %v70 = vld [vmem:[%s0 + $0x78] sm:$0xf]
    %v71 = vld [vmem:[%s0 + $0x7c] sm:$0xf]
    %v72 = vld [vmem:[%s0 + $0x80] sm:$0xf]
    %v73 = vld [vmem:[%s0 + $0x84] sm:$0xf]
    %v74 = vld [vmem:[%s0 + $0x88] sm:$0xf]
    %v75 = vld [vmem:[%s0 + $0x8c] sm:$0xf]
    %v76 = vld [vmem:[%s0 + $0x90] sm:$0xf]
    %v77 = vld [vmem:[%s0 + $0x94] sm:$0xf]
    %v78 = vld [vmem:[%s0 + $0x98] sm:$0xf]
    %v79 = vld [vmem:[%s0 + $0x9c] sm:$0xf]
    %v80 = vld [vmem:[%s0 + $0xa0] sm:$0xf]
    %v81 = vld [vmem:[%s0 + $0xa4] sm:$0xf]
    %v82 = vld [vmem:[%s0 + $0xa8] sm:$0xf]
    %v83 = vld [vmem:[%s0 + $0xac] sm:$0xf]
    %v84 = vld [vmem:[%s0 + $0xb0] sm:$0xf]
    %v85 = vld [vmem:[%s0 + $0xb4] sm:$0xf]
    %v86 = vld [vmem:[%s0 + $0xb8] sm:$0xf]
    %v87 = vld [vmem:[%s0 + $0xbc] sm:$0xf]
    %v88 = vld [vmem:[%s0 + $0xc0] sm:$0xf]
    %v89 = vld [vmem:[%s0 + $0xc4] sm:$0xf]
    %v90 = vld [vmem:[%s0 + $0xc8] sm:$0xf]
    %v91 = vld [vmem:[%s0 + $0xcc] sm:$0xf]
    %v92 = vld [vmem:[%s0 + $0xd0] sm:$0xf]
    %v93 = vld [vmem:[%s0 + $0xd4] sm:$0xf]
    %v94 = vld [vmem:[%s0 + $0xd8] sm:$0xf]
    %v95 = vld [vmem:[%s0 + $0xdc] sm:$0xf]
    %v96 = vld [vmem:[%s0 + $0xe0] sm:$0xf]
    %v97 = vld [vmem:[%s0 + $0xe4] sm:$0xf]
    %v98 = vld [vmem:[%s0 + $0xe8] sm:$0xf]
    %v99 = vld [vmem:[%s0 + $0xec] sm:$0xf]
    %v100 = vld [vmem:[%s0 + $0xf0] sm:$0xf]
    %v101 = vld [vmem:[%s0 + $0xf4] sm:$0xf]
    %v102 = vld [vmem:[%s0 + $0xf8] sm:$0xf]
    %v103 = vld [vmem:[%s0 + $0xfc] sm:$0xf]
    %v104 = vunpack.c.l.bf16 %v40
    %v105 = vunpack.c.l.bf16 %v41
    %v106 = vunpack.c.l.bf16 %v42
    %v107 = vunpack.c.l.bf16 %v43
    %v108 = vunpack.c.l.bf16 %v44
    %v109 = vunpack.c.l.bf16 %v45
    %v110 = vunpack.c.l.bf16 %v46
    %v111 = vunpack.c.l.bf16 %v47
    %v112 = vunpack.c.l.bf16 %v48
    %v113 = vunpack.c.l.bf16 %v49
    %v114 = vunpack.c.l.bf16 %v50
    %v115 = vunpack.c.l.bf16 %v51
    %v116 = vunpack.c.l.bf16 %v52
    %v117 = vunpack.c.l.bf16 %v53
    %v118 = vunpack.c.l.bf16 %v54
    %v119 = vunpack.c.l.bf16 %v55
    %v120 = vunpack.c.l.bf16 %v56
    %v121 = vunpack.c.l.bf16 %v57
    %v122 = vunpack.c.l.bf16 %v58
    %v123 = vunpack.c.l.bf16 %v59
    %v124 = vunpack.c.l.bf16 %v60
    %v125 = vunpack.c.l.bf16 %v61
    %v126 = vunpack.c.l.bf16 %v62
    %v127 = vunpack.c.l.bf16 %v63
    %v128 = vunpack.c.l.bf16 %v64
    %v129 = vunpack.c.l.bf16 %v65
    %v130 = vunpack.c.l.bf16 %v66
    %v131 = vunpack.c.l.bf16 %v67
    %v132 = vunpack.c.l.bf16 %v68
    %v133 = vunpack.c.l.bf16 %v69
    %v134 = vunpack.c.l.bf16 %v70
    %v135 = vunpack.c.l.bf16 %v71
    %v136 = vunpack.c.l.bf16 %v72
    %v137 = vunpack.c.l.bf16 %v73
    %v138 = vunpack.c.l.bf16 %v74
    %v139 = vunpack.c.l.bf16 %v75
    %v140 = vunpack.c.l.bf16 %v76
    %v141 = vunpack.c.l.bf16 %v77
    %v142 = vunpack.c.l.bf16 %v78
    %v143 = vunpack.c.l.bf16 %v79
    %v144 = vunpack.c.l.bf16 %v80
    %v145 = vunpack.c.l.bf16 %v81
    %v146 = vunpack.c.l.bf16 %v82
    %v147 = vunpack.c.l.bf16 %v83
    %v148 = vunpack.c.l.bf16 %v84
    %v149 = vunpack.c.l.bf16 %v85
    %v150 = vunpack.c.l.bf16 %v86
    %v151 = vunpack.c.l.bf16 %v87
    %v152 = vunpack.c.l.bf16 %v88
    %v153 = vunpack.c.l.bf16 %v89
    %v154 = vunpack.c.l.bf16 %v90
    %v155 = vunpack.c.l.bf16 %v91
    %v156 = vunpack.c.l.bf16 %v92
    %v157 = vunpack.c.l.bf16 %v93
    %v158 = vunpack.c.l.bf16 %v94
    %v159 = vunpack.c.l.bf16 %v95
    %v160 = vunpack.c.l.bf16 %v96
    %v161 = vunpack.c.l.bf16 %v97
    %v162 = vunpack.c.l.bf16 %v98
    %v163 = vunpack.c.l.bf16 %v99
    %v164 = vunpack.c.l.bf16 %v100
    %v165 = vunpack.c.l.bf16 %v101
    %v166 = vunpack.c.l.bf16 %v102
    %v167 = vunpack.c.l.bf16 %v103
    %v168 = vld [vmem:[%s31] sm:$0xf]
    %v169 = vld [vmem:[%s31 + $0x4] sm:$0xf]
    %v170 = vld [vmem:[%s31 + $0x8] sm:$0xf]
    %v171 = vld [vmem:[%s31 + $0xc] sm:$0xf]
    %v172 = vld [vmem:[%s31 + $0x10] sm:$0xf]
    %v173 = vld [vmem:[%s31 + $0x14] sm:$0xf]
    %v174 = vld [vmem:[%s31 + $0x18] sm:$0xf]
    %v175 = vld [vmem:[%s31 + $0x1c] sm:$0xf]
    %v176 = vld [vmem:[%s31 + $0x20] sm:$0xf]
    %v177 = vld [vmem:[%s31 + $0x24] sm:$0xf]
    %v178 = vld [vmem:[%s31 + $0x28] sm:$0xf]
    %v179 = vld [vmem:[%s31 + $0x2c] sm:$0xf]
    %v180 = vld [vmem:[%s31 + $0x30] sm:$0xf]
    %v181 = vld [vmem:[%s31 + $0x34] sm:$0xf]
    %v182 = vld [vmem:[%s31 + $0x38] sm:$0xf]
    %v183 = vld [vmem:[%s31 + $0x3c] sm:$0xf]
    %v184 = vld [vmem:[%s31 + $0x40] sm:$0xf]
    %v185 = vld [vmem:[%s31 + $0x44] sm:$0xf]
    %v186 = vld [vmem:[%s31 + $0x48] sm:$0xf]
    %v187 = vld [vmem:[%s31 + $0x4c] sm:$0xf]
    %v188 = vld [vmem:[%s31 + $0x50] sm:$0xf]
    %v189 = vld [vmem:[%s31 + $0x54] sm:$0xf]
    %v190 = vld [vmem:[%s31 + $0x58] sm:$0xf]
    %v191 = vld [vmem:[%s31 + $0x5c] sm:$0xf]
    %v192 = vld [vmem:[%s31 + $0x60] sm:$0xf]
    %v193 = vld [vmem:[%s31 + $0x64] sm:$0xf]
    %v194 = vld [vmem:[%s31 + $0x68] sm:$0xf]
    %v195 = vld [vmem:[%s31 + $0x6c] sm:$0xf]
    %v196 = vld [vmem:[%s31 + $0x70] sm:$0xf]
    %v197 = vld [vmem:[%s31 + $0x74] sm:$0xf]
    %v198 = vld [vmem:[%s31 + $0x78] sm:$0xf]
    %v199 = vld [vmem:[%s31 + $0x7c] sm:$0xf]
    %v200 = vld [vmem:[%s31 + $0x80] sm:$0xf]
    %v201 = vld [vmem:[%s31 + $0x84] sm:$0xf]
    %v202 = vld [vmem:[%s31 + $0x88] sm:$0xf]
    %v203 = vld [vmem:[%s31 + $0x8c] sm:$0xf]
    %v204 = vld [vmem:[%s31 + $0x90] sm:$0xf]
    %v205 = vld [vmem:[%s31 + $0x94] sm:$0xf]
    %v206 = vld [vmem:[%s31 + $0x98] sm:$0xf]
    %v207 = vld [vmem:[%s31 + $0x9c] sm:$0xf]
    %v208 = vld [vmem:[%s31 + $0xa0] sm:$0xf]
    %v209 = vld [vmem:[%s31 + $0xa4] sm:$0xf]
    %v210 = vld [vmem:[%s31 + $0xa8] sm:$0xf]
    %v211 = vld [vmem:[%s31 + $0xac] sm:$0xf]
    %v212 = vld [vmem:[%s31 + $0xb0] sm:$0xf]
    %v213 = vld [vmem:[%s31 + $0xb4] sm:$0xf]
    %v214 = vld [vmem:[%s31 + $0xb8] sm:$0xf]
    %v215 = vld [vmem:[%s31 + $0xbc] sm:$0xf]
    %v216 = vld [vmem:[%s31 + $0xc0] sm:$0xf]
    %v217 = vld [vmem:[%s31 + $0xc4] sm:$0xf]
    %v218 = vld [vmem:[%s31 + $0xc8] sm:$0xf]
    %v219 = vld [vmem:[%s31 + $0xcc] sm:$0xf]
    %v220 = vld [vmem:[%s31 + $0xd0] sm:$0xf]
    %v221 = vld [vmem:[%s31 + $0xd4] sm:$0xf]
    %v222 = vld [vmem:[%s31 + $0xd8] sm:$0xf]
    %v223 = vld [vmem:[%s31 + $0xdc] sm:$0xf]
    %v224 = vld [vmem:[%s31 + $0xe0] sm:$0xf]
    %v225 = vld [vmem:[%s31 + $0xe4] sm:$0xf]
    %v226 = vld [vmem:[%s31 + $0xe8] sm:$0xf]
    %v227 = vld [vmem:[%s31 + $0xec] sm:$0xf]
    %v228 = vld [vmem:[%s31 + $0xf0] sm:$0xf]
    %v229 = vld [vmem:[%s31 + $0xf4] sm:$0xf]
    %v230 = vld [vmem:[%s31 + $0xf8] sm:$0xf]
    %v231 = vld [vmem:[%s31 + $0xfc] sm:$0xf]
    %v232 = vunpack.c.l.bf16 %v168
    %v233 = vunpack.c.l.bf16 %v169
    %v234 = vunpack.c.l.bf16 %v170
    %v235 = vunpack.c.l.bf16 %v171
    %v236 = vunpack.c.l.bf16 %v172
    %v237 = vunpack.c.l.bf16 %v173
    %v238 = vunpack.c.l.bf16 %v174
    %v239 = vunpack.c.l.bf16 %v175
    %v240 = vunpack.c.l.bf16 %v176
    %v241 = vunpack.c.l.bf16 %v177
    %v242 = vunpack.c.l.bf16 %v178
    %v243 = vunpack.c.l.bf16 %v179
    %v244 = vunpack.c.l.bf16 %v180
    %v245 = vunpack.c.l.bf16 %v181
    %v246 = vunpack.c.l.bf16 %v182
    %v247 = vunpack.c.l.bf16 %v183
    %v248 = vunpack.c.l.bf16 %v184
    %v249 = vunpack.c.l.bf16 %v185
    %v250 = vunpack.c.l.bf16 %v186
    %v251 = vunpack.c.l.bf16 %v187
    %v252 = vunpack.c.l.bf16 %v188
    %v253 = vunpack.c.l.bf16 %v189
    %v254 = vunpack.c.l.bf16 %v190
    %v255 = vunpack.c.l.bf16 %v191
    %v256 = vunpack.c.l.bf16 %v192
    %v257 = vunpack.c.l.bf16 %v193
    %v258 = vunpack.c.l.bf16 %v194
    %v259 = vunpack.c.l.bf16 %v195
    %v260 = vunpack.c.l.bf16 %v196
    %v261 = vunpack.c.l.bf16 %v197
    %v262 = vunpack.c.l.bf16 %v198
    %v263 = vunpack.c.l.bf16 %v199
    %v264 = vunpack.c.l.bf16 %v200
    %v265 = vunpack.c.l.bf16 %v201
    %v266 = vunpack.c.l.bf16 %v202
    %v267 = vunpack.c.l.bf16 %v203
    %v268 = vunpack.c.l.bf16 %v204
    %v269 = vunpack.c.l.bf16 %v205
    %v270 = vunpack.c.l.bf16 %v206
    %v271 = vunpack.c.l.bf16 %v207
    %v272 = vunpack.c.l.bf16 %v208
    %v273 = vunpack.c.l.bf16 %v209
    %v274 = vunpack.c.l.bf16 %v210
    %v275 = vunpack.c.l.bf16 %v211
    %v276 = vunpack.c.l.bf16 %v212
    %v277 = vunpack.c.l.bf16 %v213
    %v278 = vunpack.c.l.bf16 %v214
    %v279 = vunpack.c.l.bf16 %v215
    %v280 = vunpack.c.l.bf16 %v216
    %v281 = vunpack.c.l.bf16 %v217
    %v282 = vunpack.c.l.bf16 %v218
    %v283 = vunpack.c.l.bf16 %v219
    %v284 = vunpack.c.l.bf16 %v220
    %v285 = vunpack.c.l.bf16 %v221
    %v286 = vunpack.c.l.bf16 %v222
    %v287 = vunpack.c.l.bf16 %v223
    %v288 = vunpack.c.l.bf16 %v224
    %v289 = vunpack.c.l.bf16 %v225
    %v290 = vunpack.c.l.bf16 %v226
    %v291 = vunpack.c.l.bf16 %v227
    %v292 = vunpack.c.l.bf16 %v228
    %v293 = vunpack.c.l.bf16 %v229
    %v294 = vunpack.c.l.bf16 %v230
    %v295 = vunpack.c.l.bf16 %v231
    %v296 = vsub.f32 %v104, %v232
    %v297 = vsub.f32 %v105, %v233
    %v298 = vsub.f32 %v106, %v234
    %v299 = vsub.f32 %v107, %v235
    %v300 = vsub.f32 %v108, %v236
    %v301 = vsub.f32 %v109, %v237
    %v302 = vsub.f32 %v110, %v238
    %v303 = vsub.f32 %v111, %v239
    %v304 = vsub.f32 %v112, %v240
    %v305 = vsub.f32 %v113, %v241
    %v306 = vsub.f32 %v114, %v242
    %v307 = vsub.f32 %v115, %v243
    %v308 = vsub.f32 %v116, %v244
    %v309 = vsub.f32 %v117, %v245
    %v310 = vsub.f32 %v118, %v246
    %v311 = vsub.f32 %v119, %v247
    %v312 = vsub.f32 %v120, %v248
    %v313 = vsub.f32 %v121, %v249
    %v314 = vsub.f32 %v122, %v250
    %v315 = vsub.f32 %v123, %v251
    %v316 = vsub.f32 %v124, %v252
    %v317 = vsub.f32 %v125, %v253
    %v318 = vsub.f32 %v126, %v254
    %v319 = vsub.f32 %v127, %v255
    %v320 = vsub.f32 %v128, %v256
    %v321 = vsub.f32 %v129, %v257
    %v322 = vsub.f32 %v130, %v258
    %v323 = vsub.f32 %v131, %v259
    %v324 = vsub.f32 %v132, %v260
    %v325 = vsub.f32 %v133, %v261
    %v326 = vsub.f32 %v134, %v262
    %v327 = vsub.f32 %v135, %v263
    %v328 = vsub.f32 %v136, %v264
    %v329 = vsub.f32 %v137, %v265
    %v330 = vsub.f32 %v138, %v266
    %v331 = vsub.f32 %v139, %v267
    %v332 = vsub.f32 %v140, %v268
    %v333 = vsub.f32 %v141, %v269
    %v334 = vsub.f32 %v142, %v270
    %v335 = vsub.f32 %v143, %v271
    %v336 = vsub.f32 %v144, %v272
    %v337 = vsub.f32 %v145, %v273
    %v338 = vsub.f32 %v146, %v274
    %v339 = vsub.f32 %v147, %v275
    %v340 = vsub.f32 %v148, %v276
    %v341 = vsub.f32 %v149, %v277
    %v342 = vsub.f32 %v150, %v278
    %v343 = vsub.f32 %v151, %v279
    %v344 = vsub.f32 %v152, %v280
    %v345 = vsub.f32 %v153, %v281
    %v346 = vsub.f32 %v154, %v282
    %v347 = vsub.f32 %v155, %v283
    %v348 = vsub.f32 %v156, %v284
    %v349 = vsub.f32 %v157, %v285
    %v350 = vsub.f32 %v158, %v286
    %v351 = vsub.f32 %v159, %v287
    %v352 = vsub.f32 %v160, %v288
    %v353 = vsub.f32 %v161, %v289
    %v354 = vsub.f32 %v162, %v290
    %v355 = vsub.f32 %v163, %v291
    %v356 = vsub.f32 %v164, %v292
    %v357 = vsub.f32 %v165, %v293
    %v358 = vsub.f32 %v166, %v294
    %v359 = vsub.f32 %v167, %v295
    %s360 = sld [smem:[#allocation2]]
    %v361 = vmul.f32 %v296, %v296
    %v362 = vmul.f32 %v297, %v297
    %v363 = vmul.f32 %v298, %v298
    %v364 = vmul.f32 %v299, %v299
    %v365 = vmul.f32 %v300, %v300
    %v366 = vmul.f32 %v301, %v301
    %v367 = vmul.f32 %v302, %v302
    %v368 = vmul.f32 %v303, %v303
    %v369 = vmul.f32 %v304, %v304
    %v370 = vmul.f32 %v305, %v305
    %v371 = vmul.f32 %v306, %v306
    %v372 = vmul.f32 %v307, %v307
    %v373 = vmul.f32 %v308, %v308
    %v374 = vmul.f32 %v309, %v309
    %v375 = vmul.f32 %v310, %v310
    %v376 = vmul.f32 %v311, %v311
    %v377 = vmul.f32 %v312, %v312
    %v378 = vmul.f32 %v313, %v313
    %v379 = vmul.f32 %v314, %v314
    %v380 = vmul.f32 %v315, %v315
    %v381 = vmul.f32 %v316, %v316
    %v382 = vmul.f32 %v317, %v317
    %v383 = vmul.f32 %v318, %v318
    %v384 = vmul.f32 %v319, %v319
    %v385 = vmul.f32 %v320, %v320
    %v386 = vmul.f32 %v321, %v321
    %v387 = vmul.f32 %v322, %v322
    %v388 = vmul.f32 %v323, %v323
    %v389 = vmul.f32 %v324, %v324
    %v390 = vmul.f32 %v325, %v325
    %v391 = vmul.f32 %v326, %v326
    %v392 = vmul.f32 %v327, %v327
    %v393 = vmul.f32 %v328, %v328
    %v394 = vmul.f32 %v329, %v329
    %v395 = vmul.f32 %v330, %v330
    %v396 = vmul.f32 %v331, %v331
    %v397 = vmul.f32 %v332, %v332
    %v398 = vmul.f32 %v333, %v333
    %v399 = vmul.f32 %v334, %v334
    %v400 = vmul.f32 %v335, %v335
    %v401 = vmul.f32 %v336, %v336
    %v402 = vmul.f32 %v337, %v337
    %v403 = vmul.f32 %v338, %v338
    %v404 = vmul.f32 %v339, %v339
    %v405 = vmul.f32 %v340, %v340
    %v406 = vmul.f32 %v341, %v341
    %v407 = vmul.f32 %v342, %v342
    %v408 = vmul.f32 %v343, %v343
    %v409 = vmul.f32 %v344, %v344
    %v410 = vmul.f32 %v345, %v345
    %v411 = vmul.f32 %v346, %v346
    %v412 = vmul.f32 %v347, %v347
    %v413 = vmul.f32 %v348, %v348
    %v414 = vmul.f32 %v349, %v349
    %v415 = vmul.f32 %v350, %v350
    %v416 = vmul.f32 %v351, %v351
    %v417 = vmul.f32 %v352, %v352
    %v418 = vmul.f32 %v353, %v353
    %v419 = vmul.f32 %v354, %v354
    %v420 = vmul.f32 %v355, %v355
    %v421 = vmul.f32 %v356, %v356
    %v422 = vmul.f32 %v357, %v357
    %v423 = vmul.f32 %v358, %v358
    %v424 = vmul.f32 %v359, %v359
    %vm425 = vcmask 523264
    %v426 = vsel %vm425, %v361, 0.0
    %v427 = vsel %vm425, %v362, 0.0
    %v428 = vadd.f32 %v426, %v427
    %v429 = vsel %vm425, %v363, 0.0
    %v430 = vadd.f32 %v428, %v429
    %v431 = vsel %vm425, %v364, 0.0
    %v432 = vadd.f32 %v430, %v431
    %v433 = vsel %vm425, %v365, 0.0
    %v434 = vadd.f32 %v432, %v433
    %v435 = vsel %vm425, %v366, 0.0
    %v436 = vadd.f32 %v434, %v435
    %v437 = vsel %vm425, %v367, 0.0
    %v438 = vadd.f32 %v436, %v437
    %v439 = vsel %vm425, %v368, 0.0
    %v440 = vadd.f32 %v438, %v439
    %v441 = vsel %vm425, %v369, 0.0
    %v442 = vadd.f32 %v440, %v441
    %v443 = vsel %vm425, %v370, 0.0
    %v444 = vadd.f32 %v442, %v443
    %v445 = vsel %vm425, %v371, 0.0
    %v446 = vadd.f32 %v444, %v445
    %v447 = vsel %vm425, %v372, 0.0
    %v448 = vadd.f32 %v446, %v447
    %v449 = vsel %vm425, %v373, 0.0
    %v450 = vadd.f32 %v448, %v449
    %v451 = vsel %vm425, %v374, 0.0
    %v452 = vadd.f32 %v450, %v451
    %v453 = vsel %vm425, %v375, 0.0
    %v454 = vadd.f32 %v452, %v453
    %v455 = vsel %vm425, %v376, 0.0
    %v456 = vadd.f32 %v454, %v455
    %v457 = vsel %vm425, %v377, 0.0
    %v458 = vadd.f32 %v456, %v457
    %v459 = vsel %vm425, %v378, 0.0
    %v460 = vadd.f32 %v458, %v459
    %v461 = vsel %vm425, %v379, 0.0
    %v462 = vadd.f32 %v460, %v461
    %v463 = vsel %vm425, %v380, 0.0
    %v464 = vadd.f32 %v462, %v463
    %v465 = vsel %vm425, %v381, 0.0
    %v466 = vadd.f32 %v464, %v465
    %v467 = vsel %vm425, %v382, 0.0
    %v468 = vadd.f32 %v466, %v467
    %v469 = vsel %vm425, %v383, 0.0
    %v470 = vadd.f32 %v468, %v469
    %v471 = vsel %vm425, %v384, 0.0
    %v472 = vadd.f32 %v470, %v471
    %v473 = vsel %vm425, %v385, 0.0
    %v474 = vadd.f32 %v472, %v473
    %v475 = vsel %vm425, %v386, 0.0
    %v476 = vadd.f32 %v474, %v475
    %v477 = vsel %vm425, %v387, 0.0
    %v478 = vadd.f32 %v476, %v477
    %v479 = vsel %vm425, %v388, 0.0
    %v480 = vadd.f32 %v478, %v479
    %v481 = vsel %vm425, %v389, 0.0
    %v482 = vadd.f32 %v480, %v481
    %v483 = vsel %vm425, %v390, 0.0
    %v484 = vadd.f32 %v482, %v483
    %v485 = vsel %vm425, %v391, 0.0
    %v486 = vadd.f32 %v484, %v485
    %v487 = vsel %vm425, %v392, 0.0
    %v488 = vadd.f32 %v486, %v487
    %v489 = vsel %vm425, %v393, 0.0
    %v490 = vadd.f32 %v488, %v489
    %v491 = vsel %vm425, %v394, 0.0
    %v492 = vadd.f32 %v490, %v491
    %v493 = vsel %vm425, %v395, 0.0
    %v494 = vadd.f32 %v492, %v493
    %v495 = vsel %vm425, %v396, 0.0
    %v496 = vadd.f32 %v494, %v495
    %v497 = vsel %vm425, %v397, 0.0
    %v498 = vadd.f32 %v496, %v497
    %v499 = vsel %vm425, %v398, 0.0
    %v500 = vadd.f32 %v498, %v499
    %v501 = vsel %vm425, %v399, 0.0
    %v502 = vadd.f32 %v500, %v501
    %v503 = vsel %vm425, %v400, 0.0
    %v504 = vadd.f32 %v502, %v503
    %v505 = vsel %vm425, %v401, 0.0
    %v506 = vadd.f32 %v504, %v505
    %v507 = vsel %vm425, %v402, 0.0
    %v508 = vadd.f32 %v506, %v507
    %v509 = vsel %vm425, %v403, 0.0
    %v510 = vadd.f32 %v508, %v509
    %v511 = vsel %vm425, %v404, 0.0
    %v512 = vadd.f32 %v510, %v511
    %v513 = vsel %vm425, %v405, 0.0
    %v514 = vadd.f32 %v512, %v513
    %v515 = vsel %vm425, %v406, 0.0
    %v516 = vadd.f32 %v514, %v515
    %v517 = vsel %vm425, %v407, 0.0
    %v518 = vadd.f32 %v516, %v517
    %v519 = vsel %vm425, %v408, 0.0
    %v520 = vadd.f32 %v518, %v519
    %v521 = vsel %vm425, %v409, 0.0
    %v522 = vadd.f32 %v520, %v521
    %v523 = vsel %vm425, %v410, 0.0
    %v524 = vadd.f32 %v522, %v523
    %v525 = vsel %vm425, %v411, 0.0
    %v526 = vadd.f32 %v524, %v525
    %v527 = vsel %vm425, %v412, 0.0
    %v528 = vadd.f32 %v526, %v527
    %v529 = vsel %vm425, %v413, 0.0
    %v530 = vadd.f32 %v528, %v529
    %v531 = vsel %vm425, %v414, 0.0
    %v532 = vadd.f32 %v530, %v531
    %v533 = vsel %vm425, %v415, 0.0
    %v534 = vadd.f32 %v532, %v533
    %v535 = vsel %vm425, %v416, 0.0
    %v536 = vadd.f32 %v534, %v535
    %v537 = vsel %vm425, %v417, 0.0
    %v538 = vadd.f32 %v536, %v537
    %v539 = vsel %vm425, %v418, 0.0
    %v540 = vadd.f32 %v538, %v539
    %v541 = vsel %vm425, %v419, 0.0
    %v542 = vadd.f32 %v540, %v541
    %v543 = vsel %vm425, %v420, 0.0
    %v544 = vadd.f32 %v542, %v543
    %v545 = vsel %vm425, %v421, 0.0
    %v546 = vadd.f32 %v544, %v545
    %v547 = vsel %vm425, %v422, 0.0
    %v548 = vadd.f32 %v546, %v547
    %v549 = vsel %vm425, %v423, 0.0
    %v550 = vadd.f32 %v548, %v549
    %v551 = vsel %vm425, %v424, 0.0
    %v552 = vadd.f32 %v550, %v551
    %553 = vadd.xlane.f32.xlu0 %v552
    %v554 = vpop.xlane.xlu0 %553
    %v555 = vrot.slane %v554, 4
    %v556 = vadd.f32 %v554, %v555
    %v557 = vrot.slane %v556, 2
    %v558 = vadd.f32 %v556, %v557
    %v559 = vrot.slane %v558, 1
    %v560 = vadd.f32 %v558, %v559
    %s561 = vtos %v560
    %s562 = sadd.f32 %s360, %s561
    %s563 = scalar_lea.smem [#allocation2], 0
    %564 = sst [smem:[%s563]] %s562
    // Predicated region
    $region14: #{_lambda_.12} parent=1 // pred_check
      _
    $region15: #{_lambda_.12} parent=1 // pred_check_branch
      %566 = sbr.rel (0) target = $region17
    $region16: #{_lambda_.12} parent=1 // pred_region
      %568 = vsyncadd [#allocation3], 0
      %s570 = sshll.u32 %s2, 4
      %s571 = int_to_ptr.hbm [resolvable:$true] %s570
      %573 = dma.smem_to_hbm [#allocation2], 16, %s571, [#allocation3]
    $region17: #{_lambda_.12} parent=1 // pred_fallthru
      _
    // Predicated region
    $region18: #{_lambda_.12} parent=1 // pred_check
      _
    $region19: #{_lambda_.12} parent=1 // pred_check_branch
      %575 = sbr.rel (0) target = $region21
    $region20: #{_lambda_.12} parent=1 // pred_region
      %577 = dma.done [#allocation3], 16
    $region21: #{_lambda_.12} parent=1 // pred_fallthru
      _
    %578 = sfence
    %579 = vsyncpa [#allocation3], 1

// kernel: _lambda_.9
$region0: #{_lambda_.9}
  #allocation0 [shape = 'u32[]', space=smem, size = 0x4, offset = 0x4, fixed_abs, tag = 'smem constant byte address 0x4 - core index']
  #allocation1 [shape = 'u32[72,128]{1,0:T(1,128)}', space=vmem, size = 0x9000, scoped, tag = 'internal scratch']
  %s0 = inlined_call_operand.vmem [shape: bf16[4,8,2,8,128], index: 0, kind: input, shape index: {}]
  %s1 = inlined_call_operand.vmem [shape: bf16[4,8,8,64], index: 1, kind: output, shape index: {}]
  %s2 = sld [smem:[#allocation0]]
  $region37: #{_lambda_.9} parent=0
    _
  %s4 = ssub.s32 1, %s2
  %s5 = scalar_select 0, %s4, %s2
  loop: start=0, step=1, limit=6
  $region2: #{_lambda_.9} parent=0 // loop_pre_header
    _
  $region3: #{_lambda_.9} parent=0 // loop_header
    %s7 = sphi 0, %s11
    %p8 = scmp.ge.s32.totalorder %s7, 6
    %s14 = sphi 0, %s26
    %s15 = sphi 0, %s22
    %s16 = sphi 0, %s14
    %s17 = sphi 0, %s15
    %s18 = sphi 0, %s16
    %s19 = sphi 0, %s17
    %s31 = sphi 0, %s33
    %s34 = sphi 0, %s31
    %s35 = sphi 0, %s34
    %s51 = sphi 0, %s35
    %s59 = sphi 0, %s61
    %s62 = sphi 0, %s59
    %s63 = sphi 0, %s62
    %s79 = sphi 0, %s63
  $region4: #{_lambda_.9} parent=0 // loop_header_branch
    %10 = sbr.rel (%p8) target = $region8
  $region5: #{_lambda_.9} parent=0 // loop_body
    %s12 = ssub.s32 %s7, 1
    %s13 = ssub.s32 %s7, 2
    %s20 = sadd.s32 1, %s15
    %p21 = scmp.ge.s32.totalorder %s20, 1
    %s22 = scalar_select %p21, 0, %s20
    %s23 = sadd.s32 1, %s14
    %s24 = scalar_select %p21, %s23, %s14
    %p25 = scmp.ge.s32.totalorder %s24, 4
    %s26 = scalar_select %p25, 0, %s24
    %s27 = ssub.s32 %s14, %s26
    %s28 = ssub.s32 %s15, %s22
    %s29 = sor.u32 %s27, %s28
    %p30 = scmp.eq.s32.totalorder %s29, 0
    %s32 = sadd.s32 %s31, 1
    %s33 = scalar_select %p30, %s31, %s32
    %p36 = pneg %p30
    %p37 = scmp.eq.s32.totalorder %s7, 3
    %p38 = por %p36, %p37
    %p39 = scmp.ne.s32.totalorder %s31, %s34
    %p40 = scmp.eq.s32.totalorder %s7, 0
    %p41 = por %p39, %p40
    %p42 = scmp.ne.s32.totalorder %s31, %s34
    %p43 = scmp.eq.s32.totalorder %s12, 3
    %p44 = por %p42, %p43
    %p45 = scmp.ne.s32.totalorder %s34, %s35
    %p46 = scmp.eq.s32.totalorder %s12, 0
    %p47 = por %p45, %p46
    %p48 = scmp.ne.s32.totalorder %s34, %s35
    %p49 = scmp.eq.s32.totalorder %s13, 3
    %p50 = por %p48, %p49
    %p52 = scmp.ne.s32.totalorder %s35, %s51
    %p53 = scmp.eq.s32.totalorder %s13, 0
    %p54 = por %p52, %p53
    %s55 = ssub.s32 %s14, %s26
    %s56 = ssub.s32 %s15, %s22
    %s57 = sor.u32 %s55, %s56
    %p58 = scmp.eq.s32.totalorder %s57, 0
    %s60 = sadd.s32 %s59, 1
    %s61 = scalar_select %p58, %s59, %s60
    %p64 = pneg %p58
    %p65 = scmp.eq.s32.totalorder %s7, 3
    %p66 = por %p64, %p65
    %p67 = scmp.ne.s32.totalorder %s59, %s62
    %p68 = scmp.eq.s32.totalorder %s7, 0
    %p69 = por %p67, %p68
    %p70 = scmp.ne.s32.totalorder %s59, %s62
    %p71 = scmp.eq.s32.totalorder %s12, 3
    %p72 = por %p70, %p71
    %p73 = scmp.ne.s32.totalorder %s62, %s63
    %p74 = scmp.eq.s32.totalorder %s12, 0
    %p75 = por %p73, %p74
    %p76 = scmp.ne.s32.totalorder %s62, %s63
    %p77 = scmp.eq.s32.totalorder %s13, 3
    %p78 = por %p76, %p77
    %p80 = scmp.ne.s32.totalorder %s63, %s79
    %p81 = scmp.eq.s32.totalorder %s13, 0
    %p82 = por %p80, %p81
    %p83 = scmp.le.s32.totalorder 1, %s7
    %p84 = scmp.lt.s32.totalorder %s7, 5
    %p85 = pnand %p83, %p84
    %p86 = pneg %p85
    // Predicated region
    $region9: #{_lambda_.9} parent=5 // pred_check
      _
    $region10: #{_lambda_.9} parent=5 // pred_check_branch
      %88 = sbr.rel (%p85) target = $region12
    $region11: #{_lambda_.9} parent=5 // pred_region
      %s89 = ssub.s32 %s7, 1
    $region12: #{_lambda_.9} parent=5 // pred_fallthru
      _
    %p90 = scmp.lt.s32.totalorder %s7, 4
    // Predicated region
    $region13: #{_lambda_.9} parent=5 // pred_check
      %p91 = pneg %p90
    $region14: #{_lambda_.9} parent=5 // pred_check_branch
      %93 = sbr.rel (%p91) target = $region16
    $region15: #{_lambda_.9} parent=5 // pred_region
      // Predicated region
      $region17: #{_lambda_.9} parent=15 // pred_check
        %p94 = pneg %p41
      $region18: #{_lambda_.9} parent=15 // pred_check_branch
        %96 = sbr.rel (%p94) target = $region20
      $region19: #{_lambda_.9} parent=15 // pred_region
        %s97 = smul.u32 8, %s15
        %p98 = scmp.lt.s32.totalorder %s14, 3
        %s99 = scalar_select %p98, %s14, 3
        %p100 = scmp.lt.s32.totalorder %s97, 7
        %s101 = scalar_select %p100, %s97, 7
        %s102 = smul.addr %s101, 2
        %s103 = smul.addr %s99, 16
        %s104 = sadd.s32 %s102, %s103
        %s105 = smul.addr %s104, 4
        %s106 = scalar_lea.vmem %s0, %s105
        %s107 = smul.u32 8, %s15
      $region20: #{_lambda_.9} parent=15 // pred_fallthru
        _
    $region16: #{_lambda_.9} parent=5 // pred_fallthru
      _
    %p108 = scmp.le.s32.totalorder 1, %s7
    %p109 = scmp.lt.s32.totalorder %s7, 5
    %p110 = pnand %p108, %p109
    %p111 = pneg %p110
    // Predicated region
    $region21: #{_lambda_.9} parent=5 // pred_check
      _
    $region22: #{_lambda_.9} parent=5 // pred_check_branch
      %113 = sbr.rel (%p110) target = $region24
    $region23: #{_lambda_.9} parent=5 // pred_region
      %s114 = ssub.s32 %s7, 1
      %s115 = smul.u32 8, %s17
      %p116 = scmp.lt.s32.totalorder %s16, 3
      %s117 = scalar_select %p116, %s16, 3
      %p118 = scmp.lt.s32.totalorder %s115, 7
      %s119 = scalar_select %p118, %s115, 7
      %s120 = smul.addr %s119, 2
      %s121 = smul.addr %s117, 16
      %s122 = sadd.s32 %s120, %s121
      %s123 = smul.addr %s122, 4
      %s124 = scalar_lea.vmem %s0, %s123
      %p125 = pneg %p47
      %p126 = pneg %p44
      %p127 = pneg %p75
      %p128 = pneg %p72
      %s129 = smul.u32 8, %s17
      %p130 = scmp.lt.s32.totalorder %s16, 3
      %s131 = scalar_select %p130, %s16, 3
      %p132 = scmp.lt.s32.totalorder %s129, 7
      %s133 = scalar_select %p132, %s129, 7
      %s134 = smul.addr %s131, 8
      %s135 = sadd.s32 %s133, %s134
      %s136 = smul.addr %s135, 4
      %s137 = scalar_lea.vmem %s1, %s136
      %s138 = smul.u32 8, %s17
      %p139 = scmp.lt.s32.totalorder %s16, 3
      %s140 = scalar_select %p139, %s16, 3
      %p141 = scmp.lt.s32.totalorder %s138, 7
      %s142 = scalar_select %p141, %s138, 7
      %s143 = smul.addr %s142, 2
      %s144 = smul.addr %s140, 16
      %s145 = sadd.s32 %s143, %s144
      %s146 = smul.addr %s145, 4
      %s147 = scalar_lea.vmem %s0, %s146
      %s148 = smul.u32 8, %s17
      %s149 = smul.u32 8, %s17
      %p150 = scmp.lt.s32.totalorder %s16, 3
      %s151 = scalar_select %p150, %s16, 3
      %p152 = scmp.lt.s32.totalorder %s149, 7
      %s153 = scalar_select %p152, %s149, 7
      %s154 = smul.addr %s151, 8
      %s155 = sadd.s32 %s153, %s154
      %s156 = smul.addr %s155, 4
      %s157 = scalar_lea.vmem %s1, %s156
      %s158 = smul.u32 8, %s17
      %v159 = vld [vmem:[%s147] sm:$0xf]
      %v160 = vld [vmem:[%s147 + $0x8] sm:$0xf]
      %v161 = vld [vmem:[%s147 + $0x10] sm:$0xf]
      %v162 = vld [vmem:[%s147 + $0x18] sm:$0xf]
      %v163 = vld [vmem:[%s147 + $0x20] sm:$0xf]
      %v164 = vld [vmem:[%s147 + $0x28] sm:$0xf]
      %v165 = vld [vmem:[%s147 + $0x30] sm:$0xf]
      %v166 = vld [vmem:[%s147 + $0x38] sm:$0xf]
      %s167 = scalar_lea.vmem %s147, 4
      %v168 = vld [vmem:[%s167] sm:$0xf]
      %v169 = vld [vmem:[%s167 + $0x8] sm:$0xf]
      %v170 = vld [vmem:[%s167 + $0x10] sm:$0xf]
      %v171 = vld [vmem:[%s167 + $0x18] sm:$0xf]
      %v172 = vld [vmem:[%s167 + $0x20] sm:$0xf]
      %v173 = vld [vmem:[%s167 + $0x28] sm:$0xf]
      %v174 = vld [vmem:[%s167 + $0x30] sm:$0xf]
      %v175 = vld [vmem:[%s167 + $0x38] sm:$0xf]
      %v176 = vunpack.c.l.bf16 %v159
      %v177 = vunpack.c.l.bf16 %v160
      %v178 = vunpack.c.l.bf16 %v161
      %v179 = vunpack.c.l.bf16 %v162
      %v180 = vunpack.c.l.bf16 %v163
      %v181 = vunpack.c.l.bf16 %v164
      %v182 = vunpack.c.l.bf16 %v165
      %v183 = vunpack.c.l.bf16 %v166
      %v184 = vunpack.c.l.bf16 %v168
      %v185 = vunpack.c.l.bf16 %v169
      %v186 = vunpack.c.l.bf16 %v170
      %v187 = vunpack.c.l.bf16 %v171
      %v188 = vunpack.c.l.bf16 %v172
      %v189 = vunpack.c.l.bf16 %v173
      %v190 = vunpack.c.l.bf16 %v174
      %v191 = vunpack.c.l.bf16 %v175
      %v192 = vmax.f32 %v176, %v184
      %v193 = vmax.f32 %v177, %v185
      %v194 = vmax.f32 %v178, %v186
      %v195 = vmax.f32 %v179, %v187
      %v196 = vmax.f32 %v180, %v188
      %v197 = vmax.f32 %v181, %v189
      %v198 = vmax.f32 %v182, %v190
      %v199 = vmax.f32 %v183, %v191
      %v200 = vpack.c.bf16 %v192, %v192
      %v201 = vpack.c.bf16 %v193, %v193
      %v202 = vpack.c.bf16 %v194, %v194
      %v203 = vpack.c.bf16 %v195, %v195
      %v204 = vpack.c.bf16 %v196, %v196
      %v205 = vpack.c.bf16 %v197, %v197
      %v206 = vpack.c.bf16 %v198, %v198
      %v207 = vpack.c.bf16 %v199, %v199
      %v208 = vunpack.c.l.bf16 %v200
      %v209 = vunpack.c.l.bf16 %v201
      %v210 = vunpack.c.l.bf16 %v202
      %v211 = vunpack.c.l.bf16 %v203
      %v212 = vunpack.c.l.bf16 %v204
      %v213 = vunpack.c.l.bf16 %v205
      %v214 = vunpack.c.l.bf16 %v206
      %v215 = vunpack.c.l.bf16 %v207
      %224 = vrot.lane.b32.xlu0 %v208, 64
      %v225 = vpop.permute.xlu0 %224
      %226 = vrot.lane.b32.xlu0 %v209, 64
      %v227 = vpop.permute.xlu0 %226
      %228 = vrot.lane.b32.xlu0 %v210, 64
      %v229 = vpop.permute.xlu0 %228
      %230 = vrot.lane.b32.xlu0 %v211, 64
      %v231 = vpop.permute.xlu0 %230
      %232 = vrot.lane.b32.xlu0 %v212, 64
      %v233 = vpop.permute.xlu0 %232
      %234 = vrot.lane.b32.xlu0 %v213, 64
      %v235 = vpop.permute.xlu0 %234
      %236 = vrot.lane.b32.xlu0 %v214, 64
      %v237 = vpop.permute.xlu0 %236
      %238 = vrot.lane.b32.xlu0 %v215, 64
      %v239 = vpop.permute.xlu0 %238
      %v248 = vmax.f32 %v208, %v225
      %v249 = vmax.f32 %v209, %v227
      %v250 = vmax.f32 %v210, %v229
      %v251 = vmax.f32 %v211, %v231
      %v252 = vmax.f32 %v212, %v233
      %v253 = vmax.f32 %v213, %v235
      %v254 = vmax.f32 %v214, %v237
      %v255 = vmax.f32 %v215, %v239
      %v256 = vpack.c.bf16 %v248, %v248
      %v257 = vpack.c.bf16 %v249, %v249
      %v258 = vpack.c.bf16 %v250, %v250
      %v259 = vpack.c.bf16 %v251, %v251
      %v260 = vpack.c.bf16 %v252, %v252
      %v261 = vpack.c.bf16 %v253, %v253
      %v262 = vpack.c.bf16 %v254, %v254
      %v263 = vpack.c.bf16 %v255, %v255
      %vm264 = vcmask 519168
      %265 = vst.msk [vmem:[%s157] sm:$0xf] %vm264, %v256
      %266 = vst.msk [vmem:[%s157 + $0x4] sm:$0xf] %vm264, %v257
      %267 = vst.msk [vmem:[%s157 + $0x8] sm:$0xf] %vm264, %v258
      %268 = vst.msk [vmem:[%s157 + $0xc] sm:$0xf] %vm264, %v259
      %269 = vst.msk [vmem:[%s157 + $0x10] sm:$0xf] %vm264, %v260
      %270 = vst.msk [vmem:[%s157 + $0x14] sm:$0xf] %vm264, %v261
      %271 = vst.msk [vmem:[%s157 + $0x18] sm:$0xf] %vm264, %v262
      %272 = vst.msk [vmem:[%s157 + $0x1c] sm:$0xf] %vm264, %v263
      %s273 = smul.u32 8, %s17
      %p274 = scmp.lt.s32.totalorder %s16, 3
      %s275 = scalar_select %p274, %s16, 3
      %p276 = scmp.lt.s32.totalorder %s273, 7
      %s277 = scalar_select %p276, %s273, 7
      %s278 = smul.addr %s275, 8
      %s279 = sadd.s32 %s277, %s278
      %s280 = smul.addr %s279, 4
      %s281 = scalar_lea.vmem %s1, %s280
      // Predicated region
      $region25: #{_lambda_.9} parent=23 // pred_check
        %p282 = pneg %p72
      $region26: #{_lambda_.9} parent=23 // pred_check_branch
        %284 = sbr.rel (%p282) target = $region28
      $region27: #{_lambda_.9} parent=23 // pred_region
        %s285 = smul.u32 8, %s17
      $region28: #{_lambda_.9} parent=23 // pred_fallthru
        _
    $region24: #{_lambda_.9} parent=5 // pred_fallthru
      _
    %p286 = scmp.le.s32.totalorder 2, %s7
    // Predicated region
    $region29: #{_lambda_.9} parent=5 // pred_check
      %p287 = pneg %p286
    $region30: #{_lambda_.9} parent=5 // pred_check_branch
      %289 = sbr.rel (%p287) target = $region32
    $region31: #{_lambda_.9} parent=5 // pred_region
      %s290 = ssub.s32 %s7, 2
      // Predicated region
      $region33: #{_lambda_.9} parent=31 // pred_check
        %p291 = pneg %p78
      $region34: #{_lambda_.9} parent=31 // pred_check_branch
        %293 = sbr.rel (%p291) target = $region36
      $region35: #{_lambda_.9} parent=31 // pred_region
        %s294 = smul.u32 8, %s19
        %p295 = scmp.lt.s32.totalorder %s18, 3
        %s296 = scalar_select %p295, %s18, 3
        %p297 = scmp.lt.s32.totalorder %s294, 7
        %s298 = scalar_select %p297, %s294, 7
        %s299 = smul.addr %s296, 8
        %s300 = sadd.s32 %s298, %s299
        %s301 = smul.addr %s300, 4
        %s302 = scalar_lea.vmem %s1, %s301
      $region36: #{_lambda_.9} parent=31 // pred_fallthru
        _
    $region32: #{_lambda_.9} parent=5 // pred_fallthru
      _
  $region6: #{_lambda_.9} parent=0 // loop_footer
    %s11 = sadd.s32 1, %s7
  $region7: #{_lambda_.9} parent=0 // loop_footer_branch
    %6 = sbr.rel target = $region3
  $region8: #{_lambda_.9} parent=0 // loop_exit
    _

// kernel: _lambda_.8
$region0: #{_lambda_.8}
  #allocation0 [shape = 'u32[]', space=smem, size = 0x4, offset = 0x4, fixed_abs, tag = 'smem constant byte address 0x4 - core index']
  #allocation1 [shape = 'u32[72,128]{1,0:T(1,128)}', space=vmem, size = 0x9000, scoped, tag = 'internal scratch']
  #allocation2 [shape = 'bf16[18,18,64]{2,1,0:T(8,128)(2,1)}', space=vmem, size = 0x1b000, scoped, tag = 'scratch operand']
  %s0 = inlined_call_operand.vmem [shape: bf16[4,18,18,64], index: 0, kind: input, shape index: {}, may-alias: {0,1,2}]
  %s1 = inlined_call_operand.vmem [shape: bf16[4,18,18,64], index: 1, kind: input, shape index: {}, may-alias: {0,1,2}]
  %s2 = inlined_call_operand.vmem [shape: bf16[4,18,18,64], index: 2, kind: input, shape index: {}, may-alias: {0,1,2}]
  %s3 = inlined_call_operand.vmem [shape: bf16[3,192,64], index: 3, kind: input, shape index: {}]
  %s4 = inlined_call_operand.vmem [shape: f32[1,64], index: 4, kind: input, shape index: {}]
  %s5 = inlined_call_operand.vmem [shape: bf16[4,16,16,64], index: 5, kind: output, shape index: {}]
  %s6 = sld [smem:[#allocation0]]
  $region53: #{_lambda_.8} parent=0
    _
  %s8 = ssub.s32 1, %s6
  %s9 = scalar_select 0, %s8, %s6
  loop: start=0, step=1, limit=6
  $region2: #{_lambda_.8} parent=0 // loop_pre_header
    _
  $region3: #{_lambda_.8} parent=0 // loop_header
    %s11 = sphi 0, %s15
    %p12 = scmp.ge.s32.totalorder %s11, 6
    %s18 = sphi 0, %s30
    %s19 = sphi 0, %s26
    %s20 = sphi 0, %s18
    %s21 = sphi 0, %s19
    %s22 = sphi 0, %s20
    %s23 = sphi 0, %s21
    %s35 = sphi 0, %s37
    %s38 = sphi 0, %s35
    %s39 = sphi 0, %s38
    %s55 = sphi 0, %s39
    %s67 = sphi 0, %s69
    %s70 = sphi 0, %s67
    %s71 = sphi 0, %s70
    %s87 = sphi 0, %s71
    %s99 = sphi 0, %s101
    %s102 = sphi 0, %s99
    %s103 = sphi 0, %s102
    %s119 = sphi 0, %s103
    %s123 = sphi 0, %s123
    %s125 = sphi 0, %s123
    %s126 = sphi 0, %s125
    %s140 = sphi 0, %s126
    %s144 = sphi 0, %s144
    %s146 = sphi 0, %s144
    %s147 = sphi 0, %s146
    %s161 = sphi 0, %s147
    %s169 = sphi 0, %s171
    %s172 = sphi 0, %s169
    %s173 = sphi 0, %s172
    %s189 = sphi 0, %s173
  $region4: #{_lambda_.8} parent=0 // loop_header_branch
    %14 = sbr.rel (%p12) target = $region8
  $region5: #{_lambda_.8} parent=0 // loop_body
    %s16 = ssub.s32 %s11, 1
    %s17 = ssub.s32 %s11, 2
    %s24 = sadd.s32 1, %s19
    %p25 = scmp.ge.s32.totalorder %s24, 1
    %s26 = scalar_select %p25, 0, %s24
    %s27 = sadd.s32 1, %s18
    %s28 = scalar_select %p25, %s27, %s18
    %p29 = scmp.ge.s32.totalorder %s28, 4
    %s30 = scalar_select %p29, 0, %s28
    %s31 = ssub.s32 %s18, %s30
    %s32 = ssub.s32 %s19, %s26
    %s33 = sor.u32 %s31, %s32
    %p34 = scmp.eq.s32.totalorder %s33, 0
    %s36 = sadd.s32 %s35, 1
    %s37 = scalar_select %p34, %s35, %s36
    %p40 = pneg %p34
    %p41 = scmp.eq.s32.totalorder %s11, 3
    %p42 = por %p40, %p41
    %p43 = scmp.ne.s32.totalorder %s35, %s38
    %p44 = scmp.eq.s32.totalorder %s11, 0
    %p45 = por %p43, %p44
    %p46 = scmp.ne.s32.totalorder %s35, %s38
    %p47 = scmp.eq.s32.totalorder %s16, 3
    %p48 = por %p46, %p47
    %p49 = scmp.ne.s32.totalorder %s38, %s39
    %p50 = scmp.eq.s32.totalorder %s16, 0
    %p51 = por %p49, %p50
    %p52 = scmp.ne.s32.totalorder %s38, %s39
    %p53 = scmp.eq.s32.totalorder %s17, 3
    %p54 = por %p52, %p53
    %p56 = scmp.ne.s32.totalorder %s39, %s55
    %p57 = scmp.eq.s32.totalorder %s17, 0
    %p58 = por %p56, %p57
    %s59 = smul.u32 %s19, 16
    %s60 = sadd.s32 %s59, 16
    %s61 = smul.u32 %s26, 16
    %s62 = sadd.s32 %s61, 16
    %s63 = ssub.s32 %s18, %s30
    %s64 = ssub.s32 %s60, %s62
    %s65 = sor.u32 %s63, %s64
    %p66 = scmp.eq.s32.totalorder %s65, 0
    %s68 = sadd.s32 %s67, 1
    %s69 = scalar_select %p66, %s67, %s68
    %p72 = pneg %p66
    %p73 = scmp.eq.s32.totalorder %s11, 3
    %p74 = por %p72, %p73
    %p75 = scmp.ne.s32.totalorder %s67, %s70
    %p76 = scmp.eq.s32.totalorder %s11, 0
    %p77 = por %p75, %p76
    %p78 = scmp.ne.s32.totalorder %s67, %s70
    %p79 = scmp.eq.s32.totalorder %s16, 3
    %p80 = por %p78, %p79
    %p81 = scmp.ne.s32.totalorder %s70, %s71
    %p82 = scmp.eq.s32.totalorder %s16, 0
    %p83 = por %p81, %p82
    %p84 = scmp.ne.s32.totalorder %s70, %s71
    %p85 = scmp.eq.s32.totalorder %s17, 3
    %p86 = por %p84, %p85
    %p88 = scmp.ne.s32.totalorder %s71, %s87
    %p89 = scmp.eq.s32.totalorder %s17, 0
    %p90 = por %p88, %p89
    %s91 = smul.u32 %s19, 16
    %s92 = sadd.s32 %s91, 17
    %s93 = smul.u32 %s26, 16
    %s94 = sadd.s32 %s93, 17
    %s95 = ssub.s32 %s18, %s30
    %s96 = ssub.s32 %s92, %s94
    %s97 = sor.u32 %s95, %s96
    %p98 = scmp.eq.s32.totalorder %s97, 0
    %s100 = sadd.s32 %s99, 1
    %s101 = scalar_select %p98, %s99, %s100
    %p104 = pneg %p98
    %p105 = scmp.eq.s32.totalorder %s11, 3
    %p106 = por %p104, %p105
    %p107 = scmp.ne.s32.totalorder %s99, %s102
    %p108 = scmp.eq.s32.totalorder %s11, 0
    %p109 = por %p107, %p108
    %p110 = scmp.ne.s32.totalorder %s99, %s102
    %p111 = scmp.eq.s32.totalorder %s16, 3
    %p112 = por %p110, %p111
    %p113 = scmp.ne.s32.totalorder %s102, %s103
    %p114 = scmp.eq.s32.totalorder %s16, 0
    %p115 = por %p113, %p114
    %p116 = scmp.ne.s32.totalorder %s102, %s103
    %p117 = scmp.eq.s32.totalorder %s17, 3
    %p118 = por %p116, %p117
    %p120 = scmp.ne.s32.totalorder %s103, %s119
    %p121 = scmp.eq.s32.totalorder %s17, 0
    %p122 = por %p120, %p121
    %s124 = sadd.s32 %s123, 1
    %p127 = scmp.eq.s32.totalorder %s11, 3
    %p128 = scmp.ne.s32.totalorder %s123, %s125
    %p129 = scmp.eq.s32.totalorder %s11, 0
    %p130 = por %p128, %p129
    %p131 = scmp.ne.s32.totalorder %s123, %s125
    %p132 = scmp.eq.s32.totalorder %s16, 3
    %p133 = por %p131, %p132
    %p134 = scmp.ne.s32.totalorder %s125, %s126
    %p135 = scmp.eq.s32.totalorder %s16, 0
    %p136 = por %p134, %p135
    %p137 = scmp.ne.s32.totalorder %s125, %s126
    %p138 = scmp.eq.s32.totalorder %s17, 3
    %p139 = por %p137, %p138
    %p141 = scmp.ne.s32.totalorder %s126, %s140
    %p142 = scmp.eq.s32.totalorder %s17, 0
    %p143 = por %p141, %p142
    %s145 = sadd.s32 %s144, 1
    %p148 = scmp.eq.s32.totalorder %s11, 3
    %p149 = scmp.ne.s32.totalorder %s144, %s146
    %p150 = scmp.eq.s32.totalorder %s11, 0
    %p151 = por %p149, %p150
    %p152 = scmp.ne.s32.totalorder %s144, %s146
    %p153 = scmp.eq.s32.totalorder %s16, 3
    %p154 = por %p152, %p153
    %p155 = scmp.ne.s32.totalorder %s146, %s147
    %p156 = scmp.eq.s32.totalorder %s16, 0
    %p157 = por %p155, %p156
    %p158 = scmp.ne.s32.totalorder %s146, %s147
    %p159 = scmp.eq.s32.totalorder %s17, 3
    %p160 = por %p158, %p159
    %p162 = scmp.ne.s32.totalorder %s147, %s161
    %p163 = scmp.eq.s32.totalorder %s17, 0
    %p164 = por %p162, %p163
    %s165 = ssub.s32 %s18, %s30
    %s166 = ssub.s32 %s19, %s26
    %s167 = sor.u32 %s165, %s166
    %p168 = scmp.eq.s32.totalorder %s167, 0
    %s170 = sadd.s32 %s169, 1
    %s171 = scalar_select %p168, %s169, %s170
    %p174 = pneg %p168
    %p175 = scmp.eq.s32.totalorder %s11, 3
    %p176 = por %p174, %p175
    %p177 = scmp.ne.s32.totalorder %s169, %s172
    %p178 = scmp.eq.s32.totalorder %s11, 0
    %p179 = por %p177, %p178
    %p180 = scmp.ne.s32.totalorder %s169, %s172
    %p181 = scmp.eq.s32.totalorder %s16, 3
    %p182 = por %p180, %p181
    %p183 = scmp.ne.s32.totalorder %s172, %s173
    %p184 = scmp.eq.s32.totalorder %s16, 0
    %p185 = por %p183, %p184
    %p186 = scmp.ne.s32.totalorder %s172, %s173
    %p187 = scmp.eq.s32.totalorder %s17, 3
    %p188 = por %p186, %p187
    %p190 = scmp.ne.s32.totalorder %s173, %s189
    %p191 = scmp.eq.s32.totalorder %s17, 0
    %p192 = por %p190, %p191
    %p193 = scmp.le.s32.totalorder 1, %s11
    %p194 = scmp.lt.s32.totalorder %s11, 5
    %p195 = pnand %p193, %p194
    %p196 = pneg %p195
    // Predicated region
    $region9: #{_lambda_.8} parent=5 // pred_check
      _
    $region10: #{_lambda_.8} parent=5 // pred_check_branch
      %198 = sbr.rel (%p195) target = $region12
    $region11: #{_lambda_.8} parent=5 // pred_region
      %s199 = ssub.s32 %s11, 1
      // Predicated region
      $region13: #{_lambda_.8} parent=11 // pred_check
        %p200 = pneg %p136
      $region14: #{_lambda_.8} parent=11 // pred_check_branch
        %202 = sbr.rel (%p200) target = $region16
      $region15: #{_lambda_.8} parent=11 // pred_region
        _
      $region16: #{_lambda_.8} parent=11 // pred_fallthru
        _
      // Predicated region
      $region17: #{_lambda_.8} parent=11 // pred_check
        %p203 = pneg %p157
      $region18: #{_lambda_.8} parent=11 // pred_check_branch
        %205 = sbr.rel (%p203) target = $region20
      $region19: #{_lambda_.8} parent=11 // pred_region
        _
      $region20: #{_lambda_.8} parent=11 // pred_fallthru
        _
    $region12: #{_lambda_.8} parent=5 // pred_fallthru
      _
    %p206 = scmp.lt.s32.totalorder %s11, 4
    // Predicated region
    $region21: #{_lambda_.8} parent=5 // pred_check
      %p207 = pneg %p206
    $region22: #{_lambda_.8} parent=5 // pred_check_branch
      %209 = sbr.rel (%p207) target = $region24
    $region23: #{_lambda_.8} parent=5 // pred_region
      // Predicated region
      $region25: #{_lambda_.8} parent=23 // pred_check
        %p210 = pneg %p45
      $region26: #{_lambda_.8} parent=23 // pred_check_branch
        %212 = sbr.rel (%p210) target = $region28
      $region27: #{_lambda_.8} parent=23 // pred_region
        %s213 = smul.u32 16, %s19
        %s214 = ssub.s32 18, %s213
        %p215 = scmp.lt.s32.totalorder %s214, 16
        %s216 = scalar_select %p215, %s214, 16
        %s217 = smul.u32 4, %s216
        %s218 = smul.u32 %s217, 3
        %p219 = scmp.lt.s32.totalorder %s18, 3
        %s220 = scalar_select %p219, %s18, 3
        %p221 = scmp.lt.s32.totalorder %s213, 17
        %s222 = scalar_select %p221, %s213, 17
        %s223 = smul.addr %s222, 3
        %s224 = smul.addr %s220, 54
        %s225 = sadd.s32 %s223, %s224
        %s226 = smul.addr %s225, 4
        %s227 = scalar_lea.vmem %s0, %s226
        %s228 = smul.u32 16, %s19
        %s229 = ssub.s32 18, %s228
        %p230 = scmp.lt.s32.totalorder %s229, 16
        %s231 = scalar_select %p230, %s229, 16
        %s232 = smul.u32 4, %s231
        %s233 = smul.u32 %s232, 3
      $region28: #{_lambda_.8} parent=23 // pred_fallthru
        _
      // Predicated region
      $region29: #{_lambda_.8} parent=23 // pred_check
        %p234 = pneg %p77
      $region30: #{_lambda_.8} parent=23 // pred_check_branch
        %236 = sbr.rel (%p234) target = $region32
      $region31: #{_lambda_.8} parent=23 // pred_region
        %s237 = smul.u32 %s19, 16
        %s238 = sadd.s32 %s237, 16
        %p239 = scmp.lt.s32.totalorder %s18, 3
        %s240 = scalar_select %p239, %s18, 3
        %p241 = scmp.lt.s32.totalorder %s238, 17
        %s242 = scalar_select %p241, %s238, 17
        %s243 = smul.addr %s242, 3
        %s244 = smul.addr %s240, 54
        %s245 = sadd.s32 %s243, %s244
        %s246 = smul.addr %s245, 4
        %s247 = scalar_lea.vmem %s1, %s246
        %s248 = smul.u32 %s19, 16
        %s249 = sadd.s32 %s248, 16
      $region32: #{_lambda_.8} parent=23 // pred_fallthru
        _
      // Predicated region
      $region33: #{_lambda_.8} parent=23 // pred_check
        %p250 = pneg %p109
      $region34: #{_lambda_.8} parent=23 // pred_check_branch
        %252 = sbr.rel (%p250) target = $region36
      $region35: #{_lambda_.8} parent=23 // pred_region
        %s253 = smul.u32 %s19, 16
        %s254 = sadd.s32 %s253, 17
        %p255 = scmp.lt.s32.totalorder %s18, 3
        %s256 = scalar_select %p255, %s18, 3
        %p257 = scmp.lt.s32.totalorder %s254, 17
        %s258 = scalar_select %p257, %s254, 17
        %s259 = smul.addr %s258, 3
        %s260 = smul.addr %s256, 54
        %s261 = sadd.s32 %s259, %s260
        %s262 = smul.addr %s261, 4
        %s263 = scalar_lea.vmem %s2, %s262
        %s264 = smul.u32 %s19, 16
        %s265 = sadd.s32 %s264, 17
      $region36: #{_lambda_.8} parent=23 // pred_fallthru
        _
    $region24: #{_lambda_.8} parent=5 // pred_fallthru
      _
    %p266 = scmp.le.s32.totalorder 1, %s11
    %p267 = scmp.lt.s32.totalorder %s11, 5
    %p268 = pnand %p266, %p267
    %p269 = pneg %p268
    // Predicated region
    $region37: #{_lambda_.8} parent=5 // pred_check
      _
    $region38: #{_lambda_.8} parent=5 // pred_check_branch
      %271 = sbr.rel (%p268) target = $region40
    $region39: #{_lambda_.8} parent=5 // pred_region
      %s272 = ssub.s32 %s11, 1
      %s273 = smul.u32 16, %s21
      %s274 = ssub.s32 18, %s273
      %p275 = scmp.lt.s32.totalorder %s274, 16
      %s276 = scalar_select %p275, %s274, 16
      %s277 = smul.u32 4, %s276
      %s278 = smul.u32 %s277, 3
      %p279 = scmp.lt.s32.totalorder %s20, 3
      %s280 = scalar_select %p279, %s20, 3
      %p281 = scmp.lt.s32.totalorder %s273, 17
      %s282 = scalar_select %p281, %s273, 17
      %s283 = smul.addr %s282, 3
      %s284 = smul.addr %s280, 54
      %s285 = sadd.s32 %s283, %s284
      %s286 = smul.addr %s285, 4
      %s287 = scalar_lea.vmem %s0, %s286
      %p288 = pneg %p51
      %p289 = pneg %p48
      %s290 = smul.u32 %s21, 16
      %s291 = sadd.s32 %s290, 16
      %p292 = scmp.lt.s32.totalorder %s20, 3
      %s293 = scalar_select %p292, %s20, 3
      %p294 = scmp.lt.s32.totalorder %s291, 17
      %s295 = scalar_select %p294, %s291, 17
      %s296 = smul.addr %s295, 3
      %s297 = smul.addr %s293, 54
      %s298 = sadd.s32 %s296, %s297
      %s299 = smul.addr %s298, 4
      %s300 = scalar_lea.vmem %s1, %s299
      %p301 = pneg %p83
      %p302 = pneg %p80
      %s303 = smul.u32 %s21, 16
      %s304 = sadd.s32 %s303, 17
      %p305 = scmp.lt.s32.totalorder %s20, 3
      %s306 = scalar_select %p305, %s20, 3
      %p307 = scmp.lt.s32.totalorder %s304, 17
      %s308 = scalar_select %p307, %s304, 17
      %s309 = smul.addr %s308, 3
      %s310 = smul.addr %s306, 54
      %s311 = sadd.s32 %s309, %s310
      %s312 = smul.addr %s311, 4
      %s313 = scalar_lea.vmem %s2, %s312
      %p314 = pneg %p115
      %p315 = pneg %p112
      %p316 = pneg %p136
      %p317 = pneg %p133
      %p318 = pneg %p157
      %p319 = pneg %p154
      %p320 = pneg %p185
      %p321 = pneg %p182
      %s322 = smul.u32 16, %s21
      %p323 = scmp.lt.s32.totalorder %s20, 3
      %s324 = scalar_select %p323, %s20, 3
      %p325 = scmp.lt.s32.totalorder %s322, 15
      %s326 = scalar_select %p325, %s322, 15
      %s327 = smul.addr %s326, 2
      %s328 = smul.addr %s324, 32
      %s329 = sadd.s32 %s327, %s328
      %s330 = smul.addr %s329, 4
      %s331 = scalar_lea.vmem %s5, %s330
      %s332 = smul.u32 16, %s21
      %s333 = ssub.s32 18, %s332
      %p334 = scmp.lt.s32.totalorder %s333, 16
      %s335 = scalar_select %p334, %s333, 16
      %s336 = smul.u32 4, %s335
      %s337 = smul.u32 %s336, 3
      %p338 = scmp.lt.s32.totalorder %s20, 3
      %s339 = scalar_select %p338, %s20, 3
      %p340 = scmp.lt.s32.totalorder %s332, 17
      %s341 = scalar_select %p340, %s332, 17
      %s342 = smul.addr %s341, 3
      %s343 = smul.addr %s339, 54
      %s344 = sadd.s32 %s342, %s343
      %s345 = smul.addr %s344, 4
      %s346 = scalar_lea.vmem %s0, %s345
      %s347 = smul.u32 16, %s21
      %s348 = ssub.s32 18, %s347
      %p349 = scmp.lt.s32.totalorder %s348, 16
      %s350 = scalar_select %p349, %s348, 16
      %s351 = smul.u32 4, %s350
      %s352 = smul.u32 %s351, 3
      %s353 = smul.u32 %s21, 16
      %s354 = sadd.s32 %s353, 16
      %p355 = scmp.lt.s32.totalorder %s20, 3
      %s356 = scalar_select %p355, %s20, 3
      %p357 = scmp.lt.s32.totalorder %s354, 17
      %s358 = scalar_select %p357, %s354, 17
      %s359 = smul.addr %s358, 3
      %s360 = smul.addr %s356, 54
      %s361 = sadd.s32 %s359, %s360
      %s362 = smul.addr %s361, 4
      %s363 = scalar_lea.vmem %s1, %s362
      %s364 = smul.u32 %s21, 16
      %s365 = sadd.s32 %s364, 16
      %s366 = smul.u32 %s21, 16
      %s367 = sadd.s32 %s366, 17
      %p368 = scmp.lt.s32.totalorder %s20, 3
      %s369 = scalar_select %p368, %s20, 3
      %p370 = scmp.lt.s32.totalorder %s367, 17
      %s371 = scalar_select %p370, %s367, 17
      %s372 = smul.addr %s371, 3
      %s373 = smul.addr %s369, 54
      %s374 = sadd.s32 %s372, %s373
      %s375 = smul.addr %s374, 4
      %s376 = scalar_lea.vmem %s2, %s375
      %s377 = smul.u32 %s21, 16
      %s378 = sadd.s32 %s377, 17
      %s379 = smul.u32 16, %s21
      %p380 = scmp.lt.s32.totalorder %s20, 3
      %s381 = scalar_select %p380, %s20, 3
      %p382 = scmp.lt.s32.totalorder %s379, 15
      %s383 = scalar_select %p382, %s379, 15
      %s384 = smul.addr %s383, 2
      %s385 = smul.addr %s381, 32
      %s386 = sadd.s32 %s384, %s385
      %s387 = smul.addr %s386, 4
      %s388 = scalar_lea.vmem %s5, %s387
      %s389 = smul.u32 16, %s21
      %v391 = vld [vmem:[%s346] sm:$0xf]
      %v392 = vld [vmem:[%s346 + $0x4] sm:$0xf]
      %v393 = vld [vmem:[%s346 + $0x8] sm:$0x1]
      %v394 = vld [vmem:[%s346 + $0xc] sm:$0xf]
      %v395 = vld [vmem:[%s346 + $0x10] sm:$0xf]
      %v396 = vld [vmem:[%s346 + $0x14] sm:$0x1]
      %v397 = vld [vmem:[%s346 + $0x18] sm:$0xf]
      %v398 = vld [vmem:[%s346 + $0x1c] sm:$0xf]
      %v399 = vld [vmem:[%s346 + $0x20] sm:$0x1]
      %v400 = vld [vmem:[%s346 + $0x24] sm:$0xf]
      %v401 = vld [vmem:[%s346 + $0x28] sm:$0xf]
      %v402 = vld [vmem:[%s346 + $0x2c] sm:$0x1]
      %v403 = vld [vmem:[%s346 + $0x30] sm:$0xf]
      %v404 = vld [vmem:[%s346 + $0x34] sm:$0xf]
      %v405 = vld [vmem:[%s346 + $0x38] sm:$0x1]
      %v406 = vld [vmem:[%s346 + $0x3c] sm:$0xf]
      %v407 = vld [vmem:[%s346 + $0x40] sm:$0xf]
      %v408 = vld [vmem:[%s346 + $0x44] sm:$0x1]
      %v409 = vld [vmem:[%s346 + $0x48] sm:$0xf]
      %v410 = vld [vmem:[%s346 + $0x4c] sm:$0xf]
      %v411 = vld [vmem:[%s346 + $0x50] sm:$0x1]
      %v412 = vld [vmem:[%s346 + $0x54] sm:$0xf]
      %v413 = vld [vmem:[%s346 + $0x58] sm:$0xf]
      %v414 = vld [vmem:[%s346 + $0x5c] sm:$0x1]
      %v415 = vld [vmem:[%s346 + $0x60] sm:$0xf]
      %v416 = vld [vmem:[%s346 + $0x64] sm:$0xf]
      %v417 = vld [vmem:[%s346 + $0x68] sm:$0x1]
      %v418 = vld [vmem:[%s346 + $0x6c] sm:$0xf]
      %v419 = vld [vmem:[%s346 + $0x70] sm:$0xf]
      %v420 = vld [vmem:[%s346 + $0x74] sm:$0x1]
      %v421 = vld [vmem:[%s346 + $0x78] sm:$0xf]
      %v422 = vld [vmem:[%s346 + $0x7c] sm:$0xf]
      %v423 = vld [vmem:[%s346 + $0x80] sm:$0x1]
      %v424 = vld [vmem:[%s346 + $0x84] sm:$0xf]
      %v425 = vld [vmem:[%s346 + $0x88] sm:$0xf]
      %v426 = vld [vmem:[%s346 + $0x8c] sm:$0x1]
      %v427 = vld [vmem:[%s346 + $0x90] sm:$0xf]
      %v428 = vld [vmem:[%s346 + $0x94] sm:$0xf]
      %v429 = vld [vmem:[%s346 + $0x98] sm:$0x1]
      %v430 = vld [vmem:[%s346 + $0x9c] sm:$0xf]
      %v431 = vld [vmem:[%s346 + $0xa0] sm:$0xf]
      %v432 = vld [vmem:[%s346 + $0xa4] sm:$0x1]
      %v433 = vld [vmem:[%s346 + $0xa8] sm:$0xf]
      %v434 = vld [vmem:[%s346 + $0xac] sm:$0xf]
      %v435 = vld [vmem:[%s346 + $0xb0] sm:$0x1]
      %v436 = vld [vmem:[%s346 + $0xb4] sm:$0xf]
      %v437 = vld [vmem:[%s346 + $0xb8] sm:$0xf]
      %v438 = vld [vmem:[%s346 + $0xbc] sm:$0x1]
      %vm439 = vcmask 519168
      %440 = vst.msk [vmem:[#allocation2] sm:$0xf] %vm439, %v391
      %441 = vst.msk [vmem:[#allocation2 + $0x4] sm:$0xf] %vm439, %v392
      %vm442 = vcmask 516096
      %443 = vst.msk [vmem:[#allocation2 + $0x8] sm:$0x1] %vm442, %v393
      %444 = vst.msk [vmem:[#allocation2 + $0xc] sm:$0xf] %vm439, %v394
      %445 = vst.msk [vmem:[#allocation2 + $0x10] sm:$0xf] %vm439, %v395
      %446 = vst.msk [vmem:[#allocation2 + $0x14] sm:$0x1] %vm442, %v396
      %447 = vst.msk [vmem:[#allocation2 + $0x18] sm:$0xf] %vm439, %v397
      %448 = vst.msk [vmem:[#allocation2 + $0x1c] sm:$0xf] %vm439, %v398
      %449 = vst.msk [vmem:[#allocation2 + $0x20] sm:$0x1] %vm442, %v399
      %450 = vst.msk [vmem:[#allocation2 + $0x24] sm:$0xf] %vm439, %v400
      %451 = vst.msk [vmem:[#allocation2 + $0x28] sm:$0xf] %vm439, %v401
      %452 = vst.msk [vmem:[#allocation2 + $0x2c] sm:$0x1] %vm442, %v402
      %453 = vst.msk [vmem:[#allocation2 + $0x30] sm:$0xf] %vm439, %v403
      %454 = vst.msk [vmem:[#allocation2 + $0x34] sm:$0xf] %vm439, %v404
      %455 = vst.msk [vmem:[#allocation2 + $0x38] sm:$0x1] %vm442, %v405
      %456 = vst.msk [vmem:[#allocation2 + $0x3c] sm:$0xf] %vm439, %v406
      %457 = vst.msk [vmem:[#allocation2 + $0x40] sm:$0xf] %vm439, %v407
      %458 = vst.msk [vmem:[#allocation2 + $0x44] sm:$0x1] %vm442, %v408
      %459 = vst.msk [vmem:[#allocation2 + $0x48] sm:$0xf] %vm439, %v409
      %460 = vst.msk [vmem:[#allocation2 + $0x4c] sm:$0xf] %vm439, %v410
      %461 = vst.msk [vmem:[#allocation2 + $0x50] sm:$0x1] %vm442, %v411
      %462 = vst.msk [vmem:[#allocation2 + $0x54] sm:$0xf] %vm439, %v412
      %463 = vst.msk [vmem:[#allocation2 + $0x58] sm:$0xf] %vm439, %v413
      %464 = vst.msk [vmem:[#allocation2 + $0x5c] sm:$0x1] %vm442, %v414
      %465 = vst.msk [vmem:[#allocation2 + $0x60] sm:$0xf] %vm439, %v415
      %466 = vst.msk [vmem:[#allocation2 + $0x64] sm:$0xf] %vm439, %v416
      %467 = vst.msk [vmem:[#allocation2 + $0x68] sm:$0x1] %vm442, %v417
      %468 = vst.msk [vmem:[#allocation2 + $0x6c] sm:$0xf] %vm439, %v418
      %469 = vst.msk [vmem:[#allocation2 + $0x70] sm:$0xf] %vm439, %v419
      %470 = vst.msk [vmem:[#allocation2 + $0x74] sm:$0x1] %vm442, %v420
      %471 = vst.msk [vmem:[#allocation2 + $0x78] sm:$0xf] %vm439, %v421
      %472 = vst.msk [vmem:[#allocation2 + $0x7c] sm:$0xf] %vm439, %v422
      %473 = vst.msk [vmem:[#allocation2 + $0x80] sm:$0x1] %vm442, %v423
      %474 = vst.msk [vmem:[#allocation2 + $0x84] sm:$0xf] %vm439, %v424
      %475 = vst.msk [vmem:[#allocation2 + $0x88] sm:$0xf] %vm439, %v425
      %476 = vst.msk [vmem:[#allocation2 + $0x8c] sm:$0x1] %vm442, %v426
      %477 = vst.msk [vmem:[#allocation2 + $0x90] sm:$0xf] %vm439, %v427
      %478 = vst.msk [vmem:[#allocation2 + $0x94] sm:$0xf] %vm439, %v428
      %479 = vst.msk [vmem:[#allocation2 + $0x98] sm:$0x1] %vm442, %v429
      %480 = vst.msk [vmem:[#allocation2 + $0x9c] sm:$0xf] %vm439, %v430
      %481 = vst.msk [vmem:[#allocation2 + $0xa0] sm:$0xf] %vm439, %v431
      %482 = vst.msk [vmem:[#allocation2 + $0xa4] sm:$0x1] %vm442, %v432
      %483 = vst.msk [vmem:[#allocation2 + $0xa8] sm:$0xf] %vm439, %v433
      %484 = vst.msk [vmem:[#allocation2 + $0xac] sm:$0xf] %vm439, %v434
      %485 = vst.msk [vmem:[#allocation2 + $0xb0] sm:$0x1] %vm442, %v435
      %486 = vst.msk [vmem:[#allocation2 + $0xb4] sm:$0xf] %vm439, %v436
      %487 = vst.msk [vmem:[#allocation2 + $0xb8] sm:$0xf] %vm439, %v437
      %488 = vst.msk [vmem:[#allocation2 + $0xbc] sm:$0x1] %vm442, %v438
      %v489 = vld [vmem:[%s363] sm:$0xf]
      %v490 = vld [vmem:[%s363 + $0x4] sm:$0xf]
      %v491 = vld [vmem:[%s363 + $0x8] sm:$0x1]
      %s492 = scalar_lea.vmem [#allocation2], 192
      %493 = vst.msk [vmem:[%s492] sm:$0xf] %vm439, %v489
      %494 = vst.msk [vmem:[%s492 + $0x4] sm:$0xf] %vm439, %v490
      %495 = vst.msk [vmem:[%s492 + $0x8] sm:$0x1] %vm442, %v491
      %v496 = vld [vmem:[%s376] sm:$0xf]
      %v497 = vld [vmem:[%s376 + $0x4] sm:$0xf]
      %v498 = vld [vmem:[%s376 + $0x8] sm:$0x1]
      %s499 = scalar_lea.vmem [#allocation2], 204
      %500 = vst.msk [vmem:[%s499] sm:$0xf] %vm439, %v496
      %501 = vst.msk [vmem:[%s499 + $0x4] sm:$0xf] %vm439, %v497
      %502 = vst.msk [vmem:[%s499 + $0x8] sm:$0x1] %vm442, %v498
      %v503 = vld [vmem:[#allocation2] sm:$0xf]
      %v504 = vld [vmem:[#allocation2 + $0x4] sm:$0xf]
      %v505 = vld [vmem:[#allocation2 + $0xc] sm:$0xf]
      %v506 = vld [vmem:[#allocation2 + $0x10] sm:$0xf]
      %v507 = vld [vmem:[#allocation2 + $0x18] sm:$0xf]
      %v508 = vld [vmem:[#allocation2 + $0x1c] sm:$0xf]
      %v509 = vld [vmem:[#allocation2 + $0x24] sm:$0xf]
      %v510 = vld [vmem:[#allocation2 + $0x28] sm:$0xf]
      %v511 = vld [vmem:[#allocation2 + $0x30] sm:$0xf]
      %v512 = vld [vmem:[#allocation2 + $0x34] sm:$0xf]
      %v513 = vld [vmem:[#allocation2 + $0x3c] sm:$0xf]
      %v514 = vld [vmem:[#allocation2 + $0x40] sm:$0xf]
      %v515 = vld [vmem:[#allocation2 + $0x48] sm:$0xf]
      %v516 = vld [vmem:[#allocation2 + $0x4c] sm:$0xf]
      %v517 = vld [vmem:[#allocation2 + $0x54] sm:$0xf]
      %v518 = vld [vmem:[#allocation2 + $0x58] sm:$0xf]
      %v519 = vld [vmem:[#allocation2 + $0x60] sm:$0xf]
      %v520 = vld [vmem:[#allocation2 + $0x64] sm:$0xf]
      %v521 = vld [vmem:[#allocation2 + $0x6c] sm:$0xf]
      %v522 = vld [vmem:[#allocation2 + $0x70] sm:$0xf]
      %v523 = vld [vmem:[#allocation2 + $0x78] sm:$0xf]
      %v524 = vld [vmem:[#allocation2 + $0x7c] sm:$0xf]
      %v525 = vld [vmem:[#allocation2 + $0x84] sm:$0xf]
      %v526 = vld [vmem:[#allocation2 + $0x88] sm:$0xf]
      %v527 = vld [vmem:[#allocation2 + $0x90] sm:$0xf]
      %v528 = vld [vmem:[#allocation2 + $0x94] sm:$0xf]
      %v529 = vld [vmem:[#allocation2 + $0x9c] sm:$0xf]
      %v530 = vld [vmem:[#allocation2 + $0xa0] sm:$0xf]
      %v531 = vld [vmem:[#allocation2 + $0xa8] sm:$0xf]
      %v532 = vld [vmem:[#allocation2 + $0xac] sm:$0xf]
      %v533 = vld [vmem:[#allocation2 + $0xb4] sm:$0xf]
      %v534 = vld [vmem:[#allocation2 + $0xb8] sm:$0xf]
      %v535 = vld [vmem:[#allocation2 + $0x8] sm:$0x1]
      %v536 = vld [vmem:[#allocation2 + $0x14] sm:$0x1]
      %v537 = vld [vmem:[#allocation2 + $0x20] sm:$0x1]
      %v538 = vld [vmem:[#allocation2 + $0x2c] sm:$0x1]
      %v539 = vld [vmem:[#allocation2 + $0x38] sm:$0x1]
      %v540 = vld [vmem:[#allocation2 + $0x44] sm:$0x1]
      %v541 = vld [vmem:[#allocation2 + $0x50] sm:$0x1]
      %v542 = vld [vmem:[#allocation2 + $0x5c] sm:$0x1]
      %v543 = vld [vmem:[#allocation2 + $0x68] sm:$0x1]
      %v544 = vld [vmem:[#allocation2 + $0x74] sm:$0x1]
      %v545 = vld [vmem:[#allocation2 + $0x80] sm:$0x1]
      %v546 = vld [vmem:[#allocation2 + $0x8c] sm:$0x1]
      %v547 = vld [vmem:[#allocation2 + $0x98] sm:$0x1]
      %v548 = vld [vmem:[#allocation2 + $0xa4] sm:$0x1]
      %v549 = vld [vmem:[#allocation2 + $0xb0] sm:$0x1]
      %v550 = vld [vmem:[#allocation2 + $0xbc] sm:$0x1]
      %v551 = vld [vmem:[#allocation2] sm:$0xe]
      %v552 = vld [vmem:[#allocation2 + $0xc] sm:$0xe]
      %v553 = vld [vmem:[#allocation2 + $0x18] sm:$0xe]
      %v554 = vld [vmem:[#allocation2 + $0x24] sm:$0xe]
      %v555 = vld [vmem:[#allocation2 + $0x30] sm:$0xe]
      %v556 = vld [vmem:[#allocation2 + $0x3c] sm:$0xe]
      %v557 = vld [vmem:[#allocation2 + $0x48] sm:$0xe]
      %v558 = vld [vmem:[#allocation2 + $0x54] sm:$0xe]
      %v559 = vld [vmem:[#allocation2 + $0x60] sm:$0xe]
      %v560 = vld [vmem:[#allocation2 + $0x6c] sm:$0xe]
      %v561 = vld [vmem:[#allocation2 + $0x78] sm:$0xe]
      %v562 = vld [vmem:[#allocation2 + $0x84] sm:$0xe]
      %v563 = vld [vmem:[#allocation2 + $0x90] sm:$0xe]
      %v564 = vld [vmem:[#allocation2 + $0x9c] sm:$0xe]
      %v565 = vld [vmem:[#allocation2 + $0xa8] sm:$0xe]
      %v566 = vld [vmem:[#allocation2 + $0xb4] sm:$0xe]
      %v599 = vunpack.c.l.b16 %v503
      %v600 = vunpack.c.l.b16 %v504
      %v601 = vunpack.c.l.b16 %v505
      %v602 = vunpack.c.l.b16 %v506
      %v603 = vunpack.c.l.b16 %v507
      %v604 = vunpack.c.l.b16 %v508
      %v605 = vunpack.c.l.b16 %v509
      %v606 = vunpack.c.l.b16 %v510
      %v607 = vunpack.c.l.b16 %v511
      %v608 = vunpack.c.l.b16 %v512
      %v609 = vunpack.c.l.b16 %v513
      %v610 = vunpack.c.l.b16 %v514
      %v611 = vunpack.c.l.b16 %v515
      %v612 = vunpack.c.l.b16 %v516
      %v613 = vunpack.c.l.b16 %v517
      %v614 = vunpack.c.l.b16 %v518
      %v615 = vunpack.c.l.b16 %v519
      %v616 = vunpack.c.l.b16 %v520
      %v617 = vunpack.c.l.b16 %v521
      %v618 = vunpack.c.l.b16 %v522
      %v619 = vunpack.c.l.b16 %v523
      %v620 = vunpack.c.l.b16 %v524
      %v621 = vunpack.c.l.b16 %v525
      %v622 = vunpack.c.l.b16 %v526
      %v623 = vunpack.c.l.b16 %v527
      %v624 = vunpack.c.l.b16 %v528
      %v625 = vunpack.c.l.b16 %v529
      %v626 = vunpack.c.l.b16 %v530
      %v627 = vunpack.c.l.b16 %v531
      %v628 = vunpack.c.l.b16 %v532
      %v629 = vunpack.c.l.b16 %v533
      %v630 = vunpack.c.l.b16 %v534
      %v631 = vpack.c.b16 %v600, %v599
      %v632 = vpack.c.b16 %v602, %v601
      %v633 = vpack.c.b16 %v604, %v603
      %v634 = vpack.c.b16 %v606, %v605
      %v635 = vpack.c.b16 %v608, %v607
      %v636 = vpack.c.b16 %v610, %v609
      %v637 = vpack.c.b16 %v612, %v611
      %v638 = vpack.c.b16 %v614, %v613
      %v639 = vpack.c.b16 %v616, %v615
      %v640 = vpack.c.b16 %v618, %v617
      %v641 = vpack.c.b16 %v620, %v619
      %v642 = vpack.c.b16 %v622, %v621
      %v643 = vpack.c.b16 %v624, %v623
      %v644 = vpack.c.b16 %v626, %v625
      %v645 = vpack.c.b16 %v628, %v627
      %v646 = vpack.c.b16 %v630, %v629
      %v663 = vunpack.c.l.b16 %v535
      %v664 = vunpack.c.l.b16 %v536
      %v665 = vunpack.c.l.b16 %v537
      %v666 = vunpack.c.l.b16 %v538
      %v667 = vunpack.c.l.b16 %v539
      %v668 = vunpack.c.l.b16 %v540
      %v669 = vunpack.c.l.b16 %v541
      %v670 = vunpack.c.l.b16 %v542
      %v671 = vunpack.c.l.b16 %v543
      %v672 = vunpack.c.l.b16 %v544
      %v673 = vunpack.c.l.b16 %v545
      %v674 = vunpack.c.l.b16 %v546
      %v675 = vunpack.c.l.b16 %v547
      %v676 = vunpack.c.l.b16 %v548
      %v677 = vunpack.c.l.b16 %v549
      %v678 = vunpack.c.l.b16 %v550
      %v679 = vpack.c.b16 %v663, %v663
      %v680 = vpack.c.b16 %v664, %v664
      %v681 = vpack.c.b16 %v665, %v665
      %v682 = vpack.c.b16 %v666, %v666
      %v683 = vpack.c.b16 %v667, %v667
      %v684 = vpack.c.b16 %v668, %v668
      %v685 = vpack.c.b16 %v669, %v669
      %v686 = vpack.c.b16 %v670, %v670
      %v687 = vpack.c.b16 %v671, %v671
      %v688 = vpack.c.b16 %v672, %v672
      %v689 = vpack.c.b16 %v673, %v673
      %v690 = vpack.c.b16 %v674, %v674
      %v691 = vpack.c.b16 %v675, %v675
      %v692 = vpack.c.b16 %v676, %v676
      %v693 = vpack.c.b16 %v677, %v677
      %v694 = vpack.c.b16 %v678, %v678
      %vm695 = vsmask.f32 7424
      %v697 = vshrl.u32 %v631, 16
      %v699 = vshll.u32 %v631, 16
      %v701 = vrot.slane %v699, 1
      %v702 = vor.u32 %v697, %v701
      %v704 = vshll.u32 %v679, 16
      %v706 = vrot.slane %v704, 1
      %v707 = vsel %vm695, %v702, %v706
      %v709 = vshrl.u32 %v632, 16
      %v711 = vshll.u32 %v632, 16
      %v713 = vrot.slane %v711, 1
      %v714 = vor.u32 %v709, %v713
      %v716 = vshll.u32 %v680, 16
      %v718 = vrot.slane %v716, 1
      %v719 = vsel %vm695, %v714, %v718
      %v721 = vshrl.u32 %v633, 16
      %v723 = vshll.u32 %v633, 16
      %v725 = vrot.slane %v723, 1
      %v726 = vor.u32 %v721, %v725
      %v728 = vshll.u32 %v681, 16
      %v730 = vrot.slane %v728, 1
      %v731 = vsel %vm695, %v726, %v730
      %v733 = vshrl.u32 %v634, 16
      %v735 = vshll.u32 %v634, 16
      %v737 = vrot.slane %v735, 1
      %v738 = vor.u32 %v733, %v737
      %v740 = vshll.u32 %v682, 16
      %v742 = vrot.slane %v740, 1
      %v743 = vsel %vm695, %v738, %v742
      %v745 = vshrl.u32 %v635, 16
      %v747 = vshll.u32 %v635, 16
      %v749 = vrot.slane %v747, 1
      %v750 = vor.u32 %v745, %v749
      %v752 = vshll.u32 %v683, 16
      %v754 = vrot.slane %v752, 1
      %v755 = vsel %vm695, %v750, %v754
      %v757 = vshrl.u32 %v636, 16
      %v759 = vshll.u32 %v636, 16
      %v761 = vrot.slane %v759, 1
      %v762 = vor.u32 %v757, %v761
      %v764 = vshll.u32 %v684, 16
      %v766 = vrot.slane %v764, 1
      %v767 = vsel %vm695, %v762, %v766
      %v769 = vshrl.u32 %v637, 16
      %v771 = vshll.u32 %v637, 16
      %v773 = vrot.slane %v771, 1
      %v774 = vor.u32 %v769, %v773
      %v776 = vshll.u32 %v685, 16
      %v778 = vrot.slane %v776, 1
      %v779 = vsel %vm695, %v774, %v778
      %v781 = vshrl.u32 %v638, 16
      %v783 = vshll.u32 %v638, 16
      %v785 = vrot.slane %v783, 1
      %v786 = vor.u32 %v781, %v785
      %v788 = vshll.u32 %v686, 16
      %v790 = vrot.slane %v788, 1
      %v791 = vsel %vm695, %v786, %v790
      %v793 = vshrl.u32 %v639, 16
      %v795 = vshll.u32 %v639, 16
      %v797 = vrot.slane %v795, 1
      %v798 = vor.u32 %v793, %v797
      %v800 = vshll.u32 %v687, 16
      %v802 = vrot.slane %v800, 1
      %v803 = vsel %vm695, %v798, %v802
      %v805 = vshrl.u32 %v640, 16
      %v807 = vshll.u32 %v640, 16
      %v809 = vrot.slane %v807, 1
      %v810 = vor.u32 %v805, %v809
      %v812 = vshll.u32 %v688, 16
      %v814 = vrot.slane %v812, 1
      %v815 = vsel %vm695, %v810, %v814
      %v817 = vshrl.u32 %v641, 16
      %v819 = vshll.u32 %v641, 16
      %v821 = vrot.slane %v819, 1
      %v822 = vor.u32 %v817, %v821
      %v824 = vshll.u32 %v689, 16
      %v826 = vrot.slane %v824, 1
      %v827 = vsel %vm695, %v822, %v826
      %v829 = vshrl.u32 %v642, 16
      %v831 = vshll.u32 %v642, 16
      %v833 = vrot.slane %v831, 1
      %v834 = vor.u32 %v829, %v833
      %v836 = vshll.u32 %v690, 16
      %v838 = vrot.slane %v836, 1
      %v839 = vsel %vm695, %v834, %v838
      %v841 = vshrl.u32 %v643, 16
      %v843 = vshll.u32 %v643, 16
      %v845 = vrot.slane %v843, 1
      %v846 = vor.u32 %v841, %v845
      %v848 = vshll.u32 %v691, 16
      %v850 = vrot.slane %v848, 1
      %v851 = vsel %vm695, %v846, %v850
      %v853 = vshrl.u32 %v644, 16
      %v855 = vshll.u32 %v644, 16
      %v857 = vrot.slane %v855, 1
      %v858 = vor.u32 %v853, %v857
      %v860 = vshll.u32 %v692, 16
      %v862 = vrot.slane %v860, 1
      %v863 = vsel %vm695, %v858, %v862
      %v865 = vshrl.u32 %v645, 16
      %v867 = vshll.u32 %v645, 16
      %v869 = vrot.slane %v867, 1
      %v870 = vor.u32 %v865, %v869
      %v872 = vshll.u32 %v693, 16
      %v874 = vrot.slane %v872, 1
      %v875 = vsel %vm695, %v870, %v874
      %v877 = vshrl.u32 %v646, 16
      %v879 = vshll.u32 %v646, 16
      %v881 = vrot.slane %v879, 1
      %v882 = vor.u32 %v877, %v881
      %v884 = vshll.u32 %v694, 16
      %v886 = vrot.slane %v884, 1
      %v887 = vsel %vm695, %v882, %v886
      %888 = vrot.lane.b32.xlu0 %v707, 64
      %v889 = vpop.permute.xlu0 %888
      %890 = vrot.lane.b32.xlu0 %v719, 64
      %v891 = vpop.permute.xlu0 %890
      %892 = vrot.lane.b32.xlu0 %v731, 64
      %v893 = vpop.permute.xlu0 %892
      %894 = vrot.lane.b32.xlu0 %v743, 64
      %v895 = vpop.permute.xlu0 %894
      %896 = vrot.lane.b32.xlu0 %v755, 64
      %v897 = vpop.permute.xlu0 %896
      %898 = vrot.lane.b32.xlu0 %v767, 64
      %v899 = vpop.permute.xlu0 %898
      %900 = vrot.lane.b32.xlu0 %v779, 64
      %v901 = vpop.permute.xlu0 %900
      %902 = vrot.lane.b32.xlu0 %v791, 64
      %v903 = vpop.permute.xlu0 %902
      %904 = vrot.lane.b32.xlu0 %v803, 64
      %v905 = vpop.permute.xlu0 %904
      %906 = vrot.lane.b32.xlu0 %v815, 64
      %v907 = vpop.permute.xlu0 %906
      %908 = vrot.lane.b32.xlu0 %v827, 64
      %v909 = vpop.permute.xlu0 %908
      %910 = vrot.lane.b32.xlu0 %v839, 64
      %v911 = vpop.permute.xlu0 %910
      %912 = vrot.lane.b32.xlu0 %v851, 64
      %v913 = vpop.permute.xlu0 %912
      %914 = vrot.lane.b32.xlu0 %v863, 64
      %v915 = vpop.permute.xlu0 %914
      %916 = vrot.lane.b32.xlu0 %v875, 64
      %v917 = vpop.permute.xlu0 %916
      %918 = vrot.lane.b32.xlu0 %v887, 64
      %v919 = vpop.permute.xlu0 %918
      %v936 = vunpack.c.l.b16 %v551
      %v937 = vunpack.c.l.b16 %v552
      %v938 = vunpack.c.l.b16 %v553
      %v939 = vunpack.c.l.b16 %v554
      %v940 = vunpack.c.l.b16 %v555
      %v941 = vunpack.c.l.b16 %v556
      %v942 = vunpack.c.l.b16 %v557
      %v943 = vunpack.c.l.b16 %v558
      %v944 = vunpack.c.l.b16 %v559
      %v945 = vunpack.c.l.b16 %v560
      %v946 = vunpack.c.l.b16 %v561
      %v947 = vunpack.c.l.b16 %v562
      %v948 = vunpack.c.l.b16 %v563
      %v949 = vunpack.c.l.b16 %v564
      %v950 = vunpack.c.l.b16 %v565
      %v951 = vunpack.c.l.b16 %v566
      %v952 = vpack.c.b16 %v600, %v936
      %v953 = vpack.c.b16 %v602, %v937
      %v954 = vpack.c.b16 %v604, %v938
      %v955 = vpack.c.b16 %v606, %v939
      %v956 = vpack.c.b16 %v608, %v940
      %v957 = vpack.c.b16 %v610, %v941
      %v958 = vpack.c.b16 %v612, %v942
      %v959 = vpack.c.b16 %v614, %v943
      %v960 = vpack.c.b16 %v616, %v944
      %v961 = vpack.c.b16 %v618, %v945
      %v962 = vpack.c.b16 %v620, %v946
      %v963 = vpack.c.b16 %v622, %v947
      %v964 = vpack.c.b16 %v624, %v948
      %v965 = vpack.c.b16 %v626, %v949
      %v966 = vpack.c.b16 %v628, %v950
      %v967 = vpack.c.b16 %v630, %v951
      %vm968 = vcmask 1046528
      %v969 = vrot.slane %v952, 1
      %v970 = vrot.slane %v679, 1
      %v971 = vsel %vm968, %v969, %v970
      %v972 = vrot.slane %v953, 1
      %v973 = vrot.slane %v680, 1
      %v974 = vsel %vm968, %v972, %v973
      %v975 = vrot.slane %v954, 1
      %v976 = vrot.slane %v681, 1
      %v977 = vsel %vm968, %v975, %v976
      %v978 = vrot.slane %v955, 1
      %v979 = vrot.slane %v682, 1
      %v980 = vsel %vm968, %v978, %v979
      %v981 = vrot.slane %v956, 1
      %v982 = vrot.slane %v683, 1
      %v983 = vsel %vm968, %v981, %v982
      %v984 = vrot.slane %v957, 1
      %v985 = vrot.slane %v684, 1
      %v986 = vsel %vm968, %v984, %v985
      %v987 = vrot.slane %v958, 1
      %v988 = vrot.slane %v685, 1
      %v989 = vsel %vm968, %v987, %v988
      %v990 = vrot.slane %v959, 1
      %v991 = vrot.slane %v686, 1
      %v992 = vsel %vm968, %v990, %v991
      %v993 = vrot.slane %v960, 1
      %v994 = vrot.slane %v687, 1
      %v995 = vsel %vm968, %v993, %v994
      %v996 = vrot.slane %v961, 1
      %v997 = vrot.slane %v688, 1
      %v998 = vsel %vm968, %v996, %v997
      %v999 = vrot.slane %v962, 1
      %v1000 = vrot.slane %v689, 1
      %v1001 = vsel %vm968, %v999, %v1000
      %v1002 = vrot.slane %v963, 1
      %v1003 = vrot.slane %v690, 1
      %v1004 = vsel %vm968, %v1002, %v1003
      %v1005 = vrot.slane %v964, 1
      %v1006 = vrot.slane %v691, 1
      %v1007 = vsel %vm968, %v1005, %v1006
      %v1008 = vrot.slane %v965, 1
      %v1009 = vrot.slane %v692, 1
      %v1010 = vsel %vm968, %v1008, %v1009
      %v1011 = vrot.slane %v966, 1
      %v1012 = vrot.slane %v693, 1
      %v1013 = vsel %vm968, %v1011, %v1012
      %v1014 = vrot.slane %v967, 1
      %v1015 = vrot.slane %v694, 1
      %v1016 = vsel %vm968, %v1014, %v1015
      %vm1017 = vcmask 523264
      %v1019 = vsel %vm1017, %v631, %v889
      %v1022 = vsel %vm1017, %v632, %v891
      %v1025 = vsel %vm1017, %v633, %v893
      %v1028 = vsel %vm1017, %v634, %v895
      %v1031 = vsel %vm1017, %v635, %v897
      %v1034 = vsel %vm1017, %v636, %v899
      %v1037 = vsel %vm1017, %v637, %v901
      %v1040 = vsel %vm1017, %v638, %v903
      %v1043 = vsel %vm1017, %v639, %v905
      %v1046 = vsel %vm1017, %v640, %v907
      %v1049 = vsel %vm1017, %v641, %v909
      %v1052 = vsel %vm1017, %v642, %v911
      %v1055 = vsel %vm1017, %v643, %v913
      %v1058 = vsel %vm1017, %v644, %v915
      %v1061 = vsel %vm1017, %v645, %v917
      %v1064 = vsel %vm1017, %v646, %v919
      %v1066 = vld [vmem:[%s3] sm:$0xf]
      %v1067 = vld [vmem:[%s3 + $0x4] sm:$0xf]
      %v1068 = vld [vmem:[%s3 + $0x8] sm:$0xf]
      %v1069 = vld [vmem:[%s3 + $0xc] sm:$0xf]
      %v1070 = vld [vmem:[%s3 + $0x10] sm:$0xf]
      %v1071 = vld [vmem:[%s3 + $0x14] sm:$0xf]
      %v1072 = vld [vmem:[%s3 + $0x18] sm:$0xf]
      %v1073 = vld [vmem:[%s3 + $0x1c] sm:$0xf]
      %v1074 = vld [vmem:[%s3 + $0x20] sm:$0xf]
      %v1075 = vld [vmem:[%s3 + $0x24] sm:$0xf]
      %v1076 = vld [vmem:[%s3 + $0x28] sm:$0xf]
      %v1077 = vld [vmem:[%s3 + $0x2c] sm:$0xf]
      %v1078 = vld [vmem:[%s3 + $0x30] sm:$0xf]
      %v1079 = vld [vmem:[%s3 + $0x34] sm:$0xf]
      %v1080 = vld [vmem:[%s3 + $0x38] sm:$0xf]
      %v1081 = vld [vmem:[%s3 + $0x3c] sm:$0xf]
      %v1082 = vld [vmem:[%s3 + $0x40] sm:$0xf]
      %v1083 = vld [vmem:[%s3 + $0x44] sm:$0xf]
      %v1084 = vld [vmem:[%s3 + $0x48] sm:$0xf]
      %v1085 = vld [vmem:[%s3 + $0x4c] sm:$0xf]
      %v1086 = vld [vmem:[%s3 + $0x50] sm:$0xf]
      %v1087 = vld [vmem:[%s3 + $0x54] sm:$0xf]
      %v1088 = vld [vmem:[%s3 + $0x58] sm:$0xf]
      %v1089 = vld [vmem:[%s3 + $0x5c] sm:$0xf]
      %s1090 = scalar_lea.vmem [#allocation2], 12
      %v1091 = vld [vmem:[%s1090] sm:$0xf]
      %v1092 = vld [vmem:[%s1090 + $0x4] sm:$0xf]
      %v1093 = vld [vmem:[%s1090 + $0xc] sm:$0xf]
      %v1094 = vld [vmem:[%s1090 + $0x10] sm:$0xf]
      %v1095 = vld [vmem:[%s1090 + $0x18] sm:$0xf]
      %v1096 = vld [vmem:[%s1090 + $0x1c] sm:$0xf]
      %v1097 = vld [vmem:[%s1090 + $0x24] sm:$0xf]
      %v1098 = vld [vmem:[%s1090 + $0x28] sm:$0xf]
      %v1099 = vld [vmem:[%s1090 + $0x30] sm:$0xf]
      %v1100 = vld [vmem:[%s1090 + $0x34] sm:$0xf]
      %v1101 = vld [vmem:[%s1090 + $0x3c] sm:$0xf]
      %v1102 = vld [vmem:[%s1090 + $0x40] sm:$0xf]
      %v1103 = vld [vmem:[%s1090 + $0x48] sm:$0xf]
      %v1104 = vld [vmem:[%s1090 + $0x4c] sm:$0xf]
      %v1105 = vld [vmem:[%s1090 + $0x54] sm:$0xf]
      %v1106 = vld [vmem:[%s1090 + $0x58] sm:$0xf]
      %v1107 = vld [vmem:[%s1090 + $0x60] sm:$0xf]
      %v1108 = vld [vmem:[%s1090 + $0x64] sm:$0xf]
      %v1109 = vld [vmem:[%s1090 + $0x6c] sm:$0xf]
      %v1110 = vld [vmem:[%s1090 + $0x70] sm:$0xf]
      %v1111 = vld [vmem:[%s1090 + $0x78] sm:$0xf]
      %v1112 = vld [vmem:[%s1090 + $0x7c] sm:$0xf]
      %v1113 = vld [vmem:[%s1090 + $0x84] sm:$0xf]
      %v1114 = vld [vmem:[%s1090 + $0x88] sm:$0xf]
      %v1115 = vld [vmem:[%s1090 + $0x90] sm:$0xf]
      %v1116 = vld [vmem:[%s1090 + $0x94] sm:$0xf]
      %v1117 = vld [vmem:[%s1090 + $0x9c] sm:$0xf]
      %v1118 = vld [vmem:[%s1090 + $0xa0] sm:$0xf]
      %v1119 = vld [vmem:[%s1090 + $0xa8] sm:$0xf]
      %v1120 = vld [vmem:[%s1090 + $0xac] sm:$0xf]
      %v1121 = vld [vmem:[%s1090 + $0xb4] sm:$0xf]
      %v1122 = vld [vmem:[%s1090 + $0xb8] sm:$0xf]
      %v1123 = vld [vmem:[%s1090 + $0x8] sm:$0x1]
      %v1124 = vld [vmem:[%s1090 + $0x14] sm:$0x1]
      %v1125 = vld [vmem:[%s1090 + $0x20] sm:$0x1]
      %v1126 = vld [vmem:[%s1090 + $0x2c] sm:$0x1]
      %v1127 = vld [vmem:[%s1090 + $0x38] sm:$0x1]
      %v1128 = vld [vmem:[%s1090 + $0x44] sm:$0x1]
      %v1129 = vld [vmem:[%s1090 + $0x50] sm:$0x1]
      %v1130 = vld [vmem:[%s1090 + $0x5c] sm:$0x1]
      %v1131 = vld [vmem:[%s1090 + $0x68] sm:$0x1]
      %v1132 = vld [vmem:[%s1090 + $0x74] sm:$0x1]
      %v1133 = vld [vmem:[%s1090 + $0x80] sm:$0x1]
      %v1134 = vld [vmem:[%s1090 + $0x8c] sm:$0x1]
      %v1135 = vld [vmem:[%s1090 + $0x98] sm:$0x1]
      %v1136 = vld [vmem:[%s1090 + $0xa4] sm:$0x1]
      %v1137 = vld [vmem:[%s1090 + $0xb0] sm:$0x1]
      %v1138 = vld [vmem:[%s1090 + $0xbc] sm:$0x1]
      %v1139 = vld [vmem:[%s1090] sm:$0xe]
      %v1140 = vld [vmem:[%s1090 + $0xc] sm:$0xe]
      %v1141 = vld [vmem:[%s1090 + $0x18] sm:$0xe]
      %v1142 = vld [vmem:[%s1090 + $0x24] sm:$0xe]
      %v1143 = vld [vmem:[%s1090 + $0x30] sm:$0xe]
      %v1144 = vld [vmem:[%s1090 + $0x3c] sm:$0xe]
      %v1145 = vld [vmem:[%s1090 + $0x48] sm:$0xe]
      %v1146 = vld [vmem:[%s1090 + $0x54] sm:$0xe]
      %v1147 = vld [vmem:[%s1090 + $0x60] sm:$0xe]
      %v1148 = vld [vmem:[%s1090 + $0x6c] sm:$0xe]
      %v1149 = vld [vmem:[%s1090 + $0x78] sm:$0xe]
      %v1150 = vld [vmem:[%s1090 + $0x84] sm:$0xe]
      %v1151 = vld [vmem:[%s1090 + $0x90] sm:$0xe]
      %v1152 = vld [vmem:[%s1090 + $0x9c] sm:$0xe]
      %v1153 = vld [vmem:[%s1090 + $0xa8] sm:$0xe]
      %v1154 = vld [vmem:[%s1090 + $0xb4] sm:$0xe]
      %v1187 = vunpack.c.l.b16 %v1091
      %v1188 = vunpack.c.l.b16 %v1092
      %v1189 = vunpack.c.l.b16 %v1093
      %v1190 = vunpack.c.l.b16 %v1094
      %v1191 = vunpack.c.l.b16 %v1095
      %v1192 = vunpack.c.l.b16 %v1096
      %v1193 = vunpack.c.l.b16 %v1097
      %v1194 = vunpack.c.l.b16 %v1098
      %v1195 = vunpack.c.l.b16 %v1099
      %v1196 = vunpack.c.l.b16 %v1100
      %v1197 = vunpack.c.l.b16 %v1101
      %v1198 = vunpack.c.l.b16 %v1102
      %v1199 = vunpack.c.l.b16 %v1103
      %v1200 = vunpack.c.l.b16 %v1104
      %v1201 = vunpack.c.l.b16 %v1105
      %v1202 = vunpack.c.l.b16 %v1106
      %v1203 = vunpack.c.l.b16 %v1107
      %v1204 = vunpack.c.l.b16 %v1108
      %v1205 = vunpack.c.l.b16 %v1109
      %v1206 = vunpack.c.l.b16 %v1110
      %v1207 = vunpack.c.l.b16 %v1111
      %v1208 = vunpack.c.l.b16 %v1112
      %v1209 = vunpack.c.l.b16 %v1113
      %v1210 = vunpack.c.l.b16 %v1114
      %v1211 = vunpack.c.l.b16 %v1115
      %v1212 = vunpack.c.l.b16 %v1116
      %v1213 = vunpack.c.l.b16 %v1117
      %v1214 = vunpack.c.l.b16 %v1118
      %v1215 = vunpack.c.l.b16 %v1119
      %v1216 = vunpack.c.l.b16 %v1120
      %v1217 = vunpack.c.l.b16 %v1121
      %v1218 = vunpack.c.l.b16 %v1122
      %v1219 = vpack.c.b16 %v1188, %v1187
      %v1220 = vpack.c.b16 %v1190, %v1189
      %v1221 = vpack.c.b16 %v1192, %v1191
      %v1222 = vpack.c.b16 %v1194, %v1193
      %v1223 = vpack.c.b16 %v1196, %v1195
      %v1224 = vpack.c.b16 %v1198, %v1197
      %v1225 = vpack.c.b16 %v1200, %v1199
      %v1226 = vpack.c.b16 %v1202, %v1201
      %v1227 = vpack.c.b16 %v1204, %v1203
      %v1228 = vpack.c.b16 %v1206, %v1205
      %v1229 = vpack.c.b16 %v1208, %v1207
      %v1230 = vpack.c.b16 %v1210, %v1209
      %v1231 = vpack.c.b16 %v1212, %v1211
      %v1232 = vpack.c.b16 %v1214, %v1213
      %v1233 = vpack.c.b16 %v1216, %v1215
      %v1234 = vpack.c.b16 %v1218, %v1217
      %v1251 = vunpack.c.l.b16 %v1123
      %v1252 = vunpack.c.l.b16 %v1124
      %v1253 = vunpack.c.l.b16 %v1125
      %v1254 = vunpack.c.l.b16 %v1126
      %v1255 = vunpack.c.l.b16 %v1127
      %v1256 = vunpack.c.l.b16 %v1128
      %v1257 = vunpack.c.l.b16 %v1129
      %v1258 = vunpack.c.l.b16 %v1130
      %v1259 = vunpack.c.l.b16 %v1131
      %v1260 = vunpack.c.l.b16 %v1132
      %v1261 = vunpack.c.l.b16 %v1133
      %v1262 = vunpack.c.l.b16 %v1134
      %v1263 = vunpack.c.l.b16 %v1135
      %v1264 = vunpack.c.l.b16 %v1136
      %v1265 = vunpack.c.l.b16 %v1137
      %v1266 = vunpack.c.l.b16 %v1138
      %v1267 = vpack.c.b16 %v1251, %v1251
      %v1268 = vpack.c.b16 %v1252, %v1252
      %v1269 = vpack.c.b16 %v1253, %v1253
      %v1270 = vpack.c.b16 %v1254, %v1254
      %v1271 = vpack.c.b16 %v1255, %v1255
      %v1272 = vpack.c.b16 %v1256, %v1256
      %v1273 = vpack.c.b16 %v1257, %v1257
      %v1274 = vpack.c.b16 %v1258, %v1258
      %v1275 = vpack.c.b16 %v1259, %v1259
      %v1276 = vpack.c.b16 %v1260, %v1260
      %v1277 = vpack.c.b16 %v1261, %v1261
      %v1278 = vpack.c.b16 %v1262, %v1262
      %v1279 = vpack.c.b16 %v1263, %v1263
      %v1280 = vpack.c.b16 %v1264, %v1264
      %v1281 = vpack.c.b16 %v1265, %v1265
      %v1282 = vpack.c.b16 %v1266, %v1266
      %v1284 = vshrl.u32 %v1219, 16
      %v1286 = vshll.u32 %v1219, 16
      %v1288 = vrot.slane %v1286, 1
      %v1289 = vor.u32 %v1284, %v1288
      %v1291 = vshll.u32 %v1267, 16
      %v1293 = vrot.slane %v1291, 1
      %v1294 = vsel %vm695, %v1289, %v1293
      %v1296 = vshrl.u32 %v1220, 16
      %v1298 = vshll.u32 %v1220, 16
      %v1300 = vrot.slane %v1298, 1
      %v1301 = vor.u32 %v1296, %v1300
      %v1303 = vshll.u32 %v1268, 16
      %v1305 = vrot.slane %v1303, 1
      %v1306 = vsel %vm695, %v1301, %v1305
      %v1308 = vshrl.u32 %v1221, 16
      %v1310 = vshll.u32 %v1221, 16
      %v1312 = vrot.slane %v1310, 1
      %v1313 = vor.u32 %v1308, %v1312
      %v1315 = vshll.u32 %v1269, 16
      %v1317 = vrot.slane %v1315, 1
      %v1318 = vsel %vm695, %v1313, %v1317
      %v1320 = vshrl.u32 %v1222, 16
      %v1322 = vshll.u32 %v1222, 16
      %v1324 = vrot.slane %v1322, 1
      %v1325 = vor.u32 %v1320, %v1324
      %v1327 = vshll.u32 %v1270, 16
      %v1329 = vrot.slane %v1327, 1
      %v1330 = vsel %vm695, %v1325, %v1329
      %v1332 = vshrl.u32 %v1223, 16
      %v1334 = vshll.u32 %v1223, 16
      %v1336 = vrot.slane %v1334, 1
      %v1337 = vor.u32 %v1332, %v1336
      %v1339 = vshll.u32 %v1271, 16
      %v1341 = vrot.slane %v1339, 1
      %v1342 = vsel %vm695, %v1337, %v1341
      %v1344 = vshrl.u32 %v1224, 16
      %v1346 = vshll.u32 %v1224, 16
      %v1348 = vrot.slane %v1346, 1
      %v1349 = vor.u32 %v1344, %v1348
      %v1351 = vshll.u32 %v1272, 16
      %v1353 = vrot.slane %v1351, 1
      %v1354 = vsel %vm695, %v1349, %v1353
      %v1356 = vshrl.u32 %v1225, 16
      %v1358 = vshll.u32 %v1225, 16
      %v1360 = vrot.slane %v1358, 1
      %v1361 = vor.u32 %v1356, %v1360
      %v1363 = vshll.u32 %v1273, 16
      %v1365 = vrot.slane %v1363, 1
      %v1366 = vsel %vm695, %v1361, %v1365
      %v1368 = vshrl.u32 %v1226, 16
      %v1370 = vshll.u32 %v1226, 16
      %v1372 = vrot.slane %v1370, 1
      %v1373 = vor.u32 %v1368, %v1372
      %v1375 = vshll.u32 %v1274, 16
      %v1377 = vrot.slane %v1375, 1
      %v1378 = vsel %vm695, %v1373, %v1377
      %v1380 = vshrl.u32 %v1227, 16
      %v1382 = vshll.u32 %v1227, 16
      %v1384 = vrot.slane %v1382, 1
      %v1385 = vor.u32 %v1380, %v1384
      %v1387 = vshll.u32 %v1275, 16
      %v1389 = vrot.slane %v1387, 1
      %v1390 = vsel %vm695, %v1385, %v1389
      %v1392 = vshrl.u32 %v1228, 16
      %v1394 = vshll.u32 %v1228, 16
      %v1396 = vrot.slane %v1394, 1
      %v1397 = vor.u32 %v1392, %v1396
      %v1399 = vshll.u32 %v1276, 16
      %v1401 = vrot.slane %v1399, 1
      %v1402 = vsel %vm695, %v1397, %v1401
      %v1404 = vshrl.u32 %v1229, 16
      %v1406 = vshll.u32 %v1229, 16
      %v1408 = vrot.slane %v1406, 1
      %v1409 = vor.u32 %v1404, %v1408
      %v1411 = vshll.u32 %v1277, 16
      %v1413 = vrot.slane %v1411, 1
      %v1414 = vsel %vm695, %v1409, %v1413
      %v1416 = vshrl.u32 %v1230, 16
      %v1418 = vshll.u32 %v1230, 16
      %v1420 = vrot.slane %v1418, 1
      %v1421 = vor.u32 %v1416, %v1420
      %v1423 = vshll.u32 %v1278, 16
      %v1425 = vrot.slane %v1423, 1
      %v1426 = vsel %vm695, %v1421, %v1425
      %v1428 = vshrl.u32 %v1231, 16
      %v1430 = vshll.u32 %v1231, 16
      %v1432 = vrot.slane %v1430, 1
      %v1433 = vor.u32 %v1428, %v1432
      %v1435 = vshll.u32 %v1279, 16
      %v1437 = vrot.slane %v1435, 1
      %v1438 = vsel %vm695, %v1433, %v1437
      %v1440 = vshrl.u32 %v1232, 16
      %v1442 = vshll.u32 %v1232, 16
      %v1444 = vrot.slane %v1442, 1
      %v1445 = vor.u32 %v1440, %v1444
      %v1447 = vshll.u32 %v1280, 16
      %v1449 = vrot.slane %v1447, 1
      %v1450 = vsel %vm695, %v1445, %v1449
      %v1452 = vshrl.u32 %v1233, 16
      %v1454 = vshll.u32 %v1233, 16
      %v1456 = vrot.slane %v1454, 1
      %v1457 = vor.u32 %v1452, %v1456
      %v1459 = vshll.u32 %v1281, 16
      %v1461 = vrot.slane %v1459, 1
      %v1462 = vsel %vm695, %v1457, %v1461
      %v1464 = vshrl.u32 %v1234, 16
      %v1466 = vshll.u32 %v1234, 16
      %v1468 = vrot.slane %v1466, 1
      %v1469 = vor.u32 %v1464, %v1468
      %v1471 = vshll.u32 %v1282, 16
      %v1473 = vrot.slane %v1471, 1
      %v1474 = vsel %vm695, %v1469, %v1473
      %1475 = vrot.lane.b32.xlu0 %v1294, 64
      %v1476 = vpop.permute.xlu0 %1475
      %1477 = vrot.lane.b32.xlu0 %v1306, 64
      %v1478 = vpop.permute.xlu0 %1477
      %1479 = vrot.lane.b32.xlu0 %v1318, 64
      %v1480 = vpop.permute.xlu0 %1479
      %1481 = vrot.lane.b32.xlu0 %v1330, 64
      %v1482 = vpop.permute.xlu0 %1481
      %1483 = vrot.lane.b32.xlu0 %v1342, 64
      %v1484 = vpop.permute.xlu0 %1483
      %1485 = vrot.lane.b32.xlu0 %v1354, 64
      %v1486 = vpop.permute.xlu0 %1485
      %1487 = vrot.lane.b32.xlu0 %v1366, 64
      %v1488 = vpop.permute.xlu0 %1487
      %1489 = vrot.lane.b32.xlu0 %v1378, 64
      %v1490 = vpop.permute.xlu0 %1489
      %1491 = vrot.lane.b32.xlu0 %v1390, 64
      %v1492 = vpop.permute.xlu0 %1491
      %1493 = vrot.lane.b32.xlu0 %v1402, 64
      %v1494 = vpop.permute.xlu0 %1493
      %1495 = vrot.lane.b32.xlu0 %v1414, 64
      %v1496 = vpop.permute.xlu0 %1495
      %1497 = vrot.lane.b32.xlu0 %v1426, 64
      %v1498 = vpop.permute.xlu0 %1497
      %1499 = vrot.lane.b32.xlu0 %v1438, 64
      %v1500 = vpop.permute.xlu0 %1499
      %1501 = vrot.lane.b32.xlu0 %v1450, 64
      %v1502 = vpop.permute.xlu0 %1501
      %1503 = vrot.lane.b32.xlu0 %v1462, 64
      %v1504 = vpop.permute.xlu0 %1503
      %1505 = vrot.lane.b32.xlu0 %v1474, 64
      %v1506 = vpop.permute.xlu0 %1505
      %v1523 = vunpack.c.l.b16 %v1139
      %v1524 = vunpack.c.l.b16 %v1140
      %v1525 = vunpack.c.l.b16 %v1141
      %v1526 = vunpack.c.l.b16 %v1142
      %v1527 = vunpack.c.l.b16 %v1143
      %v1528 = vunpack.c.l.b16 %v1144
      %v1529 = vunpack.c.l.b16 %v1145
      %v1530 = vunpack.c.l.b16 %v1146
      %v1531 = vunpack.c.l.b16 %v1147
      %v1532 = vunpack.c.l.b16 %v1148
      %v1533 = vunpack.c.l.b16 %v1149
      %v1534 = vunpack.c.l.b16 %v1150
      %v1535 = vunpack.c.l.b16 %v1151
      %v1536 = vunpack.c.l.b16 %v1152
      %v1537 = vunpack.c.l.b16 %v1153
      %v1538 = vunpack.c.l.b16 %v1154
      %v1539 = vpack.c.b16 %v1188, %v1523
      %v1540 = vpack.c.b16 %v1190, %v1524
      %v1541 = vpack.c.b16 %v1192, %v1525
      %v1542 = vpack.c.b16 %v1194, %v1526
      %v1543 = vpack.c.b16 %v1196, %v1527
      %v1544 = vpack.c.b16 %v1198, %v1528
      %v1545 = vpack.c.b16 %v1200, %v1529
      %v1546 = vpack.c.b16 %v1202, %v1530
      %v1547 = vpack.c.b16 %v1204, %v1531
      %v1548 = vpack.c.b16 %v1206, %v1532
      %v1549 = vpack.c.b16 %v1208, %v1533
      %v1550 = vpack.c.b16 %v1210, %v1534
      %v1551 = vpack.c.b16 %v1212, %v1535
      %v1552 = vpack.c.b16 %v1214, %v1536
      %v1553 = vpack.c.b16 %v1216, %v1537
      %v1554 = vpack.c.b16 %v1218, %v1538
      %v1555 = vrot.slane %v1539, 1
      %v1556 = vrot.slane %v1267, 1
      %v1557 = vsel %vm968, %v1555, %v1556
      %v1558 = vrot.slane %v1540, 1
      %v1559 = vrot.slane %v1268, 1
      %v1560 = vsel %vm968, %v1558, %v1559
      %v1561 = vrot.slane %v1541, 1
      %v1562 = vrot.slane %v1269, 1
      %v1563 = vsel %vm968, %v1561, %v1562
      %v1564 = vrot.slane %v1542, 1
      %v1565 = vrot.slane %v1270, 1
      %v1566 = vsel %vm968, %v1564, %v1565
      %v1567 = vrot.slane %v1543, 1
      %v1568 = vrot.slane %v1271, 1
      %v1569 = vsel %vm968, %v1567, %v1568
      %v1570 = vrot.slane %v1544, 1
      %v1571 = vrot.slane %v1272, 1
      %v1572 = vsel %vm968, %v1570, %v1571
      %v1573 = vrot.slane %v1545, 1
      %v1574 = vrot.slane %v1273, 1
      %v1575 = vsel %vm968, %v1573, %v1574
      %v1576 = vrot.slane %v1546, 1
      %v1577 = vrot.slane %v1274, 1
      %v1578 = vsel %vm968, %v1576, %v1577
      %v1579 = vrot.slane %v1547, 1
      %v1580 = vrot.slane %v1275, 1
      %v1581 = vsel %vm968, %v1579, %v1580
      %v1582 = vrot.slane %v1548, 1
      %v1583 = vrot.slane %v1276, 1
      %v1584 = vsel %vm968, %v1582, %v1583
      %v1585 = vrot.slane %v1549, 1
      %v1586 = vrot.slane %v1277, 1
      %v1587 = vsel %vm968, %v1585, %v1586
      %v1588 = vrot.slane %v1550, 1
      %v1589 = vrot.slane %v1278, 1
      %v1590 = vsel %vm968, %v1588, %v1589
      %v1591 = vrot.slane %v1551, 1
      %v1592 = vrot.slane %v1279, 1
      %v1593 = vsel %vm968, %v1591, %v1592
      %v1594 = vrot.slane %v1552, 1
      %v1595 = vrot.slane %v1280, 1
      %v1596 = vsel %vm968, %v1594, %v1595
      %v1597 = vrot.slane %v1553, 1
      %v1598 = vrot.slane %v1281, 1
      %v1599 = vsel %vm968, %v1597, %v1598
      %v1600 = vrot.slane %v1554, 1
      %v1601 = vrot.slane %v1282, 1
      %v1602 = vsel %vm968, %v1600, %v1601
      %v1604 = vsel %vm1017, %v1219, %v1476
      %v1607 = vsel %vm1017, %v1220, %v1478
      %v1610 = vsel %vm1017, %v1221, %v1480
      %v1613 = vsel %vm1017, %v1222, %v1482
      %v1616 = vsel %vm1017, %v1223, %v1484
      %v1619 = vsel %vm1017, %v1224, %v1486
      %v1622 = vsel %vm1017, %v1225, %v1488
      %v1625 = vsel %vm1017, %v1226, %v1490
      %v1628 = vsel %vm1017, %v1227, %v1492
      %v1631 = vsel %vm1017, %v1228, %v1494
      %v1634 = vsel %vm1017, %v1229, %v1496
      %v1637 = vsel %vm1017, %v1230, %v1498
      %v1640 = vsel %vm1017, %v1231, %v1500
      %v1643 = vsel %vm1017, %v1232, %v1502
      %v1646 = vsel %vm1017, %v1233, %v1504
      %v1649 = vsel %vm1017, %v1234, %v1506
      %s1651 = scalar_lea.vmem %s3, 96
      %v1652 = vld [vmem:[%s1651] sm:$0xf]
      %v1653 = vld [vmem:[%s1651 + $0x4] sm:$0xf]
      %v1654 = vld [vmem:[%s1651 + $0x8] sm:$0xf]
      %v1655 = vld [vmem:[%s1651 + $0xc] sm:$0xf]
      %v1656 = vld [vmem:[%s1651 + $0x10] sm:$0xf]
      %v1657 = vld [vmem:[%s1651 + $0x14] sm:$0xf]
      %v1658 = vld [vmem:[%s1651 + $0x18] sm:$0xf]
      %v1659 = vld [vmem:[%s1651 + $0x1c] sm:$0xf]
      %v1660 = vld [vmem:[%s1651 + $0x20] sm:$0xf]
      %v1661 = vld [vmem:[%s1651 + $0x24] sm:$0xf]
      %v1662 = vld [vmem:[%s1651 + $0x28] sm:$0xf]
      %v1663 = vld [vmem:[%s1651 + $0x2c] sm:$0xf]
      %v1664 = vld [vmem:[%s1651 + $0x30] sm:$0xf]
      %v1665 = vld [vmem:[%s1651 + $0x34] sm:$0xf]
      %v1666 = vld [vmem:[%s1651 + $0x38] sm:$0xf]
      %v1667 = vld [vmem:[%s1651 + $0x3c] sm:$0xf]
      %v1668 = vld [vmem:[%s1651 + $0x40] sm:$0xf]
      %v1669 = vld [vmem:[%s1651 + $0x44] sm:$0xf]
      %v1670 = vld [vmem:[%s1651 + $0x48] sm:$0xf]
      %v1671 = vld [vmem:[%s1651 + $0x4c] sm:$0xf]
      %v1672 = vld [vmem:[%s1651 + $0x50] sm:$0xf]
      %v1673 = vld [vmem:[%s1651 + $0x54] sm:$0xf]
      %v1674 = vld [vmem:[%s1651 + $0x58] sm:$0xf]
      %v1675 = vld [vmem:[%s1651 + $0x5c] sm:$0xf]
      %v1700 = vunpack.c.l.b16 %v1652
      %v1701 = vunpack.c.l.b16 %v1653
      %v1702 = vunpack.c.l.b16 %v1654
      %v1703 = vunpack.c.l.b16 %v1655
      %v1704 = vunpack.c.l.b16 %v1656
      %v1705 = vunpack.c.l.b16 %v1657
      %v1706 = vunpack.c.l.b16 %v1658
      %v1707 = vunpack.c.l.b16 %v1659
      %v1708 = vunpack.c.l.b16 %v1660
      %v1709 = vunpack.c.l.b16 %v1661
      %v1710 = vunpack.c.l.b16 %v1662
      %v1711 = vunpack.c.l.b16 %v1663
      %v1712 = vunpack.c.l.b16 %v1664
      %v1713 = vunpack.c.l.b16 %v1665
      %v1714 = vunpack.c.l.b16 %v1666
      %v1715 = vunpack.c.l.b16 %v1667
      %v1716 = vunpack.c.l.b16 %v1668
      %v1717 = vunpack.c.l.b16 %v1669
      %v1718 = vunpack.c.l.b16 %v1670
      %v1719 = vunpack.c.l.b16 %v1671
      %v1720 = vunpack.c.l.b16 %v1672
      %v1721 = vunpack.c.l.b16 %v1673
      %v1722 = vunpack.c.l.b16 %v1674
      %v1723 = vunpack.c.l.b16 %v1675
      %v1724 = vpack.c.b16 %v1701, %v1700
      %v1725 = vpack.c.b16 %v1703, %v1702
      %v1726 = vpack.c.b16 %v1705, %v1704
      %v1727 = vpack.c.b16 %v1707, %v1706
      %v1728 = vpack.c.b16 %v1709, %v1708
      %v1729 = vpack.c.b16 %v1711, %v1710
      %v1730 = vpack.c.b16 %v1713, %v1712
      %v1731 = vpack.c.b16 %v1715, %v1714
      %v1732 = vpack.c.b16 %v1717, %v1716
      %v1733 = vpack.c.b16 %v1719, %v1718
      %v1734 = vpack.c.b16 %v1721, %v1720
      %v1735 = vpack.c.b16 %v1723, %v1722
      %v1749 = vsel %vm1017, %v1557, 0
      %v1752 = vsel %vm1017, %v1560, 0
      %v1755 = vsel %vm1017, %v1563, 0
      %v1758 = vsel %vm1017, %v1566, 0
      %v1761 = vsel %vm1017, %v1569, 0
      %v1764 = vsel %vm1017, %v1572, 0
      %v1767 = vsel %vm1017, %v1575, 0
      %v1770 = vsel %vm1017, %v1578, 0
      %v1773 = vsel %vm1017, %v1581, 0
      %v1776 = vsel %vm1017, %v1584, 0
      %v1779 = vsel %vm1017, %v1587, 0
      %v1782 = vsel %vm1017, %v1590, 0
      %v1785 = vsel %vm1017, %v1593, 0
      %v1788 = vsel %vm1017, %v1596, 0
      %v1791 = vsel %vm1017, %v1599, 0
      %v1794 = vsel %vm1017, %v1602, 0
      %1796 = vmatpush.bf16.msra.mxu0 %v1731
      %1797 = vmatpush.bf16.msra.mxu0 %v1730
      %1798 = vmatpush.bf16.msra.mxu0 %v1729
      %1799 = vmatpush.bf16.msra.mxu0 %v1728
      %1800 = vmatpush.bf16.msra.mxu0 %v1727
      %1801 = vmatpush.bf16.msra.mxu0 %v1726
      %1802 = vmatpush.bf16.msra.mxu0 %v1725
      %1803 = vmatpush.bf16.msra.mxu0 %v1724
      %1804 = vmatmul.bf16.gmra.mxu0 %v1604
      %v1805 = vpop.f32.mrf.mxu0
      %v1806 = vadd.f32 0.0, %v1805
      %v1807 = vpop.f32.mrf.mxu0
      %v1808 = vadd.f32 0.0, %v1807
      %1809 = vmatmul.bf16.gmra.mxu0 %v1607
      %v1810 = vpop.f32.mrf.mxu0
      %v1811 = vadd.f32 0.0, %v1810
      %v1812 = vpop.f32.mrf.mxu0
      %v1813 = vadd.f32 0.0, %v1812
      %1814 = vmatmul.bf16.gmra.mxu0 %v1610
      %v1815 = vpop.f32.mrf.mxu0
      %v1816 = vadd.f32 0.0, %v1815
      %v1817 = vpop.f32.mrf.mxu0
      %v1818 = vadd.f32 0.0, %v1817
      %1819 = vmatmul.bf16.gmra.mxu0 %v1613
      %v1820 = vpop.f32.mrf.mxu0
      %v1821 = vadd.f32 0.0, %v1820
      %v1822 = vpop.f32.mrf.mxu0
      %v1823 = vadd.f32 0.0, %v1822
      %1824 = vmatmul.bf16.gmra.mxu0 %v1616
      %v1825 = vpop.f32.mrf.mxu0
      %v1826 = vadd.f32 0.0, %v1825
      %v1827 = vpop.f32.mrf.mxu0
      %v1828 = vadd.f32 0.0, %v1827
      %1829 = vmatmul.bf16.gmra.mxu0 %v1619
      %v1830 = vpop.f32.mrf.mxu0
      %v1831 = vadd.f32 0.0, %v1830
      %v1832 = vpop.f32.mrf.mxu0
      %v1833 = vadd.f32 0.0, %v1832
      %1834 = vmatmul.bf16.gmra.mxu0 %v1622
      %v1835 = vpop.f32.mrf.mxu0
      %v1836 = vadd.f32 0.0, %v1835
      %v1837 = vpop.f32.mrf.mxu0
      %v1838 = vadd.f32 0.0, %v1837
      %1839 = vmatmul.bf16.gmra.mxu0 %v1625
      %v1840 = vpop.f32.mrf.mxu0
      %v1841 = vadd.f32 0.0, %v1840
      %v1842 = vpop.f32.mrf.mxu0
      %v1843 = vadd.f32 0.0, %v1842
      %1844 = vmatmul.bf16.gmra.mxu0 %v1628
      %v1845 = vpop.f32.mrf.mxu0
      %v1846 = vadd.f32 0.0, %v1845
      %v1847 = vpop.f32.mrf.mxu0
      %v1848 = vadd.f32 0.0, %v1847
      %1849 = vmatmul.bf16.gmra.mxu0 %v1631
      %v1850 = vpop.f32.mrf.mxu0
      %v1851 = vadd.f32 0.0, %v1850
      %v1852 = vpop.f32.mrf.mxu0
      %v1853 = vadd.f32 0.0, %v1852
      %1854 = vmatmul.bf16.gmra.mxu0 %v1634
      %v1855 = vpop.f32.mrf.mxu0
      %v1856 = vadd.f32 0.0, %v1855
      %v1857 = vpop.f32.mrf.mxu0
      %v1858 = vadd.f32 0.0, %v1857
      %1859 = vmatmul.bf16.gmra.mxu0 %v1637
      %v1860 = vpop.f32.mrf.mxu0
      %v1861 = vadd.f32 0.0, %v1860
      %v1862 = vpop.f32.mrf.mxu0
      %v1863 = vadd.f32 0.0, %v1862
      %1864 = vmatmul.bf16.gmra.mxu0 %v1640
      %v1865 = vpop.f32.mrf.mxu0
      %v1866 = vadd.f32 0.0, %v1865
      %v1867 = vpop.f32.mrf.mxu0
      %v1868 = vadd.f32 0.0, %v1867
      %1869 = vmatmul.bf16.gmra.mxu0 %v1643
      %v1870 = vpop.f32.mrf.mxu0
      %v1871 = vadd.f32 0.0, %v1870
      %v1872 = vpop.f32.mrf.mxu0
      %v1873 = vadd.f32 0.0, %v1872
      %1874 = vmatmul.bf16.gmra.mxu0 %v1646
      %v1875 = vpop.f32.mrf.mxu0
      %v1876 = vadd.f32 0.0, %v1875
      %v1877 = vpop.f32.mrf.mxu0
      %v1878 = vadd.f32 0.0, %v1877
      %1879 = vmatmul.bf16.gmra.mxu0 %v1649
      %v1880 = vpop.f32.mrf.mxu0
      %v1881 = vadd.f32 0.0, %v1880
      %v1882 = vpop.f32.mrf.mxu0
      %v1883 = vadd.f32 0.0, %v1882
      %1884 = vdwg.mxu0
      %1885 = vmatpush.bf16.msra.mxu0 0
      %1886 = vmatpush.bf16.msra.mxu0 0
      %1887 = vmatpush.bf16.msra.mxu0 0
      %1888 = vmatpush.bf16.msra.mxu0 0
      %1889 = vmatpush.bf16.msra.mxu0 %v1735
      %1890 = vmatpush.bf16.msra.mxu0 %v1734
      %1891 = vmatpush.bf16.msra.mxu0 %v1733
      %1892 = vmatpush.bf16.msra.mxu0 %v1732
      %1893 = vmatmul.bf16.gmra.mxu0 %v1749
      %v1894 = vpop.f32.mrf.mxu0
      %v1895 = vadd.f32 %v1806, %v1894
      %v1896 = vpop.f32.mrf.mxu0
      %v1897 = vadd.f32 %v1808, %v1896
      %1898 = vmatmul.bf16.gmra.mxu0 %v1752
      %v1899 = vpop.f32.mrf.mxu0
      %v1900 = vadd.f32 %v1811, %v1899
      %v1901 = vpop.f32.mrf.mxu0
      %v1902 = vadd.f32 %v1813, %v1901
      %1903 = vmatmul.bf16.gmra.mxu0 %v1755
      %v1904 = vpop.f32.mrf.mxu0
      %v1905 = vadd.f32 %v1816, %v1904
      %v1906 = vpop.f32.mrf.mxu0
      %v1907 = vadd.f32 %v1818, %v1906
      %1908 = vmatmul.bf16.gmra.mxu0 %v1758
      %v1909 = vpop.f32.mrf.mxu0
      %v1910 = vadd.f32 %v1821, %v1909
      %v1911 = vpop.f32.mrf.mxu0
      %v1912 = vadd.f32 %v1823, %v1911
      %1913 = vmatmul.bf16.gmra.mxu0 %v1761
      %v1914 = vpop.f32.mrf.mxu0
      %v1915 = vadd.f32 %v1826, %v1914
      %v1916 = vpop.f32.mrf.mxu0
      %v1917 = vadd.f32 %v1828, %v1916
      %1918 = vmatmul.bf16.gmra.mxu0 %v1764
      %v1919 = vpop.f32.mrf.mxu0
      %v1920 = vadd.f32 %v1831, %v1919
      %v1921 = vpop.f32.mrf.mxu0
      %v1922 = vadd.f32 %v1833, %v1921
      %1923 = vmatmul.bf16.gmra.mxu0 %v1767
      %v1924 = vpop.f32.mrf.mxu0
      %v1925 = vadd.f32 %v1836, %v1924
      %v1926 = vpop.f32.mrf.mxu0
      %v1927 = vadd.f32 %v1838, %v1926
      %1928 = vmatmul.bf16.gmra.mxu0 %v1770
      %v1929 = vpop.f32.mrf.mxu0
      %v1930 = vadd.f32 %v1841, %v1929
      %v1931 = vpop.f32.mrf.mxu0
      %v1932 = vadd.f32 %v1843, %v1931
      %1933 = vmatmul.bf16.gmra.mxu0 %v1773
      %v1934 = vpop.f32.mrf.mxu0
      %v1935 = vadd.f32 %v1846, %v1934
      %v1936 = vpop.f32.mrf.mxu0
      %v1937 = vadd.f32 %v1848, %v1936
      %1938 = vmatmul.bf16.gmra.mxu0 %v1776
      %v1939 = vpop.f32.mrf.mxu0
      %v1940 = vadd.f32 %v1851, %v1939
      %v1941 = vpop.f32.mrf.mxu0
      %v1942 = vadd.f32 %v1853, %v1941
      %1943 = vmatmul.bf16.gmra.mxu0 %v1779
      %v1944 = vpop.f32.mrf.mxu0
      %v1945 = vadd.f32 %v1856, %v1944
      %v1946 = vpop.f32.mrf.mxu0
      %v1947 = vadd.f32 %v1858, %v1946
      %1948 = vmatmul.bf16.gmra.mxu0 %v1782
      %v1949 = vpop.f32.mrf.mxu0
      %v1950 = vadd.f32 %v1861, %v1949
      %v1951 = vpop.f32.mrf.mxu0
      %v1952 = vadd.f32 %v1863, %v1951
      %1953 = vmatmul.bf16.gmra.mxu0 %v1785
      %v1954 = vpop.f32.mrf.mxu0
      %v1955 = vadd.f32 %v1866, %v1954
      %v1956 = vpop.f32.mrf.mxu0
      %v1957 = vadd.f32 %v1868, %v1956
      %1958 = vmatmul.bf16.gmra.mxu0 %v1788
      %v1959 = vpop.f32.mrf.mxu0
      %v1960 = vadd.f32 %v1871, %v1959
      %v1961 = vpop.f32.mrf.mxu0
      %v1962 = vadd.f32 %v1873, %v1961
      %1963 = vmatmul.bf16.gmra.mxu0 %v1791
      %v1964 = vpop.f32.mrf.mxu0
      %v1965 = vadd.f32 %v1876, %v1964
      %v1966 = vpop.f32.mrf.mxu0
      %v1967 = vadd.f32 %v1878, %v1966
      %1968 = vmatmul.bf16.gmra.mxu0 %v1794
      %v1969 = vpop.f32.mrf.mxu0
      %v1970 = vadd.f32 %v1881, %v1969
      %v1971 = vpop.f32.mrf.mxu0
      %v1972 = vadd.f32 %v1883, %v1971
      %1973 = vdwg.mxu0
      %v1998 = vunpack.c.l.b16 %v1066
      %v1999 = vunpack.c.l.b16 %v1067
      %v2000 = vunpack.c.l.b16 %v1068
      %v2001 = vunpack.c.l.b16 %v1069
      %v2002 = vunpack.c.l.b16 %v1070
      %v2003 = vunpack.c.l.b16 %v1071
      %v2004 = vunpack.c.l.b16 %v1072
      %v2005 = vunpack.c.l.b16 %v1073
      %v2006 = vunpack.c.l.b16 %v1074
      %v2007 = vunpack.c.l.b16 %v1075
      %v2008 = vunpack.c.l.b16 %v1076
      %v2009 = vunpack.c.l.b16 %v1077
      %v2010 = vunpack.c.l.b16 %v1078
      %v2011 = vunpack.c.l.b16 %v1079
      %v2012 = vunpack.c.l.b16 %v1080
      %v2013 = vunpack.c.l.b16 %v1081
      %v2014 = vunpack.c.l.b16 %v1082
      %v2015 = vunpack.c.l.b16 %v1083
      %v2016 = vunpack.c.l.b16 %v1084
      %v2017 = vunpack.c.l.b16 %v1085
      %v2018 = vunpack.c.l.b16 %v1086
      %v2019 = vunpack.c.l.b16 %v1087
      %v2020 = vunpack.c.l.b16 %v1088
      %v2021 = vunpack.c.l.b16 %v1089
      %v2022 = vpack.c.b16 %v1999, %v1998
      %v2023 = vpack.c.b16 %v2001, %v2000
      %v2024 = vpack.c.b16 %v2003, %v2002
      %v2025 = vpack.c.b16 %v2005, %v2004
      %v2026 = vpack.c.b16 %v2007, %v2006
      %v2027 = vpack.c.b16 %v2009, %v2008
      %v2028 = vpack.c.b16 %v2011, %v2010
      %v2029 = vpack.c.b16 %v2013, %v2012
      %v2030 = vpack.c.b16 %v2015, %v2014
      %v2031 = vpack.c.b16 %v2017, %v2016
      %v2032 = vpack.c.b16 %v2019, %v2018
      %v2033 = vpack.c.b16 %v2021, %v2020
      %v2047 = vsel %vm1017, %v971, 0
      %v2050 = vsel %vm1017, %v974, 0
      %v2053 = vsel %vm1017, %v977, 0
      %v2056 = vsel %vm1017, %v980, 0
      %v2059 = vsel %vm1017, %v983, 0
      %v2062 = vsel %vm1017, %v986, 0
      %v2065 = vsel %vm1017, %v989, 0
      %v2068 = vsel %vm1017, %v992, 0
      %v2071 = vsel %vm1017, %v995, 0
      %v2074 = vsel %vm1017, %v998, 0
      %v2077 = vsel %vm1017, %v1001, 0
      %v2080 = vsel %vm1017, %v1004, 0
      %v2083 = vsel %vm1017, %v1007, 0
      %v2086 = vsel %vm1017, %v1010, 0
      %v2089 = vsel %vm1017, %v1013, 0
      %v2092 = vsel %vm1017, %v1016, 0
      %2094 = vmatpush.bf16.msra.mxu0 %v2029
      %2095 = vmatpush.bf16.msra.mxu0 %v2028
      %2096 = vmatpush.bf16.msra.mxu0 %v2027
      %2097 = vmatpush.bf16.msra.mxu0 %v2026
      %2098 = vmatpush.bf16.msra.mxu0 %v2025
      %2099 = vmatpush.bf16.msra.mxu0 %v2024
      %2100 = vmatpush.bf16.msra.mxu0 %v2023
      %2101 = vmatpush.bf16.msra.mxu0 %v2022
      %2102 = vmatmul.bf16.gmra.mxu0 %v1019
      %v2103 = vpop.f32.mrf.mxu0
      %v2104 = vadd.f32 %v1895, %v2103
      %v2105 = vpop.f32.mrf.mxu0
      %v2106 = vadd.f32 %v1897, %v2105
      %2107 = vmatmul.bf16.gmra.mxu0 %v1022
      %v2108 = vpop.f32.mrf.mxu0
      %v2109 = vadd.f32 %v1900, %v2108
      %v2110 = vpop.f32.mrf.mxu0
      %v2111 = vadd.f32 %v1902, %v2110
      %2112 = vmatmul.bf16.gmra.mxu0 %v1025
      %v2113 = vpop.f32.mrf.mxu0
      %v2114 = vadd.f32 %v1905, %v2113
      %v2115 = vpop.f32.mrf.mxu0
      %v2116 = vadd.f32 %v1907, %v2115
      %2117 = vmatmul.bf16.gmra.mxu0 %v1028
      %v2118 = vpop.f32.mrf.mxu0
      %v2119 = vadd.f32 %v1910, %v2118
      %v2120 = vpop.f32.mrf.mxu0
      %v2121 = vadd.f32 %v1912, %v2120
      %2122 = vmatmul.bf16.gmra.mxu0 %v1031
      %v2123 = vpop.f32.mrf.mxu0
      %v2124 = vadd.f32 %v1915, %v2123
      %v2125 = vpop.f32.mrf.mxu0
      %v2126 = vadd.f32 %v1917, %v2125
      %2127 = vmatmul.bf16.gmra.mxu0 %v1034
      %v2128 = vpop.f32.mrf.mxu0
      %v2129 = vadd.f32 %v1920, %v2128
      %v2130 = vpop.f32.mrf.mxu0
      %v2131 = vadd.f32 %v1922, %v2130
      %2132 = vmatmul.bf16.gmra.mxu0 %v1037
      %v2133 = vpop.f32.mrf.mxu0
      %v2134 = vadd.f32 %v1925, %v2133
      %v2135 = vpop.f32.mrf.mxu0
      %v2136 = vadd.f32 %v1927, %v2135
      %2137 = vmatmul.bf16.gmra.mxu0 %v1040
      %v2138 = vpop.f32.mrf.mxu0
      %v2139 = vadd.f32 %v1930, %v2138
      %v2140 = vpop.f32.mrf.mxu0
      %v2141 = vadd.f32 %v1932, %v2140
      %2142 = vmatmul.bf16.gmra.mxu0 %v1043
      %v2143 = vpop.f32.mrf.mxu0
      %v2144 = vadd.f32 %v1935, %v2143
      %v2145 = vpop.f32.mrf.mxu0
      %v2146 = vadd.f32 %v1937, %v2145
      %2147 = vmatmul.bf16.gmra.mxu0 %v1046
      %v2148 = vpop.f32.mrf.mxu0
      %v2149 = vadd.f32 %v1940, %v2148
      %v2150 = vpop.f32.mrf.mxu0
      %v2151 = vadd.f32 %v1942, %v2150
      %2152 = vmatmul.bf16.gmra.mxu0 %v1049
      %v2153 = vpop.f32.mrf.mxu0
      %v2154 = vadd.f32 %v1945, %v2153
      %v2155 = vpop.f32.mrf.mxu0
      %v2156 = vadd.f32 %v1947, %v2155
      %2157 = vmatmul.bf16.gmra.mxu0 %v1052
      %v2158 = vpop.f32.mrf.mxu0
      %v2159 = vadd.f32 %v1950, %v2158
      %v2160 = vpop.f32.mrf.mxu0
      %v2161 = vadd.f32 %v1952, %v2160
      %2162 = vmatmul.bf16.gmra.mxu0 %v1055
      %v2163 = vpop.f32.mrf.mxu0
      %v2164 = vadd.f32 %v1955, %v2163
      %v2165 = vpop.f32.mrf.mxu0
      %v2166 = vadd.f32 %v1957, %v2165
      %2167 = vmatmul.bf16.gmra.mxu0 %v1058
      %v2168 = vpop.f32.mrf.mxu0
      %v2169 = vadd.f32 %v1960, %v2168
      %v2170 = vpop.f32.mrf.mxu0
      %v2171 = vadd.f32 %v1962, %v2170
      %2172 = vmatmul.bf16.gmra.mxu0 %v1061
      %v2173 = vpop.f32.mrf.mxu0
      %v2174 = vadd.f32 %v1965, %v2173
      %v2175 = vpop.f32.mrf.mxu0
      %v2176 = vadd.f32 %v1967, %v2175
      %2177 = vmatmul.bf16.gmra.mxu0 %v1064
      %v2178 = vpop.f32.mrf.mxu0
      %v2179 = vadd.f32 %v1970, %v2178
      %v2180 = vpop.f32.mrf.mxu0
      %v2181 = vadd.f32 %v1972, %v2180
      %2182 = vdwg.mxu0
      %2183 = vmatpush.bf16.msra.mxu0 0
      %2184 = vmatpush.bf16.msra.mxu0 0
      %2185 = vmatpush.bf16.msra.mxu0 0
      %2186 = vmatpush.bf16.msra.mxu0 0
      %2187 = vmatpush.bf16.msra.mxu0 %v2033
      %2188 = vmatpush.bf16.msra.mxu0 %v2032
      %2189 = vmatpush.bf16.msra.mxu0 %v2031
      %2190 = vmatpush.bf16.msra.mxu0 %v2030
      %2191 = vmatmul.bf16.gmra.mxu0 %v2047
      %v2192 = vpop.f32.mrf.mxu0
      %v2193 = vadd.f32 %v2104, %v2192
      %v2194 = vpop.f32.mrf.mxu0
      %v2195 = vadd.f32 %v2106, %v2194
      %2196 = vmatmul.bf16.gmra.mxu0 %v2050
      %v2197 = vpop.f32.mrf.mxu0
      %v2198 = vadd.f32 %v2109, %v2197
      %v2199 = vpop.f32.mrf.mxu0
      %v2200 = vadd.f32 %v2111, %v2199
      %2201 = vmatmul.bf16.gmra.mxu0 %v2053
      %v2202 = vpop.f32.mrf.mxu0
      %v2203 = vadd.f32 %v2114, %v2202
      %v2204 = vpop.f32.mrf.mxu0
      %v2205 = vadd.f32 %v2116, %v2204
      %2206 = vmatmul.bf16.gmra.mxu0 %v2056
      %v2207 = vpop.f32.mrf.mxu0
      %v2208 = vadd.f32 %v2119, %v2207
      %v2209 = vpop.f32.mrf.mxu0
      %v2210 = vadd.f32 %v2121, %v2209
      %2211 = vmatmul.bf16.gmra.mxu0 %v2059
      %v2212 = vpop.f32.mrf.mxu0
      %v2213 = vadd.f32 %v2124, %v2212
      %v2214 = vpop.f32.mrf.mxu0
      %v2215 = vadd.f32 %v2126, %v2214
      %2216 = vmatmul.bf16.gmra.mxu0 %v2062
      %v2217 = vpop.f32.mrf.mxu0
      %v2218 = vadd.f32 %v2129, %v2217
      %v2219 = vpop.f32.mrf.mxu0
      %v2220 = vadd.f32 %v2131, %v2219
      %2221 = vmatmul.bf16.gmra.mxu0 %v2065
      %v2222 = vpop.f32.mrf.mxu0
      %v2223 = vadd.f32 %v2134, %v2222
      %v2224 = vpop.f32.mrf.mxu0
      %v2225 = vadd.f32 %v2136, %v2224
      %2226 = vmatmul.bf16.gmra.mxu0 %v2068
      %v2227 = vpop.f32.mrf.mxu0
      %v2228 = vadd.f32 %v2139, %v2227
      %v2229 = vpop.f32.mrf.mxu0
      %v2230 = vadd.f32 %v2141, %v2229
      %2231 = vmatmul.bf16.gmra.mxu0 %v2071
      %v2232 = vpop.f32.mrf.mxu0
      %v2233 = vadd.f32 %v2144, %v2232
      %v2234 = vpop.f32.mrf.mxu0
      %v2235 = vadd.f32 %v2146, %v2234
      %2236 = vmatmul.bf16.gmra.mxu0 %v2074
      %v2237 = vpop.f32.mrf.mxu0
      %v2238 = vadd.f32 %v2149, %v2237
      %v2239 = vpop.f32.mrf.mxu0
      %v2240 = vadd.f32 %v2151, %v2239
      %2241 = vmatmul.bf16.gmra.mxu0 %v2077
      %v2242 = vpop.f32.mrf.mxu0
      %v2243 = vadd.f32 %v2154, %v2242
      %v2244 = vpop.f32.mrf.mxu0
      %v2245 = vadd.f32 %v2156, %v2244
      %2246 = vmatmul.bf16.gmra.mxu0 %v2080
      %v2247 = vpop.f32.mrf.mxu0
      %v2248 = vadd.f32 %v2159, %v2247
      %v2249 = vpop.f32.mrf.mxu0
      %v2250 = vadd.f32 %v2161, %v2249
      %2251 = vmatmul.bf16.gmra.mxu0 %v2083
      %v2252 = vpop.f32.mrf.mxu0
      %v2253 = vadd.f32 %v2164, %v2252
      %v2254 = vpop.f32.mrf.mxu0
      %v2255 = vadd.f32 %v2166, %v2254
      %2256 = vmatmul.bf16.gmra.mxu0 %v2086
      %v2257 = vpop.f32.mrf.mxu0
      %v2258 = vadd.f32 %v2169, %v2257
      %v2259 = vpop.f32.mrf.mxu0
      %v2260 = vadd.f32 %v2171, %v2259
      %2261 = vmatmul.bf16.gmra.mxu0 %v2089
      %v2262 = vpop.f32.mrf.mxu0
      %v2263 = vadd.f32 %v2174, %v2262
      %v2264 = vpop.f32.mrf.mxu0
      %v2265 = vadd.f32 %v2176, %v2264
      %2266 = vmatmul.bf16.gmra.mxu0 %v2092
      %v2267 = vpop.f32.mrf.mxu0
      %v2268 = vadd.f32 %v2179, %v2267
      %v2269 = vpop.f32.mrf.mxu0
      %v2270 = vadd.f32 %v2181, %v2269
      %2271 = vdwg.mxu0
      %s2272 = scalar_lea.vmem [#allocation2], 24
      %v2273 = vld [vmem:[%s2272] sm:$0xf]
      %v2274 = vld [vmem:[%s2272 + $0x4] sm:$0xf]
      %v2275 = vld [vmem:[%s2272 + $0xc] sm:$0xf]
      %v2276 = vld [vmem:[%s2272 + $0x10] sm:$0xf]
      %v2277 = vld [vmem:[%s2272 + $0x18] sm:$0xf]
      %v2278 = vld [vmem:[%s2272 + $0x1c] sm:$0xf]
      %v2279 = vld [vmem:[%s2272 + $0x24] sm:$0xf]
      %v2280 = vld [vmem:[%s2272 + $0x28] sm:$0xf]
      %v2281 = vld [vmem:[%s2272 + $0x30] sm:$0xf]
      %v2282 = vld [vmem:[%s2272 + $0x34] sm:$0xf]
      %v2283 = vld [vmem:[%s2272 + $0x3c] sm:$0xf]
      %v2284 = vld [vmem:[%s2272 + $0x40] sm:$0xf]
      %v2285 = vld [vmem:[%s2272 + $0x48] sm:$0xf]
      %v2286 = vld [vmem:[%s2272 + $0x4c] sm:$0xf]
      %v2287 = vld [vmem:[%s2272 + $0x54] sm:$0xf]
      %v2288 = vld [vmem:[%s2272 + $0x58] sm:$0xf]
      %v2289 = vld [vmem:[%s2272 + $0x60] sm:$0xf]
      %v2290 = vld [vmem:[%s2272 + $0x64] sm:$0xf]
      %v2291 = vld [vmem:[%s2272 + $0x6c] sm:$0xf]
      %v2292 = vld [vmem:[%s2272 + $0x70] sm:$0xf]
      %v2293 = vld [vmem:[%s2272 + $0x78] sm:$0xf]
      %v2294 = vld [vmem:[%s2272 + $0x7c] sm:$0xf]
      %v2295 = vld [vmem:[%s2272 + $0x84] sm:$0xf]
      %v2296 = vld [vmem:[%s2272 + $0x88] sm:$0xf]
      %v2297 = vld [vmem:[%s2272 + $0x90] sm:$0xf]
      %v2298 = vld [vmem:[%s2272 + $0x94] sm:$0xf]
      %v2299 = vld [vmem:[%s2272 + $0x9c] sm:$0xf]
      %v2300 = vld [vmem:[%s2272 + $0xa0] sm:$0xf]
      %v2301 = vld [vmem:[%s2272 + $0xa8] sm:$0xf]
      %v2302 = vld [vmem:[%s2272 + $0xac] sm:$0xf]
      %v2303 = vld [vmem:[%s2272 + $0xb4] sm:$0xf]
      %v2304 = vld [vmem:[%s2272 + $0xb8] sm:$0xf]
      %v2305 = vld [vmem:[%s2272 + $0x8] sm:$0x1]
      %v2306 = vld [vmem:[%s2272 + $0x14] sm:$0x1]
      %v2307 = vld [vmem:[%s2272 + $0x20] sm:$0x1]
      %v2308 = vld [vmem:[%s2272 + $0x2c] sm:$0x1]
      %v2309 = vld [vmem:[%s2272 + $0x38] sm:$0x1]
      %v2310 = vld [vmem:[%s2272 + $0x44] sm:$0x1]
      %v2311 = vld [vmem:[%s2272 + $0x50] sm:$0x1]
      %v2312 = vld [vmem:[%s2272 + $0x5c] sm:$0x1]
      %v2313 = vld [vmem:[%s2272 + $0x68] sm:$0x1]
      %v2314 = vld [vmem:[%s2272 + $0x74] sm:$0x1]
      %v2315 = vld [vmem:[%s2272 + $0x80] sm:$0x1]
      %v2316 = vld [vmem:[%s2272 + $0x8c] sm:$0x1]
      %v2317 = vld [vmem:[%s2272 + $0x98] sm:$0x1]
      %v2318 = vld [vmem:[%s2272 + $0xa4] sm:$0x1]
      %v2319 = vld [vmem:[%s2272 + $0xb0] sm:$0x1]
      %v2320 = vld [vmem:[%s2272 + $0xbc] sm:$0x1]
      %v2321 = vld [vmem:[%s2272] sm:$0xe]
      %v2322 = vld [vmem:[%s2272 + $0xc] sm:$0xe]
      %v2323 = vld [vmem:[%s2272 + $0x18] sm:$0xe]
      %v2324 = vld [vmem:[%s2272 + $0x24] sm:$0xe]
      %v2325 = vld [vmem:[%s2272 + $0x30] sm:$0xe]
      %v2326 = vld [vmem:[%s2272 + $0x3c] sm:$0xe]
      %v2327 = vld [vmem:[%s2272 + $0x48] sm:$0xe]
      %v2328 = vld [vmem:[%s2272 + $0x54] sm:$0xe]
      %v2329 = vld [vmem:[%s2272 + $0x60] sm:$0xe]
      %v2330 = vld [vmem:[%s2272 + $0x6c] sm:$0xe]
      %v2331 = vld [vmem:[%s2272 + $0x78] sm:$0xe]
      %v2332 = vld [vmem:[%s2272 + $0x84] sm:$0xe]
      %v2333 = vld [vmem:[%s2272 + $0x90] sm:$0xe]
      %v2334 = vld [vmem:[%s2272 + $0x9c] sm:$0xe]
      %v2335 = vld [vmem:[%s2272 + $0xa8] sm:$0xe]
      %v2336 = vld [vmem:[%s2272 + $0xb4] sm:$0xe]
      %v2369 = vunpack.c.l.b16 %v2273
      %v2370 = vunpack.c.l.b16 %v2274
      %v2371 = vunpack.c.l.b16 %v2275
      %v2372 = vunpack.c.l.b16 %v2276
      %v2373 = vunpack.c.l.b16 %v2277
      %v2374 = vunpack.c.l.b16 %v2278
      %v2375 = vunpack.c.l.b16 %v2279
      %v2376 = vunpack.c.l.b16 %v2280
      %v2377 = vunpack.c.l.b16 %v2281
      %v2378 = vunpack.c.l.b16 %v2282
      %v2379 = vunpack.c.l.b16 %v2283
      %v2380 = vunpack.c.l.b16 %v2284
      %v2381 = vunpack.c.l.b16 %v2285
      %v2382 = vunpack.c.l.b16 %v2286
      %v2383 = vunpack.c.l.b16 %v2287
      %v2384 = vunpack.c.l.b16 %v2288
      %v2385 = vunpack.c.l.b16 %v2289
      %v2386 = vunpack.c.l.b16 %v2290
      %v2387 = vunpack.c.l.b16 %v2291
      %v2388 = vunpack.c.l.b16 %v2292
      %v2389 = vunpack.c.l.b16 %v2293
      %v2390 = vunpack.c.l.b16 %v2294
      %v2391 = vunpack.c.l.b16 %v2295
      %v2392 = vunpack.c.l.b16 %v2296
      %v2393 = vunpack.c.l.b16 %v2297
      %v2394 = vunpack.c.l.b16 %v2298
      %v2395 = vunpack.c.l.b16 %v2299
      %v2396 = vunpack.c.l.b16 %v2300
      %v2397 = vunpack.c.l.b16 %v2301
      %v2398 = vunpack.c.l.b16 %v2302
      %v2399 = vunpack.c.l.b16 %v2303
      %v2400 = vunpack.c.l.b16 %v2304
      %v2401 = vpack.c.b16 %v2370, %v2369
      %v2402 = vpack.c.b16 %v2372, %v2371
      %v2403 = vpack.c.b16 %v2374, %v2373
      %v2404 = vpack.c.b16 %v2376, %v2375
      %v2405 = vpack.c.b16 %v2378, %v2377
      %v2406 = vpack.c.b16 %v2380, %v2379
      %v2407 = vpack.c.b16 %v2382, %v2381
      %v2408 = vpack.c.b16 %v2384, %v2383
      %v2409 = vpack.c.b16 %v2386, %v2385
      %v2410 = vpack.c.b16 %v2388, %v2387
      %v2411 = vpack.c.b16 %v2390, %v2389
      %v2412 = vpack.c.b16 %v2392, %v2391
      %v2413 = vpack.c.b16 %v2394, %v2393
      %v2414 = vpack.c.b16 %v2396, %v2395
      %v2415 = vpack.c.b16 %v2398, %v2397
      %v2416 = vpack.c.b16 %v2400, %v2399
      %v2433 = vunpack.c.l.b16 %v2305
      %v2434 = vunpack.c.l.b16 %v2306
      %v2435 = vunpack.c.l.b16 %v2307
      %v2436 = vunpack.c.l.b16 %v2308
      %v2437 = vunpack.c.l.b16 %v2309
      %v2438 = vunpack.c.l.b16 %v2310
      %v2439 = vunpack.c.l.b16 %v2311
      %v2440 = vunpack.c.l.b16 %v2312
      %v2441 = vunpack.c.l.b16 %v2313
      %v2442 = vunpack.c.l.b16 %v2314
      %v2443 = vunpack.c.l.b16 %v2315
      %v2444 = vunpack.c.l.b16 %v2316
      %v2445 = vunpack.c.l.b16 %v2317
      %v2446 = vunpack.c.l.b16 %v2318
      %v2447 = vunpack.c.l.b16 %v2319
      %v2448 = vunpack.c.l.b16 %v2320
      %v2449 = vpack.c.b16 %v2433, %v2433
      %v2450 = vpack.c.b16 %v2434, %v2434
      %v2451 = vpack.c.b16 %v2435, %v2435
      %v2452 = vpack.c.b16 %v2436, %v2436
      %v2453 = vpack.c.b16 %v2437, %v2437
      %v2454 = vpack.c.b16 %v2438, %v2438
      %v2455 = vpack.c.b16 %v2439, %v2439
      %v2456 = vpack.c.b16 %v2440, %v2440
      %v2457 = vpack.c.b16 %v2441, %v2441
      %v2458 = vpack.c.b16 %v2442, %v2442
      %v2459 = vpack.c.b16 %v2443, %v2443
      %v2460 = vpack.c.b16 %v2444, %v2444
      %v2461 = vpack.c.b16 %v2445, %v2445
      %v2462 = vpack.c.b16 %v2446, %v2446
      %v2463 = vpack.c.b16 %v2447, %v2447
      %v2464 = vpack.c.b16 %v2448, %v2448
      %v2466 = vshrl.u32 %v2401, 16
      %v2468 = vshll.u32 %v2401, 16
      %v2470 = vrot.slane %v2468, 1
      %v2471 = vor.u32 %v2466, %v2470
      %v2473 = vshll.u32 %v2449, 16
      %v2475 = vrot.slane %v2473, 1
      %v2476 = vsel %vm695, %v2471, %v2475
      %v2478 = vshrl.u32 %v2402, 16
      %v2480 = vshll.u32 %v2402, 16
      %v2482 = vrot.slane %v2480, 1
      %v2483 = vor.u32 %v2478, %v2482
      %v2485 = vshll.u32 %v2450, 16
      %v2487 = vrot.slane %v2485, 1
      %v2488 = vsel %vm695, %v2483, %v2487
      %v2490 = vshrl.u32 %v2403, 16
      %v2492 = vshll.u32 %v2403, 16
      %v2494 = vrot.slane %v2492, 1
      %v2495 = vor.u32 %v2490, %v2494
      %v2497 = vshll.u32 %v2451, 16
      %v2499 = vrot.slane %v2497, 1
      %v2500 = vsel %vm695, %v2495, %v2499
      %v2502 = vshrl.u32 %v2404, 16
      %v2504 = vshll.u32 %v2404, 16
      %v2506 = vrot.slane %v2504, 1
      %v2507 = vor.u32 %v2502, %v2506
      %v2509 = vshll.u32 %v2452, 16
      %v2511 = vrot.slane %v2509, 1
      %v2512 = vsel %vm695, %v2507, %v2511
      %v2514 = vshrl.u32 %v2405, 16
      %v2516 = vshll.u32 %v2405, 16
      %v2518 = vrot.slane %v2516, 1
      %v2519 = vor.u32 %v2514, %v2518
      %v2521 = vshll.u32 %v2453, 16
      %v2523 = vrot.slane %v2521, 1
      %v2524 = vsel %vm695, %v2519, %v2523
      %v2526 = vshrl.u32 %v2406, 16
      %v2528 = vshll.u32 %v2406, 16
      %v2530 = vrot.slane %v2528, 1
      %v2531 = vor.u32 %v2526, %v2530
      %v2533 = vshll.u32 %v2454, 16
      %v2535 = vrot.slane %v2533, 1
      %v2536 = vsel %vm695, %v2531, %v2535
      %v2538 = vshrl.u32 %v2407, 16
      %v2540 = vshll.u32 %v2407, 16
      %v2542 = vrot.slane %v2540, 1
      %v2543 = vor.u32 %v2538, %v2542
      %v2545 = vshll.u32 %v2455, 16
      %v2547 = vrot.slane %v2545, 1
      %v2548 = vsel %vm695, %v2543, %v2547
      %v2550 = vshrl.u32 %v2408, 16
      %v2552 = vshll.u32 %v2408, 16
      %v2554 = vrot.slane %v2552, 1
      %v2555 = vor.u32 %v2550, %v2554
      %v2557 = vshll.u32 %v2456, 16
      %v2559 = vrot.slane %v2557, 1
      %v2560 = vsel %vm695, %v2555, %v2559
      %v2562 = vshrl.u32 %v2409, 16
      %v2564 = vshll.u32 %v2409, 16
      %v2566 = vrot.slane %v2564, 1
      %v2567 = vor.u32 %v2562, %v2566
      %v2569 = vshll.u32 %v2457, 16
      %v2571 = vrot.slane %v2569, 1
      %v2572 = vsel %vm695, %v2567, %v2571
      %v2574 = vshrl.u32 %v2410, 16
      %v2576 = vshll.u32 %v2410, 16
      %v2578 = vrot.slane %v2576, 1
      %v2579 = vor.u32 %v2574, %v2578
      %v2581 = vshll.u32 %v2458, 16
      %v2583 = vrot.slane %v2581, 1
      %v2584 = vsel %vm695, %v2579, %v2583
      %v2586 = vshrl.u32 %v2411, 16
      %v2588 = vshll.u32 %v2411, 16
      %v2590 = vrot.slane %v2588, 1
      %v2591 = vor.u32 %v2586, %v2590
      %v2593 = vshll.u32 %v2459, 16
      %v2595 = vrot.slane %v2593, 1
      %v2596 = vsel %vm695, %v2591, %v2595
      %v2598 = vshrl.u32 %v2412, 16
      %v2600 = vshll.u32 %v2412, 16
      %v2602 = vrot.slane %v2600, 1
      %v2603 = vor.u32 %v2598, %v2602
      %v2605 = vshll.u32 %v2460, 16
      %v2607 = vrot.slane %v2605, 1
      %v2608 = vsel %vm695, %v2603, %v2607
      %v2610 = vshrl.u32 %v2413, 16
      %v2612 = vshll.u32 %v2413, 16
      %v2614 = vrot.slane %v2612, 1
      %v2615 = vor.u32 %v2610, %v2614
      %v2617 = vshll.u32 %v2461, 16
      %v2619 = vrot.slane %v2617, 1
      %v2620 = vsel %vm695, %v2615, %v2619
      %v2622 = vshrl.u32 %v2414, 16
      %v2624 = vshll.u32 %v2414, 16
      %v2626 = vrot.slane %v2624, 1
      %v2627 = vor.u32 %v2622, %v2626
      %v2629 = vshll.u32 %v2462, 16
      %v2631 = vrot.slane %v2629, 1
      %v2632 = vsel %vm695, %v2627, %v2631
      %v2634 = vshrl.u32 %v2415, 16
      %v2636 = vshll.u32 %v2415, 16
      %v2638 = vrot.slane %v2636, 1
      %v2639 = vor.u32 %v2634, %v2638
      %v2641 = vshll.u32 %v2463, 16
      %v2643 = vrot.slane %v2641, 1
      %v2644 = vsel %vm695, %v2639, %v2643
      %v2646 = vshrl.u32 %v2416, 16
      %v2648 = vshll.u32 %v2416, 16
      %v2650 = vrot.slane %v2648, 1
      %v2651 = vor.u32 %v2646, %v2650
      %v2653 = vshll.u32 %v2464, 16
      %v2655 = vrot.slane %v2653, 1
      %v2656 = vsel %vm695, %v2651, %v2655
      %2657 = vrot.lane.b32.xlu0 %v2476, 64
      %v2658 = vpop.permute.xlu0 %2657
      %2659 = vrot.lane.b32.xlu0 %v2488, 64
      %v2660 = vpop.permute.xlu0 %2659
      %2661 = vrot.lane.b32.xlu0 %v2500, 64
      %v2662 = vpop.permute.xlu0 %2661
      %2663 = vrot.lane.b32.xlu0 %v2512, 64
      %v2664 = vpop.permute.xlu0 %2663
      %2665 = vrot.lane.b32.xlu0 %v2524, 64
      %v2666 = vpop.permute.xlu0 %2665
      %2667 = vrot.lane.b32.xlu0 %v2536, 64
      %v2668 = vpop.permute.xlu0 %2667
      %2669 = vrot.lane.b32.xlu0 %v2548, 64
      %v2670 = vpop.permute.xlu0 %2669
      %2671 = vrot.lane.b32.xlu0 %v2560, 64
      %v2672 = vpop.permute.xlu0 %2671
      %2673 = vrot.lane.b32.xlu0 %v2572, 64
      %v2674 = vpop.permute.xlu0 %2673
      %2675 = vrot.lane.b32.xlu0 %v2584, 64
      %v2676 = vpop.permute.xlu0 %2675
      %2677 = vrot.lane.b32.xlu0 %v2596, 64
      %v2678 = vpop.permute.xlu0 %2677
      %2679 = vrot.lane.b32.xlu0 %v2608, 64
      %v2680 = vpop.permute.xlu0 %2679
      %2681 = vrot.lane.b32.xlu0 %v2620, 64
      %v2682 = vpop.permute.xlu0 %2681
      %2683 = vrot.lane.b32.xlu0 %v2632, 64
      %v2684 = vpop.permute.xlu0 %2683
      %2685 = vrot.lane.b32.xlu0 %v2644, 64
      %v2686 = vpop.permute.xlu0 %2685
      %2687 = vrot.lane.b32.xlu0 %v2656, 64
      %v2688 = vpop.permute.xlu0 %2687
      %v2705 = vunpack.c.l.b16 %v2321
      %v2706 = vunpack.c.l.b16 %v2322
      %v2707 = vunpack.c.l.b16 %v2323
      %v2708 = vunpack.c.l.b16 %v2324
      %v2709 = vunpack.c.l.b16 %v2325
      %v2710 = vunpack.c.l.b16 %v2326
      %v2711 = vunpack.c.l.b16 %v2327
      %v2712 = vunpack.c.l.b16 %v2328
      %v2713 = vunpack.c.l.b16 %v2329
      %v2714 = vunpack.c.l.b16 %v2330
      %v2715 = vunpack.c.l.b16 %v2331
      %v2716 = vunpack.c.l.b16 %v2332
      %v2717 = vunpack.c.l.b16 %v2333
      %v2718 = vunpack.c.l.b16 %v2334
      %v2719 = vunpack.c.l.b16 %v2335
      %v2720 = vunpack.c.l.b16 %v2336
      %v2721 = vpack.c.b16 %v2370, %v2705
      %v2722 = vpack.c.b16 %v2372, %v2706
      %v2723 = vpack.c.b16 %v2374, %v2707
      %v2724 = vpack.c.b16 %v2376, %v2708
      %v2725 = vpack.c.b16 %v2378, %v2709
      %v2726 = vpack.c.b16 %v2380, %v2710
      %v2727 = vpack.c.b16 %v2382, %v2711
      %v2728 = vpack.c.b16 %v2384, %v2712
      %v2729 = vpack.c.b16 %v2386, %v2713
      %v2730 = vpack.c.b16 %v2388, %v2714
      %v2731 = vpack.c.b16 %v2390, %v2715
      %v2732 = vpack.c.b16 %v2392, %v2716
      %v2733 = vpack.c.b16 %v2394, %v2717
      %v2734 = vpack.c.b16 %v2396, %v2718
      %v2735 = vpack.c.b16 %v2398, %v2719
      %v2736 = vpack.c.b16 %v2400, %v2720
      %v2737 = vrot.slane %v2721, 1
      %v2738 = vrot.slane %v2449, 1
      %v2739 = vsel %vm968, %v2737, %v2738
      %v2740 = vrot.slane %v2722, 1
      %v2741 = vrot.slane %v2450, 1
      %v2742 = vsel %vm968, %v2740, %v2741
      %v2743 = vrot.slane %v2723, 1
      %v2744 = vrot.slane %v2451, 1
      %v2745 = vsel %vm968, %v2743, %v2744
      %v2746 = vrot.slane %v2724, 1
      %v2747 = vrot.slane %v2452, 1
      %v2748 = vsel %vm968, %v2746, %v2747
      %v2749 = vrot.slane %v2725, 1
      %v2750 = vrot.slane %v2453, 1
      %v2751 = vsel %vm968, %v2749, %v2750
      %v2752 = vrot.slane %v2726, 1
      %v2753 = vrot.slane %v2454, 1
      %v2754 = vsel %vm968, %v2752, %v2753
      %v2755 = vrot.slane %v2727, 1
      %v2756 = vrot.slane %v2455, 1
      %v2757 = vsel %vm968, %v2755, %v2756
      %v2758 = vrot.slane %v2728, 1
      %v2759 = vrot.slane %v2456, 1
      %v2760 = vsel %vm968, %v2758, %v2759
      %v2761 = vrot.slane %v2729, 1
      %v2762 = vrot.slane %v2457, 1
      %v2763 = vsel %vm968, %v2761, %v2762
      %v2764 = vrot.slane %v2730, 1
      %v2765 = vrot.slane %v2458, 1
      %v2766 = vsel %vm968, %v2764, %v2765
      %v2767 = vrot.slane %v2731, 1
      %v2768 = vrot.slane %v2459, 1
      %v2769 = vsel %vm968, %v2767, %v2768
      %v2770 = vrot.slane %v2732, 1
      %v2771 = vrot.slane %v2460, 1
      %v2772 = vsel %vm968, %v2770, %v2771
      %v2773 = vrot.slane %v2733, 1
      %v2774 = vrot.slane %v2461, 1
      %v2775 = vsel %vm968, %v2773, %v2774
      %v2776 = vrot.slane %v2734, 1
      %v2777 = vrot.slane %v2462, 1
      %v2778 = vsel %vm968, %v2776, %v2777
      %v2779 = vrot.slane %v2735, 1
      %v2780 = vrot.slane %v2463, 1
      %v2781 = vsel %vm968, %v2779, %v2780
      %v2782 = vrot.slane %v2736, 1
      %v2783 = vrot.slane %v2464, 1
      %v2784 = vsel %vm968, %v2782, %v2783
      %v2786 = vsel %vm1017, %v2401, %v2658
      %v2789 = vsel %vm1017, %v2402, %v2660
      %v2792 = vsel %vm1017, %v2403, %v2662
      %v2795 = vsel %vm1017, %v2404, %v2664
      %v2798 = vsel %vm1017, %v2405, %v2666
      %v2801 = vsel %vm1017, %v2406, %v2668
      %v2804 = vsel %vm1017, %v2407, %v2670
      %v2807 = vsel %vm1017, %v2408, %v2672
      %v2810 = vsel %vm1017, %v2409, %v2674
      %v2813 = vsel %vm1017, %v2410, %v2676
      %v2816 = vsel %vm1017, %v2411, %v2678
      %v2819 = vsel %vm1017, %v2412, %v2680
      %v2822 = vsel %vm1017, %v2413, %v2682
      %v2825 = vsel %vm1017, %v2414, %v2684
      %v2828 = vsel %vm1017, %v2415, %v2686
      %v2831 = vsel %vm1017, %v2416, %v2688
      %s2833 = scalar_lea.vmem %s3, 192
      %v2834 = vld [vmem:[%s2833] sm:$0xf]
      %v2835 = vld [vmem:[%s2833 + $0x4] sm:$0xf]
      %v2836 = vld [vmem:[%s2833 + $0x8] sm:$0xf]
      %v2837 = vld [vmem:[%s2833 + $0xc] sm:$0xf]
      %v2838 = vld [vmem:[%s2833 + $0x10] sm:$0xf]
      %v2839 = vld [vmem:[%s2833 + $0x14] sm:$0xf]
      %v2840 = vld [vmem:[%s2833 + $0x18] sm:$0xf]
      %v2841 = vld [vmem:[%s2833 + $0x1c] sm:$0xf]
      %v2842 = vld [vmem:[%s2833 + $0x20] sm:$0xf]
      %v2843 = vld [vmem:[%s2833 + $0x24] sm:$0xf]
      %v2844 = vld [vmem:[%s2833 + $0x28] sm:$0xf]
      %v2845 = vld [vmem:[%s2833 + $0x2c] sm:$0xf]
      %v2846 = vld [vmem:[%s2833 + $0x30] sm:$0xf]
      %v2847 = vld [vmem:[%s2833 + $0x34] sm:$0xf]
      %v2848 = vld [vmem:[%s2833 + $0x38] sm:$0xf]
      %v2849 = vld [vmem:[%s2833 + $0x3c] sm:$0xf]
      %v2850 = vld [vmem:[%s2833 + $0x40] sm:$0xf]
      %v2851 = vld [vmem:[%s2833 + $0x44] sm:$0xf]
      %v2852 = vld [vmem:[%s2833 + $0x48] sm:$0xf]
      %v2853 = vld [vmem:[%s2833 + $0x4c] sm:$0xf]
      %v2854 = vld [vmem:[%s2833 + $0x50] sm:$0xf]
      %v2855 = vld [vmem:[%s2833 + $0x54] sm:$0xf]
      %v2856 = vld [vmem:[%s2833 + $0x58] sm:$0xf]
      %v2857 = vld [vmem:[%s2833 + $0x5c] sm:$0xf]
      %v2882 = vunpack.c.l.b16 %v2834
      %v2883 = vunpack.c.l.b16 %v2835
      %v2884 = vunpack.c.l.b16 %v2836
      %v2885 = vunpack.c.l.b16 %v2837
      %v2886 = vunpack.c.l.b16 %v2838
      %v2887 = vunpack.c.l.b16 %v2839
      %v2888 = vunpack.c.l.b16 %v2840
      %v2889 = vunpack.c.l.b16 %v2841
      %v2890 = vunpack.c.l.b16 %v2842
      %v2891 = vunpack.c.l.b16 %v2843
      %v2892 = vunpack.c.l.b16 %v2844
      %v2893 = vunpack.c.l.b16 %v2845
      %v2894 = vunpack.c.l.b16 %v2846
      %v2895 = vunpack.c.l.b16 %v2847
      %v2896 = vunpack.c.l.b16 %v2848
      %v2897 = vunpack.c.l.b16 %v2849
      %v2898 = vunpack.c.l.b16 %v2850
      %v2899 = vunpack.c.l.b16 %v2851
      %v2900 = vunpack.c.l.b16 %v2852
      %v2901 = vunpack.c.l.b16 %v2853
      %v2902 = vunpack.c.l.b16 %v2854
      %v2903 = vunpack.c.l.b16 %v2855
      %v2904 = vunpack.c.l.b16 %v2856
      %v2905 = vunpack.c.l.b16 %v2857
      %v2906 = vpack.c.b16 %v2883, %v2882
      %v2907 = vpack.c.b16 %v2885, %v2884
      %v2908 = vpack.c.b16 %v2887, %v2886
      %v2909 = vpack.c.b16 %v2889, %v2888
      %v2910 = vpack.c.b16 %v2891, %v2890
      %v2911 = vpack.c.b16 %v2893, %v2892
      %v2912 = vpack.c.b16 %v2895, %v2894
      %v2913 = vpack.c.b16 %v2897, %v2896
      %v2914 = vpack.c.b16 %v2899, %v2898
      %v2915 = vpack.c.b16 %v2901, %v2900
      %v2916 = vpack.c.b16 %v2903, %v2902
      %v2917 = vpack.c.b16 %v2905, %v2904
      %v2931 = vsel %vm1017, %v2739, 0
      %v2934 = vsel %vm1017, %v2742, 0
      %v2937 = vsel %vm1017, %v2745, 0
      %v2940 = vsel %vm1017, %v2748, 0
      %v2943 = vsel %vm1017, %v2751, 0
      %v2946 = vsel %vm1017, %v2754, 0
      %v2949 = vsel %vm1017, %v2757, 0
      %v2952 = vsel %vm1017, %v2760, 0
      %v2955 = vsel %vm1017, %v2763, 0
      %v2958 = vsel %vm1017, %v2766, 0
      %v2961 = vsel %vm1017, %v2769, 0
      %v2964 = vsel %vm1017, %v2772, 0
      %v2967 = vsel %vm1017, %v2775, 0
      %v2970 = vsel %vm1017, %v2778, 0
      %v2973 = vsel %vm1017, %v2781, 0
      %v2976 = vsel %vm1017, %v2784, 0
      %2978 = vmatpush.bf16.msra.mxu0 %v2913
      %2979 = vmatpush.bf16.msra.mxu0 %v2912
      %2980 = vmatpush.bf16.msra.mxu0 %v2911
      %2981 = vmatpush.bf16.msra.mxu0 %v2910
      %2982 = vmatpush.bf16.msra.mxu0 %v2909
      %2983 = vmatpush.bf16.msra.mxu0 %v2908
      %2984 = vmatpush.bf16.msra.mxu0 %v2907
      %2985 = vmatpush.bf16.msra.mxu0 %v2906
      %2986 = vmatmul.bf16.gmra.mxu0 %v2786
      %v2987 = vpop.f32.mrf.mxu0
      %v2988 = vadd.f32 0.0, %v2987
      %v2989 = vpop.f32.mrf.mxu0
      %v2990 = vadd.f32 0.0, %v2989
      %2991 = vmatmul.bf16.gmra.mxu0 %v2789
      %v2992 = vpop.f32.mrf.mxu0
      %v2993 = vadd.f32 0.0, %v2992
      %v2994 = vpop.f32.mrf.mxu0
      %v2995 = vadd.f32 0.0, %v2994
      %2996 = vmatmul.bf16.gmra.mxu0 %v2792
      %v2997 = vpop.f32.mrf.mxu0
      %v2998 = vadd.f32 0.0, %v2997
      %v2999 = vpop.f32.mrf.mxu0
      %v3000 = vadd.f32 0.0, %v2999
      %3001 = vmatmul.bf16.gmra.mxu0 %v2795
      %v3002 = vpop.f32.mrf.mxu0
      %v3003 = vadd.f32 0.0, %v3002
      %v3004 = vpop.f32.mrf.mxu0
      %v3005 = vadd.f32 0.0, %v3004
      %3006 = vmatmul.bf16.gmra.mxu0 %v2798
      %v3007 = vpop.f32.mrf.mxu0
      %v3008 = vadd.f32 0.0, %v3007
      %v3009 = vpop.f32.mrf.mxu0
      %v3010 = vadd.f32 0.0, %v3009
      %3011 = vmatmul.bf16.gmra.mxu0 %v2801
      %v3012 = vpop.f32.mrf.mxu0
      %v3013 = vadd.f32 0.0, %v3012
      %v3014 = vpop.f32.mrf.mxu0
      %v3015 = vadd.f32 0.0, %v3014
      %3016 = vmatmul.bf16.gmra.mxu0 %v2804
      %v3017 = vpop.f32.mrf.mxu0
      %v3018 = vadd.f32 0.0, %v3017
      %v3019 = vpop.f32.mrf.mxu0
      %v3020 = vadd.f32 0.0, %v3019
      %3021 = vmatmul.bf16.gmra.mxu0 %v2807
      %v3022 = vpop.f32.mrf.mxu0
      %v3023 = vadd.f32 0.0, %v3022
      %v3024 = vpop.f32.mrf.mxu0
      %v3025 = vadd.f32 0.0, %v3024
      %3026 = vmatmul.bf16.gmra.mxu0 %v2810
      %v3027 = vpop.f32.mrf.mxu0
      %v3028 = vadd.f32 0.0, %v3027
      %v3029 = vpop.f32.mrf.mxu0
      %v3030 = vadd.f32 0.0, %v3029
      %3031 = vmatmul.bf16.gmra.mxu0 %v2813
      %v3032 = vpop.f32.mrf.mxu0
      %v3033 = vadd.f32 0.0, %v3032
      %v3034 = vpop.f32.mrf.mxu0
      %v3035 = vadd.f32 0.0, %v3034
      %3036 = vmatmul.bf16.gmra.mxu0 %v2816
      %v3037 = vpop.f32.mrf.mxu0
      %v3038 = vadd.f32 0.0, %v3037
      %v3039 = vpop.f32.mrf.mxu0
      %v3040 = vadd.f32 0.0, %v3039
      %3041 = vmatmul.bf16.gmra.mxu0 %v2819
      %v3042 = vpop.f32.mrf.mxu0
      %v3043 = vadd.f32 0.0, %v3042
      %v3044 = vpop.f32.mrf.mxu0
      %v3045 = vadd.f32 0.0, %v3044
      %3046 = vmatmul.bf16.gmra.mxu0 %v2822
      %v3047 = vpop.f32.mrf.mxu0
      %v3048 = vadd.f32 0.0, %v3047
      %v3049 = vpop.f32.mrf.mxu0
      %v3050 = vadd.f32 0.0, %v3049
      %3051 = vmatmul.bf16.gmra.mxu0 %v2825
      %v3052 = vpop.f32.mrf.mxu0
      %v3053 = vadd.f32 0.0, %v3052
      %v3054 = vpop.f32.mrf.mxu0
      %v3055 = vadd.f32 0.0, %v3054
      %3056 = vmatmul.bf16.gmra.mxu0 %v2828
      %v3057 = vpop.f32.mrf.mxu0
      %v3058 = vadd.f32 0.0, %v3057
      %v3059 = vpop.f32.mrf.mxu0
      %v3060 = vadd.f32 0.0, %v3059
      %3061 = vmatmul.bf16.gmra.mxu0 %v2831
      %v3062 = vpop.f32.mrf.mxu0
      %v3063 = vadd.f32 0.0, %v3062
      %v3064 = vpop.f32.mrf.mxu0
      %v3065 = vadd.f32 0.0, %v3064
      %3066 = vdwg.mxu0
      %3067 = vmatpush.bf16.msra.mxu0 0
      %3068 = vmatpush.bf16.msra.mxu0 0
      %3069 = vmatpush.bf16.msra.mxu0 0
      %3070 = vmatpush.bf16.msra.mxu0 0
      %3071 = vmatpush.bf16.msra.mxu0 %v2917
      %3072 = vmatpush.bf16.msra.mxu0 %v2916
      %3073 = vmatpush.bf16.msra.mxu0 %v2915
      %3074 = vmatpush.bf16.msra.mxu0 %v2914
      %3075 = vmatmul.bf16.gmra.mxu0 %v2931
      %v3076 = vpop.f32.mrf.mxu0
      %v3077 = vadd.f32 %v2988, %v3076
      %v3078 = vpop.f32.mrf.mxu0
      %v3079 = vadd.f32 %v2990, %v3078
      %3080 = vmatmul.bf16.gmra.mxu0 %v2934
      %v3081 = vpop.f32.mrf.mxu0
      %v3082 = vadd.f32 %v2993, %v3081
      %v3083 = vpop.f32.mrf.mxu0
      %v3084 = vadd.f32 %v2995, %v3083
      %3085 = vmatmul.bf16.gmra.mxu0 %v2937
      %v3086 = vpop.f32.mrf.mxu0
      %v3087 = vadd.f32 %v2998, %v3086
      %v3088 = vpop.f32.mrf.mxu0
      %v3089 = vadd.f32 %v3000, %v3088
      %3090 = vmatmul.bf16.gmra.mxu0 %v2940
      %v3091 = vpop.f32.mrf.mxu0
      %v3092 = vadd.f32 %v3003, %v3091
      %v3093 = vpop.f32.mrf.mxu0
      %v3094 = vadd.f32 %v3005, %v3093
      %3095 = vmatmul.bf16.gmra.mxu0 %v2943
      %v3096 = vpop.f32.mrf.mxu0
      %v3097 = vadd.f32 %v3008, %v3096
      %v3098 = vpop.f32.mrf.mxu0
      %v3099 = vadd.f32 %v3010, %v3098
      %3100 = vmatmul.bf16.gmra.mxu0 %v2946
      %v3101 = vpop.f32.mrf.mxu0
      %v3102 = vadd.f32 %v3013, %v3101
      %v3103 = vpop.f32.mrf.mxu0
      %v3104 = vadd.f32 %v3015, %v3103
      %3105 = vmatmul.bf16.gmra.mxu0 %v2949
      %v3106 = vpop.f32.mrf.mxu0
      %v3107 = vadd.f32 %v3018, %v3106
      %v3108 = vpop.f32.mrf.mxu0
      %v3109 = vadd.f32 %v3020, %v3108
      %3110 = vmatmul.bf16.gmra.mxu0 %v2952
      %v3111 = vpop.f32.mrf.mxu0
      %v3112 = vadd.f32 %v3023, %v3111
      %v3113 = vpop.f32.mrf.mxu0
      %v3114 = vadd.f32 %v3025, %v3113
      %3115 = vmatmul.bf16.gmra.mxu0 %v2955
      %v3116 = vpop.f32.mrf.mxu0
      %v3117 = vadd.f32 %v3028, %v3116
      %v3118 = vpop.f32.mrf.mxu0
      %v3119 = vadd.f32 %v3030, %v3118
      %3120 = vmatmul.bf16.gmra.mxu0 %v2958
      %v3121 = vpop.f32.mrf.mxu0
      %v3122 = vadd.f32 %v3033, %v3121
      %v3123 = vpop.f32.mrf.mxu0
      %v3124 = vadd.f32 %v3035, %v3123
      %3125 = vmatmul.bf16.gmra.mxu0 %v2961
      %v3126 = vpop.f32.mrf.mxu0
      %v3127 = vadd.f32 %v3038, %v3126
      %v3128 = vpop.f32.mrf.mxu0
      %v3129 = vadd.f32 %v3040, %v3128
      %3130 = vmatmul.bf16.gmra.mxu0 %v2964
      %v3131 = vpop.f32.mrf.mxu0
      %v3132 = vadd.f32 %v3043, %v3131
      %v3133 = vpop.f32.mrf.mxu0
      %v3134 = vadd.f32 %v3045, %v3133
      %3135 = vmatmul.bf16.gmra.mxu0 %v2967
      %v3136 = vpop.f32.mrf.mxu0
      %v3137 = vadd.f32 %v3048, %v3136
      %v3138 = vpop.f32.mrf.mxu0
      %v3139 = vadd.f32 %v3050, %v3138
      %3140 = vmatmul.bf16.gmra.mxu0 %v2970
      %v3141 = vpop.f32.mrf.mxu0
      %v3142 = vadd.f32 %v3053, %v3141
      %v3143 = vpop.f32.mrf.mxu0
      %v3144 = vadd.f32 %v3055, %v3143
      %3145 = vmatmul.bf16.gmra.mxu0 %v2973
      %v3146 = vpop.f32.mrf.mxu0
      %v3147 = vadd.f32 %v3058, %v3146
      %v3148 = vpop.f32.mrf.mxu0
      %v3149 = vadd.f32 %v3060, %v3148
      %3150 = vmatmul.bf16.gmra.mxu0 %v2976
      %v3151 = vpop.f32.mrf.mxu0
      %v3152 = vadd.f32 %v3063, %v3151
      %v3153 = vpop.f32.mrf.mxu0
      %v3154 = vadd.f32 %v3065, %v3153
      %3155 = vdwg.mxu0
      %v3156 = vadd.f32 %v2193, %v3077
      %v3157 = vadd.f32 %v2195, %v3079
      %v3158 = vadd.f32 %v2198, %v3082
      %v3159 = vadd.f32 %v2200, %v3084
      %v3160 = vadd.f32 %v2203, %v3087
      %v3161 = vadd.f32 %v2205, %v3089
      %v3162 = vadd.f32 %v2208, %v3092
      %v3163 = vadd.f32 %v2210, %v3094
      %v3164 = vadd.f32 %v2213, %v3097
      %v3165 = vadd.f32 %v2215, %v3099
      %v3166 = vadd.f32 %v2218, %v3102
      %v3167 = vadd.f32 %v2220, %v3104
      %v3168 = vadd.f32 %v2223, %v3107
      %v3169 = vadd.f32 %v2225, %v3109
      %v3170 = vadd.f32 %v2228, %v3112
      %v3171 = vadd.f32 %v2230, %v3114
      %v3172 = vadd.f32 %v2233, %v3117
      %v3173 = vadd.f32 %v2235, %v3119
      %v3174 = vadd.f32 %v2238, %v3122
      %v3175 = vadd.f32 %v2240, %v3124
      %v3176 = vadd.f32 %v2243, %v3127
      %v3177 = vadd.f32 %v2245, %v3129
      %v3178 = vadd.f32 %v2248, %v3132
      %v3179 = vadd.f32 %v2250, %v3134
      %v3180 = vadd.f32 %v2253, %v3137
      %v3181 = vadd.f32 %v2255, %v3139
      %v3182 = vadd.f32 %v2258, %v3142
      %v3183 = vadd.f32 %v2260, %v3144
      %v3184 = vadd.f32 %v2263, %v3147
      %v3185 = vadd.f32 %v2265, %v3149
      %v3186 = vadd.f32 %v2268, %v3152
      %v3187 = vadd.f32 %v2270, %v3154
      %v3188 = vld [vmem:[%s4] sm:$0x1]
      %v3190 = vperm.slane %v3188, 0
      %v3192 = vadd.f32 %v3156, %v3190
      %v3193 = vadd.f32 %v3157, %v3190
      %v3194 = vadd.f32 %v3158, %v3190
      %v3195 = vadd.f32 %v3159, %v3190
      %v3196 = vadd.f32 %v3160, %v3190
      %v3197 = vadd.f32 %v3161, %v3190
      %v3198 = vadd.f32 %v3162, %v3190
      %v3199 = vadd.f32 %v3163, %v3190
      %v3200 = vadd.f32 %v3164, %v3190
      %v3201 = vadd.f32 %v3165, %v3190
      %v3202 = vadd.f32 %v3166, %v3190
      %v3203 = vadd.f32 %v3167, %v3190
      %v3204 = vadd.f32 %v3168, %v3190
      %v3205 = vadd.f32 %v3169, %v3190
      %v3206 = vadd.f32 %v3170, %v3190
      %v3207 = vadd.f32 %v3171, %v3190
      %v3208 = vadd.f32 %v3172, %v3190
      %v3209 = vadd.f32 %v3173, %v3190
      %v3210 = vadd.f32 %v3174, %v3190
      %v3211 = vadd.f32 %v3175, %v3190
      %v3212 = vadd.f32 %v3176, %v3190
      %v3213 = vadd.f32 %v3177, %v3190
      %v3214 = vadd.f32 %v3178, %v3190
      %v3215 = vadd.f32 %v3179, %v3190
      %v3216 = vadd.f32 %v3180, %v3190
      %v3217 = vadd.f32 %v3181, %v3190
      %v3218 = vadd.f32 %v3182, %v3190
      %v3219 = vadd.f32 %v3183, %v3190
      %v3220 = vadd.f32 %v3184, %v3190
      %v3221 = vadd.f32 %v3185, %v3190
      %v3222 = vadd.f32 %v3186, %v3190
      %v3223 = vadd.f32 %v3187, %v3190
      %v3224 = vmax.f32 %v3192, 0.0
      %v3225 = vmax.f32 %v3193, 0.0
      %v3226 = vmax.f32 %v3194, 0.0
      %v3227 = vmax.f32 %v3195, 0.0
      %v3228 = vmax.f32 %v3196, 0.0
      %v3229 = vmax.f32 %v3197, 0.0
      %v3230 = vmax.f32 %v3198, 0.0
      %v3231 = vmax.f32 %v3199, 0.0
      %v3232 = vmax.f32 %v3200, 0.0
      %v3233 = vmax.f32 %v3201, 0.0
      %v3234 = vmax.f32 %v3202, 0.0
      %v3235 = vmax.f32 %v3203, 0.0
      %v3236 = vmax.f32 %v3204, 0.0
      %v3237 = vmax.f32 %v3205, 0.0
      %v3238 = vmax.f32 %v3206, 0.0
      %v3239 = vmax.f32 %v3207, 0.0
      %v3240 = vmax.f32 %v3208, 0.0
      %v3241 = vmax.f32 %v3209, 0.0
      %v3242 = vmax.f32 %v3210, 0.0
      %v3243 = vmax.f32 %v3211, 0.0
      %v3244 = vmax.f32 %v3212, 0.0
      %v3245 = vmax.f32 %v3213, 0.0
      %v3246 = vmax.f32 %v3214, 0.0
      %v3247 = vmax.f32 %v3215, 0.0
      %v3248 = vmax.f32 %v3216, 0.0
      %v3249 = vmax.f32 %v3217, 0.0
      %v3250 = vmax.f32 %v3218, 0.0
      %v3251 = vmax.f32 %v3219, 0.0
      %v3252 = vmax.f32 %v3220, 0.0
      %v3253 = vmax.f32 %v3221, 0.0
      %v3254 = vmax.f32 %v3222, 0.0
      %v3255 = vmax.f32 %v3223, 0.0
      %v3256 = vpack.c.bf16 %v3224, %v3224
      %v3257 = vpack.c.bf16 %v3225, %v3225
      %v3258 = vpack.c.bf16 %v3226, %v3226
      %v3259 = vpack.c.bf16 %v3227, %v3227
      %v3260 = vpack.c.bf16 %v3228, %v3228
      %v3261 = vpack.c.bf16 %v3229, %v3229
      %v3262 = vpack.c.bf16 %v3230, %v3230
      %v3263 = vpack.c.bf16 %v3231, %v3231
      %v3264 = vpack.c.bf16 %v3232, %v3232
      %v3265 = vpack.c.bf16 %v3233, %v3233
      %v3266 = vpack.c.bf16 %v3234, %v3234
      %v3267 = vpack.c.bf16 %v3235, %v3235
      %v3268 = vpack.c.bf16 %v3236, %v3236
      %v3269 = vpack.c.bf16 %v3237, %v3237
      %v3270 = vpack.c.bf16 %v3238, %v3238
      %v3271 = vpack.c.bf16 %v3239, %v3239
      %v3272 = vpack.c.bf16 %v3240, %v3240
      %v3273 = vpack.c.bf16 %v3241, %v3241
      %v3274 = vpack.c.bf16 %v3242, %v3242
      %v3275 = vpack.c.bf16 %v3243, %v3243
      %v3276 = vpack.c.bf16 %v3244, %v3244
      %v3277 = vpack.c.bf16 %v3245, %v3245
      %v3278 = vpack.c.bf16 %v3246, %v3246
      %v3279 = vpack.c.bf16 %v3247, %v3247
      %v3280 = vpack.c.bf16 %v3248, %v3248
      %v3281 = vpack.c.bf16 %v3249, %v3249
      %v3282 = vpack.c.bf16 %v3250, %v3250
      %v3283 = vpack.c.bf16 %v3251, %v3251
      %v3284 = vpack.c.bf16 %v3252, %v3252
      %v3285 = vpack.c.bf16 %v3253, %v3253
      %v3286 = vpack.c.bf16 %v3254, %v3254
      %v3287 = vpack.c.bf16 %v3255, %v3255
      %3288 = vst.msk [vmem:[%s388] sm:$0xf] %vm439, %v3256
      %3289 = vst.msk [vmem:[%s388 + $0x4] sm:$0xf] %vm439, %v3257
      %3290 = vst.msk [vmem:[%s388 + $0x8] sm:$0xf] %vm439, %v3258
      %3291 = vst.msk [vmem:[%s388 + $0xc] sm:$0xf] %vm439, %v3259
      %3292 = vst.msk [vmem:[%s388 + $0x10] sm:$0xf] %vm439, %v3260
      %3293 = vst.msk [vmem:[%s388 + $0x14] sm:$0xf] %vm439, %v3261
      %3294 = vst.msk [vmem:[%s388 + $0x18] sm:$0xf] %vm439, %v3262
      %3295 = vst.msk [vmem:[%s388 + $0x1c] sm:$0xf] %vm439, %v3263
      %3296 = vst.msk [vmem:[%s388 + $0x20] sm:$0xf] %vm439, %v3264
      %3297 = vst.msk [vmem:[%s388 + $0x24] sm:$0xf] %vm439, %v3265
      %3298 = vst.msk [vmem:[%s388 + $0x28] sm:$0xf] %vm439, %v3266
      %3299 = vst.msk [vmem:[%s388 + $0x2c] sm:$0xf] %vm439, %v3267
      %3300 = vst.msk [vmem:[%s388 + $0x30] sm:$0xf] %vm439, %v3268
      %3301 = vst.msk [vmem:[%s388 + $0x34] sm:$0xf] %vm439, %v3269
      %3302 = vst.msk [vmem:[%s388 + $0x38] sm:$0xf] %vm439, %v3270
      %3303 = vst.msk [vmem:[%s388 + $0x3c] sm:$0xf] %vm439, %v3271
      %3304 = vst.msk [vmem:[%s388 + $0x40] sm:$0xf] %vm439, %v3272
      %3305 = vst.msk [vmem:[%s388 + $0x44] sm:$0xf] %vm439, %v3273
      %3306 = vst.msk [vmem:[%s388 + $0x48] sm:$0xf] %vm439, %v3274
      %3307 = vst.msk [vmem:[%s388 + $0x4c] sm:$0xf] %vm439, %v3275
      %3308 = vst.msk [vmem:[%s388 + $0x50] sm:$0xf] %vm439, %v3276
      %3309 = vst.msk [vmem:[%s388 + $0x54] sm:$0xf] %vm439, %v3277
      %3310 = vst.msk [vmem:[%s388 + $0x58] sm:$0xf] %vm439, %v3278
      %3311 = vst.msk [vmem:[%s388 + $0x5c] sm:$0xf] %vm439, %v3279
      %3312 = vst.msk [vmem:[%s388 + $0x60] sm:$0xf] %vm439, %v3280
      %3313 = vst.msk [vmem:[%s388 + $0x64] sm:$0xf] %vm439, %v3281
      %3314 = vst.msk [vmem:[%s388 + $0x68] sm:$0xf] %vm439, %v3282
      %3315 = vst.msk [vmem:[%s388 + $0x6c] sm:$0xf] %vm439, %v3283
      %3316 = vst.msk [vmem:[%s388 + $0x70] sm:$0xf] %vm439, %v3284
      %3317 = vst.msk [vmem:[%s388 + $0x74] sm:$0xf] %vm439, %v3285
      %3318 = vst.msk [vmem:[%s388 + $0x78] sm:$0xf] %vm439, %v3286
      %3319 = vst.msk [vmem:[%s388 + $0x7c] sm:$0xf] %vm439, %v3287
      %s3320 = smul.u32 16, %s21
      %p3321 = scmp.lt.s32.totalorder %s20, 3
      %s3322 = scalar_select %p3321, %s20, 3
      %p3323 = scmp.lt.s32.totalorder %s3320, 15
      %s3324 = scalar_select %p3323, %s3320, 15
      %s3325 = smul.addr %s3324, 2
      %s3326 = smul.addr %s3322, 32
      %s3327 = sadd.s32 %s3325, %s3326
      %s3328 = smul.addr %s3327, 4
      %s3329 = scalar_lea.vmem %s5, %s3328
      // Predicated region
      $region41: #{_lambda_.8} parent=39 // pred_check
        %p3330 = pneg %p182
      $region42: #{_lambda_.8} parent=39 // pred_check_branch
        %3332 = sbr.rel (%p3330) target = $region44
      $region43: #{_lambda_.8} parent=39 // pred_region
        %s3333 = smul.u32 16, %s21
      $region44: #{_lambda_.8} parent=39 // pred_fallthru
        _
    $region40: #{_lambda_.8} parent=5 // pred_fallthru
      _
    %p3334 = scmp.le.s32.totalorder 2, %s11
    // Predicated region
    $region45: #{_lambda_.8} parent=5 // pred_check
      %p3335 = pneg %p3334
    $region46: #{_lambda_.8} parent=5 // pred_check_branch
      %3337 = sbr.rel (%p3335) target = $region48
    $region47: #{_lambda_.8} parent=5 // pred_region
      %s3338 = ssub.s32 %s11, 2
      // Predicated region
      $region49: #{_lambda_.8} parent=47 // pred_check
        %p3339 = pneg %p188
      $region50: #{_lambda_.8} parent=47 // pred_check_branch
        %3341 = sbr.rel (%p3339) target = $region52
      $region51: #{_lambda_.8} parent=47 // pred_region
        %s3342 = smul.u32 16, %s23
        %p3343 = scmp.lt.s32.totalorder %s22, 3
        %s3344 = scalar_select %p3343, %s22, 3
        %p3345 = scmp.lt.s32.totalorder %s3342, 15
        %s3346 = scalar_select %p3345, %s3342, 15
        %s3347 = smul.addr %s3346, 2
        %s3348 = smul.addr %s3344, 32
        %s3349 = sadd.s32 %s3347, %s3348
        %s3350 = smul.addr %s3349, 4
        %s3351 = scalar_lea.vmem %s5, %s3350
      $region52: #{_lambda_.8} parent=47 // pred_fallthru
        _
    $region48: #{_lambda_.8} parent=5 // pred_fallthru
      _
  $region6: #{_lambda_.8} parent=0 // loop_footer
    %s15 = sadd.s32 1, %s11
  $region7: #{_lambda_.8} parent=0 // loop_footer_branch
    %10 = sbr.rel target = $region3
  $region8: #{_lambda_.8} parent=0 // loop_exit
    _

// kernel: _lambda_.7
$region0: #{_lambda_.7}
  #allocation0 [shape = 'u32[]', space=smem, size = 0x4, offset = 0x4, fixed_abs, tag = 'smem constant byte address 0x4 - core index']
  #allocation1 [shape = 'u32[72,128]{1,0:T(1,128)}', space=vmem, size = 0x9000, scoped, tag = 'internal scratch']
  #allocation2 [shape = 'bf16[18,18,8]{2,1,0:T(8,128)(2,1)}', space=vmem, size = 0x1b000, scoped, tag = 'scratch operand']
  %s0 = inlined_call_operand.vmem [shape: bf16[4,18,18,8], index: 0, kind: input, shape index: {}, may-alias: {0,1,2}]
  %s1 = inlined_call_operand.vmem [shape: bf16[4,18,18,8], index: 1, kind: input, shape index: {}, may-alias: {0,1,2}]
  %s2 = inlined_call_operand.vmem [shape: bf16[4,18,18,8], index: 2, kind: input, shape index: {}, may-alias: {0,1,2}]
  %s3 = inlined_call_operand.vmem [shape: bf16[3,24,64], index: 3, kind: input, shape index: {}]
  %s4 = inlined_call_operand.vmem [shape: f32[1,64], index: 4, kind: input, shape index: {}]
  %s5 = inlined_call_operand.vmem [shape: bf16[4,16,16,64], index: 5, kind: output, shape index: {}]
  %s6 = sld [smem:[#allocation0]]
  $region53: #{_lambda_.7} parent=0
    _
  %s8 = ssub.s32 1, %s6
  %s9 = scalar_select 0, %s8, %s6
  loop: start=0, step=1, limit=6
  $region2: #{_lambda_.7} parent=0 // loop_pre_header
    _
  $region3: #{_lambda_.7} parent=0 // loop_header
    %s11 = sphi 0, %s15
    %p12 = scmp.ge.s32.totalorder %s11, 6
    %s18 = sphi 0, %s30
    %s19 = sphi 0, %s26
    %s20 = sphi 0, %s18
    %s21 = sphi 0, %s19
    %s22 = sphi 0, %s20
    %s23 = sphi 0, %s21
    %s35 = sphi 0, %s37
    %s38 = sphi 0, %s35
    %s39 = sphi 0, %s38
    %s55 = sphi 0, %s39
    %s67 = sphi 0, %s69
    %s70 = sphi 0, %s67
    %s71 = sphi 0, %s70
    %s87 = sphi 0, %s71
    %s99 = sphi 0, %s101
    %s102 = sphi 0, %s99
    %s103 = sphi 0, %s102
    %s119 = sphi 0, %s103
    %s123 = sphi 0, %s123
    %s125 = sphi 0, %s123
    %s126 = sphi 0, %s125
    %s140 = sphi 0, %s126
    %s144 = sphi 0, %s144
    %s146 = sphi 0, %s144
    %s147 = sphi 0, %s146
    %s161 = sphi 0, %s147
    %s169 = sphi 0, %s171
    %s172 = sphi 0, %s169
    %s173 = sphi 0, %s172
    %s189 = sphi 0, %s173
  $region4: #{_lambda_.7} parent=0 // loop_header_branch
    %14 = sbr.rel (%p12) target = $region8
  $region5: #{_lambda_.7} parent=0 // loop_body
    %s16 = ssub.s32 %s11, 1
    %s17 = ssub.s32 %s11, 2
    %s24 = sadd.s32 1, %s19
    %p25 = scmp.ge.s32.totalorder %s24, 1
    %s26 = scalar_select %p25, 0, %s24
    %s27 = sadd.s32 1, %s18
    %s28 = scalar_select %p25, %s27, %s18
    %p29 = scmp.ge.s32.totalorder %s28, 4
    %s30 = scalar_select %p29, 0, %s28
    %s31 = ssub.s32 %s18, %s30
    %s32 = ssub.s32 %s19, %s26
    %s33 = sor.u32 %s31, %s32
    %p34 = scmp.eq.s32.totalorder %s33, 0
    %s36 = sadd.s32 %s35, 1
    %s37 = scalar_select %p34, %s35, %s36
    %p40 = pneg %p34
    %p41 = scmp.eq.s32.totalorder %s11, 3
    %p42 = por %p40, %p41
    %p43 = scmp.ne.s32.totalorder %s35, %s38
    %p44 = scmp.eq.s32.totalorder %s11, 0
    %p45 = por %p43, %p44
    %p46 = scmp.ne.s32.totalorder %s35, %s38
    %p47 = scmp.eq.s32.totalorder %s16, 3
    %p48 = por %p46, %p47
    %p49 = scmp.ne.s32.totalorder %s38, %s39
    %p50 = scmp.eq.s32.totalorder %s16, 0
    %p51 = por %p49, %p50
    %p52 = scmp.ne.s32.totalorder %s38, %s39
    %p53 = scmp.eq.s32.totalorder %s17, 3
    %p54 = por %p52, %p53
    %p56 = scmp.ne.s32.totalorder %s39, %s55
    %p57 = scmp.eq.s32.totalorder %s17, 0
    %p58 = por %p56, %p57
    %s59 = smul.u32 %s19, 16
    %s60 = sadd.s32 %s59, 16
    %s61 = smul.u32 %s26, 16
    %s62 = sadd.s32 %s61, 16
    %s63 = ssub.s32 %s18, %s30
    %s64 = ssub.s32 %s60, %s62
    %s65 = sor.u32 %s63, %s64
    %p66 = scmp.eq.s32.totalorder %s65, 0
    %s68 = sadd.s32 %s67, 1
    %s69 = scalar_select %p66, %s67, %s68
    %p72 = pneg %p66
    %p73 = scmp.eq.s32.totalorder %s11, 3
    %p74 = por %p72, %p73
    %p75 = scmp.ne.s32.totalorder %s67, %s70
    %p76 = scmp.eq.s32.totalorder %s11, 0
    %p77 = por %p75, %p76
    %p78 = scmp.ne.s32.totalorder %s67, %s70
    %p79 = scmp.eq.s32.totalorder %s16, 3
    %p80 = por %p78, %p79
    %p81 = scmp.ne.s32.totalorder %s70, %s71
    %p82 = scmp.eq.s32.totalorder %s16, 0
    %p83 = por %p81, %p82
    %p84 = scmp.ne.s32.totalorder %s70, %s71
    %p85 = scmp.eq.s32.totalorder %s17, 3
    %p86 = por %p84, %p85
    %p88 = scmp.ne.s32.totalorder %s71, %s87
    %p89 = scmp.eq.s32.totalorder %s17, 0
    %p90 = por %p88, %p89
    %s91 = smul.u32 %s19, 16
    %s92 = sadd.s32 %s91, 17
    %s93 = smul.u32 %s26, 16
    %s94 = sadd.s32 %s93, 17
    %s95 = ssub.s32 %s18, %s30
    %s96 = ssub.s32 %s92, %s94
    %s97 = sor.u32 %s95, %s96
    %p98 = scmp.eq.s32.totalorder %s97, 0
    %s100 = sadd.s32 %s99, 1
    %s101 = scalar_select %p98, %s99, %s100
    %p104 = pneg %p98
    %p105 = scmp.eq.s32.totalorder %s11, 3
    %p106 = por %p104, %p105
    %p107 = scmp.ne.s32.totalorder %s99, %s102
    %p108 = scmp.eq.s32.totalorder %s11, 0
    %p109 = por %p107, %p108
    %p110 = scmp.ne.s32.totalorder %s99, %s102
    %p111 = scmp.eq.s32.totalorder %s16, 3
    %p112 = por %p110, %p111
    %p113 = scmp.ne.s32.totalorder %s102, %s103
    %p114 = scmp.eq.s32.totalorder %s16, 0
    %p115 = por %p113, %p114
    %p116 = scmp.ne.s32.totalorder %s102, %s103
    %p117 = scmp.eq.s32.totalorder %s17, 3
    %p118 = por %p116, %p117
    %p120 = scmp.ne.s32.totalorder %s103, %s119
    %p121 = scmp.eq.s32.totalorder %s17, 0
    %p122 = por %p120, %p121
    %s124 = sadd.s32 %s123, 1
    %p127 = scmp.eq.s32.totalorder %s11, 3
    %p128 = scmp.ne.s32.totalorder %s123, %s125
    %p129 = scmp.eq.s32.totalorder %s11, 0
    %p130 = por %p128, %p129
    %p131 = scmp.ne.s32.totalorder %s123, %s125
    %p132 = scmp.eq.s32.totalorder %s16, 3
    %p133 = por %p131, %p132
    %p134 = scmp.ne.s32.totalorder %s125, %s126
    %p135 = scmp.eq.s32.totalorder %s16, 0
    %p136 = por %p134, %p135
    %p137 = scmp.ne.s32.totalorder %s125, %s126
    %p138 = scmp.eq.s32.totalorder %s17, 3
    %p139 = por %p137, %p138
    %p141 = scmp.ne.s32.totalorder %s126, %s140
    %p142 = scmp.eq.s32.totalorder %s17, 0
    %p143 = por %p141, %p142
    %s145 = sadd.s32 %s144, 1
    %p148 = scmp.eq.s32.totalorder %s11, 3
    %p149 = scmp.ne.s32.totalorder %s144, %s146
    %p150 = scmp.eq.s32.totalorder %s11, 0
    %p151 = por %p149, %p150
    %p152 = scmp.ne.s32.totalorder %s144, %s146
    %p153 = scmp.eq.s32.totalorder %s16, 3
    %p154 = por %p152, %p153
    %p155 = scmp.ne.s32.totalorder %s146, %s147
    %p156 = scmp.eq.s32.totalorder %s16, 0
    %p157 = por %p155, %p156
    %p158 = scmp.ne.s32.totalorder %s146, %s147
    %p159 = scmp.eq.s32.totalorder %s17, 3
    %p160 = por %p158, %p159
    %p162 = scmp.ne.s32.totalorder %s147, %s161
    %p163 = scmp.eq.s32.totalorder %s17, 0
    %p164 = por %p162, %p163
    %s165 = ssub.s32 %s18, %s30
    %s166 = ssub.s32 %s19, %s26
    %s167 = sor.u32 %s165, %s166
    %p168 = scmp.eq.s32.totalorder %s167, 0
    %s170 = sadd.s32 %s169, 1
    %s171 = scalar_select %p168, %s169, %s170
    %p174 = pneg %p168
    %p175 = scmp.eq.s32.totalorder %s11, 3
    %p176 = por %p174, %p175
    %p177 = scmp.ne.s32.totalorder %s169, %s172
    %p178 = scmp.eq.s32.totalorder %s11, 0
    %p179 = por %p177, %p178
    %p180 = scmp.ne.s32.totalorder %s169, %s172
    %p181 = scmp.eq.s32.totalorder %s16, 3
    %p182 = por %p180, %p181
    %p183 = scmp.ne.s32.totalorder %s172, %s173
    %p184 = scmp.eq.s32.totalorder %s16, 0
    %p185 = por %p183, %p184
    %p186 = scmp.ne.s32.totalorder %s172, %s173
    %p187 = scmp.eq.s32.totalorder %s17, 3
    %p188 = por %p186, %p187
    %p190 = scmp.ne.s32.totalorder %s173, %s189
    %p191 = scmp.eq.s32.totalorder %s17, 0
    %p192 = por %p190, %p191
    %p193 = scmp.le.s32.totalorder 1, %s11
    %p194 = scmp.lt.s32.totalorder %s11, 5
    %p195 = pnand %p193, %p194
    %p196 = pneg %p195
    // Predicated region
    $region9: #{_lambda_.7} parent=5 // pred_check
      _
    $region10: #{_lambda_.7} parent=5 // pred_check_branch
      %198 = sbr.rel (%p195) target = $region12
    $region11: #{_lambda_.7} parent=5 // pred_region
      %s199 = ssub.s32 %s11, 1
      // Predicated region
      $region13: #{_lambda_.7} parent=11 // pred_check
        %p200 = pneg %p136
      $region14: #{_lambda_.7} parent=11 // pred_check_branch
        %202 = sbr.rel (%p200) target = $region16
      $region15: #{_lambda_.7} parent=11 // pred_region
        _
      $region16: #{_lambda_.7} parent=11 // pred_fallthru
        _
      // Predicated region
      $region17: #{_lambda_.7} parent=11 // pred_check
        %p203 = pneg %p157
      $region18: #{_lambda_.7} parent=11 // pred_check_branch
        %205 = sbr.rel (%p203) target = $region20
      $region19: #{_lambda_.7} parent=11 // pred_region
        _
      $region20: #{_lambda_.7} parent=11 // pred_fallthru
        _
    $region12: #{_lambda_.7} parent=5 // pred_fallthru
      _
    %p206 = scmp.lt.s32.totalorder %s11, 4
    // Predicated region
    $region21: #{_lambda_.7} parent=5 // pred_check
      %p207 = pneg %p206
    $region22: #{_lambda_.7} parent=5 // pred_check_branch
      %209 = sbr.rel (%p207) target = $region24
    $region23: #{_lambda_.7} parent=5 // pred_region
      // Predicated region
      $region25: #{_lambda_.7} parent=23 // pred_check
        %p210 = pneg %p45
      $region26: #{_lambda_.7} parent=23 // pred_check_branch
        %212 = sbr.rel (%p210) target = $region28
      $region27: #{_lambda_.7} parent=23 // pred_region
        %s213 = smul.u32 16, %s19
        %s214 = ssub.s32 18, %s213
        %p215 = scmp.lt.s32.totalorder %s214, 16
        %s216 = scalar_select %p215, %s214, 16
        %s217 = smul.u32 4, %s216
        %s218 = smul.u32 %s217, 3
        %p219 = scmp.lt.s32.totalorder %s18, 3
        %s220 = scalar_select %p219, %s18, 3
        %p221 = scmp.lt.s32.totalorder %s213, 17
        %s222 = scalar_select %p221, %s213, 17
        %s223 = smul.addr %s222, 3
        %s224 = smul.addr %s220, 54
        %s225 = sadd.s32 %s223, %s224
        %s226 = smul.addr %s225, 4
        %s227 = scalar_lea.vmem %s0, %s226
        %s228 = smul.u32 16, %s19
        %s229 = ssub.s32 18, %s228
        %p230 = scmp.lt.s32.totalorder %s229, 16
        %s231 = scalar_select %p230, %s229, 16
        %s232 = smul.u32 4, %s231
        %s233 = smul.u32 %s232, 3
      $region28: #{_lambda_.7} parent=23 // pred_fallthru
        _
      // Predicated region
      $region29: #{_lambda_.7} parent=23 // pred_check
        %p234 = pneg %p77
      $region30: #{_lambda_.7} parent=23 // pred_check_branch
        %236 = sbr.rel (%p234) target = $region32
      $region31: #{_lambda_.7} parent=23 // pred_region
        %s237 = smul.u32 %s19, 16
        %s238 = sadd.s32 %s237, 16
        %p239 = scmp.lt.s32.totalorder %s18, 3
        %s240 = scalar_select %p239, %s18, 3
        %p241 = scmp.lt.s32.totalorder %s238, 17
        %s242 = scalar_select %p241, %s238, 17
        %s243 = smul.addr %s242, 3
        %s244 = smul.addr %s240, 54
        %s245 = sadd.s32 %s243, %s244
        %s246 = smul.addr %s245, 4
        %s247 = scalar_lea.vmem %s1, %s246
        %s248 = smul.u32 %s19, 16
        %s249 = sadd.s32 %s248, 16
      $region32: #{_lambda_.7} parent=23 // pred_fallthru
        _
      // Predicated region
      $region33: #{_lambda_.7} parent=23 // pred_check
        %p250 = pneg %p109
      $region34: #{_lambda_.7} parent=23 // pred_check_branch
        %252 = sbr.rel (%p250) target = $region36
      $region35: #{_lambda_.7} parent=23 // pred_region
        %s253 = smul.u32 %s19, 16
        %s254 = sadd.s32 %s253, 17
        %p255 = scmp.lt.s32.totalorder %s18, 3
        %s256 = scalar_select %p255, %s18, 3
        %p257 = scmp.lt.s32.totalorder %s254, 17
        %s258 = scalar_select %p257, %s254, 17
        %s259 = smul.addr %s258, 3
        %s260 = smul.addr %s256, 54
        %s261 = sadd.s32 %s259, %s260
        %s262 = smul.addr %s261, 4
        %s263 = scalar_lea.vmem %s2, %s262
        %s264 = smul.u32 %s19, 16
        %s265 = sadd.s32 %s264, 17
      $region36: #{_lambda_.7} parent=23 // pred_fallthru
        _
    $region24: #{_lambda_.7} parent=5 // pred_fallthru
      _
    %p266 = scmp.le.s32.totalorder 1, %s11
    %p267 = scmp.lt.s32.totalorder %s11, 5
    %p268 = pnand %p266, %p267
    %p269 = pneg %p268
    // Predicated region
    $region37: #{_lambda_.7} parent=5 // pred_check
      _
    $region38: #{_lambda_.7} parent=5 // pred_check_branch
      %271 = sbr.rel (%p268) target = $region40
    $region39: #{_lambda_.7} parent=5 // pred_region
      %s272 = ssub.s32 %s11, 1
      %s273 = smul.u32 16, %s21
      %s274 = ssub.s32 18, %s273
      %p275 = scmp.lt.s32.totalorder %s274, 16
      %s276 = scalar_select %p275, %s274, 16
      %s277 = smul.u32 4, %s276
      %s278 = smul.u32 %s277, 3
      %p279 = scmp.lt.s32.totalorder %s20, 3
      %s280 = scalar_select %p279, %s20, 3
      %p281 = scmp.lt.s32.totalorder %s273, 17
      %s282 = scalar_select %p281, %s273, 17
      %s283 = smul.addr %s282, 3
      %s284 = smul.addr %s280, 54
      %s285 = sadd.s32 %s283, %s284
      %s286 = smul.addr %s285, 4
      %s287 = scalar_lea.vmem %s0, %s286
      %p288 = pneg %p51
      %p289 = pneg %p48
      %s290 = smul.u32 %s21, 16
      %s291 = sadd.s32 %s290, 16
      %p292 = scmp.lt.s32.totalorder %s20, 3
      %s293 = scalar_select %p292, %s20, 3
      %p294 = scmp.lt.s32.totalorder %s291, 17
      %s295 = scalar_select %p294, %s291, 17
      %s296 = smul.addr %s295, 3
      %s297 = smul.addr %s293, 54
      %s298 = sadd.s32 %s296, %s297
      %s299 = smul.addr %s298, 4
      %s300 = scalar_lea.vmem %s1, %s299
      %p301 = pneg %p83
      %p302 = pneg %p80
      %s303 = smul.u32 %s21, 16
      %s304 = sadd.s32 %s303, 17
      %p305 = scmp.lt.s32.totalorder %s20, 3
      %s306 = scalar_select %p305, %s20, 3
      %p307 = scmp.lt.s32.totalorder %s304, 17
      %s308 = scalar_select %p307, %s304, 17
      %s309 = smul.addr %s308, 3
      %s310 = smul.addr %s306, 54
      %s311 = sadd.s32 %s309, %s310
      %s312 = smul.addr %s311, 4
      %s313 = scalar_lea.vmem %s2, %s312
      %p314 = pneg %p115
      %p315 = pneg %p112
      %p316 = pneg %p136
      %p317 = pneg %p133
      %p318 = pneg %p157
      %p319 = pneg %p154
      %p320 = pneg %p185
      %p321 = pneg %p182
      %s322 = smul.u32 16, %s21
      %p323 = scmp.lt.s32.totalorder %s20, 3
      %s324 = scalar_select %p323, %s20, 3
      %p325 = scmp.lt.s32.totalorder %s322, 15
      %s326 = scalar_select %p325, %s322, 15
      %s327 = smul.addr %s326, 2
      %s328 = smul.addr %s324, 32
      %s329 = sadd.s32 %s327, %s328
      %s330 = smul.addr %s329, 4
      %s331 = scalar_lea.vmem %s5, %s330
      %s332 = smul.u32 16, %s21
      %s333 = ssub.s32 18, %s332
      %p334 = scmp.lt.s32.totalorder %s333, 16
      %s335 = scalar_select %p334, %s333, 16
      %s336 = smul.u32 4, %s335
      %s337 = smul.u32 %s336, 3
      %p338 = scmp.lt.s32.totalorder %s20, 3
      %s339 = scalar_select %p338, %s20, 3
      %p340 = scmp.lt.s32.totalorder %s332, 17
      %s341 = scalar_select %p340, %s332, 17
      %s342 = smul.addr %s341, 3
      %s343 = smul.addr %s339, 54
      %s344 = sadd.s32 %s342, %s343
      %s345 = smul.addr %s344, 4
      %s346 = scalar_lea.vmem %s0, %s345
      %s347 = smul.u32 16, %s21
      %s348 = ssub.s32 18, %s347
      %p349 = scmp.lt.s32.totalorder %s348, 16
      %s350 = scalar_select %p349, %s348, 16
      %s351 = smul.u32 4, %s350
      %s352 = smul.u32 %s351, 3
      %s353 = smul.u32 %s21, 16
      %s354 = sadd.s32 %s353, 16
      %p355 = scmp.lt.s32.totalorder %s20, 3
      %s356 = scalar_select %p355, %s20, 3
      %p357 = scmp.lt.s32.totalorder %s354, 17
      %s358 = scalar_select %p357, %s354, 17
      %s359 = smul.addr %s358, 3
      %s360 = smul.addr %s356, 54
      %s361 = sadd.s32 %s359, %s360
      %s362 = smul.addr %s361, 4
      %s363 = scalar_lea.vmem %s1, %s362
      %s364 = smul.u32 %s21, 16
      %s365 = sadd.s32 %s364, 16
      %s366 = smul.u32 %s21, 16
      %s367 = sadd.s32 %s366, 17
      %p368 = scmp.lt.s32.totalorder %s20, 3
      %s369 = scalar_select %p368, %s20, 3
      %p370 = scmp.lt.s32.totalorder %s367, 17
      %s371 = scalar_select %p370, %s367, 17
      %s372 = smul.addr %s371, 3
      %s373 = smul.addr %s369, 54
      %s374 = sadd.s32 %s372, %s373
      %s375 = smul.addr %s374, 4
      %s376 = scalar_lea.vmem %s2, %s375
      %s377 = smul.u32 %s21, 16
      %s378 = sadd.s32 %s377, 17
      %s379 = smul.u32 16, %s21
      %p380 = scmp.lt.s32.totalorder %s20, 3
      %s381 = scalar_select %p380, %s20, 3
      %p382 = scmp.lt.s32.totalorder %s379, 15
      %s383 = scalar_select %p382, %s379, 15
      %s384 = smul.addr %s383, 2
      %s385 = smul.addr %s381, 32
      %s386 = sadd.s32 %s384, %s385
      %s387 = smul.addr %s386, 4
      %s388 = scalar_lea.vmem %s5, %s387
      %s389 = smul.u32 16, %s21
      %v391 = vld [vmem:[%s346] sm:$0xf]
      %v392 = vld [vmem:[%s346 + $0x4] sm:$0xf]
      %v393 = vld [vmem:[%s346 + $0x8] sm:$0x1]
      %v394 = vld [vmem:[%s346 + $0xc] sm:$0xf]
      %v395 = vld [vmem:[%s346 + $0x10] sm:$0xf]
      %v396 = vld [vmem:[%s346 + $0x14] sm:$0x1]
      %v397 = vld [vmem:[%s346 + $0x18] sm:$0xf]
      %v398 = vld [vmem:[%s346 + $0x1c] sm:$0xf]
      %v399 = vld [vmem:[%s346 + $0x20] sm:$0x1]
      %v400 = vld [vmem:[%s346 + $0x24] sm:$0xf]
      %v401 = vld [vmem:[%s346 + $0x28] sm:$0xf]
      %v402 = vld [vmem:[%s346 + $0x2c] sm:$0x1]
      %v403 = vld [vmem:[%s346 + $0x30] sm:$0xf]
      %v404 = vld [vmem:[%s346 + $0x34] sm:$0xf]
      %v405 = vld [vmem:[%s346 + $0x38] sm:$0x1]
      %v406 = vld [vmem:[%s346 + $0x3c] sm:$0xf]
      %v407 = vld [vmem:[%s346 + $0x40] sm:$0xf]
      %v408 = vld [vmem:[%s346 + $0x44] sm:$0x1]
      %v409 = vld [vmem:[%s346 + $0x48] sm:$0xf]
      %v410 = vld [vmem:[%s346 + $0x4c] sm:$0xf]
      %v411 = vld [vmem:[%s346 + $0x50] sm:$0x1]
      %v412 = vld [vmem:[%s346 + $0x54] sm:$0xf]
      %v413 = vld [vmem:[%s346 + $0x58] sm:$0xf]
      %v414 = vld [vmem:[%s346 + $0x5c] sm:$0x1]
      %v415 = vld [vmem:[%s346 + $0x60] sm:$0xf]
      %v416 = vld [vmem:[%s346 + $0x64] sm:$0xf]
      %v417 = vld [vmem:[%s346 + $0x68] sm:$0x1]
      %v418 = vld [vmem:[%s346 + $0x6c] sm:$0xf]
      %v419 = vld [vmem:[%s346 + $0x70] sm:$0xf]
      %v420 = vld [vmem:[%s346 + $0x74] sm:$0x1]
      %v421 = vld [vmem:[%s346 + $0x78] sm:$0xf]
      %v422 = vld [vmem:[%s346 + $0x7c] sm:$0xf]
      %v423 = vld [vmem:[%s346 + $0x80] sm:$0x1]
      %v424 = vld [vmem:[%s346 + $0x84] sm:$0xf]
      %v425 = vld [vmem:[%s346 + $0x88] sm:$0xf]
      %v426 = vld [vmem:[%s346 + $0x8c] sm:$0x1]
      %v427 = vld [vmem:[%s346 + $0x90] sm:$0xf]
      %v428 = vld [vmem:[%s346 + $0x94] sm:$0xf]
      %v429 = vld [vmem:[%s346 + $0x98] sm:$0x1]
      %v430 = vld [vmem:[%s346 + $0x9c] sm:$0xf]
      %v431 = vld [vmem:[%s346 + $0xa0] sm:$0xf]
      %v432 = vld [vmem:[%s346 + $0xa4] sm:$0x1]
      %v433 = vld [vmem:[%s346 + $0xa8] sm:$0xf]
      %v434 = vld [vmem:[%s346 + $0xac] sm:$0xf]
      %v435 = vld [vmem:[%s346 + $0xb0] sm:$0x1]
      %v436 = vld [vmem:[%s346 + $0xb4] sm:$0xf]
      %v437 = vld [vmem:[%s346 + $0xb8] sm:$0xf]
      %v438 = vld [vmem:[%s346 + $0xbc] sm:$0x1]
      %vm439 = vcmask 60416
      %440 = vst.msk [vmem:[#allocation2] sm:$0xf] %vm439, %v391
      %441 = vst.msk [vmem:[#allocation2 + $0x4] sm:$0xf] %vm439, %v392
      %vm442 = vcmask 57344
      %443 = vst.msk [vmem:[#allocation2 + $0x8] sm:$0x1] %vm442, %v393
      %444 = vst.msk [vmem:[#allocation2 + $0xc] sm:$0xf] %vm439, %v394
      %445 = vst.msk [vmem:[#allocation2 + $0x10] sm:$0xf] %vm439, %v395
      %446 = vst.msk [vmem:[#allocation2 + $0x14] sm:$0x1] %vm442, %v396
      %447 = vst.msk [vmem:[#allocation2 + $0x18] sm:$0xf] %vm439, %v397
      %448 = vst.msk [vmem:[#allocation2 + $0x1c] sm:$0xf] %vm439, %v398
      %449 = vst.msk [vmem:[#allocation2 + $0x20] sm:$0x1] %vm442, %v399
      %450 = vst.msk [vmem:[#allocation2 + $0x24] sm:$0xf] %vm439, %v400
      %451 = vst.msk [vmem:[#allocation2 + $0x28] sm:$0xf] %vm439, %v401
      %452 = vst.msk [vmem:[#allocation2 + $0x2c] sm:$0x1] %vm442, %v402
      %453 = vst.msk [vmem:[#allocation2 + $0x30] sm:$0xf] %vm439, %v403
      %454 = vst.msk [vmem:[#allocation2 + $0x34] sm:$0xf] %vm439, %v404
      %455 = vst.msk [vmem:[#allocation2 + $0x38] sm:$0x1] %vm442, %v405
      %456 = vst.msk [vmem:[#allocation2 + $0x3c] sm:$0xf] %vm439, %v406
      %457 = vst.msk [vmem:[#allocation2 + $0x40] sm:$0xf] %vm439, %v407
      %458 = vst.msk [vmem:[#allocation2 + $0x44] sm:$0x1] %vm442, %v408
      %459 = vst.msk [vmem:[#allocation2 + $0x48] sm:$0xf] %vm439, %v409
      %460 = vst.msk [vmem:[#allocation2 + $0x4c] sm:$0xf] %vm439, %v410
      %461 = vst.msk [vmem:[#allocation2 + $0x50] sm:$0x1] %vm442, %v411
      %462 = vst.msk [vmem:[#allocation2 + $0x54] sm:$0xf] %vm439, %v412
      %463 = vst.msk [vmem:[#allocation2 + $0x58] sm:$0xf] %vm439, %v413
      %464 = vst.msk [vmem:[#allocation2 + $0x5c] sm:$0x1] %vm442, %v414
      %465 = vst.msk [vmem:[#allocation2 + $0x60] sm:$0xf] %vm439, %v415
      %466 = vst.msk [vmem:[#allocation2 + $0x64] sm:$0xf] %vm439, %v416
      %467 = vst.msk [vmem:[#allocation2 + $0x68] sm:$0x1] %vm442, %v417
      %468 = vst.msk [vmem:[#allocation2 + $0x6c] sm:$0xf] %vm439, %v418
      %469 = vst.msk [vmem:[#allocation2 + $0x70] sm:$0xf] %vm439, %v419
      %470 = vst.msk [vmem:[#allocation2 + $0x74] sm:$0x1] %vm442, %v420
      %471 = vst.msk [vmem:[#allocation2 + $0x78] sm:$0xf] %vm439, %v421
      %472 = vst.msk [vmem:[#allocation2 + $0x7c] sm:$0xf] %vm439, %v422
      %473 = vst.msk [vmem:[#allocation2 + $0x80] sm:$0x1] %vm442, %v423
      %474 = vst.msk [vmem:[#allocation2 + $0x84] sm:$0xf] %vm439, %v424
      %475 = vst.msk [vmem:[#allocation2 + $0x88] sm:$0xf] %vm439, %v425
      %476 = vst.msk [vmem:[#allocation2 + $0x8c] sm:$0x1] %vm442, %v426
      %477 = vst.msk [vmem:[#allocation2 + $0x90] sm:$0xf] %vm439, %v427
      %478 = vst.msk [vmem:[#allocation2 + $0x94] sm:$0xf] %vm439, %v428
      %479 = vst.msk [vmem:[#allocation2 + $0x98] sm:$0x1] %vm442, %v429
      %480 = vst.msk [vmem:[#allocation2 + $0x9c] sm:$0xf] %vm439, %v430
      %481 = vst.msk [vmem:[#allocation2 + $0xa0] sm:$0xf] %vm439, %v431
      %482 = vst.msk [vmem:[#allocation2 + $0xa4] sm:$0x1] %vm442, %v432
      %483 = vst.msk [vmem:[#allocation2 + $0xa8] sm:$0xf] %vm439, %v433
      %484 = vst.msk [vmem:[#allocation2 + $0xac] sm:$0xf] %vm439, %v434
      %485 = vst.msk [vmem:[#allocation2 + $0xb0] sm:$0x1] %vm442, %v435
      %486 = vst.msk [vmem:[#allocation2 + $0xb4] sm:$0xf] %vm439, %v436
      %487 = vst.msk [vmem:[#allocation2 + $0xb8] sm:$0xf] %vm439, %v437
      %488 = vst.msk [vmem:[#allocation2 + $0xbc] sm:$0x1] %vm442, %v438
      %v489 = vld [vmem:[%s363] sm:$0xf]
      %v490 = vld [vmem:[%s363 + $0x4] sm:$0xf]
      %v491 = vld [vmem:[%s363 + $0x8] sm:$0x1]
      %s492 = scalar_lea.vmem [#allocation2], 192
      %493 = vst.msk [vmem:[%s492] sm:$0xf] %vm439, %v489
      %494 = vst.msk [vmem:[%s492 + $0x4] sm:$0xf] %vm439, %v490
      %495 = vst.msk [vmem:[%s492 + $0x8] sm:$0x1] %vm442, %v491
      %v496 = vld [vmem:[%s376] sm:$0xf]
      %v497 = vld [vmem:[%s376 + $0x4] sm:$0xf]
      %v498 = vld [vmem:[%s376 + $0x8] sm:$0x1]
      %s499 = scalar_lea.vmem [#allocation2], 204
      %500 = vst.msk [vmem:[%s499] sm:$0xf] %vm439, %v496
      %501 = vst.msk [vmem:[%s499 + $0x4] sm:$0xf] %vm439, %v497
      %502 = vst.msk [vmem:[%s499 + $0x8] sm:$0x1] %vm442, %v498
      %v503 = vld [vmem:[#allocation2] sm:$0xf]
      %v504 = vld [vmem:[#allocation2 + $0x4] sm:$0xf]
      %v505 = vld [vmem:[#allocation2 + $0xc] sm:$0xf]
      %v506 = vld [vmem:[#allocation2 + $0x10] sm:$0xf]
      %v507 = vld [vmem:[#allocation2 + $0x18] sm:$0xf]
      %v508 = vld [vmem:[#allocation2 + $0x1c] sm:$0xf]
      %v509 = vld [vmem:[#allocation2 + $0x24] sm:$0xf]
      %v510 = vld [vmem:[#allocation2 + $0x28] sm:$0xf]
      %v511 = vld [vmem:[#allocation2 + $0x30] sm:$0xf]
      %v512 = vld [vmem:[#allocation2 + $0x34] sm:$0xf]
      %v513 = vld [vmem:[#allocation2 + $0x3c] sm:$0xf]
      %v514 = vld [vmem:[#allocation2 + $0x40] sm:$0xf]
      %v515 = vld [vmem:[#allocation2 + $0x48] sm:$0xf]
      %v516 = vld [vmem:[#allocation2 + $0x4c] sm:$0xf]
      %v517 = vld [vmem:[#allocation2 + $0x54] sm:$0xf]
      %v518 = vld [vmem:[#allocation2 + $0x58] sm:$0xf]
      %v519 = vld [vmem:[#allocation2 + $0x60] sm:$0xf]
      %v520 = vld [vmem:[#allocation2 + $0x64] sm:$0xf]
      %v521 = vld [vmem:[#allocation2 + $0x6c] sm:$0xf]
      %v522 = vld [vmem:[#allocation2 + $0x70] sm:$0xf]
      %v523 = vld [vmem:[#allocation2 + $0x78] sm:$0xf]
      %v524 = vld [vmem:[#allocation2 + $0x7c] sm:$0xf]
      %v525 = vld [vmem:[#allocation2 + $0x84] sm:$0xf]
      %v526 = vld [vmem:[#allocation2 + $0x88] sm:$0xf]
      %v527 = vld [vmem:[#allocation2 + $0x90] sm:$0xf]
      %v528 = vld [vmem:[#allocation2 + $0x94] sm:$0xf]
      %v529 = vld [vmem:[#allocation2 + $0x9c] sm:$0xf]
      %v530 = vld [vmem:[#allocation2 + $0xa0] sm:$0xf]
      %v531 = vld [vmem:[#allocation2 + $0xa8] sm:$0xf]
      %v532 = vld [vmem:[#allocation2 + $0xac] sm:$0xf]
      %v533 = vld [vmem:[#allocation2 + $0xb4] sm:$0xf]
      %v534 = vld [vmem:[#allocation2 + $0xb8] sm:$0xf]
      %v535 = vld [vmem:[%s3] sm:$0xf]
      %v536 = vld [vmem:[#allocation2 + $0x8] sm:$0x1]
      %v537 = vld [vmem:[#allocation2 + $0x14] sm:$0x1]
      %v538 = vld [vmem:[#allocation2 + $0x20] sm:$0x1]
      %v539 = vld [vmem:[#allocation2 + $0x2c] sm:$0x1]
      %v540 = vld [vmem:[#allocation2 + $0x38] sm:$0x1]
      %v541 = vld [vmem:[#allocation2 + $0x44] sm:$0x1]
      %v542 = vld [vmem:[#allocation2 + $0x50] sm:$0x1]
      %v543 = vld [vmem:[#allocation2 + $0x5c] sm:$0x1]
      %v544 = vld [vmem:[#allocation2 + $0x68] sm:$0x1]
      %v545 = vld [vmem:[#allocation2 + $0x74] sm:$0x1]
      %v546 = vld [vmem:[#allocation2 + $0x80] sm:$0x1]
      %v547 = vld [vmem:[#allocation2 + $0x8c] sm:$0x1]
      %v548 = vld [vmem:[#allocation2 + $0x98] sm:$0x1]
      %v549 = vld [vmem:[#allocation2 + $0xa4] sm:$0x1]
      %v550 = vld [vmem:[#allocation2 + $0xb0] sm:$0x1]
      %v551 = vld [vmem:[#allocation2 + $0xbc] sm:$0x1]
      %vm552 = vsmask.f32 3328
      %vm553 = vsmask.f32 7440
      %vm554 = vmor %vm552, %vm553
      %v556 = vshrl.u32 %v503, 16
      %v558 = vrot.slane %v556, 4
      %v559 = vshll.u32 %v503, 16
      %v561 = vrot.slane %v559, 5
      %v562 = vor.u32 %v558, %v561
      %v563 = vrot.slane %v562, 4
      %v565 = vshll.u32 %v504, 16
      %v567 = vrot.slane %v565, 5
      %v568 = vsel %vm554, %v563, %v567
      %v569 = vshrl.u32 %v504, 16
      %v571 = vrot.slane %v569, 4
      %v572 = vor.u32 %v571, %v567
      %v573 = vrot.slane %v572, 4
      %v575 = vshll.u32 %v536, 16
      %v577 = vrot.slane %v575, 5
      %v578 = vsel %vm554, %v573, %v577
      %v580 = vshrl.u32 %v505, 16
      %v582 = vrot.slane %v580, 4
      %v583 = vshll.u32 %v505, 16
      %v585 = vrot.slane %v583, 5
      %v586 = vor.u32 %v582, %v585
      %v587 = vrot.slane %v586, 4
      %v589 = vshll.u32 %v506, 16
      %v591 = vrot.slane %v589, 5
      %v592 = vsel %vm554, %v587, %v591
      %v593 = vshrl.u32 %v506, 16
      %v595 = vrot.slane %v593, 4
      %v596 = vor.u32 %v595, %v591
      %v597 = vrot.slane %v596, 4
      %v599 = vshll.u32 %v537, 16
      %v601 = vrot.slane %v599, 5
      %v602 = vsel %vm554, %v597, %v601
      %v604 = vshrl.u32 %v507, 16
      %v606 = vrot.slane %v604, 4
      %v607 = vshll.u32 %v507, 16
      %v609 = vrot.slane %v607, 5
      %v610 = vor.u32 %v606, %v609
      %v611 = vrot.slane %v610, 4
      %v613 = vshll.u32 %v508, 16
      %v615 = vrot.slane %v613, 5
      %v616 = vsel %vm554, %v611, %v615
      %v617 = vshrl.u32 %v508, 16
      %v619 = vrot.slane %v617, 4
      %v620 = vor.u32 %v619, %v615
      %v621 = vrot.slane %v620, 4
      %v623 = vshll.u32 %v538, 16
      %v625 = vrot.slane %v623, 5
      %v626 = vsel %vm554, %v621, %v625
      %v628 = vshrl.u32 %v509, 16
      %v630 = vrot.slane %v628, 4
      %v631 = vshll.u32 %v509, 16
      %v633 = vrot.slane %v631, 5
      %v634 = vor.u32 %v630, %v633
      %v635 = vrot.slane %v634, 4
      %v637 = vshll.u32 %v510, 16
      %v639 = vrot.slane %v637, 5
      %v640 = vsel %vm554, %v635, %v639
      %v641 = vshrl.u32 %v510, 16
      %v643 = vrot.slane %v641, 4
      %v644 = vor.u32 %v643, %v639
      %v645 = vrot.slane %v644, 4
      %v647 = vshll.u32 %v539, 16
      %v649 = vrot.slane %v647, 5
      %v650 = vsel %vm554, %v645, %v649
      %v652 = vshrl.u32 %v511, 16
      %v654 = vrot.slane %v652, 4
      %v655 = vshll.u32 %v511, 16
      %v657 = vrot.slane %v655, 5
      %v658 = vor.u32 %v654, %v657
      %v659 = vrot.slane %v658, 4
      %v661 = vshll.u32 %v512, 16
      %v663 = vrot.slane %v661, 5
      %v664 = vsel %vm554, %v659, %v663
      %v665 = vshrl.u32 %v512, 16
      %v667 = vrot.slane %v665, 4
      %v668 = vor.u32 %v667, %v663
      %v669 = vrot.slane %v668, 4
      %v671 = vshll.u32 %v540, 16
      %v673 = vrot.slane %v671, 5
      %v674 = vsel %vm554, %v669, %v673
      %v676 = vshrl.u32 %v513, 16
      %v678 = vrot.slane %v676, 4
      %v679 = vshll.u32 %v513, 16
      %v681 = vrot.slane %v679, 5
      %v682 = vor.u32 %v678, %v681
      %v683 = vrot.slane %v682, 4
      %v685 = vshll.u32 %v514, 16
      %v687 = vrot.slane %v685, 5
      %v688 = vsel %vm554, %v683, %v687
      %v689 = vshrl.u32 %v514, 16
      %v691 = vrot.slane %v689, 4
      %v692 = vor.u32 %v691, %v687
      %v693 = vrot.slane %v692, 4
      %v695 = vshll.u32 %v541, 16
      %v697 = vrot.slane %v695, 5
      %v698 = vsel %vm554, %v693, %v697
      %v700 = vshrl.u32 %v515, 16
      %v702 = vrot.slane %v700, 4
      %v703 = vshll.u32 %v515, 16
      %v705 = vrot.slane %v703, 5
      %v706 = vor.u32 %v702, %v705
      %v707 = vrot.slane %v706, 4
      %v709 = vshll.u32 %v516, 16
      %v711 = vrot.slane %v709, 5
      %v712 = vsel %vm554, %v707, %v711
      %v713 = vshrl.u32 %v516, 16
      %v715 = vrot.slane %v713, 4
      %v716 = vor.u32 %v715, %v711
      %v717 = vrot.slane %v716, 4
      %v719 = vshll.u32 %v542, 16
      %v721 = vrot.slane %v719, 5
      %v722 = vsel %vm554, %v717, %v721
      %v724 = vshrl.u32 %v517, 16
      %v726 = vrot.slane %v724, 4
      %v727 = vshll.u32 %v517, 16
      %v729 = vrot.slane %v727, 5
      %v730 = vor.u32 %v726, %v729
      %v731 = vrot.slane %v730, 4
      %v733 = vshll.u32 %v518, 16
      %v735 = vrot.slane %v733, 5
      %v736 = vsel %vm554, %v731, %v735
      %v737 = vshrl.u32 %v518, 16
      %v739 = vrot.slane %v737, 4
      %v740 = vor.u32 %v739, %v735
      %v741 = vrot.slane %v740, 4
      %v743 = vshll.u32 %v543, 16
      %v745 = vrot.slane %v743, 5
      %v746 = vsel %vm554, %v741, %v745
      %v748 = vshrl.u32 %v519, 16
      %v750 = vrot.slane %v748, 4
      %v751 = vshll.u32 %v519, 16
      %v753 = vrot.slane %v751, 5
      %v754 = vor.u32 %v750, %v753
      %v755 = vrot.slane %v754, 4
      %v757 = vshll.u32 %v520, 16
      %v759 = vrot.slane %v757, 5
      %v760 = vsel %vm554, %v755, %v759
      %v761 = vshrl.u32 %v520, 16
      %v763 = vrot.slane %v761, 4
      %v764 = vor.u32 %v763, %v759
      %v765 = vrot.slane %v764, 4
      %v767 = vshll.u32 %v544, 16
      %v769 = vrot.slane %v767, 5
      %v770 = vsel %vm554, %v765, %v769
      %v772 = vshrl.u32 %v521, 16
      %v774 = vrot.slane %v772, 4
      %v775 = vshll.u32 %v521, 16
      %v777 = vrot.slane %v775, 5
      %v778 = vor.u32 %v774, %v777
      %v779 = vrot.slane %v778, 4
      %v781 = vshll.u32 %v522, 16
      %v783 = vrot.slane %v781, 5
      %v784 = vsel %vm554, %v779, %v783
      %v785 = vshrl.u32 %v522, 16
      %v787 = vrot.slane %v785, 4
      %v788 = vor.u32 %v787, %v783
      %v789 = vrot.slane %v788, 4
      %v791 = vshll.u32 %v545, 16
      %v793 = vrot.slane %v791, 5
      %v794 = vsel %vm554, %v789, %v793
      %v796 = vshrl.u32 %v523, 16
      %v798 = vrot.slane %v796, 4
      %v799 = vshll.u32 %v523, 16
      %v801 = vrot.slane %v799, 5
      %v802 = vor.u32 %v798, %v801
      %v803 = vrot.slane %v802, 4
      %v805 = vshll.u32 %v524, 16
      %v807 = vrot.slane %v805, 5
      %v808 = vsel %vm554, %v803, %v807
      %v809 = vshrl.u32 %v524, 16
      %v811 = vrot.slane %v809, 4
      %v812 = vor.u32 %v811, %v807
      %v813 = vrot.slane %v812, 4
      %v815 = vshll.u32 %v546, 16
      %v817 = vrot.slane %v815, 5
      %v818 = vsel %vm554, %v813, %v817
      %v820 = vshrl.u32 %v525, 16
      %v822 = vrot.slane %v820, 4
      %v823 = vshll.u32 %v525, 16
      %v825 = vrot.slane %v823, 5
      %v826 = vor.u32 %v822, %v825
      %v827 = vrot.slane %v826, 4
      %v829 = vshll.u32 %v526, 16
      %v831 = vrot.slane %v829, 5
      %v832 = vsel %vm554, %v827, %v831
      %v833 = vshrl.u32 %v526, 16
      %v835 = vrot.slane %v833, 4
      %v836 = vor.u32 %v835, %v831
      %v837 = vrot.slane %v836, 4
      %v839 = vshll.u32 %v547, 16
      %v841 = vrot.slane %v839, 5
      %v842 = vsel %vm554, %v837, %v841
      %v844 = vshrl.u32 %v527, 16
      %v846 = vrot.slane %v844, 4
      %v847 = vshll.u32 %v527, 16
      %v849 = vrot.slane %v847, 5
      %v850 = vor.u32 %v846, %v849
      %v851 = vrot.slane %v850, 4
      %v853 = vshll.u32 %v528, 16
      %v855 = vrot.slane %v853, 5
      %v856 = vsel %vm554, %v851, %v855
      %v857 = vshrl.u32 %v528, 16
      %v859 = vrot.slane %v857, 4
      %v860 = vor.u32 %v859, %v855
      %v861 = vrot.slane %v860, 4
      %v863 = vshll.u32 %v548, 16
      %v865 = vrot.slane %v863, 5
      %v866 = vsel %vm554, %v861, %v865
      %v868 = vshrl.u32 %v529, 16
      %v870 = vrot.slane %v868, 4
      %v871 = vshll.u32 %v529, 16
      %v873 = vrot.slane %v871, 5
      %v874 = vor.u32 %v870, %v873
      %v875 = vrot.slane %v874, 4
      %v877 = vshll.u32 %v530, 16
      %v879 = vrot.slane %v877, 5
      %v880 = vsel %vm554, %v875, %v879
      %v881 = vshrl.u32 %v530, 16
      %v883 = vrot.slane %v881, 4
      %v884 = vor.u32 %v883, %v879
      %v885 = vrot.slane %v884, 4
      %v887 = vshll.u32 %v549, 16
      %v889 = vrot.slane %v887, 5
      %v890 = vsel %vm554, %v885, %v889
      %v892 = vshrl.u32 %v531, 16
      %v894 = vrot.slane %v892, 4
      %v895 = vshll.u32 %v531, 16
      %v897 = vrot.slane %v895, 5
      %v898 = vor.u32 %v894, %v897
      %v899 = vrot.slane %v898, 4
      %v901 = vshll.u32 %v532, 16
      %v903 = vrot.slane %v901, 5
      %v904 = vsel %vm554, %v899, %v903
      %v905 = vshrl.u32 %v532, 16
      %v907 = vrot.slane %v905, 4
      %v908 = vor.u32 %v907, %v903
      %v909 = vrot.slane %v908, 4
      %v911 = vshll.u32 %v550, 16
      %v913 = vrot.slane %v911, 5
      %v914 = vsel %vm554, %v909, %v913
      %v916 = vshrl.u32 %v533, 16
      %v918 = vrot.slane %v916, 4
      %v919 = vshll.u32 %v533, 16
      %v921 = vrot.slane %v919, 5
      %v922 = vor.u32 %v918, %v921
      %v923 = vrot.slane %v922, 4
      %v925 = vshll.u32 %v534, 16
      %v927 = vrot.slane %v925, 5
      %v928 = vsel %vm554, %v923, %v927
      %v929 = vshrl.u32 %v534, 16
      %v931 = vrot.slane %v929, 4
      %v932 = vor.u32 %v931, %v927
      %v933 = vrot.slane %v932, 4
      %v935 = vshll.u32 %v551, 16
      %v937 = vrot.slane %v935, 5
      %v938 = vsel %vm554, %v933, %v937
      %v939 = vld [vmem:[%s3 + $0x4] sm:$0xf]
      %v940 = vunpack.c.l.b16 %v568
      %v941 = vunpack.c.l.b16 %v578
      %v942 = vunpack.c.l.b16 %v592
      %v943 = vunpack.c.l.b16 %v602
      %v944 = vunpack.c.l.b16 %v616
      %v945 = vunpack.c.l.b16 %v626
      %v946 = vunpack.c.l.b16 %v640
      %v947 = vunpack.c.l.b16 %v650
      %v948 = vunpack.c.l.b16 %v664
      %v949 = vunpack.c.l.b16 %v674
      %v950 = vunpack.c.l.b16 %v688
      %v951 = vunpack.c.l.b16 %v698
      %v952 = vunpack.c.l.b16 %v712
      %v953 = vunpack.c.l.b16 %v722
      %v954 = vunpack.c.l.b16 %v736
      %v955 = vunpack.c.l.b16 %v746
      %v956 = vunpack.c.l.b16 %v760
      %v957 = vunpack.c.l.b16 %v770
      %v958 = vunpack.c.l.b16 %v784
      %v959 = vunpack.c.l.b16 %v794
      %v960 = vunpack.c.l.b16 %v808
      %v961 = vunpack.c.l.b16 %v818
      %v962 = vunpack.c.l.b16 %v832
      %v963 = vunpack.c.l.b16 %v842
      %v964 = vunpack.c.l.b16 %v856
      %v965 = vunpack.c.l.b16 %v866
      %v966 = vunpack.c.l.b16 %v880
      %v967 = vunpack.c.l.b16 %v890
      %v968 = vunpack.c.l.b16 %v904
      %v969 = vunpack.c.l.b16 %v914
      %v970 = vunpack.c.l.b16 %v928
      %v971 = vunpack.c.l.b16 %v938
      %v972 = vpack.c.b16 %v941, %v940
      %v973 = vpack.c.b16 %v943, %v942
      %v974 = vpack.c.b16 %v945, %v944
      %v975 = vpack.c.b16 %v947, %v946
      %v976 = vpack.c.b16 %v949, %v948
      %v977 = vpack.c.b16 %v951, %v950
      %v978 = vpack.c.b16 %v953, %v952
      %v979 = vpack.c.b16 %v955, %v954
      %v980 = vpack.c.b16 %v957, %v956
      %v981 = vpack.c.b16 %v959, %v958
      %v982 = vpack.c.b16 %v961, %v960
      %v983 = vpack.c.b16 %v963, %v962
      %v984 = vpack.c.b16 %v965, %v964
      %v985 = vpack.c.b16 %v967, %v966
      %v986 = vpack.c.b16 %v969, %v968
      %v987 = vpack.c.b16 %v971, %v970
      %vm988 = vcmask 64512
      %v990 = vsel %vm988, %v972, 0
      %v993 = vsel %vm988, %v973, 0
      %v996 = vsel %vm988, %v974, 0
      %v999 = vsel %vm988, %v975, 0
      %v1002 = vsel %vm988, %v976, 0
      %v1005 = vsel %vm988, %v977, 0
      %v1008 = vsel %vm988, %v978, 0
      %v1011 = vsel %vm988, %v979, 0
      %v1014 = vsel %vm988, %v980, 0
      %v1017 = vsel %vm988, %v981, 0
      %v1020 = vsel %vm988, %v982, 0
      %v1023 = vsel %vm988, %v983, 0
      %v1026 = vsel %vm988, %v984, 0
      %v1029 = vsel %vm988, %v985, 0
      %v1032 = vsel %vm988, %v986, 0
      %v1035 = vsel %vm988, %v987, 0
      %vm1037 = vcmask 1043456
      %v1039 = vsel %vm1037, %v939, 0
      %1041 = vmatpush.bf16.msra.mxu0 0
      %1042 = vmatpush.bf16.msra.mxu0 0
      %1043 = vmatpush.bf16.msra.mxu0 0
      %1044 = vmatpush.bf16.msra.mxu0 0
      %1045 = vmatpush.bf16.msra.mxu0 0
      %1046 = vmatpush.bf16.msra.mxu0 0
      %1047 = vmatpush.bf16.msra.mxu0 0
      %1048 = vmatpush.bf16.msra.mxu0 %v1039
      %1049 = vmatmul.bf16.gmra.mxu0 %v990
      %v1050 = vpop.f32.mrf.mxu0
      %v1051 = vadd.f32 0.0, %v1050
      %v1052 = vpop.f32.mrf.mxu0
      %v1053 = vadd.f32 0.0, %v1052
      %1054 = vmatmul.bf16.gmra.mxu0 %v993
      %v1055 = vpop.f32.mrf.mxu0
      %v1056 = vadd.f32 0.0, %v1055
      %v1057 = vpop.f32.mrf.mxu0
      %v1058 = vadd.f32 0.0, %v1057
      %1059 = vmatmul.bf16.gmra.mxu0 %v996
      %v1060 = vpop.f32.mrf.mxu0
      %v1061 = vadd.f32 0.0, %v1060
      %v1062 = vpop.f32.mrf.mxu0
      %v1063 = vadd.f32 0.0, %v1062
      %1064 = vmatmul.bf16.gmra.mxu0 %v999
      %v1065 = vpop.f32.mrf.mxu0
      %v1066 = vadd.f32 0.0, %v1065
      %v1067 = vpop.f32.mrf.mxu0
      %v1068 = vadd.f32 0.0, %v1067
      %1069 = vmatmul.bf16.gmra.mxu0 %v1002
      %v1070 = vpop.f32.mrf.mxu0
      %v1071 = vadd.f32 0.0, %v1070
      %v1072 = vpop.f32.mrf.mxu0
      %v1073 = vadd.f32 0.0, %v1072
      %1074 = vmatmul.bf16.gmra.mxu0 %v1005
      %v1075 = vpop.f32.mrf.mxu0
      %v1076 = vadd.f32 0.0, %v1075
      %v1077 = vpop.f32.mrf.mxu0
      %v1078 = vadd.f32 0.0, %v1077
      %1079 = vmatmul.bf16.gmra.mxu0 %v1008
      %v1080 = vpop.f32.mrf.mxu0
      %v1081 = vadd.f32 0.0, %v1080
      %v1082 = vpop.f32.mrf.mxu0
      %v1083 = vadd.f32 0.0, %v1082
      %1084 = vmatmul.bf16.gmra.mxu0 %v1011
      %v1085 = vpop.f32.mrf.mxu0
      %v1086 = vadd.f32 0.0, %v1085
      %v1087 = vpop.f32.mrf.mxu0
      %v1088 = vadd.f32 0.0, %v1087
      %1089 = vmatmul.bf16.gmra.mxu0 %v1014
      %v1090 = vpop.f32.mrf.mxu0
      %v1091 = vadd.f32 0.0, %v1090
      %v1092 = vpop.f32.mrf.mxu0
      %v1093 = vadd.f32 0.0, %v1092
      %1094 = vmatmul.bf16.gmra.mxu0 %v1017
      %v1095 = vpop.f32.mrf.mxu0
      %v1096 = vadd.f32 0.0, %v1095
      %v1097 = vpop.f32.mrf.mxu0
      %v1098 = vadd.f32 0.0, %v1097
      %1099 = vmatmul.bf16.gmra.mxu0 %v1020
      %v1100 = vpop.f32.mrf.mxu0
      %v1101 = vadd.f32 0.0, %v1100
      %v1102 = vpop.f32.mrf.mxu0
      %v1103 = vadd.f32 0.0, %v1102
      %1104 = vmatmul.bf16.gmra.mxu0 %v1023
      %v1105 = vpop.f32.mrf.mxu0
      %v1106 = vadd.f32 0.0, %v1105
      %v1107 = vpop.f32.mrf.mxu0
      %v1108 = vadd.f32 0.0, %v1107
      %1109 = vmatmul.bf16.gmra.mxu0 %v1026
      %v1110 = vpop.f32.mrf.mxu0
      %v1111 = vadd.f32 0.0, %v1110
      %v1112 = vpop.f32.mrf.mxu0
      %v1113 = vadd.f32 0.0, %v1112
      %1114 = vmatmul.bf16.gmra.mxu0 %v1029
      %v1115 = vpop.f32.mrf.mxu0
      %v1116 = vadd.f32 0.0, %v1115
      %v1117 = vpop.f32.mrf.mxu0
      %v1118 = vadd.f32 0.0, %v1117
      %1119 = vmatmul.bf16.gmra.mxu0 %v1032
      %v1120 = vpop.f32.mrf.mxu0
      %v1121 = vadd.f32 0.0, %v1120
      %v1122 = vpop.f32.mrf.mxu0
      %v1123 = vadd.f32 0.0, %v1122
      %1124 = vmatmul.bf16.gmra.mxu0 %v1035
      %v1125 = vpop.f32.mrf.mxu0
      %v1126 = vadd.f32 0.0, %v1125
      %v1127 = vpop.f32.mrf.mxu0
      %v1128 = vadd.f32 0.0, %v1127
      %1129 = vdwg.mxu0
      %v1162 = vunpack.c.l.b16 %v503
      %v1163 = vunpack.c.l.b16 %v504
      %v1164 = vunpack.c.l.b16 %v505
      %v1165 = vunpack.c.l.b16 %v506
      %v1166 = vunpack.c.l.b16 %v507
      %v1167 = vunpack.c.l.b16 %v508
      %v1168 = vunpack.c.l.b16 %v509
      %v1169 = vunpack.c.l.b16 %v510
      %v1170 = vunpack.c.l.b16 %v511
      %v1171 = vunpack.c.l.b16 %v512
      %v1172 = vunpack.c.l.b16 %v513
      %v1173 = vunpack.c.l.b16 %v514
      %v1174 = vunpack.c.l.b16 %v515
      %v1175 = vunpack.c.l.b16 %v516
      %v1176 = vunpack.c.l.b16 %v517
      %v1177 = vunpack.c.l.b16 %v518
      %v1178 = vunpack.c.l.b16 %v519
      %v1179 = vunpack.c.l.b16 %v520
      %v1180 = vunpack.c.l.b16 %v521
      %v1181 = vunpack.c.l.b16 %v522
      %v1182 = vunpack.c.l.b16 %v523
      %v1183 = vunpack.c.l.b16 %v524
      %v1184 = vunpack.c.l.b16 %v525
      %v1185 = vunpack.c.l.b16 %v526
      %v1186 = vunpack.c.l.b16 %v527
      %v1187 = vunpack.c.l.b16 %v528
      %v1188 = vunpack.c.l.b16 %v529
      %v1189 = vunpack.c.l.b16 %v530
      %v1190 = vunpack.c.l.b16 %v531
      %v1191 = vunpack.c.l.b16 %v532
      %v1192 = vunpack.c.l.b16 %v533
      %v1193 = vunpack.c.l.b16 %v534
      %v1194 = vpack.c.b16 %v1163, %v1162
      %v1195 = vpack.c.b16 %v1165, %v1164
      %v1196 = vpack.c.b16 %v1167, %v1166
      %v1197 = vpack.c.b16 %v1169, %v1168
      %v1198 = vpack.c.b16 %v1171, %v1170
      %v1199 = vpack.c.b16 %v1173, %v1172
      %v1200 = vpack.c.b16 %v1175, %v1174
      %v1201 = vpack.c.b16 %v1177, %v1176
      %v1202 = vpack.c.b16 %v1179, %v1178
      %v1203 = vpack.c.b16 %v1181, %v1180
      %v1204 = vpack.c.b16 %v1183, %v1182
      %v1205 = vpack.c.b16 %v1185, %v1184
      %v1206 = vpack.c.b16 %v1187, %v1186
      %v1207 = vpack.c.b16 %v1189, %v1188
      %v1208 = vpack.c.b16 %v1191, %v1190
      %v1209 = vpack.c.b16 %v1193, %v1192
      %v1211 = vsel %vm988, %v1194, 0
      %v1214 = vsel %vm988, %v1195, 0
      %v1217 = vsel %vm988, %v1196, 0
      %v1220 = vsel %vm988, %v1197, 0
      %v1223 = vsel %vm988, %v1198, 0
      %v1226 = vsel %vm988, %v1199, 0
      %v1229 = vsel %vm988, %v1200, 0
      %v1232 = vsel %vm988, %v1201, 0
      %v1235 = vsel %vm988, %v1202, 0
      %v1238 = vsel %vm988, %v1203, 0
      %v1241 = vsel %vm988, %v1204, 0
      %v1244 = vsel %vm988, %v1205, 0
      %v1247 = vsel %vm988, %v1206, 0
      %v1250 = vsel %vm988, %v1207, 0
      %v1253 = vsel %vm988, %v1208, 0
      %v1256 = vsel %vm988, %v1209, 0
      %v1259 = vsel %vm1037, %v535, 0
      %1261 = vmatpush.bf16.msra.mxu0 0
      %1262 = vmatpush.bf16.msra.mxu0 0
      %1263 = vmatpush.bf16.msra.mxu0 0
      %1264 = vmatpush.bf16.msra.mxu0 0
      %1265 = vmatpush.bf16.msra.mxu0 0
      %1266 = vmatpush.bf16.msra.mxu0 0
      %1267 = vmatpush.bf16.msra.mxu0 0
      %1268 = vmatpush.bf16.msra.mxu0 %v1259
      %1269 = vmatmul.bf16.gmra.mxu0 %v1211
      %v1270 = vpop.f32.mrf.mxu0
      %v1271 = vadd.f32 %v1051, %v1270
      %v1272 = vpop.f32.mrf.mxu0
      %v1273 = vadd.f32 %v1053, %v1272
      %1274 = vmatmul.bf16.gmra.mxu0 %v1214
      %v1275 = vpop.f32.mrf.mxu0
      %v1276 = vadd.f32 %v1056, %v1275
      %v1277 = vpop.f32.mrf.mxu0
      %v1278 = vadd.f32 %v1058, %v1277
      %1279 = vmatmul.bf16.gmra.mxu0 %v1217
      %v1280 = vpop.f32.mrf.mxu0
      %v1281 = vadd.f32 %v1061, %v1280
      %v1282 = vpop.f32.mrf.mxu0
      %v1283 = vadd.f32 %v1063, %v1282
      %1284 = vmatmul.bf16.gmra.mxu0 %v1220
      %v1285 = vpop.f32.mrf.mxu0
      %v1286 = vadd.f32 %v1066, %v1285
      %v1287 = vpop.f32.mrf.mxu0
      %v1288 = vadd.f32 %v1068, %v1287
      %1289 = vmatmul.bf16.gmra.mxu0 %v1223
      %v1290 = vpop.f32.mrf.mxu0
      %v1291 = vadd.f32 %v1071, %v1290
      %v1292 = vpop.f32.mrf.mxu0
      %v1293 = vadd.f32 %v1073, %v1292
      %1294 = vmatmul.bf16.gmra.mxu0 %v1226
      %v1295 = vpop.f32.mrf.mxu0
      %v1296 = vadd.f32 %v1076, %v1295
      %v1297 = vpop.f32.mrf.mxu0
      %v1298 = vadd.f32 %v1078, %v1297
      %1299 = vmatmul.bf16.gmra.mxu0 %v1229
      %v1300 = vpop.f32.mrf.mxu0
      %v1301 = vadd.f32 %v1081, %v1300
      %v1302 = vpop.f32.mrf.mxu0
      %v1303 = vadd.f32 %v1083, %v1302
      %1304 = vmatmul.bf16.gmra.mxu0 %v1232
      %v1305 = vpop.f32.mrf.mxu0
      %v1306 = vadd.f32 %v1086, %v1305
      %v1307 = vpop.f32.mrf.mxu0
      %v1308 = vadd.f32 %v1088, %v1307
      %1309 = vmatmul.bf16.gmra.mxu0 %v1235
      %v1310 = vpop.f32.mrf.mxu0
      %v1311 = vadd.f32 %v1091, %v1310
      %v1312 = vpop.f32.mrf.mxu0
      %v1313 = vadd.f32 %v1093, %v1312
      %1314 = vmatmul.bf16.gmra.mxu0 %v1238
      %v1315 = vpop.f32.mrf.mxu0
      %v1316 = vadd.f32 %v1096, %v1315
      %v1317 = vpop.f32.mrf.mxu0
      %v1318 = vadd.f32 %v1098, %v1317
      %1319 = vmatmul.bf16.gmra.mxu0 %v1241
      %v1320 = vpop.f32.mrf.mxu0
      %v1321 = vadd.f32 %v1101, %v1320
      %v1322 = vpop.f32.mrf.mxu0
      %v1323 = vadd.f32 %v1103, %v1322
      %1324 = vmatmul.bf16.gmra.mxu0 %v1244
      %v1325 = vpop.f32.mrf.mxu0
      %v1326 = vadd.f32 %v1106, %v1325
      %v1327 = vpop.f32.mrf.mxu0
      %v1328 = vadd.f32 %v1108, %v1327
      %1329 = vmatmul.bf16.gmra.mxu0 %v1247
      %v1330 = vpop.f32.mrf.mxu0
      %v1331 = vadd.f32 %v1111, %v1330
      %v1332 = vpop.f32.mrf.mxu0
      %v1333 = vadd.f32 %v1113, %v1332
      %1334 = vmatmul.bf16.gmra.mxu0 %v1250
      %v1335 = vpop.f32.mrf.mxu0
      %v1336 = vadd.f32 %v1116, %v1335
      %v1337 = vpop.f32.mrf.mxu0
      %v1338 = vadd.f32 %v1118, %v1337
      %1339 = vmatmul.bf16.gmra.mxu0 %v1253
      %v1340 = vpop.f32.mrf.mxu0
      %v1341 = vadd.f32 %v1121, %v1340
      %v1342 = vpop.f32.mrf.mxu0
      %v1343 = vadd.f32 %v1123, %v1342
      %1344 = vmatmul.bf16.gmra.mxu0 %v1256
      %v1345 = vpop.f32.mrf.mxu0
      %v1346 = vadd.f32 %v1126, %v1345
      %v1347 = vpop.f32.mrf.mxu0
      %v1348 = vadd.f32 %v1128, %v1347
      %1349 = vdwg.mxu0
      %v1350 = vld [vmem:[#allocation2] sm:$0xe]
      %v1351 = vld [vmem:[#allocation2 + $0xc] sm:$0xe]
      %v1352 = vld [vmem:[#allocation2 + $0x18] sm:$0xe]
      %v1353 = vld [vmem:[#allocation2 + $0x24] sm:$0xe]
      %v1354 = vld [vmem:[#allocation2 + $0x30] sm:$0xe]
      %v1355 = vld [vmem:[#allocation2 + $0x3c] sm:$0xe]
      %v1356 = vld [vmem:[#allocation2 + $0x48] sm:$0xe]
      %v1357 = vld [vmem:[#allocation2 + $0x54] sm:$0xe]
      %v1358 = vld [vmem:[#allocation2 + $0x60] sm:$0xe]
      %v1359 = vld [vmem:[#allocation2 + $0x6c] sm:$0xe]
      %v1360 = vld [vmem:[#allocation2 + $0x78] sm:$0xe]
      %v1361 = vld [vmem:[#allocation2 + $0x84] sm:$0xe]
      %v1362 = vld [vmem:[#allocation2 + $0x90] sm:$0xe]
      %v1363 = vld [vmem:[#allocation2 + $0x9c] sm:$0xe]
      %v1364 = vld [vmem:[#allocation2 + $0xa8] sm:$0xe]
      %v1365 = vld [vmem:[#allocation2 + $0xb4] sm:$0xe]
      %vm1398 = vcmask 1042432
      %vm1399 = vcmask 1046532
      %vm1400 = vmor %vm1398, %vm1399
      %v1401 = vrot.slane %v1350, 5
      %v1402 = vrot.slane %v1401, 4
      %v1403 = vrot.slane %v504, 5
      %v1404 = vsel %vm1400, %v1402, %v1403
      %v1405 = vrot.slane %v1403, 4
      %v1406 = vrot.slane %v536, 5
      %v1407 = vsel %vm1400, %v1405, %v1406
      %v1408 = vrot.slane %v1351, 5
      %v1409 = vrot.slane %v1408, 4
      %v1410 = vrot.slane %v506, 5
      %v1411 = vsel %vm1400, %v1409, %v1410
      %v1412 = vrot.slane %v1410, 4
      %v1413 = vrot.slane %v537, 5
      %v1414 = vsel %vm1400, %v1412, %v1413
      %v1415 = vrot.slane %v1352, 5
      %v1416 = vrot.slane %v1415, 4
      %v1417 = vrot.slane %v508, 5
      %v1418 = vsel %vm1400, %v1416, %v1417
      %v1419 = vrot.slane %v1417, 4
      %v1420 = vrot.slane %v538, 5
      %v1421 = vsel %vm1400, %v1419, %v1420
      %v1422 = vrot.slane %v1353, 5
      %v1423 = vrot.slane %v1422, 4
      %v1424 = vrot.slane %v510, 5
      %v1425 = vsel %vm1400, %v1423, %v1424
      %v1426 = vrot.slane %v1424, 4
      %v1427 = vrot.slane %v539, 5
      %v1428 = vsel %vm1400, %v1426, %v1427
      %v1429 = vrot.slane %v1354, 5
      %v1430 = vrot.slane %v1429, 4
      %v1431 = vrot.slane %v512, 5
      %v1432 = vsel %vm1400, %v1430, %v1431
      %v1433 = vrot.slane %v1431, 4
      %v1434 = vrot.slane %v540, 5
      %v1435 = vsel %vm1400, %v1433, %v1434
      %v1436 = vrot.slane %v1355, 5
      %v1437 = vrot.slane %v1436, 4
      %v1438 = vrot.slane %v514, 5
      %v1439 = vsel %vm1400, %v1437, %v1438
      %v1440 = vrot.slane %v1438, 4
      %v1441 = vrot.slane %v541, 5
      %v1442 = vsel %vm1400, %v1440, %v1441
      %v1443 = vrot.slane %v1356, 5
      %v1444 = vrot.slane %v1443, 4
      %v1445 = vrot.slane %v516, 5
      %v1446 = vsel %vm1400, %v1444, %v1445
      %v1447 = vrot.slane %v1445, 4
      %v1448 = vrot.slane %v542, 5
      %v1449 = vsel %vm1400, %v1447, %v1448
      %v1450 = vrot.slane %v1357, 5
      %v1451 = vrot.slane %v1450, 4
      %v1452 = vrot.slane %v518, 5
      %v1453 = vsel %vm1400, %v1451, %v1452
      %v1454 = vrot.slane %v1452, 4
      %v1455 = vrot.slane %v543, 5
      %v1456 = vsel %vm1400, %v1454, %v1455
      %v1457 = vrot.slane %v1358, 5
      %v1458 = vrot.slane %v1457, 4
      %v1459 = vrot.slane %v520, 5
      %v1460 = vsel %vm1400, %v1458, %v1459
      %v1461 = vrot.slane %v1459, 4
      %v1462 = vrot.slane %v544, 5
      %v1463 = vsel %vm1400, %v1461, %v1462
      %v1464 = vrot.slane %v1359, 5
      %v1465 = vrot.slane %v1464, 4
      %v1466 = vrot.slane %v522, 5
      %v1467 = vsel %vm1400, %v1465, %v1466
      %v1468 = vrot.slane %v1466, 4
      %v1469 = vrot.slane %v545, 5
      %v1470 = vsel %vm1400, %v1468, %v1469
      %v1471 = vrot.slane %v1360, 5
      %v1472 = vrot.slane %v1471, 4
      %v1473 = vrot.slane %v524, 5
      %v1474 = vsel %vm1400, %v1472, %v1473
      %v1475 = vrot.slane %v1473, 4
      %v1476 = vrot.slane %v546, 5
      %v1477 = vsel %vm1400, %v1475, %v1476
      %v1478 = vrot.slane %v1361, 5
      %v1479 = vrot.slane %v1478, 4
      %v1480 = vrot.slane %v526, 5
      %v1481 = vsel %vm1400, %v1479, %v1480
      %v1482 = vrot.slane %v1480, 4
      %v1483 = vrot.slane %v547, 5
      %v1484 = vsel %vm1400, %v1482, %v1483
      %v1485 = vrot.slane %v1362, 5
      %v1486 = vrot.slane %v1485, 4
      %v1487 = vrot.slane %v528, 5
      %v1488 = vsel %vm1400, %v1486, %v1487
      %v1489 = vrot.slane %v1487, 4
      %v1490 = vrot.slane %v548, 5
      %v1491 = vsel %vm1400, %v1489, %v1490
      %v1492 = vrot.slane %v1363, 5
      %v1493 = vrot.slane %v1492, 4
      %v1494 = vrot.slane %v530, 5
      %v1495 = vsel %vm1400, %v1493, %v1494
      %v1496 = vrot.slane %v1494, 4
      %v1497 = vrot.slane %v549, 5
      %v1498 = vsel %vm1400, %v1496, %v1497
      %v1499 = vrot.slane %v1364, 5
      %v1500 = vrot.slane %v1499, 4
      %v1501 = vrot.slane %v532, 5
      %v1502 = vsel %vm1400, %v1500, %v1501
      %v1503 = vrot.slane %v1501, 4
      %v1504 = vrot.slane %v550, 5
      %v1505 = vsel %vm1400, %v1503, %v1504
      %v1506 = vrot.slane %v1365, 5
      %v1507 = vrot.slane %v1506, 4
      %v1508 = vrot.slane %v534, 5
      %v1509 = vsel %vm1400, %v1507, %v1508
      %v1510 = vrot.slane %v1508, 4
      %v1511 = vrot.slane %v551, 5
      %v1512 = vsel %vm1400, %v1510, %v1511
      %v1513 = vld [vmem:[%s3 + $0x8] sm:$0xf]
      %v1514 = vunpack.c.l.b16 %v1404
      %v1515 = vunpack.c.l.b16 %v1407
      %v1516 = vunpack.c.l.b16 %v1411
      %v1517 = vunpack.c.l.b16 %v1414
      %v1518 = vunpack.c.l.b16 %v1418
      %v1519 = vunpack.c.l.b16 %v1421
      %v1520 = vunpack.c.l.b16 %v1425
      %v1521 = vunpack.c.l.b16 %v1428
      %v1522 = vunpack.c.l.b16 %v1432
      %v1523 = vunpack.c.l.b16 %v1435
      %v1524 = vunpack.c.l.b16 %v1439
      %v1525 = vunpack.c.l.b16 %v1442
      %v1526 = vunpack.c.l.b16 %v1446
      %v1527 = vunpack.c.l.b16 %v1449
      %v1528 = vunpack.c.l.b16 %v1453
      %v1529 = vunpack.c.l.b16 %v1456
      %v1530 = vunpack.c.l.b16 %v1460
      %v1531 = vunpack.c.l.b16 %v1463
      %v1532 = vunpack.c.l.b16 %v1467
      %v1533 = vunpack.c.l.b16 %v1470
      %v1534 = vunpack.c.l.b16 %v1474
      %v1535 = vunpack.c.l.b16 %v1477
      %v1536 = vunpack.c.l.b16 %v1481
      %v1537 = vunpack.c.l.b16 %v1484
      %v1538 = vunpack.c.l.b16 %v1488
      %v1539 = vunpack.c.l.b16 %v1491
      %v1540 = vunpack.c.l.b16 %v1495
      %v1541 = vunpack.c.l.b16 %v1498
      %v1542 = vunpack.c.l.b16 %v1502
      %v1543 = vunpack.c.l.b16 %v1505
      %v1544 = vunpack.c.l.b16 %v1509
      %v1545 = vunpack.c.l.b16 %v1512
      %v1546 = vpack.c.b16 %v1515, %v1514
      %v1547 = vpack.c.b16 %v1517, %v1516
      %v1548 = vpack.c.b16 %v1519, %v1518
      %v1549 = vpack.c.b16 %v1521, %v1520
      %v1550 = vpack.c.b16 %v1523, %v1522
      %v1551 = vpack.c.b16 %v1525, %v1524
      %v1552 = vpack.c.b16 %v1527, %v1526
      %v1553 = vpack.c.b16 %v1529, %v1528
      %v1554 = vpack.c.b16 %v1531, %v1530
      %v1555 = vpack.c.b16 %v1533, %v1532
      %v1556 = vpack.c.b16 %v1535, %v1534
      %v1557 = vpack.c.b16 %v1537, %v1536
      %v1558 = vpack.c.b16 %v1539, %v1538
      %v1559 = vpack.c.b16 %v1541, %v1540
      %v1560 = vpack.c.b16 %v1543, %v1542
      %v1561 = vpack.c.b16 %v1545, %v1544
      %v1563 = vsel %vm988, %v1546, 0
      %v1566 = vsel %vm988, %v1547, 0
      %v1569 = vsel %vm988, %v1548, 0
      %v1572 = vsel %vm988, %v1549, 0
      %v1575 = vsel %vm988, %v1550, 0
      %v1578 = vsel %vm988, %v1551, 0
      %v1581 = vsel %vm988, %v1552, 0
      %v1584 = vsel %vm988, %v1553, 0
      %v1587 = vsel %vm988, %v1554, 0
      %v1590 = vsel %vm988, %v1555, 0
      %v1593 = vsel %vm988, %v1556, 0
      %v1596 = vsel %vm988, %v1557, 0
      %v1599 = vsel %vm988, %v1558, 0
      %v1602 = vsel %vm988, %v1559, 0
      %v1605 = vsel %vm988, %v1560, 0
      %v1608 = vsel %vm988, %v1561, 0
      %v1611 = vsel %vm1037, %v1513, 0
      %1613 = vmatpush.bf16.msra.mxu0 0
      %1614 = vmatpush.bf16.msra.mxu0 0
      %1615 = vmatpush.bf16.msra.mxu0 0
      %1616 = vmatpush.bf16.msra.mxu0 0
      %1617 = vmatpush.bf16.msra.mxu0 0
      %1618 = vmatpush.bf16.msra.mxu0 0
      %1619 = vmatpush.bf16.msra.mxu0 0
      %1620 = vmatpush.bf16.msra.mxu0 %v1611
      %1621 = vmatmul.bf16.gmra.mxu0 %v1563
      %v1622 = vpop.f32.mrf.mxu0
      %v1623 = vadd.f32 0.0, %v1622
      %v1624 = vpop.f32.mrf.mxu0
      %v1625 = vadd.f32 0.0, %v1624
      %1626 = vmatmul.bf16.gmra.mxu0 %v1566
      %v1627 = vpop.f32.mrf.mxu0
      %v1628 = vadd.f32 0.0, %v1627
      %v1629 = vpop.f32.mrf.mxu0
      %v1630 = vadd.f32 0.0, %v1629
      %1631 = vmatmul.bf16.gmra.mxu0 %v1569
      %v1632 = vpop.f32.mrf.mxu0
      %v1633 = vadd.f32 0.0, %v1632
      %v1634 = vpop.f32.mrf.mxu0
      %v1635 = vadd.f32 0.0, %v1634
      %1636 = vmatmul.bf16.gmra.mxu0 %v1572
      %v1637 = vpop.f32.mrf.mxu0
      %v1638 = vadd.f32 0.0, %v1637
      %v1639 = vpop.f32.mrf.mxu0
      %v1640 = vadd.f32 0.0, %v1639
      %1641 = vmatmul.bf16.gmra.mxu0 %v1575
      %v1642 = vpop.f32.mrf.mxu0
      %v1643 = vadd.f32 0.0, %v1642
      %v1644 = vpop.f32.mrf.mxu0
      %v1645 = vadd.f32 0.0, %v1644
      %1646 = vmatmul.bf16.gmra.mxu0 %v1578
      %v1647 = vpop.f32.mrf.mxu0
      %v1648 = vadd.f32 0.0, %v1647
      %v1649 = vpop.f32.mrf.mxu0
      %v1650 = vadd.f32 0.0, %v1649
      %1651 = vmatmul.bf16.gmra.mxu0 %v1581
      %v1652 = vpop.f32.mrf.mxu0
      %v1653 = vadd.f32 0.0, %v1652
      %v1654 = vpop.f32.mrf.mxu0
      %v1655 = vadd.f32 0.0, %v1654
      %1656 = vmatmul.bf16.gmra.mxu0 %v1584
      %v1657 = vpop.f32.mrf.mxu0
      %v1658 = vadd.f32 0.0, %v1657
      %v1659 = vpop.f32.mrf.mxu0
      %v1660 = vadd.f32 0.0, %v1659
      %1661 = vmatmul.bf16.gmra.mxu0 %v1587
      %v1662 = vpop.f32.mrf.mxu0
      %v1663 = vadd.f32 0.0, %v1662
      %v1664 = vpop.f32.mrf.mxu0
      %v1665 = vadd.f32 0.0, %v1664
      %1666 = vmatmul.bf16.gmra.mxu0 %v1590
      %v1667 = vpop.f32.mrf.mxu0
      %v1668 = vadd.f32 0.0, %v1667
      %v1669 = vpop.f32.mrf.mxu0
      %v1670 = vadd.f32 0.0, %v1669
      %1671 = vmatmul.bf16.gmra.mxu0 %v1593
      %v1672 = vpop.f32.mrf.mxu0
      %v1673 = vadd.f32 0.0, %v1672
      %v1674 = vpop.f32.mrf.mxu0
      %v1675 = vadd.f32 0.0, %v1674
      %1676 = vmatmul.bf16.gmra.mxu0 %v1596
      %v1677 = vpop.f32.mrf.mxu0
      %v1678 = vadd.f32 0.0, %v1677
      %v1679 = vpop.f32.mrf.mxu0
      %v1680 = vadd.f32 0.0, %v1679
      %1681 = vmatmul.bf16.gmra.mxu0 %v1599
      %v1682 = vpop.f32.mrf.mxu0
      %v1683 = vadd.f32 0.0, %v1682
      %v1684 = vpop.f32.mrf.mxu0
      %v1685 = vadd.f32 0.0, %v1684
      %1686 = vmatmul.bf16.gmra.mxu0 %v1602
      %v1687 = vpop.f32.mrf.mxu0
      %v1688 = vadd.f32 0.0, %v1687
      %v1689 = vpop.f32.mrf.mxu0
      %v1690 = vadd.f32 0.0, %v1689
      %1691 = vmatmul.bf16.gmra.mxu0 %v1605
      %v1692 = vpop.f32.mrf.mxu0
      %v1693 = vadd.f32 0.0, %v1692
      %v1694 = vpop.f32.mrf.mxu0
      %v1695 = vadd.f32 0.0, %v1694
      %1696 = vmatmul.bf16.gmra.mxu0 %v1608
      %v1697 = vpop.f32.mrf.mxu0
      %v1698 = vadd.f32 0.0, %v1697
      %v1699 = vpop.f32.mrf.mxu0
      %v1700 = vadd.f32 0.0, %v1699
      %1701 = vdwg.mxu0
      %v1702 = vadd.f32 %v1271, %v1623
      %v1703 = vadd.f32 %v1273, %v1625
      %v1704 = vadd.f32 %v1276, %v1628
      %v1705 = vadd.f32 %v1278, %v1630
      %v1706 = vadd.f32 %v1281, %v1633
      %v1707 = vadd.f32 %v1283, %v1635
      %v1708 = vadd.f32 %v1286, %v1638
      %v1709 = vadd.f32 %v1288, %v1640
      %v1710 = vadd.f32 %v1291, %v1643
      %v1711 = vadd.f32 %v1293, %v1645
      %v1712 = vadd.f32 %v1296, %v1648
      %v1713 = vadd.f32 %v1298, %v1650
      %v1714 = vadd.f32 %v1301, %v1653
      %v1715 = vadd.f32 %v1303, %v1655
      %v1716 = vadd.f32 %v1306, %v1658
      %v1717 = vadd.f32 %v1308, %v1660
      %v1718 = vadd.f32 %v1311, %v1663
      %v1719 = vadd.f32 %v1313, %v1665
      %v1720 = vadd.f32 %v1316, %v1668
      %v1721 = vadd.f32 %v1318, %v1670
      %v1722 = vadd.f32 %v1321, %v1673
      %v1723 = vadd.f32 %v1323, %v1675
      %v1724 = vadd.f32 %v1326, %v1678
      %v1725 = vadd.f32 %v1328, %v1680
      %v1726 = vadd.f32 %v1331, %v1683
      %v1727 = vadd.f32 %v1333, %v1685
      %v1728 = vadd.f32 %v1336, %v1688
      %v1729 = vadd.f32 %v1338, %v1690
      %v1730 = vadd.f32 %v1341, %v1693
      %v1731 = vadd.f32 %v1343, %v1695
      %v1732 = vadd.f32 %v1346, %v1698
      %v1733 = vadd.f32 %v1348, %v1700
      %s1734 = scalar_lea.vmem [#allocation2], 12
      %v1735 = vld [vmem:[%s1734] sm:$0xf]
      %v1736 = vld [vmem:[%s1734 + $0x4] sm:$0xf]
      %v1737 = vld [vmem:[%s1734 + $0xc] sm:$0xf]
      %v1738 = vld [vmem:[%s1734 + $0x10] sm:$0xf]
      %v1739 = vld [vmem:[%s1734 + $0x18] sm:$0xf]
      %v1740 = vld [vmem:[%s1734 + $0x1c] sm:$0xf]
      %v1741 = vld [vmem:[%s1734 + $0x24] sm:$0xf]
      %v1742 = vld [vmem:[%s1734 + $0x28] sm:$0xf]
      %v1743 = vld [vmem:[%s1734 + $0x30] sm:$0xf]
      %v1744 = vld [vmem:[%s1734 + $0x34] sm:$0xf]
      %v1745 = vld [vmem:[%s1734 + $0x3c] sm:$0xf]
      %v1746 = vld [vmem:[%s1734 + $0x40] sm:$0xf]
      %v1747 = vld [vmem:[%s1734 + $0x48] sm:$0xf]
      %v1748 = vld [vmem:[%s1734 + $0x4c] sm:$0xf]
      %v1749 = vld [vmem:[%s1734 + $0x54] sm:$0xf]
      %v1750 = vld [vmem:[%s1734 + $0x58] sm:$0xf]
      %v1751 = vld [vmem:[%s1734 + $0x60] sm:$0xf]
      %v1752 = vld [vmem:[%s1734 + $0x64] sm:$0xf]
      %v1753 = vld [vmem:[%s1734 + $0x6c] sm:$0xf]
      %v1754 = vld [vmem:[%s1734 + $0x70] sm:$0xf]
      %v1755 = vld [vmem:[%s1734 + $0x78] sm:$0xf]
      %v1756 = vld [vmem:[%s1734 + $0x7c] sm:$0xf]
      %v1757 = vld [vmem:[%s1734 + $0x84] sm:$0xf]
      %v1758 = vld [vmem:[%s1734 + $0x88] sm:$0xf]
      %v1759 = vld [vmem:[%s1734 + $0x90] sm:$0xf]
      %v1760 = vld [vmem:[%s1734 + $0x94] sm:$0xf]
      %v1761 = vld [vmem:[%s1734 + $0x9c] sm:$0xf]
      %v1762 = vld [vmem:[%s1734 + $0xa0] sm:$0xf]
      %v1763 = vld [vmem:[%s1734 + $0xa8] sm:$0xf]
      %v1764 = vld [vmem:[%s1734 + $0xac] sm:$0xf]
      %v1765 = vld [vmem:[%s1734 + $0xb4] sm:$0xf]
      %v1766 = vld [vmem:[%s1734 + $0xb8] sm:$0xf]
      %s1767 = scalar_lea.vmem %s3, 12
      %v1768 = vld [vmem:[%s1767] sm:$0xf]
      %v1801 = vunpack.c.l.b16 %v1735
      %v1802 = vunpack.c.l.b16 %v1736
      %v1803 = vunpack.c.l.b16 %v1737
      %v1804 = vunpack.c.l.b16 %v1738
      %v1805 = vunpack.c.l.b16 %v1739
      %v1806 = vunpack.c.l.b16 %v1740
      %v1807 = vunpack.c.l.b16 %v1741
      %v1808 = vunpack.c.l.b16 %v1742
      %v1809 = vunpack.c.l.b16 %v1743
      %v1810 = vunpack.c.l.b16 %v1744
      %v1811 = vunpack.c.l.b16 %v1745
      %v1812 = vunpack.c.l.b16 %v1746
      %v1813 = vunpack.c.l.b16 %v1747
      %v1814 = vunpack.c.l.b16 %v1748
      %v1815 = vunpack.c.l.b16 %v1749
      %v1816 = vunpack.c.l.b16 %v1750
      %v1817 = vunpack.c.l.b16 %v1751
      %v1818 = vunpack.c.l.b16 %v1752
      %v1819 = vunpack.c.l.b16 %v1753
      %v1820 = vunpack.c.l.b16 %v1754
      %v1821 = vunpack.c.l.b16 %v1755
      %v1822 = vunpack.c.l.b16 %v1756
      %v1823 = vunpack.c.l.b16 %v1757
      %v1824 = vunpack.c.l.b16 %v1758
      %v1825 = vunpack.c.l.b16 %v1759
      %v1826 = vunpack.c.l.b16 %v1760
      %v1827 = vunpack.c.l.b16 %v1761
      %v1828 = vunpack.c.l.b16 %v1762
      %v1829 = vunpack.c.l.b16 %v1763
      %v1830 = vunpack.c.l.b16 %v1764
      %v1831 = vunpack.c.l.b16 %v1765
      %v1832 = vunpack.c.l.b16 %v1766
      %v1833 = vpack.c.b16 %v1802, %v1801
      %v1834 = vpack.c.b16 %v1804, %v1803
      %v1835 = vpack.c.b16 %v1806, %v1805
      %v1836 = vpack.c.b16 %v1808, %v1807
      %v1837 = vpack.c.b16 %v1810, %v1809
      %v1838 = vpack.c.b16 %v1812, %v1811
      %v1839 = vpack.c.b16 %v1814, %v1813
      %v1840 = vpack.c.b16 %v1816, %v1815
      %v1841 = vpack.c.b16 %v1818, %v1817
      %v1842 = vpack.c.b16 %v1820, %v1819
      %v1843 = vpack.c.b16 %v1822, %v1821
      %v1844 = vpack.c.b16 %v1824, %v1823
      %v1845 = vpack.c.b16 %v1826, %v1825
      %v1846 = vpack.c.b16 %v1828, %v1827
      %v1847 = vpack.c.b16 %v1830, %v1829
      %v1848 = vpack.c.b16 %v1832, %v1831
      %v1850 = vsel %vm988, %v1833, 0
      %v1853 = vsel %vm988, %v1834, 0
      %v1856 = vsel %vm988, %v1835, 0
      %v1859 = vsel %vm988, %v1836, 0
      %v1862 = vsel %vm988, %v1837, 0
      %v1865 = vsel %vm988, %v1838, 0
      %v1868 = vsel %vm988, %v1839, 0
      %v1871 = vsel %vm988, %v1840, 0
      %v1874 = vsel %vm988, %v1841, 0
      %v1877 = vsel %vm988, %v1842, 0
      %v1880 = vsel %vm988, %v1843, 0
      %v1883 = vsel %vm988, %v1844, 0
      %v1886 = vsel %vm988, %v1845, 0
      %v1889 = vsel %vm988, %v1846, 0
      %v1892 = vsel %vm988, %v1847, 0
      %v1895 = vsel %vm988, %v1848, 0
      %v1898 = vsel %vm1037, %v1768, 0
      %1900 = vmatpush.bf16.msra.mxu0 0
      %1901 = vmatpush.bf16.msra.mxu0 0
      %1902 = vmatpush.bf16.msra.mxu0 0
      %1903 = vmatpush.bf16.msra.mxu0 0
      %1904 = vmatpush.bf16.msra.mxu0 0
      %1905 = vmatpush.bf16.msra.mxu0 0
      %1906 = vmatpush.bf16.msra.mxu0 0
      %1907 = vmatpush.bf16.msra.mxu0 %v1898
      %1908 = vmatmul.bf16.gmra.mxu0 %v1850
      %v1909 = vpop.f32.mrf.mxu0
      %v1910 = vadd.f32 0.0, %v1909
      %v1911 = vpop.f32.mrf.mxu0
      %v1912 = vadd.f32 0.0, %v1911
      %1913 = vmatmul.bf16.gmra.mxu0 %v1853
      %v1914 = vpop.f32.mrf.mxu0
      %v1915 = vadd.f32 0.0, %v1914
      %v1916 = vpop.f32.mrf.mxu0
      %v1917 = vadd.f32 0.0, %v1916
      %1918 = vmatmul.bf16.gmra.mxu0 %v1856
      %v1919 = vpop.f32.mrf.mxu0
      %v1920 = vadd.f32 0.0, %v1919
      %v1921 = vpop.f32.mrf.mxu0
      %v1922 = vadd.f32 0.0, %v1921
      %1923 = vmatmul.bf16.gmra.mxu0 %v1859
      %v1924 = vpop.f32.mrf.mxu0
      %v1925 = vadd.f32 0.0, %v1924
      %v1926 = vpop.f32.mrf.mxu0
      %v1927 = vadd.f32 0.0, %v1926
      %1928 = vmatmul.bf16.gmra.mxu0 %v1862
      %v1929 = vpop.f32.mrf.mxu0
      %v1930 = vadd.f32 0.0, %v1929
      %v1931 = vpop.f32.mrf.mxu0
      %v1932 = vadd.f32 0.0, %v1931
      %1933 = vmatmul.bf16.gmra.mxu0 %v1865
      %v1934 = vpop.f32.mrf.mxu0
      %v1935 = vadd.f32 0.0, %v1934
      %v1936 = vpop.f32.mrf.mxu0
      %v1937 = vadd.f32 0.0, %v1936
      %1938 = vmatmul.bf16.gmra.mxu0 %v1868
      %v1939 = vpop.f32.mrf.mxu0
      %v1940 = vadd.f32 0.0, %v1939
      %v1941 = vpop.f32.mrf.mxu0
      %v1942 = vadd.f32 0.0, %v1941
      %1943 = vmatmul.bf16.gmra.mxu0 %v1871
      %v1944 = vpop.f32.mrf.mxu0
      %v1945 = vadd.f32 0.0, %v1944
      %v1946 = vpop.f32.mrf.mxu0
      %v1947 = vadd.f32 0.0, %v1946
      %1948 = vmatmul.bf16.gmra.mxu0 %v1874
      %v1949 = vpop.f32.mrf.mxu0
      %v1950 = vadd.f32 0.0, %v1949
      %v1951 = vpop.f32.mrf.mxu0
      %v1952 = vadd.f32 0.0, %v1951
      %1953 = vmatmul.bf16.gmra.mxu0 %v1877
      %v1954 = vpop.f32.mrf.mxu0
      %v1955 = vadd.f32 0.0, %v1954
      %v1956 = vpop.f32.mrf.mxu0
      %v1957 = vadd.f32 0.0, %v1956
      %1958 = vmatmul.bf16.gmra.mxu0 %v1880
      %v1959 = vpop.f32.mrf.mxu0
      %v1960 = vadd.f32 0.0, %v1959
      %v1961 = vpop.f32.mrf.mxu0
      %v1962 = vadd.f32 0.0, %v1961
      %1963 = vmatmul.bf16.gmra.mxu0 %v1883
      %v1964 = vpop.f32.mrf.mxu0
      %v1965 = vadd.f32 0.0, %v1964
      %v1966 = vpop.f32.mrf.mxu0
      %v1967 = vadd.f32 0.0, %v1966
      %1968 = vmatmul.bf16.gmra.mxu0 %v1886
      %v1969 = vpop.f32.mrf.mxu0
      %v1970 = vadd.f32 0.0, %v1969
      %v1971 = vpop.f32.mrf.mxu0
      %v1972 = vadd.f32 0.0, %v1971
      %1973 = vmatmul.bf16.gmra.mxu0 %v1889
      %v1974 = vpop.f32.mrf.mxu0
      %v1975 = vadd.f32 0.0, %v1974
      %v1976 = vpop.f32.mrf.mxu0
      %v1977 = vadd.f32 0.0, %v1976
      %1978 = vmatmul.bf16.gmra.mxu0 %v1892
      %v1979 = vpop.f32.mrf.mxu0
      %v1980 = vadd.f32 0.0, %v1979
      %v1981 = vpop.f32.mrf.mxu0
      %v1982 = vadd.f32 0.0, %v1981
      %1983 = vmatmul.bf16.gmra.mxu0 %v1895
      %v1984 = vpop.f32.mrf.mxu0
      %v1985 = vadd.f32 0.0, %v1984
      %v1986 = vpop.f32.mrf.mxu0
      %v1987 = vadd.f32 0.0, %v1986
      %1988 = vdwg.mxu0
      %v1989 = vadd.f32 %v1702, %v1910
      %v1990 = vadd.f32 %v1703, %v1912
      %v1991 = vadd.f32 %v1704, %v1915
      %v1992 = vadd.f32 %v1705, %v1917
      %v1993 = vadd.f32 %v1706, %v1920
      %v1994 = vadd.f32 %v1707, %v1922
      %v1995 = vadd.f32 %v1708, %v1925
      %v1996 = vadd.f32 %v1709, %v1927
      %v1997 = vadd.f32 %v1710, %v1930
      %v1998 = vadd.f32 %v1711, %v1932
      %v1999 = vadd.f32 %v1712, %v1935
      %v2000 = vadd.f32 %v1713, %v1937
      %v2001 = vadd.f32 %v1714, %v1940
      %v2002 = vadd.f32 %v1715, %v1942
      %v2003 = vadd.f32 %v1716, %v1945
      %v2004 = vadd.f32 %v1717, %v1947
      %v2005 = vadd.f32 %v1718, %v1950
      %v2006 = vadd.f32 %v1719, %v1952
      %v2007 = vadd.f32 %v1720, %v1955
      %v2008 = vadd.f32 %v1721, %v1957
      %v2009 = vadd.f32 %v1722, %v1960
      %v2010 = vadd.f32 %v1723, %v1962
      %v2011 = vadd.f32 %v1724, %v1965
      %v2012 = vadd.f32 %v1725, %v1967
      %v2013 = vadd.f32 %v1726, %v1970
      %v2014 = vadd.f32 %v1727, %v1972
      %v2015 = vadd.f32 %v1728, %v1975
      %v2016 = vadd.f32 %v1729, %v1977
      %v2017 = vadd.f32 %v1730, %v1980
      %v2018 = vadd.f32 %v1731, %v1982
      %v2019 = vadd.f32 %v1732, %v1985
      %v2020 = vadd.f32 %v1733, %v1987
      %v2021 = vld [vmem:[%s1734] sm:$0xf]
      %v2022 = vld [vmem:[%s1734 + $0x4] sm:$0xf]
      %v2023 = vld [vmem:[%s1734 + $0x8] sm:$0x1]
      %v2024 = vld [vmem:[%s1734 + $0xc] sm:$0xf]
      %v2025 = vld [vmem:[%s1734 + $0x10] sm:$0xf]
      %v2026 = vld [vmem:[%s1734 + $0x14] sm:$0x1]
      %v2027 = vld [vmem:[%s1734 + $0x18] sm:$0xf]
      %v2028 = vld [vmem:[%s1734 + $0x1c] sm:$0xf]
      %v2029 = vld [vmem:[%s1734 + $0x20] sm:$0x1]
      %v2030 = vld [vmem:[%s1734 + $0x24] sm:$0xf]
      %v2031 = vld [vmem:[%s1734 + $0x28] sm:$0xf]
      %v2032 = vld [vmem:[%s1734 + $0x2c] sm:$0x1]
      %v2033 = vld [vmem:[%s1734 + $0x30] sm:$0xf]
      %v2034 = vld [vmem:[%s1734 + $0x34] sm:$0xf]
      %v2035 = vld [vmem:[%s1734 + $0x38] sm:$0x1]
      %v2036 = vld [vmem:[%s1734 + $0x3c] sm:$0xf]
      %v2037 = vld [vmem:[%s1734 + $0x40] sm:$0xf]
      %v2038 = vld [vmem:[%s1734 + $0x44] sm:$0x1]
      %v2039 = vld [vmem:[%s1734 + $0x48] sm:$0xf]
      %v2040 = vld [vmem:[%s1734 + $0x4c] sm:$0xf]
      %v2041 = vld [vmem:[%s1734 + $0x50] sm:$0x1]
      %v2042 = vld [vmem:[%s1734 + $0x54] sm:$0xf]
      %v2043 = vld [vmem:[%s1734 + $0x58] sm:$0xf]
      %v2044 = vld [vmem:[%s1734 + $0x5c] sm:$0x1]
      %v2045 = vld [vmem:[%s1734 + $0x60] sm:$0xf]
      %v2046 = vld [vmem:[%s1734 + $0x64] sm:$0xf]
      %v2047 = vld [vmem:[%s1734 + $0x68] sm:$0x1]
      %v2048 = vld [vmem:[%s1734 + $0x6c] sm:$0xf]
      %v2049 = vld [vmem:[%s1734 + $0x70] sm:$0xf]
      %v2050 = vld [vmem:[%s1734 + $0x74] sm:$0x1]
      %v2051 = vld [vmem:[%s1734 + $0x78] sm:$0xf]
      %v2052 = vld [vmem:[%s1734 + $0x7c] sm:$0xf]
      %v2053 = vld [vmem:[%s1734 + $0x80] sm:$0x1]
      %v2054 = vld [vmem:[%s1734 + $0x84] sm:$0xf]
      %v2055 = vld [vmem:[%s1734 + $0x88] sm:$0xf]
      %v2056 = vld [vmem:[%s1734 + $0x8c] sm:$0x1]
      %v2057 = vld [vmem:[%s1734 + $0x90] sm:$0xf]
      %v2058 = vld [vmem:[%s1734 + $0x94] sm:$0xf]
      %v2059 = vld [vmem:[%s1734 + $0x98] sm:$0x1]
      %v2060 = vld [vmem:[%s1734 + $0x9c] sm:$0xf]
      %v2061 = vld [vmem:[%s1734 + $0xa0] sm:$0xf]
      %v2062 = vld [vmem:[%s1734 + $0xa4] sm:$0x1]
      %v2063 = vld [vmem:[%s1734 + $0xa8] sm:$0xf]
      %v2064 = vld [vmem:[%s1734 + $0xac] sm:$0xf]
      %v2065 = vld [vmem:[%s1734 + $0xb0] sm:$0x1]
      %v2066 = vld [vmem:[%s1734 + $0xb4] sm:$0xf]
      %v2067 = vld [vmem:[%s1734 + $0xb8] sm:$0xf]
      %v2068 = vld [vmem:[%s1734 + $0xbc] sm:$0x1]
      %v2070 = vshrl.u32 %v2021, 16
      %v2072 = vrot.slane %v2070, 4
      %v2073 = vshll.u32 %v2021, 16
      %v2075 = vrot.slane %v2073, 5
      %v2076 = vor.u32 %v2072, %v2075
      %v2077 = vrot.slane %v2076, 4
      %v2079 = vshll.u32 %v2022, 16
      %v2081 = vrot.slane %v2079, 5
      %v2082 = vsel %vm554, %v2077, %v2081
      %v2083 = vshrl.u32 %v2022, 16
      %v2085 = vrot.slane %v2083, 4
      %v2086 = vor.u32 %v2085, %v2081
      %v2087 = vrot.slane %v2086, 4
      %v2089 = vshll.u32 %v2023, 16
      %v2091 = vrot.slane %v2089, 5
      %v2092 = vsel %vm554, %v2087, %v2091
      %v2094 = vshrl.u32 %v2024, 16
      %v2096 = vrot.slane %v2094, 4
      %v2097 = vshll.u32 %v2024, 16
      %v2099 = vrot.slane %v2097, 5
      %v2100 = vor.u32 %v2096, %v2099
      %v2101 = vrot.slane %v2100, 4
      %v2103 = vshll.u32 %v2025, 16
      %v2105 = vrot.slane %v2103, 5
      %v2106 = vsel %vm554, %v2101, %v2105
      %v2107 = vshrl.u32 %v2025, 16
      %v2109 = vrot.slane %v2107, 4
      %v2110 = vor.u32 %v2109, %v2105
      %v2111 = vrot.slane %v2110, 4
      %v2113 = vshll.u32 %v2026, 16
      %v2115 = vrot.slane %v2113, 5
      %v2116 = vsel %vm554, %v2111, %v2115
      %v2118 = vshrl.u32 %v2027, 16
      %v2120 = vrot.slane %v2118, 4
      %v2121 = vshll.u32 %v2027, 16
      %v2123 = vrot.slane %v2121, 5
      %v2124 = vor.u32 %v2120, %v2123
      %v2125 = vrot.slane %v2124, 4
      %v2127 = vshll.u32 %v2028, 16
      %v2129 = vrot.slane %v2127, 5
      %v2130 = vsel %vm554, %v2125, %v2129
      %v2131 = vshrl.u32 %v2028, 16
      %v2133 = vrot.slane %v2131, 4
      %v2134 = vor.u32 %v2133, %v2129
      %v2135 = vrot.slane %v2134, 4
      %v2137 = vshll.u32 %v2029, 16
      %v2139 = vrot.slane %v2137, 5
      %v2140 = vsel %vm554, %v2135, %v2139
      %v2142 = vshrl.u32 %v2030, 16
      %v2144 = vrot.slane %v2142, 4
      %v2145 = vshll.u32 %v2030, 16
      %v2147 = vrot.slane %v2145, 5
      %v2148 = vor.u32 %v2144, %v2147
      %v2149 = vrot.slane %v2148, 4
      %v2151 = vshll.u32 %v2031, 16
      %v2153 = vrot.slane %v2151, 5
      %v2154 = vsel %vm554, %v2149, %v2153
      %v2155 = vshrl.u32 %v2031, 16
      %v2157 = vrot.slane %v2155, 4
      %v2158 = vor.u32 %v2157, %v2153
      %v2159 = vrot.slane %v2158, 4
      %v2161 = vshll.u32 %v2032, 16
      %v2163 = vrot.slane %v2161, 5
      %v2164 = vsel %vm554, %v2159, %v2163
      %v2166 = vshrl.u32 %v2033, 16
      %v2168 = vrot.slane %v2166, 4
      %v2169 = vshll.u32 %v2033, 16
      %v2171 = vrot.slane %v2169, 5
      %v2172 = vor.u32 %v2168, %v2171
      %v2173 = vrot.slane %v2172, 4
      %v2175 = vshll.u32 %v2034, 16
      %v2177 = vrot.slane %v2175, 5
      %v2178 = vsel %vm554, %v2173, %v2177
      %v2179 = vshrl.u32 %v2034, 16
      %v2181 = vrot.slane %v2179, 4
      %v2182 = vor.u32 %v2181, %v2177
      %v2183 = vrot.slane %v2182, 4
      %v2185 = vshll.u32 %v2035, 16
      %v2187 = vrot.slane %v2185, 5
      %v2188 = vsel %vm554, %v2183, %v2187
      %v2190 = vshrl.u32 %v2036, 16
      %v2192 = vrot.slane %v2190, 4
      %v2193 = vshll.u32 %v2036, 16
      %v2195 = vrot.slane %v2193, 5
      %v2196 = vor.u32 %v2192, %v2195
      %v2197 = vrot.slane %v2196, 4
      %v2199 = vshll.u32 %v2037, 16
      %v2201 = vrot.slane %v2199, 5
      %v2202 = vsel %vm554, %v2197, %v2201
      %v2203 = vshrl.u32 %v2037, 16
      %v2205 = vrot.slane %v2203, 4
      %v2206 = vor.u32 %v2205, %v2201
      %v2207 = vrot.slane %v2206, 4
      %v2209 = vshll.u32 %v2038, 16
      %v2211 = vrot.slane %v2209, 5
      %v2212 = vsel %vm554, %v2207, %v2211
      %v2214 = vshrl.u32 %v2039, 16
      %v2216 = vrot.slane %v2214, 4
      %v2217 = vshll.u32 %v2039, 16
      %v2219 = vrot.slane %v2217, 5
      %v2220 = vor.u32 %v2216, %v2219
      %v2221 = vrot.slane %v2220, 4
      %v2223 = vshll.u32 %v2040, 16
      %v2225 = vrot.slane %v2223, 5
      %v2226 = vsel %vm554, %v2221, %v2225
      %v2227 = vshrl.u32 %v2040, 16
      %v2229 = vrot.slane %v2227, 4
      %v2230 = vor.u32 %v2229, %v2225
      %v2231 = vrot.slane %v2230, 4
      %v2233 = vshll.u32 %v2041, 16
      %v2235 = vrot.slane %v2233, 5
      %v2236 = vsel %vm554, %v2231, %v2235
      %v2238 = vshrl.u32 %v2042, 16
      %v2240 = vrot.slane %v2238, 4
      %v2241 = vshll.u32 %v2042, 16
      %v2243 = vrot.slane %v2241, 5
      %v2244 = vor.u32 %v2240, %v2243
      %v2245 = vrot.slane %v2244, 4
      %v2247 = vshll.u32 %v2043, 16
      %v2249 = vrot.slane %v2247, 5
      %v2250 = vsel %vm554, %v2245, %v2249
      %v2251 = vshrl.u32 %v2043, 16
      %v2253 = vrot.slane %v2251, 4
      %v2254 = vor.u32 %v2253, %v2249
      %v2255 = vrot.slane %v2254, 4
      %v2257 = vshll.u32 %v2044, 16
      %v2259 = vrot.slane %v2257, 5
      %v2260 = vsel %vm554, %v2255, %v2259
      %v2262 = vshrl.u32 %v2045, 16
      %v2264 = vrot.slane %v2262, 4
      %v2265 = vshll.u32 %v2045, 16
      %v2267 = vrot.slane %v2265, 5
      %v2268 = vor.u32 %v2264, %v2267
      %v2269 = vrot.slane %v2268, 4
      %v2271 = vshll.u32 %v2046, 16
      %v2273 = vrot.slane %v2271, 5
      %v2274 = vsel %vm554, %v2269, %v2273
      %v2275 = vshrl.u32 %v2046, 16
      %v2277 = vrot.slane %v2275, 4
      %v2278 = vor.u32 %v2277, %v2273
      %v2279 = vrot.slane %v2278, 4
      %v2281 = vshll.u32 %v2047, 16
      %v2283 = vrot.slane %v2281, 5
      %v2284 = vsel %vm554, %v2279, %v2283
      %v2286 = vshrl.u32 %v2048, 16
      %v2288 = vrot.slane %v2286, 4
      %v2289 = vshll.u32 %v2048, 16
      %v2291 = vrot.slane %v2289, 5
      %v2292 = vor.u32 %v2288, %v2291
      %v2293 = vrot.slane %v2292, 4
      %v2295 = vshll.u32 %v2049, 16
      %v2297 = vrot.slane %v2295, 5
      %v2298 = vsel %vm554, %v2293, %v2297
      %v2299 = vshrl.u32 %v2049, 16
      %v2301 = vrot.slane %v2299, 4
      %v2302 = vor.u32 %v2301, %v2297
      %v2303 = vrot.slane %v2302, 4
      %v2305 = vshll.u32 %v2050, 16
      %v2307 = vrot.slane %v2305, 5
      %v2308 = vsel %vm554, %v2303, %v2307
      %v2310 = vshrl.u32 %v2051, 16
      %v2312 = vrot.slane %v2310, 4
      %v2313 = vshll.u32 %v2051, 16
      %v2315 = vrot.slane %v2313, 5
      %v2316 = vor.u32 %v2312, %v2315
      %v2317 = vrot.slane %v2316, 4
      %v2319 = vshll.u32 %v2052, 16
      %v2321 = vrot.slane %v2319, 5
      %v2322 = vsel %vm554, %v2317, %v2321
      %v2323 = vshrl.u32 %v2052, 16
      %v2325 = vrot.slane %v2323, 4
      %v2326 = vor.u32 %v2325, %v2321
      %v2327 = vrot.slane %v2326, 4
      %v2329 = vshll.u32 %v2053, 16
      %v2331 = vrot.slane %v2329, 5
      %v2332 = vsel %vm554, %v2327, %v2331
      %v2334 = vshrl.u32 %v2054, 16
      %v2336 = vrot.slane %v2334, 4
      %v2337 = vshll.u32 %v2054, 16
      %v2339 = vrot.slane %v2337, 5
      %v2340 = vor.u32 %v2336, %v2339
      %v2341 = vrot.slane %v2340, 4
      %v2343 = vshll.u32 %v2055, 16
      %v2345 = vrot.slane %v2343, 5
      %v2346 = vsel %vm554, %v2341, %v2345
      %v2347 = vshrl.u32 %v2055, 16
      %v2349 = vrot.slane %v2347, 4
      %v2350 = vor.u32 %v2349, %v2345
      %v2351 = vrot.slane %v2350, 4
      %v2353 = vshll.u32 %v2056, 16
      %v2355 = vrot.slane %v2353, 5
      %v2356 = vsel %vm554, %v2351, %v2355
      %v2358 = vshrl.u32 %v2057, 16
      %v2360 = vrot.slane %v2358, 4
      %v2361 = vshll.u32 %v2057, 16
      %v2363 = vrot.slane %v2361, 5
      %v2364 = vor.u32 %v2360, %v2363
      %v2365 = vrot.slane %v2364, 4
      %v2367 = vshll.u32 %v2058, 16
      %v2369 = vrot.slane %v2367, 5
      %v2370 = vsel %vm554, %v2365, %v2369
      %v2371 = vshrl.u32 %v2058, 16
      %v2373 = vrot.slane %v2371, 4
      %v2374 = vor.u32 %v2373, %v2369
      %v2375 = vrot.slane %v2374, 4
      %v2377 = vshll.u32 %v2059, 16
      %v2379 = vrot.slane %v2377, 5
      %v2380 = vsel %vm554, %v2375, %v2379
      %v2382 = vshrl.u32 %v2060, 16
      %v2384 = vrot.slane %v2382, 4
      %v2385 = vshll.u32 %v2060, 16
      %v2387 = vrot.slane %v2385, 5
      %v2388 = vor.u32 %v2384, %v2387
      %v2389 = vrot.slane %v2388, 4
      %v2391 = vshll.u32 %v2061, 16
      %v2393 = vrot.slane %v2391, 5
      %v2394 = vsel %vm554, %v2389, %v2393
      %v2395 = vshrl.u32 %v2061, 16
      %v2397 = vrot.slane %v2395, 4
      %v2398 = vor.u32 %v2397, %v2393
      %v2399 = vrot.slane %v2398, 4
      %v2401 = vshll.u32 %v2062, 16
      %v2403 = vrot.slane %v2401, 5
      %v2404 = vsel %vm554, %v2399, %v2403
      %v2406 = vshrl.u32 %v2063, 16
      %v2408 = vrot.slane %v2406, 4
      %v2409 = vshll.u32 %v2063, 16
      %v2411 = vrot.slane %v2409, 5
      %v2412 = vor.u32 %v2408, %v2411
      %v2413 = vrot.slane %v2412, 4
      %v2415 = vshll.u32 %v2064, 16
      %v2417 = vrot.slane %v2415, 5
      %v2418 = vsel %vm554, %v2413, %v2417
      %v2419 = vshrl.u32 %v2064, 16
      %v2421 = vrot.slane %v2419, 4
      %v2422 = vor.u32 %v2421, %v2417
      %v2423 = vrot.slane %v2422, 4
      %v2425 = vshll.u32 %v2065, 16
      %v2427 = vrot.slane %v2425, 5
      %v2428 = vsel %vm554, %v2423, %v2427
      %v2430 = vshrl.u32 %v2066, 16
      %v2432 = vrot.slane %v2430, 4
      %v2433 = vshll.u32 %v2066, 16
      %v2435 = vrot.slane %v2433, 5
      %v2436 = vor.u32 %v2432, %v2435
      %v2437 = vrot.slane %v2436, 4
      %v2439 = vshll.u32 %v2067, 16
      %v2441 = vrot.slane %v2439, 5
      %v2442 = vsel %vm554, %v2437, %v2441
      %v2443 = vshrl.u32 %v2067, 16
      %v2445 = vrot.slane %v2443, 4
      %v2446 = vor.u32 %v2445, %v2441
      %v2447 = vrot.slane %v2446, 4
      %v2449 = vshll.u32 %v2068, 16
      %v2451 = vrot.slane %v2449, 5
      %v2452 = vsel %vm554, %v2447, %v2451
      %v2453 = vld [vmem:[%s1767 + $0x4] sm:$0xf]
      %v2454 = vunpack.c.l.b16 %v2082
      %v2455 = vunpack.c.l.b16 %v2092
      %v2456 = vunpack.c.l.b16 %v2106
      %v2457 = vunpack.c.l.b16 %v2116
      %v2458 = vunpack.c.l.b16 %v2130
      %v2459 = vunpack.c.l.b16 %v2140
      %v2460 = vunpack.c.l.b16 %v2154
      %v2461 = vunpack.c.l.b16 %v2164
      %v2462 = vunpack.c.l.b16 %v2178
      %v2463 = vunpack.c.l.b16 %v2188
      %v2464 = vunpack.c.l.b16 %v2202
      %v2465 = vunpack.c.l.b16 %v2212
      %v2466 = vunpack.c.l.b16 %v2226
      %v2467 = vunpack.c.l.b16 %v2236
      %v2468 = vunpack.c.l.b16 %v2250
      %v2469 = vunpack.c.l.b16 %v2260
      %v2470 = vunpack.c.l.b16 %v2274
      %v2471 = vunpack.c.l.b16 %v2284
      %v2472 = vunpack.c.l.b16 %v2298
      %v2473 = vunpack.c.l.b16 %v2308
      %v2474 = vunpack.c.l.b16 %v2322
      %v2475 = vunpack.c.l.b16 %v2332
      %v2476 = vunpack.c.l.b16 %v2346
      %v2477 = vunpack.c.l.b16 %v2356
      %v2478 = vunpack.c.l.b16 %v2370
      %v2479 = vunpack.c.l.b16 %v2380
      %v2480 = vunpack.c.l.b16 %v2394
      %v2481 = vunpack.c.l.b16 %v2404
      %v2482 = vunpack.c.l.b16 %v2418
      %v2483 = vunpack.c.l.b16 %v2428
      %v2484 = vunpack.c.l.b16 %v2442
      %v2485 = vunpack.c.l.b16 %v2452
      %v2486 = vpack.c.b16 %v2455, %v2454
      %v2487 = vpack.c.b16 %v2457, %v2456
      %v2488 = vpack.c.b16 %v2459, %v2458
      %v2489 = vpack.c.b16 %v2461, %v2460
      %v2490 = vpack.c.b16 %v2463, %v2462
      %v2491 = vpack.c.b16 %v2465, %v2464
      %v2492 = vpack.c.b16 %v2467, %v2466
      %v2493 = vpack.c.b16 %v2469, %v2468
      %v2494 = vpack.c.b16 %v2471, %v2470
      %v2495 = vpack.c.b16 %v2473, %v2472
      %v2496 = vpack.c.b16 %v2475, %v2474
      %v2497 = vpack.c.b16 %v2477, %v2476
      %v2498 = vpack.c.b16 %v2479, %v2478
      %v2499 = vpack.c.b16 %v2481, %v2480
      %v2500 = vpack.c.b16 %v2483, %v2482
      %v2501 = vpack.c.b16 %v2485, %v2484
      %v2503 = vsel %vm988, %v2486, 0
      %v2506 = vsel %vm988, %v2487, 0
      %v2509 = vsel %vm988, %v2488, 0
      %v2512 = vsel %vm988, %v2489, 0
      %v2515 = vsel %vm988, %v2490, 0
      %v2518 = vsel %vm988, %v2491, 0
      %v2521 = vsel %vm988, %v2492, 0
      %v2524 = vsel %vm988, %v2493, 0
      %v2527 = vsel %vm988, %v2494, 0
      %v2530 = vsel %vm988, %v2495, 0
      %v2533 = vsel %vm988, %v2496, 0
      %v2536 = vsel %vm988, %v2497, 0
      %v2539 = vsel %vm988, %v2498, 0
      %v2542 = vsel %vm988, %v2499, 0
      %v2545 = vsel %vm988, %v2500, 0
      %v2548 = vsel %vm988, %v2501, 0
      %v2551 = vsel %vm1037, %v2453, 0
      %2553 = vmatpush.bf16.msra.mxu0 0
      %2554 = vmatpush.bf16.msra.mxu0 0
      %2555 = vmatpush.bf16.msra.mxu0 0
      %2556 = vmatpush.bf16.msra.mxu0 0
      %2557 = vmatpush.bf16.msra.mxu0 0
      %2558 = vmatpush.bf16.msra.mxu0 0
      %2559 = vmatpush.bf16.msra.mxu0 0
      %2560 = vmatpush.bf16.msra.mxu0 %v2551
      %2561 = vmatmul.bf16.gmra.mxu0 %v2503
      %v2562 = vpop.f32.mrf.mxu0
      %v2563 = vadd.f32 0.0, %v2562
      %v2564 = vpop.f32.mrf.mxu0
      %v2565 = vadd.f32 0.0, %v2564
      %2566 = vmatmul.bf16.gmra.mxu0 %v2506
      %v2567 = vpop.f32.mrf.mxu0
      %v2568 = vadd.f32 0.0, %v2567
      %v2569 = vpop.f32.mrf.mxu0
      %v2570 = vadd.f32 0.0, %v2569
      %2571 = vmatmul.bf16.gmra.mxu0 %v2509
      %v2572 = vpop.f32.mrf.mxu0
      %v2573 = vadd.f32 0.0, %v2572
      %v2574 = vpop.f32.mrf.mxu0
      %v2575 = vadd.f32 0.0, %v2574
      %2576 = vmatmul.bf16.gmra.mxu0 %v2512
      %v2577 = vpop.f32.mrf.mxu0
      %v2578 = vadd.f32 0.0, %v2577
      %v2579 = vpop.f32.mrf.mxu0
      %v2580 = vadd.f32 0.0, %v2579
      %2581 = vmatmul.bf16.gmra.mxu0 %v2515
      %v2582 = vpop.f32.mrf.mxu0
      %v2583 = vadd.f32 0.0, %v2582
      %v2584 = vpop.f32.mrf.mxu0
      %v2585 = vadd.f32 0.0, %v2584
      %2586 = vmatmul.bf16.gmra.mxu0 %v2518
      %v2587 = vpop.f32.mrf.mxu0
      %v2588 = vadd.f32 0.0, %v2587
      %v2589 = vpop.f32.mrf.mxu0
      %v2590 = vadd.f32 0.0, %v2589
      %2591 = vmatmul.bf16.gmra.mxu0 %v2521
      %v2592 = vpop.f32.mrf.mxu0
      %v2593 = vadd.f32 0.0, %v2592
      %v2594 = vpop.f32.mrf.mxu0
      %v2595 = vadd.f32 0.0, %v2594
      %2596 = vmatmul.bf16.gmra.mxu0 %v2524
      %v2597 = vpop.f32.mrf.mxu0
      %v2598 = vadd.f32 0.0, %v2597
      %v2599 = vpop.f32.mrf.mxu0
      %v2600 = vadd.f32 0.0, %v2599
      %2601 = vmatmul.bf16.gmra.mxu0 %v2527
      %v2602 = vpop.f32.mrf.mxu0
      %v2603 = vadd.f32 0.0, %v2602
      %v2604 = vpop.f32.mrf.mxu0
      %v2605 = vadd.f32 0.0, %v2604
      %2606 = vmatmul.bf16.gmra.mxu0 %v2530
      %v2607 = vpop.f32.mrf.mxu0
      %v2608 = vadd.f32 0.0, %v2607
      %v2609 = vpop.f32.mrf.mxu0
      %v2610 = vadd.f32 0.0, %v2609
      %2611 = vmatmul.bf16.gmra.mxu0 %v2533
      %v2612 = vpop.f32.mrf.mxu0
      %v2613 = vadd.f32 0.0, %v2612
      %v2614 = vpop.f32.mrf.mxu0
      %v2615 = vadd.f32 0.0, %v2614
      %2616 = vmatmul.bf16.gmra.mxu0 %v2536
      %v2617 = vpop.f32.mrf.mxu0
      %v2618 = vadd.f32 0.0, %v2617
      %v2619 = vpop.f32.mrf.mxu0
      %v2620 = vadd.f32 0.0, %v2619
      %2621 = vmatmul.bf16.gmra.mxu0 %v2539
      %v2622 = vpop.f32.mrf.mxu0
      %v2623 = vadd.f32 0.0, %v2622
      %v2624 = vpop.f32.mrf.mxu0
      %v2625 = vadd.f32 0.0, %v2624
      %2626 = vmatmul.bf16.gmra.mxu0 %v2542
      %v2627 = vpop.f32.mrf.mxu0
      %v2628 = vadd.f32 0.0, %v2627
      %v2629 = vpop.f32.mrf.mxu0
      %v2630 = vadd.f32 0.0, %v2629
      %2631 = vmatmul.bf16.gmra.mxu0 %v2545
      %v2632 = vpop.f32.mrf.mxu0
      %v2633 = vadd.f32 0.0, %v2632
      %v2634 = vpop.f32.mrf.mxu0
      %v2635 = vadd.f32 0.0, %v2634
      %2636 = vmatmul.bf16.gmra.mxu0 %v2548
      %v2637 = vpop.f32.mrf.mxu0
      %v2638 = vadd.f32 0.0, %v2637
      %v2639 = vpop.f32.mrf.mxu0
      %v2640 = vadd.f32 0.0, %v2639
      %2641 = vdwg.mxu0
      %v2642 = vadd.f32 %v1989, %v2563
      %v2643 = vadd.f32 %v1990, %v2565
      %v2644 = vadd.f32 %v1991, %v2568
      %v2645 = vadd.f32 %v1992, %v2570
      %v2646 = vadd.f32 %v1993, %v2573
      %v2647 = vadd.f32 %v1994, %v2575
      %v2648 = vadd.f32 %v1995, %v2578
      %v2649 = vadd.f32 %v1996, %v2580
      %v2650 = vadd.f32 %v1997, %v2583
      %v2651 = vadd.f32 %v1998, %v2585
      %v2652 = vadd.f32 %v1999, %v2588
      %v2653 = vadd.f32 %v2000, %v2590
      %v2654 = vadd.f32 %v2001, %v2593
      %v2655 = vadd.f32 %v2002, %v2595
      %v2656 = vadd.f32 %v2003, %v2598
      %v2657 = vadd.f32 %v2004, %v2600
      %v2658 = vadd.f32 %v2005, %v2603
      %v2659 = vadd.f32 %v2006, %v2605
      %v2660 = vadd.f32 %v2007, %v2608
      %v2661 = vadd.f32 %v2008, %v2610
      %v2662 = vadd.f32 %v2009, %v2613
      %v2663 = vadd.f32 %v2010, %v2615
      %v2664 = vadd.f32 %v2011, %v2618
      %v2665 = vadd.f32 %v2012, %v2620
      %v2666 = vadd.f32 %v2013, %v2623
      %v2667 = vadd.f32 %v2014, %v2625
      %v2668 = vadd.f32 %v2015, %v2628
      %v2669 = vadd.f32 %v2016, %v2630
      %v2670 = vadd.f32 %v2017, %v2633
      %v2671 = vadd.f32 %v2018, %v2635
      %v2672 = vadd.f32 %v2019, %v2638
      %v2673 = vadd.f32 %v2020, %v2640
      %v2674 = vld [vmem:[%s1734] sm:$0xe]
      %v2675 = vld [vmem:[%s1734 + $0xc] sm:$0xe]
      %v2676 = vld [vmem:[%s1734 + $0x18] sm:$0xe]
      %v2677 = vld [vmem:[%s1734 + $0x24] sm:$0xe]
      %v2678 = vld [vmem:[%s1734 + $0x30] sm:$0xe]
      %v2679 = vld [vmem:[%s1734 + $0x3c] sm:$0xe]
      %v2680 = vld [vmem:[%s1734 + $0x48] sm:$0xe]
      %v2681 = vld [vmem:[%s1734 + $0x54] sm:$0xe]
      %v2682 = vld [vmem:[%s1734 + $0x60] sm:$0xe]
      %v2683 = vld [vmem:[%s1734 + $0x6c] sm:$0xe]
      %v2684 = vld [vmem:[%s1734 + $0x78] sm:$0xe]
      %v2685 = vld [vmem:[%s1734 + $0x84] sm:$0xe]
      %v2686 = vld [vmem:[%s1734 + $0x90] sm:$0xe]
      %v2687 = vld [vmem:[%s1734 + $0x9c] sm:$0xe]
      %v2688 = vld [vmem:[%s1734 + $0xa8] sm:$0xe]
      %v2689 = vld [vmem:[%s1734 + $0xb4] sm:$0xe]
      %v2738 = vrot.slane %v2674, 5
      %v2739 = vrot.slane %v2738, 4
      %v2740 = vrot.slane %v2022, 5
      %v2741 = vsel %vm1400, %v2739, %v2740
      %v2742 = vrot.slane %v2740, 4
      %v2743 = vrot.slane %v2023, 5
      %v2744 = vsel %vm1400, %v2742, %v2743
      %v2745 = vrot.slane %v2675, 5
      %v2746 = vrot.slane %v2745, 4
      %v2747 = vrot.slane %v2025, 5
      %v2748 = vsel %vm1400, %v2746, %v2747
      %v2749 = vrot.slane %v2747, 4
      %v2750 = vrot.slane %v2026, 5
      %v2751 = vsel %vm1400, %v2749, %v2750
      %v2752 = vrot.slane %v2676, 5
      %v2753 = vrot.slane %v2752, 4
      %v2754 = vrot.slane %v2028, 5
      %v2755 = vsel %vm1400, %v2753, %v2754
      %v2756 = vrot.slane %v2754, 4
      %v2757 = vrot.slane %v2029, 5
      %v2758 = vsel %vm1400, %v2756, %v2757
      %v2759 = vrot.slane %v2677, 5
      %v2760 = vrot.slane %v2759, 4
      %v2761 = vrot.slane %v2031, 5
      %v2762 = vsel %vm1400, %v2760, %v2761
      %v2763 = vrot.slane %v2761, 4
      %v2764 = vrot.slane %v2032, 5
      %v2765 = vsel %vm1400, %v2763, %v2764
      %v2766 = vrot.slane %v2678, 5
      %v2767 = vrot.slane %v2766, 4
      %v2768 = vrot.slane %v2034, 5
      %v2769 = vsel %vm1400, %v2767, %v2768
      %v2770 = vrot.slane %v2768, 4
      %v2771 = vrot.slane %v2035, 5
      %v2772 = vsel %vm1400, %v2770, %v2771
      %v2773 = vrot.slane %v2679, 5
      %v2774 = vrot.slane %v2773, 4
      %v2775 = vrot.slane %v2037, 5
      %v2776 = vsel %vm1400, %v2774, %v2775
      %v2777 = vrot.slane %v2775, 4
      %v2778 = vrot.slane %v2038, 5
      %v2779 = vsel %vm1400, %v2777, %v2778
      %v2780 = vrot.slane %v2680, 5
      %v2781 = vrot.slane %v2780, 4
      %v2782 = vrot.slane %v2040, 5
      %v2783 = vsel %vm1400, %v2781, %v2782
      %v2784 = vrot.slane %v2782, 4
      %v2785 = vrot.slane %v2041, 5
      %v2786 = vsel %vm1400, %v2784, %v2785
      %v2787 = vrot.slane %v2681, 5
      %v2788 = vrot.slane %v2787, 4
      %v2789 = vrot.slane %v2043, 5
      %v2790 = vsel %vm1400, %v2788, %v2789
      %v2791 = vrot.slane %v2789, 4
      %v2792 = vrot.slane %v2044, 5
      %v2793 = vsel %vm1400, %v2791, %v2792
      %v2794 = vrot.slane %v2682, 5
      %v2795 = vrot.slane %v2794, 4
      %v2796 = vrot.slane %v2046, 5
      %v2797 = vsel %vm1400, %v2795, %v2796
      %v2798 = vrot.slane %v2796, 4
      %v2799 = vrot.slane %v2047, 5
      %v2800 = vsel %vm1400, %v2798, %v2799
      %v2801 = vrot.slane %v2683, 5
      %v2802 = vrot.slane %v2801, 4
      %v2803 = vrot.slane %v2049, 5
      %v2804 = vsel %vm1400, %v2802, %v2803
      %v2805 = vrot.slane %v2803, 4
      %v2806 = vrot.slane %v2050, 5
      %v2807 = vsel %vm1400, %v2805, %v2806
      %v2808 = vrot.slane %v2684, 5
      %v2809 = vrot.slane %v2808, 4
      %v2810 = vrot.slane %v2052, 5
      %v2811 = vsel %vm1400, %v2809, %v2810
      %v2812 = vrot.slane %v2810, 4
      %v2813 = vrot.slane %v2053, 5
      %v2814 = vsel %vm1400, %v2812, %v2813
      %v2815 = vrot.slane %v2685, 5
      %v2816 = vrot.slane %v2815, 4
      %v2817 = vrot.slane %v2055, 5
      %v2818 = vsel %vm1400, %v2816, %v2817
      %v2819 = vrot.slane %v2817, 4
      %v2820 = vrot.slane %v2056, 5
      %v2821 = vsel %vm1400, %v2819, %v2820
      %v2822 = vrot.slane %v2686, 5
      %v2823 = vrot.slane %v2822, 4
      %v2824 = vrot.slane %v2058, 5
      %v2825 = vsel %vm1400, %v2823, %v2824
      %v2826 = vrot.slane %v2824, 4
      %v2827 = vrot.slane %v2059, 5
      %v2828 = vsel %vm1400, %v2826, %v2827
      %v2829 = vrot.slane %v2687, 5
      %v2830 = vrot.slane %v2829, 4
      %v2831 = vrot.slane %v2061, 5
      %v2832 = vsel %vm1400, %v2830, %v2831
      %v2833 = vrot.slane %v2831, 4
      %v2834 = vrot.slane %v2062, 5
      %v2835 = vsel %vm1400, %v2833, %v2834
      %v2836 = vrot.slane %v2688, 5
      %v2837 = vrot.slane %v2836, 4
      %v2838 = vrot.slane %v2064, 5
      %v2839 = vsel %vm1400, %v2837, %v2838
      %v2840 = vrot.slane %v2838, 4
      %v2841 = vrot.slane %v2065, 5
      %v2842 = vsel %vm1400, %v2840, %v2841
      %v2843 = vrot.slane %v2689, 5
      %v2844 = vrot.slane %v2843, 4
      %v2845 = vrot.slane %v2067, 5
      %v2846 = vsel %vm1400, %v2844, %v2845
      %v2847 = vrot.slane %v2845, 4
      %v2848 = vrot.slane %v2068, 5
      %v2849 = vsel %vm1400, %v2847, %v2848
      %v2850 = vld [vmem:[%s1767 + $0x8] sm:$0xf]
      %v2851 = vunpack.c.l.b16 %v2741
      %v2852 = vunpack.c.l.b16 %v2744
      %v2853 = vunpack.c.l.b16 %v2748
      %v2854 = vunpack.c.l.b16 %v2751
      %v2855 = vunpack.c.l.b16 %v2755
      %v2856 = vunpack.c.l.b16 %v2758
      %v2857 = vunpack.c.l.b16 %v2762
      %v2858 = vunpack.c.l.b16 %v2765
      %v2859 = vunpack.c.l.b16 %v2769
      %v2860 = vunpack.c.l.b16 %v2772
      %v2861 = vunpack.c.l.b16 %v2776
      %v2862 = vunpack.c.l.b16 %v2779
      %v2863 = vunpack.c.l.b16 %v2783
      %v2864 = vunpack.c.l.b16 %v2786
      %v2865 = vunpack.c.l.b16 %v2790
      %v2866 = vunpack.c.l.b16 %v2793
      %v2867 = vunpack.c.l.b16 %v2797
      %v2868 = vunpack.c.l.b16 %v2800
      %v2869 = vunpack.c.l.b16 %v2804
      %v2870 = vunpack.c.l.b16 %v2807
      %v2871 = vunpack.c.l.b16 %v2811
      %v2872 = vunpack.c.l.b16 %v2814
      %v2873 = vunpack.c.l.b16 %v2818
      %v2874 = vunpack.c.l.b16 %v2821
      %v2875 = vunpack.c.l.b16 %v2825
      %v2876 = vunpack.c.l.b16 %v2828
      %v2877 = vunpack.c.l.b16 %v2832
      %v2878 = vunpack.c.l.b16 %v2835
      %v2879 = vunpack.c.l.b16 %v2839
      %v2880 = vunpack.c.l.b16 %v2842
      %v2881 = vunpack.c.l.b16 %v2846
      %v2882 = vunpack.c.l.b16 %v2849
      %v2883 = vpack.c.b16 %v2852, %v2851
      %v2884 = vpack.c.b16 %v2854, %v2853
      %v2885 = vpack.c.b16 %v2856, %v2855
      %v2886 = vpack.c.b16 %v2858, %v2857
      %v2887 = vpack.c.b16 %v2860, %v2859
      %v2888 = vpack.c.b16 %v2862, %v2861
      %v2889 = vpack.c.b16 %v2864, %v2863
      %v2890 = vpack.c.b16 %v2866, %v2865
      %v2891 = vpack.c.b16 %v2868, %v2867
      %v2892 = vpack.c.b16 %v2870, %v2869
      %v2893 = vpack.c.b16 %v2872, %v2871
      %v2894 = vpack.c.b16 %v2874, %v2873
      %v2895 = vpack.c.b16 %v2876, %v2875
      %v2896 = vpack.c.b16 %v2878, %v2877
      %v2897 = vpack.c.b16 %v2880, %v2879
      %v2898 = vpack.c.b16 %v2882, %v2881
      %v2900 = vsel %vm988, %v2883, 0
      %v2903 = vsel %vm988, %v2884, 0
      %v2906 = vsel %vm988, %v2885, 0
      %v2909 = vsel %vm988, %v2886, 0
      %v2912 = vsel %vm988, %v2887, 0
      %v2915 = vsel %vm988, %v2888, 0
      %v2918 = vsel %vm988, %v2889, 0
      %v2921 = vsel %vm988, %v2890, 0
      %v2924 = vsel %vm988, %v2891, 0
      %v2927 = vsel %vm988, %v2892, 0
      %v2930 = vsel %vm988, %v2893, 0
      %v2933 = vsel %vm988, %v2894, 0
      %v2936 = vsel %vm988, %v2895, 0
      %v2939 = vsel %vm988, %v2896, 0
      %v2942 = vsel %vm988, %v2897, 0
      %v2945 = vsel %vm988, %v2898, 0
      %v2948 = vsel %vm1037, %v2850, 0
      %2950 = vmatpush.bf16.msra.mxu0 0
      %2951 = vmatpush.bf16.msra.mxu0 0
      %2952 = vmatpush.bf16.msra.mxu0 0
      %2953 = vmatpush.bf16.msra.mxu0 0
      %2954 = vmatpush.bf16.msra.mxu0 0
      %2955 = vmatpush.bf16.msra.mxu0 0
      %2956 = vmatpush.bf16.msra.mxu0 0
      %2957 = vmatpush.bf16.msra.mxu0 %v2948
      %2958 = vmatmul.bf16.gmra.mxu0 %v2900
      %v2959 = vpop.f32.mrf.mxu0
      %v2960 = vadd.f32 0.0, %v2959
      %v2961 = vpop.f32.mrf.mxu0
      %v2962 = vadd.f32 0.0, %v2961
      %2963 = vmatmul.bf16.gmra.mxu0 %v2903
      %v2964 = vpop.f32.mrf.mxu0
      %v2965 = vadd.f32 0.0, %v2964
      %v2966 = vpop.f32.mrf.mxu0
      %v2967 = vadd.f32 0.0, %v2966
      %2968 = vmatmul.bf16.gmra.mxu0 %v2906
      %v2969 = vpop.f32.mrf.mxu0
      %v2970 = vadd.f32 0.0, %v2969
      %v2971 = vpop.f32.mrf.mxu0
      %v2972 = vadd.f32 0.0, %v2971
      %2973 = vmatmul.bf16.gmra.mxu0 %v2909
      %v2974 = vpop.f32.mrf.mxu0
      %v2975 = vadd.f32 0.0, %v2974
      %v2976 = vpop.f32.mrf.mxu0
      %v2977 = vadd.f32 0.0, %v2976
      %2978 = vmatmul.bf16.gmra.mxu0 %v2912
      %v2979 = vpop.f32.mrf.mxu0
      %v2980 = vadd.f32 0.0, %v2979
      %v2981 = vpop.f32.mrf.mxu0
      %v2982 = vadd.f32 0.0, %v2981
      %2983 = vmatmul.bf16.gmra.mxu0 %v2915
      %v2984 = vpop.f32.mrf.mxu0
      %v2985 = vadd.f32 0.0, %v2984
      %v2986 = vpop.f32.mrf.mxu0
      %v2987 = vadd.f32 0.0, %v2986
      %2988 = vmatmul.bf16.gmra.mxu0 %v2918
      %v2989 = vpop.f32.mrf.mxu0
      %v2990 = vadd.f32 0.0, %v2989
      %v2991 = vpop.f32.mrf.mxu0
      %v2992 = vadd.f32 0.0, %v2991
      %2993 = vmatmul.bf16.gmra.mxu0 %v2921
      %v2994 = vpop.f32.mrf.mxu0
      %v2995 = vadd.f32 0.0, %v2994
      %v2996 = vpop.f32.mrf.mxu0
      %v2997 = vadd.f32 0.0, %v2996
      %2998 = vmatmul.bf16.gmra.mxu0 %v2924
      %v2999 = vpop.f32.mrf.mxu0
      %v3000 = vadd.f32 0.0, %v2999
      %v3001 = vpop.f32.mrf.mxu0
      %v3002 = vadd.f32 0.0, %v3001
      %3003 = vmatmul.bf16.gmra.mxu0 %v2927
      %v3004 = vpop.f32.mrf.mxu0
      %v3005 = vadd.f32 0.0, %v3004
      %v3006 = vpop.f32.mrf.mxu0
      %v3007 = vadd.f32 0.0, %v3006
      %3008 = vmatmul.bf16.gmra.mxu0 %v2930
      %v3009 = vpop.f32.mrf.mxu0
      %v3010 = vadd.f32 0.0, %v3009
      %v3011 = vpop.f32.mrf.mxu0
      %v3012 = vadd.f32 0.0, %v3011
      %3013 = vmatmul.bf16.gmra.mxu0 %v2933
      %v3014 = vpop.f32.mrf.mxu0
      %v3015 = vadd.f32 0.0, %v3014
      %v3016 = vpop.f32.mrf.mxu0
      %v3017 = vadd.f32 0.0, %v3016
      %3018 = vmatmul.bf16.gmra.mxu0 %v2936
      %v3019 = vpop.f32.mrf.mxu0
      %v3020 = vadd.f32 0.0, %v3019
      %v3021 = vpop.f32.mrf.mxu0
      %v3022 = vadd.f32 0.0, %v3021
      %3023 = vmatmul.bf16.gmra.mxu0 %v2939
      %v3024 = vpop.f32.mrf.mxu0
      %v3025 = vadd.f32 0.0, %v3024
      %v3026 = vpop.f32.mrf.mxu0
      %v3027 = vadd.f32 0.0, %v3026
      %3028 = vmatmul.bf16.gmra.mxu0 %v2942
      %v3029 = vpop.f32.mrf.mxu0
      %v3030 = vadd.f32 0.0, %v3029
      %v3031 = vpop.f32.mrf.mxu0
      %v3032 = vadd.f32 0.0, %v3031
      %3033 = vmatmul.bf16.gmra.mxu0 %v2945
      %v3034 = vpop.f32.mrf.mxu0
      %v3035 = vadd.f32 0.0, %v3034
      %v3036 = vpop.f32.mrf.mxu0
      %v3037 = vadd.f32 0.0, %v3036
      %3038 = vdwg.mxu0
      %v3039 = vadd.f32 %v2642, %v2960
      %v3040 = vadd.f32 %v2643, %v2962
      %v3041 = vadd.f32 %v2644, %v2965
      %v3042 = vadd.f32 %v2645, %v2967
      %v3043 = vadd.f32 %v2646, %v2970
      %v3044 = vadd.f32 %v2647, %v2972
      %v3045 = vadd.f32 %v2648, %v2975
      %v3046 = vadd.f32 %v2649, %v2977
      %v3047 = vadd.f32 %v2650, %v2980
      %v3048 = vadd.f32 %v2651, %v2982
      %v3049 = vadd.f32 %v2652, %v2985
      %v3050 = vadd.f32 %v2653, %v2987
      %v3051 = vadd.f32 %v2654, %v2990
      %v3052 = vadd.f32 %v2655, %v2992
      %v3053 = vadd.f32 %v2656, %v2995
      %v3054 = vadd.f32 %v2657, %v2997
      %v3055 = vadd.f32 %v2658, %v3000
      %v3056 = vadd.f32 %v2659, %v3002
      %v3057 = vadd.f32 %v2660, %v3005
      %v3058 = vadd.f32 %v2661, %v3007
      %v3059 = vadd.f32 %v2662, %v3010
      %v3060 = vadd.f32 %v2663, %v3012
      %v3061 = vadd.f32 %v2664, %v3015
      %v3062 = vadd.f32 %v2665, %v3017
      %v3063 = vadd.f32 %v2666, %v3020
      %v3064 = vadd.f32 %v2667, %v3022
      %v3065 = vadd.f32 %v2668, %v3025
      %v3066 = vadd.f32 %v2669, %v3027
      %v3067 = vadd.f32 %v2670, %v3030
      %v3068 = vadd.f32 %v2671, %v3032
      %v3069 = vadd.f32 %v2672, %v3035
      %v3070 = vadd.f32 %v2673, %v3037
      %s3071 = scalar_lea.vmem [#allocation2], 24
      %v3072 = vld [vmem:[%s3071] sm:$0xf]
      %v3073 = vld [vmem:[%s3071 + $0x4] sm:$0xf]
      %v3074 = vld [vmem:[%s3071 + $0xc] sm:$0xf]
      %v3075 = vld [vmem:[%s3071 + $0x10] sm:$0xf]
      %v3076 = vld [vmem:[%s3071 + $0x18] sm:$0xf]
      %v3077 = vld [vmem:[%s3071 + $0x1c] sm:$0xf]
      %v3078 = vld [vmem:[%s3071 + $0x24] sm:$0xf]
      %v3079 = vld [vmem:[%s3071 + $0x28] sm:$0xf]
      %v3080 = vld [vmem:[%s3071 + $0x30] sm:$0xf]
      %v3081 = vld [vmem:[%s3071 + $0x34] sm:$0xf]
      %v3082 = vld [vmem:[%s3071 + $0x3c] sm:$0xf]
      %v3083 = vld [vmem:[%s3071 + $0x40] sm:$0xf]
      %v3084 = vld [vmem:[%s3071 + $0x48] sm:$0xf]
      %v3085 = vld [vmem:[%s3071 + $0x4c] sm:$0xf]
      %v3086 = vld [vmem:[%s3071 + $0x54] sm:$0xf]
      %v3087 = vld [vmem:[%s3071 + $0x58] sm:$0xf]
      %v3088 = vld [vmem:[%s3071 + $0x60] sm:$0xf]
      %v3089 = vld [vmem:[%s3071 + $0x64] sm:$0xf]
      %v3090 = vld [vmem:[%s3071 + $0x6c] sm:$0xf]
      %v3091 = vld [vmem:[%s3071 + $0x70] sm:$0xf]
      %v3092 = vld [vmem:[%s3071 + $0x78] sm:$0xf]
      %v3093 = vld [vmem:[%s3071 + $0x7c] sm:$0xf]
      %v3094 = vld [vmem:[%s3071 + $0x84] sm:$0xf]
      %v3095 = vld [vmem:[%s3071 + $0x88] sm:$0xf]
      %v3096 = vld [vmem:[%s3071 + $0x90] sm:$0xf]
      %v3097 = vld [vmem:[%s3071 + $0x94] sm:$0xf]
      %v3098 = vld [vmem:[%s3071 + $0x9c] sm:$0xf]
      %v3099 = vld [vmem:[%s3071 + $0xa0] sm:$0xf]
      %v3100 = vld [vmem:[%s3071 + $0xa8] sm:$0xf]
      %v3101 = vld [vmem:[%s3071 + $0xac] sm:$0xf]
      %v3102 = vld [vmem:[%s3071 + $0xb4] sm:$0xf]
      %v3103 = vld [vmem:[%s3071 + $0xb8] sm:$0xf]
      %s3104 = scalar_lea.vmem %s3, 24
      %v3105 = vld [vmem:[%s3104] sm:$0xf]
      %v3138 = vunpack.c.l.b16 %v3072
      %v3139 = vunpack.c.l.b16 %v3073
      %v3140 = vunpack.c.l.b16 %v3074
      %v3141 = vunpack.c.l.b16 %v3075
      %v3142 = vunpack.c.l.b16 %v3076
      %v3143 = vunpack.c.l.b16 %v3077
      %v3144 = vunpack.c.l.b16 %v3078
      %v3145 = vunpack.c.l.b16 %v3079
      %v3146 = vunpack.c.l.b16 %v3080
      %v3147 = vunpack.c.l.b16 %v3081
      %v3148 = vunpack.c.l.b16 %v3082
      %v3149 = vunpack.c.l.b16 %v3083
      %v3150 = vunpack.c.l.b16 %v3084
      %v3151 = vunpack.c.l.b16 %v3085
      %v3152 = vunpack.c.l.b16 %v3086
      %v3153 = vunpack.c.l.b16 %v3087
      %v3154 = vunpack.c.l.b16 %v3088
      %v3155 = vunpack.c.l.b16 %v3089
      %v3156 = vunpack.c.l.b16 %v3090
      %v3157 = vunpack.c.l.b16 %v3091
      %v3158 = vunpack.c.l.b16 %v3092
      %v3159 = vunpack.c.l.b16 %v3093
      %v3160 = vunpack.c.l.b16 %v3094
      %v3161 = vunpack.c.l.b16 %v3095
      %v3162 = vunpack.c.l.b16 %v3096
      %v3163 = vunpack.c.l.b16 %v3097
      %v3164 = vunpack.c.l.b16 %v3098
      %v3165 = vunpack.c.l.b16 %v3099
      %v3166 = vunpack.c.l.b16 %v3100
      %v3167 = vunpack.c.l.b16 %v3101
      %v3168 = vunpack.c.l.b16 %v3102
      %v3169 = vunpack.c.l.b16 %v3103
      %v3170 = vpack.c.b16 %v3139, %v3138
      %v3171 = vpack.c.b16 %v3141, %v3140
      %v3172 = vpack.c.b16 %v3143, %v3142
      %v3173 = vpack.c.b16 %v3145, %v3144
      %v3174 = vpack.c.b16 %v3147, %v3146
      %v3175 = vpack.c.b16 %v3149, %v3148
      %v3176 = vpack.c.b16 %v3151, %v3150
      %v3177 = vpack.c.b16 %v3153, %v3152
      %v3178 = vpack.c.b16 %v3155, %v3154
      %v3179 = vpack.c.b16 %v3157, %v3156
      %v3180 = vpack.c.b16 %v3159, %v3158
      %v3181 = vpack.c.b16 %v3161, %v3160
      %v3182 = vpack.c.b16 %v3163, %v3162
      %v3183 = vpack.c.b16 %v3165, %v3164
      %v3184 = vpack.c.b16 %v3167, %v3166
      %v3185 = vpack.c.b16 %v3169, %v3168
      %v3187 = vsel %vm988, %v3170, 0
      %v3190 = vsel %vm988, %v3171, 0
      %v3193 = vsel %vm988, %v3172, 0
      %v3196 = vsel %vm988, %v3173, 0
      %v3199 = vsel %vm988, %v3174, 0
      %v3202 = vsel %vm988, %v3175, 0
      %v3205 = vsel %vm988, %v3176, 0
      %v3208 = vsel %vm988, %v3177, 0
      %v3211 = vsel %vm988, %v3178, 0
      %v3214 = vsel %vm988, %v3179, 0
      %v3217 = vsel %vm988, %v3180, 0
      %v3220 = vsel %vm988, %v3181, 0
      %v3223 = vsel %vm988, %v3182, 0
      %v3226 = vsel %vm988, %v3183, 0
      %v3229 = vsel %vm988, %v3184, 0
      %v3232 = vsel %vm988, %v3185, 0
      %v3235 = vsel %vm1037, %v3105, 0
      %3237 = vmatpush.bf16.msra.mxu0 0
      %3238 = vmatpush.bf16.msra.mxu0 0
      %3239 = vmatpush.bf16.msra.mxu0 0
      %3240 = vmatpush.bf16.msra.mxu0 0
      %3241 = vmatpush.bf16.msra.mxu0 0
      %3242 = vmatpush.bf16.msra.mxu0 0
      %3243 = vmatpush.bf16.msra.mxu0 0
      %3244 = vmatpush.bf16.msra.mxu0 %v3235
      %3245 = vmatmul.bf16.gmra.mxu0 %v3187
      %v3246 = vpop.f32.mrf.mxu0
      %v3247 = vadd.f32 0.0, %v3246
      %v3248 = vpop.f32.mrf.mxu0
      %v3249 = vadd.f32 0.0, %v3248
      %3250 = vmatmul.bf16.gmra.mxu0 %v3190
      %v3251 = vpop.f32.mrf.mxu0
      %v3252 = vadd.f32 0.0, %v3251
      %v3253 = vpop.f32.mrf.mxu0
      %v3254 = vadd.f32 0.0, %v3253
      %3255 = vmatmul.bf16.gmra.mxu0 %v3193
      %v3256 = vpop.f32.mrf.mxu0
      %v3257 = vadd.f32 0.0, %v3256
      %v3258 = vpop.f32.mrf.mxu0
      %v3259 = vadd.f32 0.0, %v3258
      %3260 = vmatmul.bf16.gmra.mxu0 %v3196
      %v3261 = vpop.f32.mrf.mxu0
      %v3262 = vadd.f32 0.0, %v3261
      %v3263 = vpop.f32.mrf.mxu0
      %v3264 = vadd.f32 0.0, %v3263
      %3265 = vmatmul.bf16.gmra.mxu0 %v3199
      %v3266 = vpop.f32.mrf.mxu0
      %v3267 = vadd.f32 0.0, %v3266
      %v3268 = vpop.f32.mrf.mxu0
      %v3269 = vadd.f32 0.0, %v3268
      %3270 = vmatmul.bf16.gmra.mxu0 %v3202
      %v3271 = vpop.f32.mrf.mxu0
      %v3272 = vadd.f32 0.0, %v3271
      %v3273 = vpop.f32.mrf.mxu0
      %v3274 = vadd.f32 0.0, %v3273
      %3275 = vmatmul.bf16.gmra.mxu0 %v3205
      %v3276 = vpop.f32.mrf.mxu0
      %v3277 = vadd.f32 0.0, %v3276
      %v3278 = vpop.f32.mrf.mxu0
      %v3279 = vadd.f32 0.0, %v3278
      %3280 = vmatmul.bf16.gmra.mxu0 %v3208
      %v3281 = vpop.f32.mrf.mxu0
      %v3282 = vadd.f32 0.0, %v3281
      %v3283 = vpop.f32.mrf.mxu0
      %v3284 = vadd.f32 0.0, %v3283
      %3285 = vmatmul.bf16.gmra.mxu0 %v3211
      %v3286 = vpop.f32.mrf.mxu0
      %v3287 = vadd.f32 0.0, %v3286
      %v3288 = vpop.f32.mrf.mxu0
      %v3289 = vadd.f32 0.0, %v3288
      %3290 = vmatmul.bf16.gmra.mxu0 %v3214
      %v3291 = vpop.f32.mrf.mxu0
      %v3292 = vadd.f32 0.0, %v3291
      %v3293 = vpop.f32.mrf.mxu0
      %v3294 = vadd.f32 0.0, %v3293
      %3295 = vmatmul.bf16.gmra.mxu0 %v3217
      %v3296 = vpop.f32.mrf.mxu0
      %v3297 = vadd.f32 0.0, %v3296
      %v3298 = vpop.f32.mrf.mxu0
      %v3299 = vadd.f32 0.0, %v3298
      %3300 = vmatmul.bf16.gmra.mxu0 %v3220
      %v3301 = vpop.f32.mrf.mxu0
      %v3302 = vadd.f32 0.0, %v3301
      %v3303 = vpop.f32.mrf.mxu0
      %v3304 = vadd.f32 0.0, %v3303
      %3305 = vmatmul.bf16.gmra.mxu0 %v3223
      %v3306 = vpop.f32.mrf.mxu0
      %v3307 = vadd.f32 0.0, %v3306
      %v3308 = vpop.f32.mrf.mxu0
      %v3309 = vadd.f32 0.0, %v3308
      %3310 = vmatmul.bf16.gmra.mxu0 %v3226
      %v3311 = vpop.f32.mrf.mxu0
      %v3312 = vadd.f32 0.0, %v3311
      %v3313 = vpop.f32.mrf.mxu0
      %v3314 = vadd.f32 0.0, %v3313
      %3315 = vmatmul.bf16.gmra.mxu0 %v3229
      %v3316 = vpop.f32.mrf.mxu0
      %v3317 = vadd.f32 0.0, %v3316
      %v3318 = vpop.f32.mrf.mxu0
      %v3319 = vadd.f32 0.0, %v3318
      %3320 = vmatmul.bf16.gmra.mxu0 %v3232
      %v3321 = vpop.f32.mrf.mxu0
      %v3322 = vadd.f32 0.0, %v3321
      %v3323 = vpop.f32.mrf.mxu0
      %v3324 = vadd.f32 0.0, %v3323
      %3325 = vdwg.mxu0
      %v3326 = vadd.f32 %v3039, %v3247
      %v3327 = vadd.f32 %v3040, %v3249
      %v3328 = vadd.f32 %v3041, %v3252
      %v3329 = vadd.f32 %v3042, %v3254
      %v3330 = vadd.f32 %v3043, %v3257
      %v3331 = vadd.f32 %v3044, %v3259
      %v3332 = vadd.f32 %v3045, %v3262
      %v3333 = vadd.f32 %v3046, %v3264
      %v3334 = vadd.f32 %v3047, %v3267
      %v3335 = vadd.f32 %v3048, %v3269
      %v3336 = vadd.f32 %v3049, %v3272
      %v3337 = vadd.f32 %v3050, %v3274
      %v3338 = vadd.f32 %v3051, %v3277
      %v3339 = vadd.f32 %v3052, %v3279
      %v3340 = vadd.f32 %v3053, %v3282
      %v3341 = vadd.f32 %v3054, %v3284
      %v3342 = vadd.f32 %v3055, %v3287
      %v3343 = vadd.f32 %v3056, %v3289
      %v3344 = vadd.f32 %v3057, %v3292
      %v3345 = vadd.f32 %v3058, %v3294
      %v3346 = vadd.f32 %v3059, %v3297
      %v3347 = vadd.f32 %v3060, %v3299
      %v3348 = vadd.f32 %v3061, %v3302
      %v3349 = vadd.f32 %v3062, %v3304
      %v3350 = vadd.f32 %v3063, %v3307
      %v3351 = vadd.f32 %v3064, %v3309
      %v3352 = vadd.f32 %v3065, %v3312
      %v3353 = vadd.f32 %v3066, %v3314
      %v3354 = vadd.f32 %v3067, %v3317
      %v3355 = vadd.f32 %v3068, %v3319
      %v3356 = vadd.f32 %v3069, %v3322
      %v3357 = vadd.f32 %v3070, %v3324
      %v3358 = vld [vmem:[%s3071] sm:$0xf]
      %v3359 = vld [vmem:[%s3071 + $0x4] sm:$0xf]
      %v3360 = vld [vmem:[%s3071 + $0x8] sm:$0x1]
      %v3361 = vld [vmem:[%s3071 + $0xc] sm:$0xf]
      %v3362 = vld [vmem:[%s3071 + $0x10] sm:$0xf]
      %v3363 = vld [vmem:[%s3071 + $0x14] sm:$0x1]
      %v3364 = vld [vmem:[%s3071 + $0x18] sm:$0xf]
      %v3365 = vld [vmem:[%s3071 + $0x1c] sm:$0xf]
      %v3366 = vld [vmem:[%s3071 + $0x20] sm:$0x1]
      %v3367 = vld [vmem:[%s3071 + $0x24] sm:$0xf]
      %v3368 = vld [vmem:[%s3071 + $0x28] sm:$0xf]
      %v3369 = vld [vmem:[%s3071 + $0x2c] sm:$0x1]
      %v3370 = vld [vmem:[%s3071 + $0x30] sm:$0xf]
      %v3371 = vld [vmem:[%s3071 + $0x34] sm:$0xf]
      %v3372 = vld [vmem:[%s3071 + $0x38] sm:$0x1]
      %v3373 = vld [vmem:[%s3071 + $0x3c] sm:$0xf]
      %v3374 = vld [vmem:[%s3071 + $0x40] sm:$0xf]
      %v3375 = vld [vmem:[%s3071 + $0x44] sm:$0x1]
      %v3376 = vld [vmem:[%s3071 + $0x48] sm:$0xf]
      %v3377 = vld [vmem:[%s3071 + $0x4c] sm:$0xf]
      %v3378 = vld [vmem:[%s3071 + $0x50] sm:$0x1]
      %v3379 = vld [vmem:[%s3071 + $0x54] sm:$0xf]
      %v3380 = vld [vmem:[%s3071 + $0x58] sm:$0xf]
      %v3381 = vld [vmem:[%s3071 + $0x5c] sm:$0x1]
      %v3382 = vld [vmem:[%s3071 + $0x60] sm:$0xf]
      %v3383 = vld [vmem:[%s3071 + $0x64] sm:$0xf]
      %v3384 = vld [vmem:[%s3071 + $0x68] sm:$0x1]
      %v3385 = vld [vmem:[%s3071 + $0x6c] sm:$0xf]
      %v3386 = vld [vmem:[%s3071 + $0x70] sm:$0xf]
      %v3387 = vld [vmem:[%s3071 + $0x74] sm:$0x1]
      %v3388 = vld [vmem:[%s3071 + $0x78] sm:$0xf]
      %v3389 = vld [vmem:[%s3071 + $0x7c] sm:$0xf]
      %v3390 = vld [vmem:[%s3071 + $0x80] sm:$0x1]
      %v3391 = vld [vmem:[%s3071 + $0x84] sm:$0xf]
      %v3392 = vld [vmem:[%s3071 + $0x88] sm:$0xf]
      %v3393 = vld [vmem:[%s3071 + $0x8c] sm:$0x1]
      %v3394 = vld [vmem:[%s3071 + $0x90] sm:$0xf]
      %v3395 = vld [vmem:[%s3071 + $0x94] sm:$0xf]
      %v3396 = vld [vmem:[%s3071 + $0x98] sm:$0x1]
      %v3397 = vld [vmem:[%s3071 + $0x9c] sm:$0xf]
      %v3398 = vld [vmem:[%s3071 + $0xa0] sm:$0xf]
      %v3399 = vld [vmem:[%s3071 + $0xa4] sm:$0x1]
      %v3400 = vld [vmem:[%s3071 + $0xa8] sm:$0xf]
      %v3401 = vld [vmem:[%s3071 + $0xac] sm:$0xf]
      %v3402 = vld [vmem:[%s3071 + $0xb0] sm:$0x1]
      %v3403 = vld [vmem:[%s3071 + $0xb4] sm:$0xf]
      %v3404 = vld [vmem:[%s3071 + $0xb8] sm:$0xf]
      %v3405 = vld [vmem:[%s3071 + $0xbc] sm:$0x1]
      %v3407 = vshrl.u32 %v3358, 16
      %v3409 = vrot.slane %v3407, 4
      %v3410 = vshll.u32 %v3358, 16
      %v3412 = vrot.slane %v3410, 5
      %v3413 = vor.u32 %v3409, %v3412
      %v3414 = vrot.slane %v3413, 4
      %v3416 = vshll.u32 %v3359, 16
      %v3418 = vrot.slane %v3416, 5
      %v3419 = vsel %vm554, %v3414, %v3418
      %v3420 = vshrl.u32 %v3359, 16
      %v3422 = vrot.slane %v3420, 4
      %v3423 = vor.u32 %v3422, %v3418
      %v3424 = vrot.slane %v3423, 4
      %v3426 = vshll.u32 %v3360, 16
      %v3428 = vrot.slane %v3426, 5
      %v3429 = vsel %vm554, %v3424, %v3428
      %v3431 = vshrl.u32 %v3361, 16
      %v3433 = vrot.slane %v3431, 4
      %v3434 = vshll.u32 %v3361, 16
      %v3436 = vrot.slane %v3434, 5
      %v3437 = vor.u32 %v3433, %v3436
      %v3438 = vrot.slane %v3437, 4
      %v3440 = vshll.u32 %v3362, 16
      %v3442 = vrot.slane %v3440, 5
      %v3443 = vsel %vm554, %v3438, %v3442
      %v3444 = vshrl.u32 %v3362, 16
      %v3446 = vrot.slane %v3444, 4
      %v3447 = vor.u32 %v3446, %v3442
      %v3448 = vrot.slane %v3447, 4
      %v3450 = vshll.u32 %v3363, 16
      %v3452 = vrot.slane %v3450, 5
      %v3453 = vsel %vm554, %v3448, %v3452
      %v3455 = vshrl.u32 %v3364, 16
      %v3457 = vrot.slane %v3455, 4
      %v3458 = vshll.u32 %v3364, 16
      %v3460 = vrot.slane %v3458, 5
      %v3461 = vor.u32 %v3457, %v3460
      %v3462 = vrot.slane %v3461, 4
      %v3464 = vshll.u32 %v3365, 16
      %v3466 = vrot.slane %v3464, 5
      %v3467 = vsel %vm554, %v3462, %v3466
      %v3468 = vshrl.u32 %v3365, 16
      %v3470 = vrot.slane %v3468, 4
      %v3471 = vor.u32 %v3470, %v3466
      %v3472 = vrot.slane %v3471, 4
      %v3474 = vshll.u32 %v3366, 16
      %v3476 = vrot.slane %v3474, 5
      %v3477 = vsel %vm554, %v3472, %v3476
      %v3479 = vshrl.u32 %v3367, 16
      %v3481 = vrot.slane %v3479, 4
      %v3482 = vshll.u32 %v3367, 16
      %v3484 = vrot.slane %v3482, 5
      %v3485 = vor.u32 %v3481, %v3484
      %v3486 = vrot.slane %v3485, 4
      %v3488 = vshll.u32 %v3368, 16
      %v3490 = vrot.slane %v3488, 5
      %v3491 = vsel %vm554, %v3486, %v3490
      %v3492 = vshrl.u32 %v3368, 16
      %v3494 = vrot.slane %v3492, 4
      %v3495 = vor.u32 %v3494, %v3490
      %v3496 = vrot.slane %v3495, 4
      %v3498 = vshll.u32 %v3369, 16
      %v3500 = vrot.slane %v3498, 5
      %v3501 = vsel %vm554, %v3496, %v3500
      %v3503 = vshrl.u32 %v3370, 16
      %v3505 = vrot.slane %v3503, 4
      %v3506 = vshll.u32 %v3370, 16
      %v3508 = vrot.slane %v3506, 5
      %v3509 = vor.u32 %v3505, %v3508
      %v3510 = vrot.slane %v3509, 4
      %v3512 = vshll.u32 %v3371, 16
      %v3514 = vrot.slane %v3512, 5
      %v3515 = vsel %vm554, %v3510, %v3514
      %v3516 = vshrl.u32 %v3371, 16
      %v3518 = vrot.slane %v3516, 4
      %v3519 = vor.u32 %v3518, %v3514
      %v3520 = vrot.slane %v3519, 4
      %v3522 = vshll.u32 %v3372, 16
      %v3524 = vrot.slane %v3522, 5
      %v3525 = vsel %vm554, %v3520, %v3524
      %v3527 = vshrl.u32 %v3373, 16
      %v3529 = vrot.slane %v3527, 4
      %v3530 = vshll.u32 %v3373, 16
      %v3532 = vrot.slane %v3530, 5
      %v3533 = vor.u32 %v3529, %v3532
      %v3534 = vrot.slane %v3533, 4
      %v3536 = vshll.u32 %v3374, 16
      %v3538 = vrot.slane %v3536, 5
      %v3539 = vsel %vm554, %v3534, %v3538
      %v3540 = vshrl.u32 %v3374, 16
      %v3542 = vrot.slane %v3540, 4
      %v3543 = vor.u32 %v3542, %v3538
      %v3544 = vrot.slane %v3543, 4
      %v3546 = vshll.u32 %v3375, 16
      %v3548 = vrot.slane %v3546, 5
      %v3549 = vsel %vm554, %v3544, %v3548
      %v3551 = vshrl.u32 %v3376, 16
      %v3553 = vrot.slane %v3551, 4
      %v3554 = vshll.u32 %v3376, 16
      %v3556 = vrot.slane %v3554, 5
      %v3557 = vor.u32 %v3553, %v3556
      %v3558 = vrot.slane %v3557, 4
      %v3560 = vshll.u32 %v3377, 16
      %v3562 = vrot.slane %v3560, 5
      %v3563 = vsel %vm554, %v3558, %v3562
      %v3564 = vshrl.u32 %v3377, 16
      %v3566 = vrot.slane %v3564, 4
      %v3567 = vor.u32 %v3566, %v3562
      %v3568 = vrot.slane %v3567, 4
      %v3570 = vshll.u32 %v3378, 16
      %v3572 = vrot.slane %v3570, 5
      %v3573 = vsel %vm554, %v3568, %v3572
      %v3575 = vshrl.u32 %v3379, 16
      %v3577 = vrot.slane %v3575, 4
      %v3578 = vshll.u32 %v3379, 16
      %v3580 = vrot.slane %v3578, 5
      %v3581 = vor.u32 %v3577, %v3580
      %v3582 = vrot.slane %v3581, 4
      %v3584 = vshll.u32 %v3380, 16
      %v3586 = vrot.slane %v3584, 5
      %v3587 = vsel %vm554, %v3582, %v3586
      %v3588 = vshrl.u32 %v3380, 16
      %v3590 = vrot.slane %v3588, 4
      %v3591 = vor.u32 %v3590, %v3586
      %v3592 = vrot.slane %v3591, 4
      %v3594 = vshll.u32 %v3381, 16
      %v3596 = vrot.slane %v3594, 5
      %v3597 = vsel %vm554, %v3592, %v3596
      %v3599 = vshrl.u32 %v3382, 16
      %v3601 = vrot.slane %v3599, 4
      %v3602 = vshll.u32 %v3382, 16
      %v3604 = vrot.slane %v3602, 5
      %v3605 = vor.u32 %v3601, %v3604
      %v3606 = vrot.slane %v3605, 4
      %v3608 = vshll.u32 %v3383, 16
      %v3610 = vrot.slane %v3608, 5
      %v3611 = vsel %vm554, %v3606, %v3610
      %v3612 = vshrl.u32 %v3383, 16
      %v3614 = vrot.slane %v3612, 4
      %v3615 = vor.u32 %v3614, %v3610
      %v3616 = vrot.slane %v3615, 4
      %v3618 = vshll.u32 %v3384, 16
      %v3620 = vrot.slane %v3618, 5
      %v3621 = vsel %vm554, %v3616, %v3620
      %v3623 = vshrl.u32 %v3385, 16
      %v3625 = vrot.slane %v3623, 4
      %v3626 = vshll.u32 %v3385, 16
      %v3628 = vrot.slane %v3626, 5
      %v3629 = vor.u32 %v3625, %v3628
      %v3630 = vrot.slane %v3629, 4
      %v3632 = vshll.u32 %v3386, 16
      %v3634 = vrot.slane %v3632, 5
      %v3635 = vsel %vm554, %v3630, %v3634
      %v3636 = vshrl.u32 %v3386, 16
      %v3638 = vrot.slane %v3636, 4
      %v3639 = vor.u32 %v3638, %v3634
      %v3640 = vrot.slane %v3639, 4
      %v3642 = vshll.u32 %v3387, 16
      %v3644 = vrot.slane %v3642, 5
      %v3645 = vsel %vm554, %v3640, %v3644
      %v3647 = vshrl.u32 %v3388, 16
      %v3649 = vrot.slane %v3647, 4
      %v3650 = vshll.u32 %v3388, 16
      %v3652 = vrot.slane %v3650, 5
      %v3653 = vor.u32 %v3649, %v3652
      %v3654 = vrot.slane %v3653, 4
      %v3656 = vshll.u32 %v3389, 16
      %v3658 = vrot.slane %v3656, 5
      %v3659 = vsel %vm554, %v3654, %v3658
      %v3660 = vshrl.u32 %v3389, 16
      %v3662 = vrot.slane %v3660, 4
      %v3663 = vor.u32 %v3662, %v3658
      %v3664 = vrot.slane %v3663, 4
      %v3666 = vshll.u32 %v3390, 16
      %v3668 = vrot.slane %v3666, 5
      %v3669 = vsel %vm554, %v3664, %v3668
      %v3671 = vshrl.u32 %v3391, 16
      %v3673 = vrot.slane %v3671, 4
      %v3674 = vshll.u32 %v3391, 16
      %v3676 = vrot.slane %v3674, 5
      %v3677 = vor.u32 %v3673, %v3676
      %v3678 = vrot.slane %v3677, 4
      %v3680 = vshll.u32 %v3392, 16
      %v3682 = vrot.slane %v3680, 5
      %v3683 = vsel %vm554, %v3678, %v3682
      %v3684 = vshrl.u32 %v3392, 16
      %v3686 = vrot.slane %v3684, 4
      %v3687 = vor.u32 %v3686, %v3682
      %v3688 = vrot.slane %v3687, 4
      %v3690 = vshll.u32 %v3393, 16
      %v3692 = vrot.slane %v3690, 5
      %v3693 = vsel %vm554, %v3688, %v3692
      %v3695 = vshrl.u32 %v3394, 16
      %v3697 = vrot.slane %v3695, 4
      %v3698 = vshll.u32 %v3394, 16
      %v3700 = vrot.slane %v3698, 5
      %v3701 = vor.u32 %v3697, %v3700
      %v3702 = vrot.slane %v3701, 4
      %v3704 = vshll.u32 %v3395, 16
      %v3706 = vrot.slane %v3704, 5
      %v3707 = vsel %vm554, %v3702, %v3706
      %v3708 = vshrl.u32 %v3395, 16
      %v3710 = vrot.slane %v3708, 4
      %v3711 = vor.u32 %v3710, %v3706
      %v3712 = vrot.slane %v3711, 4
      %v3714 = vshll.u32 %v3396, 16
      %v3716 = vrot.slane %v3714, 5
      %v3717 = vsel %vm554, %v3712, %v3716
      %v3719 = vshrl.u32 %v3397, 16
      %v3721 = vrot.slane %v3719, 4
      %v3722 = vshll.u32 %v3397, 16
      %v3724 = vrot.slane %v3722, 5
      %v3725 = vor.u32 %v3721, %v3724
      %v3726 = vrot.slane %v3725, 4
      %v3728 = vshll.u32 %v3398, 16
      %v3730 = vrot.slane %v3728, 5
      %v3731 = vsel %vm554, %v3726, %v3730
      %v3732 = vshrl.u32 %v3398, 16
      %v3734 = vrot.slane %v3732, 4
      %v3735 = vor.u32 %v3734, %v3730
      %v3736 = vrot.slane %v3735, 4
      %v3738 = vshll.u32 %v3399, 16
      %v3740 = vrot.slane %v3738, 5
      %v3741 = vsel %vm554, %v3736, %v3740
      %v3743 = vshrl.u32 %v3400, 16
      %v3745 = vrot.slane %v3743, 4
      %v3746 = vshll.u32 %v3400, 16
      %v3748 = vrot.slane %v3746, 5
      %v3749 = vor.u32 %v3745, %v3748
      %v3750 = vrot.slane %v3749, 4
      %v3752 = vshll.u32 %v3401, 16
      %v3754 = vrot.slane %v3752, 5
      %v3755 = vsel %vm554, %v3750, %v3754
      %v3756 = vshrl.u32 %v3401, 16
      %v3758 = vrot.slane %v3756, 4
      %v3759 = vor.u32 %v3758, %v3754
      %v3760 = vrot.slane %v3759, 4
      %v3762 = vshll.u32 %v3402, 16
      %v3764 = vrot.slane %v3762, 5
      %v3765 = vsel %vm554, %v3760, %v3764
      %v3767 = vshrl.u32 %v3403, 16
      %v3769 = vrot.slane %v3767, 4
      %v3770 = vshll.u32 %v3403, 16
      %v3772 = vrot.slane %v3770, 5
      %v3773 = vor.u32 %v3769, %v3772
      %v3774 = vrot.slane %v3773, 4
      %v3776 = vshll.u32 %v3404, 16
      %v3778 = vrot.slane %v3776, 5
      %v3779 = vsel %vm554, %v3774, %v3778
      %v3780 = vshrl.u32 %v3404, 16
      %v3782 = vrot.slane %v3780, 4
      %v3783 = vor.u32 %v3782, %v3778
      %v3784 = vrot.slane %v3783, 4
      %v3786 = vshll.u32 %v3405, 16
      %v3788 = vrot.slane %v3786, 5
      %v3789 = vsel %vm554, %v3784, %v3788
      %v3790 = vld [vmem:[%s3104 + $0x4] sm:$0xf]
      %v3791 = vunpack.c.l.b16 %v3419
      %v3792 = vunpack.c.l.b16 %v3429
      %v3793 = vunpack.c.l.b16 %v3443
      %v3794 = vunpack.c.l.b16 %v3453
      %v3795 = vunpack.c.l.b16 %v3467
      %v3796 = vunpack.c.l.b16 %v3477
      %v3797 = vunpack.c.l.b16 %v3491
      %v3798 = vunpack.c.l.b16 %v3501
      %v3799 = vunpack.c.l.b16 %v3515
      %v3800 = vunpack.c.l.b16 %v3525
      %v3801 = vunpack.c.l.b16 %v3539
      %v3802 = vunpack.c.l.b16 %v3549
      %v3803 = vunpack.c.l.b16 %v3563
      %v3804 = vunpack.c.l.b16 %v3573
      %v3805 = vunpack.c.l.b16 %v3587
      %v3806 = vunpack.c.l.b16 %v3597
      %v3807 = vunpack.c.l.b16 %v3611
      %v3808 = vunpack.c.l.b16 %v3621
      %v3809 = vunpack.c.l.b16 %v3635
      %v3810 = vunpack.c.l.b16 %v3645
      %v3811 = vunpack.c.l.b16 %v3659
      %v3812 = vunpack.c.l.b16 %v3669
      %v3813 = vunpack.c.l.b16 %v3683
      %v3814 = vunpack.c.l.b16 %v3693
      %v3815 = vunpack.c.l.b16 %v3707
      %v3816 = vunpack.c.l.b16 %v3717
      %v3817 = vunpack.c.l.b16 %v3731
      %v3818 = vunpack.c.l.b16 %v3741
      %v3819 = vunpack.c.l.b16 %v3755
      %v3820 = vunpack.c.l.b16 %v3765
      %v3821 = vunpack.c.l.b16 %v3779
      %v3822 = vunpack.c.l.b16 %v3789
      %v3823 = vpack.c.b16 %v3792, %v3791
      %v3824 = vpack.c.b16 %v3794, %v3793
      %v3825 = vpack.c.b16 %v3796, %v3795
      %v3826 = vpack.c.b16 %v3798, %v3797
      %v3827 = vpack.c.b16 %v3800, %v3799
      %v3828 = vpack.c.b16 %v3802, %v3801
      %v3829 = vpack.c.b16 %v3804, %v3803
      %v3830 = vpack.c.b16 %v3806, %v3805
      %v3831 = vpack.c.b16 %v3808, %v3807
      %v3832 = vpack.c.b16 %v3810, %v3809
      %v3833 = vpack.c.b16 %v3812, %v3811
      %v3834 = vpack.c.b16 %v3814, %v3813
      %v3835 = vpack.c.b16 %v3816, %v3815
      %v3836 = vpack.c.b16 %v3818, %v3817
      %v3837 = vpack.c.b16 %v3820, %v3819
      %v3838 = vpack.c.b16 %v3822, %v3821
      %v3840 = vsel %vm988, %v3823, 0
      %v3843 = vsel %vm988, %v3824, 0
      %v3846 = vsel %vm988, %v3825, 0
      %v3849 = vsel %vm988, %v3826, 0
      %v3852 = vsel %vm988, %v3827, 0
      %v3855 = vsel %vm988, %v3828, 0
      %v3858 = vsel %vm988, %v3829, 0
      %v3861 = vsel %vm988, %v3830, 0
      %v3864 = vsel %vm988, %v3831, 0
      %v3867 = vsel %vm988, %v3832, 0
      %v3870 = vsel %vm988, %v3833, 0
      %v3873 = vsel %vm988, %v3834, 0
      %v3876 = vsel %vm988, %v3835, 0
      %v3879 = vsel %vm988, %v3836, 0
      %v3882 = vsel %vm988, %v3837, 0
      %v3885 = vsel %vm988, %v3838, 0
      %v3888 = vsel %vm1037, %v3790, 0
      %3890 = vmatpush.bf16.msra.mxu0 0
      %3891 = vmatpush.bf16.msra.mxu0 0
      %3892 = vmatpush.bf16.msra.mxu0 0
      %3893 = vmatpush.bf16.msra.mxu0 0
      %3894 = vmatpush.bf16.msra.mxu0 0
      %3895 = vmatpush.bf16.msra.mxu0 0
      %3896 = vmatpush.bf16.msra.mxu0 0
      %3897 = vmatpush.bf16.msra.mxu0 %v3888
      %3898 = vmatmul.bf16.gmra.mxu0 %v3840
      %v3899 = vpop.f32.mrf.mxu0
      %v3900 = vadd.f32 0.0, %v3899
      %v3901 = vpop.f32.mrf.mxu0
      %v3902 = vadd.f32 0.0, %v3901
      %3903 = vmatmul.bf16.gmra.mxu0 %v3843
      %v3904 = vpop.f32.mrf.mxu0
      %v3905 = vadd.f32 0.0, %v3904
      %v3906 = vpop.f32.mrf.mxu0
      %v3907 = vadd.f32 0.0, %v3906
      %3908 = vmatmul.bf16.gmra.mxu0 %v3846
      %v3909 = vpop.f32.mrf.mxu0
      %v3910 = vadd.f32 0.0, %v3909
      %v3911 = vpop.f32.mrf.mxu0
      %v3912 = vadd.f32 0.0, %v3911
      %3913 = vmatmul.bf16.gmra.mxu0 %v3849
      %v3914 = vpop.f32.mrf.mxu0
      %v3915 = vadd.f32 0.0, %v3914
      %v3916 = vpop.f32.mrf.mxu0
      %v3917 = vadd.f32 0.0, %v3916
      %3918 = vmatmul.bf16.gmra.mxu0 %v3852
      %v3919 = vpop.f32.mrf.mxu0
      %v3920 = vadd.f32 0.0, %v3919
      %v3921 = vpop.f32.mrf.mxu0
      %v3922 = vadd.f32 0.0, %v3921
      %3923 = vmatmul.bf16.gmra.mxu0 %v3855
      %v3924 = vpop.f32.mrf.mxu0
      %v3925 = vadd.f32 0.0, %v3924
      %v3926 = vpop.f32.mrf.mxu0
      %v3927 = vadd.f32 0.0, %v3926
      %3928 = vmatmul.bf16.gmra.mxu0 %v3858
      %v3929 = vpop.f32.mrf.mxu0
      %v3930 = vadd.f32 0.0, %v3929
      %v3931 = vpop.f32.mrf.mxu0
      %v3932 = vadd.f32 0.0, %v3931
      %3933 = vmatmul.bf16.gmra.mxu0 %v3861
      %v3934 = vpop.f32.mrf.mxu0
      %v3935 = vadd.f32 0.0, %v3934
      %v3936 = vpop.f32.mrf.mxu0
      %v3937 = vadd.f32 0.0, %v3936
      %3938 = vmatmul.bf16.gmra.mxu0 %v3864
      %v3939 = vpop.f32.mrf.mxu0
      %v3940 = vadd.f32 0.0, %v3939
      %v3941 = vpop.f32.mrf.mxu0
      %v3942 = vadd.f32 0.0, %v3941
      %3943 = vmatmul.bf16.gmra.mxu0 %v3867
      %v3944 = vpop.f32.mrf.mxu0
      %v3945 = vadd.f32 0.0, %v3944
      %v3946 = vpop.f32.mrf.mxu0
      %v3947 = vadd.f32 0.0, %v3946
      %3948 = vmatmul.bf16.gmra.mxu0 %v3870
      %v3949 = vpop.f32.mrf.mxu0
      %v3950 = vadd.f32 0.0, %v3949
      %v3951 = vpop.f32.mrf.mxu0
      %v3952 = vadd.f32 0.0, %v3951
      %3953 = vmatmul.bf16.gmra.mxu0 %v3873
      %v3954 = vpop.f32.mrf.mxu0
      %v3955 = vadd.f32 0.0, %v3954
      %v3956 = vpop.f32.mrf.mxu0
      %v3957 = vadd.f32 0.0, %v3956
      %3958 = vmatmul.bf16.gmra.mxu0 %v3876
      %v3959 = vpop.f32.mrf.mxu0
      %v3960 = vadd.f32 0.0, %v3959
      %v3961 = vpop.f32.mrf.mxu0
      %v3962 = vadd.f32 0.0, %v3961
      %3963 = vmatmul.bf16.gmra.mxu0 %v3879
      %v3964 = vpop.f32.mrf.mxu0
      %v3965 = vadd.f32 0.0, %v3964
      %v3966 = vpop.f32.mrf.mxu0
      %v3967 = vadd.f32 0.0, %v3966
      %3968 = vmatmul.bf16.gmra.mxu0 %v3882
      %v3969 = vpop.f32.mrf.mxu0
      %v3970 = vadd.f32 0.0, %v3969
      %v3971 = vpop.f32.mrf.mxu0
      %v3972 = vadd.f32 0.0, %v3971
      %3973 = vmatmul.bf16.gmra.mxu0 %v3885
      %v3974 = vpop.f32.mrf.mxu0
      %v3975 = vadd.f32 0.0, %v3974
      %v3976 = vpop.f32.mrf.mxu0
      %v3977 = vadd.f32 0.0, %v3976
      %3978 = vdwg.mxu0
      %v3979 = vadd.f32 %v3326, %v3900
      %v3980 = vadd.f32 %v3327, %v3902
      %v3981 = vadd.f32 %v3328, %v3905
      %v3982 = vadd.f32 %v3329, %v3907
      %v3983 = vadd.f32 %v3330, %v3910
      %v3984 = vadd.f32 %v3331, %v3912
      %v3985 = vadd.f32 %v3332, %v3915
      %v3986 = vadd.f32 %v3333, %v3917
      %v3987 = vadd.f32 %v3334, %v3920
      %v3988 = vadd.f32 %v3335, %v3922
      %v3989 = vadd.f32 %v3336, %v3925
      %v3990 = vadd.f32 %v3337, %v3927
      %v3991 = vadd.f32 %v3338, %v3930
      %v3992 = vadd.f32 %v3339, %v3932
      %v3993 = vadd.f32 %v3340, %v3935
      %v3994 = vadd.f32 %v3341, %v3937
      %v3995 = vadd.f32 %v3342, %v3940
      %v3996 = vadd.f32 %v3343, %v3942
      %v3997 = vadd.f32 %v3344, %v3945
      %v3998 = vadd.f32 %v3345, %v3947
      %v3999 = vadd.f32 %v3346, %v3950
      %v4000 = vadd.f32 %v3347, %v3952
      %v4001 = vadd.f32 %v3348, %v3955
      %v4002 = vadd.f32 %v3349, %v3957
      %v4003 = vadd.f32 %v3350, %v3960
      %v4004 = vadd.f32 %v3351, %v3962
      %v4005 = vadd.f32 %v3352, %v3965
      %v4006 = vadd.f32 %v3353, %v3967
      %v4007 = vadd.f32 %v3354, %v3970
      %v4008 = vadd.f32 %v3355, %v3972
      %v4009 = vadd.f32 %v3356, %v3975
      %v4010 = vadd.f32 %v3357, %v3977
      %v4011 = vld [vmem:[%s3071] sm:$0xe]
      %v4012 = vld [vmem:[%s3071 + $0xc] sm:$0xe]
      %v4013 = vld [vmem:[%s3071 + $0x18] sm:$0xe]
      %v4014 = vld [vmem:[%s3071 + $0x24] sm:$0xe]
      %v4015 = vld [vmem:[%s3071 + $0x30] sm:$0xe]
      %v4016 = vld [vmem:[%s3071 + $0x3c] sm:$0xe]
      %v4017 = vld [vmem:[%s3071 + $0x48] sm:$0xe]
      %v4018 = vld [vmem:[%s3071 + $0x54] sm:$0xe]
      %v4019 = vld [vmem:[%s3071 + $0x60] sm:$0xe]
      %v4020 = vld [vmem:[%s3071 + $0x6c] sm:$0xe]
      %v4021 = vld [vmem:[%s3071 + $0x78] sm:$0xe]
      %v4022 = vld [vmem:[%s3071 + $0x84] sm:$0xe]
      %v4023 = vld [vmem:[%s3071 + $0x90] sm:$0xe]
      %v4024 = vld [vmem:[%s3071 + $0x9c] sm:$0xe]
      %v4025 = vld [vmem:[%s3071 + $0xa8] sm:$0xe]
      %v4026 = vld [vmem:[%s3071 + $0xb4] sm:$0xe]
      %v4075 = vrot.slane %v4011, 5
      %v4076 = vrot.slane %v4075, 4
      %v4077 = vrot.slane %v3359, 5
      %v4078 = vsel %vm1400, %v4076, %v4077
      %v4079 = vrot.slane %v4077, 4
      %v4080 = vrot.slane %v3360, 5
      %v4081 = vsel %vm1400, %v4079, %v4080
      %v4082 = vrot.slane %v4012, 5
      %v4083 = vrot.slane %v4082, 4
      %v4084 = vrot.slane %v3362, 5
      %v4085 = vsel %vm1400, %v4083, %v4084
      %v4086 = vrot.slane %v4084, 4
      %v4087 = vrot.slane %v3363, 5
      %v4088 = vsel %vm1400, %v4086, %v4087
      %v4089 = vrot.slane %v4013, 5
      %v4090 = vrot.slane %v4089, 4
      %v4091 = vrot.slane %v3365, 5
      %v4092 = vsel %vm1400, %v4090, %v4091
      %v4093 = vrot.slane %v4091, 4
      %v4094 = vrot.slane %v3366, 5
      %v4095 = vsel %vm1400, %v4093, %v4094
      %v4096 = vrot.slane %v4014, 5
      %v4097 = vrot.slane %v4096, 4
      %v4098 = vrot.slane %v3368, 5
      %v4099 = vsel %vm1400, %v4097, %v4098
      %v4100 = vrot.slane %v4098, 4
      %v4101 = vrot.slane %v3369, 5
      %v4102 = vsel %vm1400, %v4100, %v4101
      %v4103 = vrot.slane %v4015, 5
      %v4104 = vrot.slane %v4103, 4
      %v4105 = vrot.slane %v3371, 5
      %v4106 = vsel %vm1400, %v4104, %v4105
      %v4107 = vrot.slane %v4105, 4
      %v4108 = vrot.slane %v3372, 5
      %v4109 = vsel %vm1400, %v4107, %v4108
      %v4110 = vrot.slane %v4016, 5
      %v4111 = vrot.slane %v4110, 4
      %v4112 = vrot.slane %v3374, 5
      %v4113 = vsel %vm1400, %v4111, %v4112
      %v4114 = vrot.slane %v4112, 4
      %v4115 = vrot.slane %v3375, 5
      %v4116 = vsel %vm1400, %v4114, %v4115
      %v4117 = vrot.slane %v4017, 5
      %v4118 = vrot.slane %v4117, 4
      %v4119 = vrot.slane %v3377, 5
      %v4120 = vsel %vm1400, %v4118, %v4119
      %v4121 = vrot.slane %v4119, 4
      %v4122 = vrot.slane %v3378, 5
      %v4123 = vsel %vm1400, %v4121, %v4122
      %v4124 = vrot.slane %v4018, 5
      %v4125 = vrot.slane %v4124, 4
      %v4126 = vrot.slane %v3380, 5
      %v4127 = vsel %vm1400, %v4125, %v4126
      %v4128 = vrot.slane %v4126, 4
      %v4129 = vrot.slane %v3381, 5
      %v4130 = vsel %vm1400, %v4128, %v4129
      %v4131 = vrot.slane %v4019, 5
      %v4132 = vrot.slane %v4131, 4
      %v4133 = vrot.slane %v3383, 5
      %v4134 = vsel %vm1400, %v4132, %v4133
      %v4135 = vrot.slane %v4133, 4
      %v4136 = vrot.slane %v3384, 5
      %v4137 = vsel %vm1400, %v4135, %v4136
      %v4138 = vrot.slane %v4020, 5
      %v4139 = vrot.slane %v4138, 4
      %v4140 = vrot.slane %v3386, 5
      %v4141 = vsel %vm1400, %v4139, %v4140
      %v4142 = vrot.slane %v4140, 4
      %v4143 = vrot.slane %v3387, 5
      %v4144 = vsel %vm1400, %v4142, %v4143
      %v4145 = vrot.slane %v4021, 5
      %v4146 = vrot.slane %v4145, 4
      %v4147 = vrot.slane %v3389, 5
      %v4148 = vsel %vm1400, %v4146, %v4147
      %v4149 = vrot.slane %v4147, 4
      %v4150 = vrot.slane %v3390, 5
      %v4151 = vsel %vm1400, %v4149, %v4150
      %v4152 = vrot.slane %v4022, 5
      %v4153 = vrot.slane %v4152, 4
      %v4154 = vrot.slane %v3392, 5
      %v4155 = vsel %vm1400, %v4153, %v4154
      %v4156 = vrot.slane %v4154, 4
      %v4157 = vrot.slane %v3393, 5
      %v4158 = vsel %vm1400, %v4156, %v4157
      %v4159 = vrot.slane %v4023, 5
      %v4160 = vrot.slane %v4159, 4
      %v4161 = vrot.slane %v3395, 5
      %v4162 = vsel %vm1400, %v4160, %v4161
      %v4163 = vrot.slane %v4161, 4
      %v4164 = vrot.slane %v3396, 5
      %v4165 = vsel %vm1400, %v4163, %v4164
      %v4166 = vrot.slane %v4024, 5
      %v4167 = vrot.slane %v4166, 4
      %v4168 = vrot.slane %v3398, 5
      %v4169 = vsel %vm1400, %v4167, %v4168
      %v4170 = vrot.slane %v4168, 4
      %v4171 = vrot.slane %v3399, 5
      %v4172 = vsel %vm1400, %v4170, %v4171
      %v4173 = vrot.slane %v4025, 5
      %v4174 = vrot.slane %v4173, 4
      %v4175 = vrot.slane %v3401, 5
      %v4176 = vsel %vm1400, %v4174, %v4175
      %v4177 = vrot.slane %v4175, 4
      %v4178 = vrot.slane %v3402, 5
      %v4179 = vsel %vm1400, %v4177, %v4178
      %v4180 = vrot.slane %v4026, 5
      %v4181 = vrot.slane %v4180, 4
      %v4182 = vrot.slane %v3404, 5
      %v4183 = vsel %vm1400, %v4181, %v4182
      %v4184 = vrot.slane %v4182, 4
      %v4185 = vrot.slane %v3405, 5
      %v4186 = vsel %vm1400, %v4184, %v4185
      %v4187 = vld [vmem:[%s3104 + $0x8] sm:$0xf]
      %v4188 = vunpack.c.l.b16 %v4078
      %v4189 = vunpack.c.l.b16 %v4081
      %v4190 = vunpack.c.l.b16 %v4085
      %v4191 = vunpack.c.l.b16 %v4088
      %v4192 = vunpack.c.l.b16 %v4092
      %v4193 = vunpack.c.l.b16 %v4095
      %v4194 = vunpack.c.l.b16 %v4099
      %v4195 = vunpack.c.l.b16 %v4102
      %v4196 = vunpack.c.l.b16 %v4106
      %v4197 = vunpack.c.l.b16 %v4109
      %v4198 = vunpack.c.l.b16 %v4113
      %v4199 = vunpack.c.l.b16 %v4116
      %v4200 = vunpack.c.l.b16 %v4120
      %v4201 = vunpack.c.l.b16 %v4123
      %v4202 = vunpack.c.l.b16 %v4127
      %v4203 = vunpack.c.l.b16 %v4130
      %v4204 = vunpack.c.l.b16 %v4134
      %v4205 = vunpack.c.l.b16 %v4137
      %v4206 = vunpack.c.l.b16 %v4141
      %v4207 = vunpack.c.l.b16 %v4144
      %v4208 = vunpack.c.l.b16 %v4148
      %v4209 = vunpack.c.l.b16 %v4151
      %v4210 = vunpack.c.l.b16 %v4155
      %v4211 = vunpack.c.l.b16 %v4158
      %v4212 = vunpack.c.l.b16 %v4162
      %v4213 = vunpack.c.l.b16 %v4165
      %v4214 = vunpack.c.l.b16 %v4169
      %v4215 = vunpack.c.l.b16 %v4172
      %v4216 = vunpack.c.l.b16 %v4176
      %v4217 = vunpack.c.l.b16 %v4179
      %v4218 = vunpack.c.l.b16 %v4183
      %v4219 = vunpack.c.l.b16 %v4186
      %v4220 = vpack.c.b16 %v4189, %v4188
      %v4221 = vpack.c.b16 %v4191, %v4190
      %v4222 = vpack.c.b16 %v4193, %v4192
      %v4223 = vpack.c.b16 %v4195, %v4194
      %v4224 = vpack.c.b16 %v4197, %v4196
      %v4225 = vpack.c.b16 %v4199, %v4198
      %v4226 = vpack.c.b16 %v4201, %v4200
      %v4227 = vpack.c.b16 %v4203, %v4202
      %v4228 = vpack.c.b16 %v4205, %v4204
      %v4229 = vpack.c.b16 %v4207, %v4206
      %v4230 = vpack.c.b16 %v4209, %v4208
      %v4231 = vpack.c.b16 %v4211, %v4210
      %v4232 = vpack.c.b16 %v4213, %v4212
      %v4233 = vpack.c.b16 %v4215, %v4214
      %v4234 = vpack.c.b16 %v4217, %v4216
      %v4235 = vpack.c.b16 %v4219, %v4218
      %v4237 = vsel %vm988, %v4220, 0
      %v4240 = vsel %vm988, %v4221, 0
      %v4243 = vsel %vm988, %v4222, 0
      %v4246 = vsel %vm988, %v4223, 0
      %v4249 = vsel %vm988, %v4224, 0
      %v4252 = vsel %vm988, %v4225, 0
      %v4255 = vsel %vm988, %v4226, 0
      %v4258 = vsel %vm988, %v4227, 0
      %v4261 = vsel %vm988, %v4228, 0
      %v4264 = vsel %vm988, %v4229, 0
      %v4267 = vsel %vm988, %v4230, 0
      %v4270 = vsel %vm988, %v4231, 0
      %v4273 = vsel %vm988, %v4232, 0
      %v4276 = vsel %vm988, %v4233, 0
      %v4279 = vsel %vm988, %v4234, 0
      %v4282 = vsel %vm988, %v4235, 0
      %v4285 = vsel %vm1037, %v4187, 0
      %4287 = vmatpush.bf16.msra.mxu0 0
      %4288 = vmatpush.bf16.msra.mxu0 0
      %4289 = vmatpush.bf16.msra.mxu0 0
      %4290 = vmatpush.bf16.msra.mxu0 0
      %4291 = vmatpush.bf16.msra.mxu0 0
      %4292 = vmatpush.bf16.msra.mxu0 0
      %4293 = vmatpush.bf16.msra.mxu0 0
      %4294 = vmatpush.bf16.msra.mxu0 %v4285
      %4295 = vmatmul.bf16.gmra.mxu0 %v4237
      %v4296 = vpop.f32.mrf.mxu0
      %v4297 = vadd.f32 0.0, %v4296
      %v4298 = vpop.f32.mrf.mxu0
      %v4299 = vadd.f32 0.0, %v4298
      %4300 = vmatmul.bf16.gmra.mxu0 %v4240
      %v4301 = vpop.f32.mrf.mxu0
      %v4302 = vadd.f32 0.0, %v4301
      %v4303 = vpop.f32.mrf.mxu0
      %v4304 = vadd.f32 0.0, %v4303
      %4305 = vmatmul.bf16.gmra.mxu0 %v4243
      %v4306 = vpop.f32.mrf.mxu0
      %v4307 = vadd.f32 0.0, %v4306
      %v4308 = vpop.f32.mrf.mxu0
      %v4309 = vadd.f32 0.0, %v4308
      %4310 = vmatmul.bf16.gmra.mxu0 %v4246
      %v4311 = vpop.f32.mrf.mxu0
      %v4312 = vadd.f32 0.0, %v4311
      %v4313 = vpop.f32.mrf.mxu0
      %v4314 = vadd.f32 0.0, %v4313
      %4315 = vmatmul.bf16.gmra.mxu0 %v4249
      %v4316 = vpop.f32.mrf.mxu0
      %v4317 = vadd.f32 0.0, %v4316
      %v4318 = vpop.f32.mrf.mxu0
      %v4319 = vadd.f32 0.0, %v4318
      %4320 = vmatmul.bf16.gmra.mxu0 %v4252
      %v4321 = vpop.f32.mrf.mxu0
      %v4322 = vadd.f32 0.0, %v4321
      %v4323 = vpop.f32.mrf.mxu0
      %v4324 = vadd.f32 0.0, %v4323
      %4325 = vmatmul.bf16.gmra.mxu0 %v4255
      %v4326 = vpop.f32.mrf.mxu0
      %v4327 = vadd.f32 0.0, %v4326
      %v4328 = vpop.f32.mrf.mxu0
      %v4329 = vadd.f32 0.0, %v4328
      %4330 = vmatmul.bf16.gmra.mxu0 %v4258
      %v4331 = vpop.f32.mrf.mxu0
      %v4332 = vadd.f32 0.0, %v4331
      %v4333 = vpop.f32.mrf.mxu0
      %v4334 = vadd.f32 0.0, %v4333
      %4335 = vmatmul.bf16.gmra.mxu0 %v4261
      %v4336 = vpop.f32.mrf.mxu0
      %v4337 = vadd.f32 0.0, %v4336
      %v4338 = vpop.f32.mrf.mxu0
      %v4339 = vadd.f32 0.0, %v4338
      %4340 = vmatmul.bf16.gmra.mxu0 %v4264
      %v4341 = vpop.f32.mrf.mxu0
      %v4342 = vadd.f32 0.0, %v4341
      %v4343 = vpop.f32.mrf.mxu0
      %v4344 = vadd.f32 0.0, %v4343
      %4345 = vmatmul.bf16.gmra.mxu0 %v4267
      %v4346 = vpop.f32.mrf.mxu0
      %v4347 = vadd.f32 0.0, %v4346
      %v4348 = vpop.f32.mrf.mxu0
      %v4349 = vadd.f32 0.0, %v4348
      %4350 = vmatmul.bf16.gmra.mxu0 %v4270
      %v4351 = vpop.f32.mrf.mxu0
      %v4352 = vadd.f32 0.0, %v4351
      %v4353 = vpop.f32.mrf.mxu0
      %v4354 = vadd.f32 0.0, %v4353
      %4355 = vmatmul.bf16.gmra.mxu0 %v4273
      %v4356 = vpop.f32.mrf.mxu0
      %v4357 = vadd.f32 0.0, %v4356
      %v4358 = vpop.f32.mrf.mxu0
      %v4359 = vadd.f32 0.0, %v4358
      %4360 = vmatmul.bf16.gmra.mxu0 %v4276
      %v4361 = vpop.f32.mrf.mxu0
      %v4362 = vadd.f32 0.0, %v4361
      %v4363 = vpop.f32.mrf.mxu0
      %v4364 = vadd.f32 0.0, %v4363
      %4365 = vmatmul.bf16.gmra.mxu0 %v4279
      %v4366 = vpop.f32.mrf.mxu0
      %v4367 = vadd.f32 0.0, %v4366
      %v4368 = vpop.f32.mrf.mxu0
      %v4369 = vadd.f32 0.0, %v4368
      %4370 = vmatmul.bf16.gmra.mxu0 %v4282
      %v4371 = vpop.f32.mrf.mxu0
      %v4372 = vadd.f32 0.0, %v4371
      %v4373 = vpop.f32.mrf.mxu0
      %v4374 = vadd.f32 0.0, %v4373
      %4375 = vdwg.mxu0
      %v4376 = vadd.f32 %v3979, %v4297
      %v4377 = vadd.f32 %v3980, %v4299
      %v4378 = vadd.f32 %v3981, %v4302
      %v4379 = vadd.f32 %v3982, %v4304
      %v4380 = vadd.f32 %v3983, %v4307
      %v4381 = vadd.f32 %v3984, %v4309
      %v4382 = vadd.f32 %v3985, %v4312
      %v4383 = vadd.f32 %v3986, %v4314
      %v4384 = vadd.f32 %v3987, %v4317
      %v4385 = vadd.f32 %v3988, %v4319
      %v4386 = vadd.f32 %v3989, %v4322
      %v4387 = vadd.f32 %v3990, %v4324
      %v4388 = vadd.f32 %v3991, %v4327
      %v4389 = vadd.f32 %v3992, %v4329
      %v4390 = vadd.f32 %v3993, %v4332
      %v4391 = vadd.f32 %v3994, %v4334
      %v4392 = vadd.f32 %v3995, %v4337
      %v4393 = vadd.f32 %v3996, %v4339
      %v4394 = vadd.f32 %v3997, %v4342
      %v4395 = vadd.f32 %v3998, %v4344
      %v4396 = vadd.f32 %v3999, %v4347
      %v4397 = vadd.f32 %v4000, %v4349
      %v4398 = vadd.f32 %v4001, %v4352
      %v4399 = vadd.f32 %v4002, %v4354
      %v4400 = vadd.f32 %v4003, %v4357
      %v4401 = vadd.f32 %v4004, %v4359
      %v4402 = vadd.f32 %v4005, %v4362
      %v4403 = vadd.f32 %v4006, %v4364
      %v4404 = vadd.f32 %v4007, %v4367
      %v4405 = vadd.f32 %v4008, %v4369
      %v4406 = vadd.f32 %v4009, %v4372
      %v4407 = vadd.f32 %v4010, %v4374
      %v4408 = vld [vmem:[%s4] sm:$0x1]
      %v4410 = vperm.slane %v4408, 0
      %v4412 = vadd.f32 %v4376, %v4410
      %v4413 = vadd.f32 %v4377, %v4410
      %v4414 = vadd.f32 %v4378, %v4410
      %v4415 = vadd.f32 %v4379, %v4410
      %v4416 = vadd.f32 %v4380, %v4410
      %v4417 = vadd.f32 %v4381, %v4410
      %v4418 = vadd.f32 %v4382, %v4410
      %v4419 = vadd.f32 %v4383, %v4410
      %v4420 = vadd.f32 %v4384, %v4410
      %v4421 = vadd.f32 %v4385, %v4410
      %v4422 = vadd.f32 %v4386, %v4410
      %v4423 = vadd.f32 %v4387, %v4410
      %v4424 = vadd.f32 %v4388, %v4410
      %v4425 = vadd.f32 %v4389, %v4410
      %v4426 = vadd.f32 %v4390, %v4410
      %v4427 = vadd.f32 %v4391, %v4410
      %v4428 = vadd.f32 %v4392, %v4410
      %v4429 = vadd.f32 %v4393, %v4410
      %v4430 = vadd.f32 %v4394, %v4410
      %v4431 = vadd.f32 %v4395, %v4410
      %v4432 = vadd.f32 %v4396, %v4410
      %v4433 = vadd.f32 %v4397, %v4410
      %v4434 = vadd.f32 %v4398, %v4410
      %v4435 = vadd.f32 %v4399, %v4410
      %v4436 = vadd.f32 %v4400, %v4410
      %v4437 = vadd.f32 %v4401, %v4410
      %v4438 = vadd.f32 %v4402, %v4410
      %v4439 = vadd.f32 %v4403, %v4410
      %v4440 = vadd.f32 %v4404, %v4410
      %v4441 = vadd.f32 %v4405, %v4410
      %v4442 = vadd.f32 %v4406, %v4410
      %v4443 = vadd.f32 %v4407, %v4410
      %v4444 = vmax.f32 %v4412, 0.0
      %v4445 = vmax.f32 %v4413, 0.0
      %v4446 = vmax.f32 %v4414, 0.0
      %v4447 = vmax.f32 %v4415, 0.0
      %v4448 = vmax.f32 %v4416, 0.0
      %v4449 = vmax.f32 %v4417, 0.0
      %v4450 = vmax.f32 %v4418, 0.0
      %v4451 = vmax.f32 %v4419, 0.0
      %v4452 = vmax.f32 %v4420, 0.0
      %v4453 = vmax.f32 %v4421, 0.0
      %v4454 = vmax.f32 %v4422, 0.0
      %v4455 = vmax.f32 %v4423, 0.0
      %v4456 = vmax.f32 %v4424, 0.0
      %v4457 = vmax.f32 %v4425, 0.0
      %v4458 = vmax.f32 %v4426, 0.0
      %v4459 = vmax.f32 %v4427, 0.0
      %v4460 = vmax.f32 %v4428, 0.0
      %v4461 = vmax.f32 %v4429, 0.0
      %v4462 = vmax.f32 %v4430, 0.0
      %v4463 = vmax.f32 %v4431, 0.0
      %v4464 = vmax.f32 %v4432, 0.0
      %v4465 = vmax.f32 %v4433, 0.0
      %v4466 = vmax.f32 %v4434, 0.0
      %v4467 = vmax.f32 %v4435, 0.0
      %v4468 = vmax.f32 %v4436, 0.0
      %v4469 = vmax.f32 %v4437, 0.0
      %v4470 = vmax.f32 %v4438, 0.0
      %v4471 = vmax.f32 %v4439, 0.0
      %v4472 = vmax.f32 %v4440, 0.0
      %v4473 = vmax.f32 %v4441, 0.0
      %v4474 = vmax.f32 %v4442, 0.0
      %v4475 = vmax.f32 %v4443, 0.0
      %v4476 = vpack.c.bf16 %v4444, %v4444
      %v4477 = vpack.c.bf16 %v4445, %v4445
      %v4478 = vpack.c.bf16 %v4446, %v4446
      %v4479 = vpack.c.bf16 %v4447, %v4447
      %v4480 = vpack.c.bf16 %v4448, %v4448
      %v4481 = vpack.c.bf16 %v4449, %v4449
      %v4482 = vpack.c.bf16 %v4450, %v4450
      %v4483 = vpack.c.bf16 %v4451, %v4451
      %v4484 = vpack.c.bf16 %v4452, %v4452
      %v4485 = vpack.c.bf16 %v4453, %v4453
      %v4486 = vpack.c.bf16 %v4454, %v4454
      %v4487 = vpack.c.bf16 %v4455, %v4455
      %v4488 = vpack.c.bf16 %v4456, %v4456
      %v4489 = vpack.c.bf16 %v4457, %v4457
      %v4490 = vpack.c.bf16 %v4458, %v4458
      %v4491 = vpack.c.bf16 %v4459, %v4459
      %v4492 = vpack.c.bf16 %v4460, %v4460
      %v4493 = vpack.c.bf16 %v4461, %v4461
      %v4494 = vpack.c.bf16 %v4462, %v4462
      %v4495 = vpack.c.bf16 %v4463, %v4463
      %v4496 = vpack.c.bf16 %v4464, %v4464
      %v4497 = vpack.c.bf16 %v4465, %v4465
      %v4498 = vpack.c.bf16 %v4466, %v4466
      %v4499 = vpack.c.bf16 %v4467, %v4467
      %v4500 = vpack.c.bf16 %v4468, %v4468
      %v4501 = vpack.c.bf16 %v4469, %v4469
      %v4502 = vpack.c.bf16 %v4470, %v4470
      %v4503 = vpack.c.bf16 %v4471, %v4471
      %v4504 = vpack.c.bf16 %v4472, %v4472
      %v4505 = vpack.c.bf16 %v4473, %v4473
      %v4506 = vpack.c.bf16 %v4474, %v4474
      %v4507 = vpack.c.bf16 %v4475, %v4475
      %vm4508 = vcmask 519168
      %4509 = vst.msk [vmem:[%s388] sm:$0xf] %vm4508, %v4476
      %4510 = vst.msk [vmem:[%s388 + $0x4] sm:$0xf] %vm4508, %v4477
      %4511 = vst.msk [vmem:[%s388 + $0x8] sm:$0xf] %vm4508, %v4478
      %4512 = vst.msk [vmem:[%s388 + $0xc] sm:$0xf] %vm4508, %v4479
      %4513 = vst.msk [vmem:[%s388 + $0x10] sm:$0xf] %vm4508, %v4480
      %4514 = vst.msk [vmem:[%s388 + $0x14] sm:$0xf] %vm4508, %v4481
      %4515 = vst.msk [vmem:[%s388 + $0x18] sm:$0xf] %vm4508, %v4482
      %4516 = vst.msk [vmem:[%s388 + $0x1c] sm:$0xf] %vm4508, %v4483
      %4517 = vst.msk [vmem:[%s388 + $0x20] sm:$0xf] %vm4508, %v4484
      %4518 = vst.msk [vmem:[%s388 + $0x24] sm:$0xf] %vm4508, %v4485
      %4519 = vst.msk [vmem:[%s388 + $0x28] sm:$0xf] %vm4508, %v4486
      %4520 = vst.msk [vmem:[%s388 + $0x2c] sm:$0xf] %vm4508, %v4487
      %4521 = vst.msk [vmem:[%s388 + $0x30] sm:$0xf] %vm4508, %v4488
      %4522 = vst.msk [vmem:[%s388 + $0x34] sm:$0xf] %vm4508, %v4489
      %4523 = vst.msk [vmem:[%s388 + $0x38] sm:$0xf] %vm4508, %v4490
      %4524 = vst.msk [vmem:[%s388 + $0x3c] sm:$0xf] %vm4508, %v4491
      %4525 = vst.msk [vmem:[%s388 + $0x40] sm:$0xf] %vm4508, %v4492
      %4526 = vst.msk [vmem:[%s388 + $0x44] sm:$0xf] %vm4508, %v4493
      %4527 = vst.msk [vmem:[%s388 + $0x48] sm:$0xf] %vm4508, %v4494
      %4528 = vst.msk [vmem:[%s388 + $0x4c] sm:$0xf] %vm4508, %v4495
      %4529 = vst.msk [vmem:[%s388 + $0x50] sm:$0xf] %vm4508, %v4496
      %4530 = vst.msk [vmem:[%s388 + $0x54] sm:$0xf] %vm4508, %v4497
      %4531 = vst.msk [vmem:[%s388 + $0x58] sm:$0xf] %vm4508, %v4498
      %4532 = vst.msk [vmem:[%s388 + $0x5c] sm:$0xf] %vm4508, %v4499
      %4533 = vst.msk [vmem:[%s388 + $0x60] sm:$0xf] %vm4508, %v4500
      %4534 = vst.msk [vmem:[%s388 + $0x64] sm:$0xf] %vm4508, %v4501
      %4535 = vst.msk [vmem:[%s388 + $0x68] sm:$0xf] %vm4508, %v4502
      %4536 = vst.msk [vmem:[%s388 + $0x6c] sm:$0xf] %vm4508, %v4503
      %4537 = vst.msk [vmem:[%s388 + $0x70] sm:$0xf] %vm4508, %v4504
      %4538 = vst.msk [vmem:[%s388 + $0x74] sm:$0xf] %vm4508, %v4505
      %4539 = vst.msk [vmem:[%s388 + $0x78] sm:$0xf] %vm4508, %v4506
      %4540 = vst.msk [vmem:[%s388 + $0x7c] sm:$0xf] %vm4508, %v4507
      %s4541 = smul.u32 16, %s21
      %p4542 = scmp.lt.s32.totalorder %s20, 3
      %s4543 = scalar_select %p4542, %s20, 3
      %p4544 = scmp.lt.s32.totalorder %s4541, 15
      %s4545 = scalar_select %p4544, %s4541, 15
      %s4546 = smul.addr %s4545, 2
      %s4547 = smul.addr %s4543, 32
      %s4548 = sadd.s32 %s4546, %s4547
      %s4549 = smul.addr %s4548, 4
      %s4550 = scalar_lea.vmem %s5, %s4549
      // Predicated region
      $region41: #{_lambda_.7} parent=39 // pred_check
        %p4551 = pneg %p182
      $region42: #{_lambda_.7} parent=39 // pred_check_branch
        %4553 = sbr.rel (%p4551) target = $region44
      $region43: #{_lambda_.7} parent=39 // pred_region
        %s4554 = smul.u32 16, %s21
      $region44: #{_lambda_.7} parent=39 // pred_fallthru
        _
    $region40: #{_lambda_.7} parent=5 // pred_fallthru
      _
    %p4555 = scmp.le.s32.totalorder 2, %s11
    // Predicated region
    $region45: #{_lambda_.7} parent=5 // pred_check
      %p4556 = pneg %p4555
    $region46: #{_lambda_.7} parent=5 // pred_check_branch
      %4558 = sbr.rel (%p4556) target = $region48
    $region47: #{_lambda_.7} parent=5 // pred_region
      %s4559 = ssub.s32 %s11, 2
      // Predicated region
      $region49: #{_lambda_.7} parent=47 // pred_check
        %p4560 = pneg %p188
      $region50: #{_lambda_.7} parent=47 // pred_check_branch
        %4562 = sbr.rel (%p4560) target = $region52
      $region51: #{_lambda_.7} parent=47 // pred_region
        %s4563 = smul.u32 16, %s23
        %p4564 = scmp.lt.s32.totalorder %s22, 3
        %s4565 = scalar_select %p4564, %s22, 3
        %p4566 = scmp.lt.s32.totalorder %s4563, 15
        %s4567 = scalar_select %p4566, %s4563, 15
        %s4568 = smul.addr %s4567, 2
        %s4569 = smul.addr %s4565, 32
        %s4570 = sadd.s32 %s4568, %s4569
        %s4571 = smul.addr %s4570, 4
        %s4572 = scalar_lea.vmem %s5, %s4571
      $region52: #{_lambda_.7} parent=47 // pred_fallthru
        _
    $region48: #{_lambda_.7} parent=5 // pred_fallthru
      _
  $region6: #{_lambda_.7} parent=0 // loop_footer
    %s15 = sadd.s32 1, %s11
  $region7: #{_lambda_.7} parent=0 // loop_footer_branch
    %10 = sbr.rel target = $region3
  $region8: #{_lambda_.7} parent=0 // loop_exit
    _

// kernel: _lambda_.10
$region0: #{_lambda_.10}
  #allocation0 [shape = 'u32[]', space=smem, size = 0x4, offset = 0x4, fixed_abs, tag = 'smem constant byte address 0x4 - core index']
  #allocation1 [shape = 'u32[72,128]{1,0:T(1,128)}', space=vmem, size = 0x9000, scoped, tag = 'internal scratch']
  #allocation2 [shape = 'bf16[10,10,64]{2,1,0:T(8,128)(2,1)}', space=vmem, size = 0xa000, scoped, tag = 'scratch operand']
  %s0 = inlined_call_operand.vmem [shape: bf16[4,10,10,64], index: 0, kind: input, shape index: {}, may-alias: {0,1,2}]
  %s1 = inlined_call_operand.vmem [shape: bf16[4,10,10,64], index: 1, kind: input, shape index: {}, may-alias: {0,1,2}]
  %s2 = inlined_call_operand.vmem [shape: bf16[4,10,10,64], index: 2, kind: input, shape index: {}, may-alias: {0,1,2}]
  %s3 = inlined_call_operand.vmem [shape: bf16[3,192,128], index: 3, kind: input, shape index: {}]
  %s4 = inlined_call_operand.vmem [shape: f32[1,128], index: 4, kind: input, shape index: {}]
  %s5 = inlined_call_operand.vmem [shape: bf16[4,8,8,128], index: 5, kind: output, shape index: {}]
  %s6 = sld [smem:[#allocation0]]
  $region53: #{_lambda_.10} parent=0
    _
  %s8 = ssub.s32 1, %s6
  %s9 = scalar_select 0, %s8, %s6
  loop: start=0, step=1, limit=6
  $region2: #{_lambda_.10} parent=0 // loop_pre_header
    _
  $region3: #{_lambda_.10} parent=0 // loop_header
    %s11 = sphi 0, %s15
    %p12 = scmp.ge.s32.totalorder %s11, 6
    %s18 = sphi 0, %s30
    %s19 = sphi 0, %s26
    %s20 = sphi 0, %s18
    %s21 = sphi 0, %s19
    %s22 = sphi 0, %s20
    %s23 = sphi 0, %s21
    %s35 = sphi 0, %s37
    %s38 = sphi 0, %s35
    %s39 = sphi 0, %s38
    %s55 = sphi 0, %s39
    %s67 = sphi 0, %s69
    %s70 = sphi 0, %s67
    %s71 = sphi 0, %s70
    %s87 = sphi 0, %s71
    %s99 = sphi 0, %s101
    %s102 = sphi 0, %s99
    %s103 = sphi 0, %s102
    %s119 = sphi 0, %s103
    %s123 = sphi 0, %s123
    %s125 = sphi 0, %s123
    %s126 = sphi 0, %s125
    %s140 = sphi 0, %s126
    %s144 = sphi 0, %s144
    %s146 = sphi 0, %s144
    %s147 = sphi 0, %s146
    %s161 = sphi 0, %s147
    %s169 = sphi 0, %s171
    %s172 = sphi 0, %s169
    %s173 = sphi 0, %s172
    %s189 = sphi 0, %s173
  $region4: #{_lambda_.10} parent=0 // loop_header_branch
    %14 = sbr.rel (%p12) target = $region8
  $region5: #{_lambda_.10} parent=0 // loop_body
    %s16 = ssub.s32 %s11, 1
    %s17 = ssub.s32 %s11, 2
    %s24 = sadd.s32 1, %s19
    %p25 = scmp.ge.s32.totalorder %s24, 1
    %s26 = scalar_select %p25, 0, %s24
    %s27 = sadd.s32 1, %s18
    %s28 = scalar_select %p25, %s27, %s18
    %p29 = scmp.ge.s32.totalorder %s28, 4
    %s30 = scalar_select %p29, 0, %s28
    %s31 = ssub.s32 %s18, %s30
    %s32 = ssub.s32 %s19, %s26
    %s33 = sor.u32 %s31, %s32
    %p34 = scmp.eq.s32.totalorder %s33, 0
    %s36 = sadd.s32 %s35, 1
    %s37 = scalar_select %p34, %s35, %s36
    %p40 = pneg %p34
    %p41 = scmp.eq.s32.totalorder %s11, 3
    %p42 = por %p40, %p41
    %p43 = scmp.ne.s32.totalorder %s35, %s38
    %p44 = scmp.eq.s32.totalorder %s11, 0
    %p45 = por %p43, %p44
    %p46 = scmp.ne.s32.totalorder %s35, %s38
    %p47 = scmp.eq.s32.totalorder %s16, 3
    %p48 = por %p46, %p47
    %p49 = scmp.ne.s32.totalorder %s38, %s39
    %p50 = scmp.eq.s32.totalorder %s16, 0
    %p51 = por %p49, %p50
    %p52 = scmp.ne.s32.totalorder %s38, %s39
    %p53 = scmp.eq.s32.totalorder %s17, 3
    %p54 = por %p52, %p53
    %p56 = scmp.ne.s32.totalorder %s39, %s55
    %p57 = scmp.eq.s32.totalorder %s17, 0
    %p58 = por %p56, %p57
    %s59 = smul.u32 %s19, 8
    %s60 = sadd.s32 %s59, 8
    %s61 = smul.u32 %s26, 8
    %s62 = sadd.s32 %s61, 8
    %s63 = ssub.s32 %s18, %s30
    %s64 = ssub.s32 %s60, %s62
    %s65 = sor.u32 %s63, %s64
    %p66 = scmp.eq.s32.totalorder %s65, 0
    %s68 = sadd.s32 %s67, 1
    %s69 = scalar_select %p66, %s67, %s68
    %p72 = pneg %p66
    %p73 = scmp.eq.s32.totalorder %s11, 3
    %p74 = por %p72, %p73
    %p75 = scmp.ne.s32.totalorder %s67, %s70
    %p76 = scmp.eq.s32.totalorder %s11, 0
    %p77 = por %p75, %p76
    %p78 = scmp.ne.s32.totalorder %s67, %s70
    %p79 = scmp.eq.s32.totalorder %s16, 3
    %p80 = por %p78, %p79
    %p81 = scmp.ne.s32.totalorder %s70, %s71
    %p82 = scmp.eq.s32.totalorder %s16, 0
    %p83 = por %p81, %p82
    %p84 = scmp.ne.s32.totalorder %s70, %s71
    %p85 = scmp.eq.s32.totalorder %s17, 3
    %p86 = por %p84, %p85
    %p88 = scmp.ne.s32.totalorder %s71, %s87
    %p89 = scmp.eq.s32.totalorder %s17, 0
    %p90 = por %p88, %p89
    %s91 = smul.u32 %s19, 8
    %s92 = sadd.s32 %s91, 9
    %s93 = smul.u32 %s26, 8
    %s94 = sadd.s32 %s93, 9
    %s95 = ssub.s32 %s18, %s30
    %s96 = ssub.s32 %s92, %s94
    %s97 = sor.u32 %s95, %s96
    %p98 = scmp.eq.s32.totalorder %s97, 0
    %s100 = sadd.s32 %s99, 1
    %s101 = scalar_select %p98, %s99, %s100
    %p104 = pneg %p98
    %p105 = scmp.eq.s32.totalorder %s11, 3
    %p106 = por %p104, %p105
    %p107 = scmp.ne.s32.totalorder %s99, %s102
    %p108 = scmp.eq.s32.totalorder %s11, 0
    %p109 = por %p107, %p108
    %p110 = scmp.ne.s32.totalorder %s99, %s102
    %p111 = scmp.eq.s32.totalorder %s16, 3
    %p112 = por %p110, %p111
    %p113 = scmp.ne.s32.totalorder %s102, %s103
    %p114 = scmp.eq.s32.totalorder %s16, 0
    %p115 = por %p113, %p114
    %p116 = scmp.ne.s32.totalorder %s102, %s103
    %p117 = scmp.eq.s32.totalorder %s17, 3
    %p118 = por %p116, %p117
    %p120 = scmp.ne.s32.totalorder %s103, %s119
    %p121 = scmp.eq.s32.totalorder %s17, 0
    %p122 = por %p120, %p121
    %s124 = sadd.s32 %s123, 1
    %p127 = scmp.eq.s32.totalorder %s11, 3
    %p128 = scmp.ne.s32.totalorder %s123, %s125
    %p129 = scmp.eq.s32.totalorder %s11, 0
    %p130 = por %p128, %p129
    %p131 = scmp.ne.s32.totalorder %s123, %s125
    %p132 = scmp.eq.s32.totalorder %s16, 3
    %p133 = por %p131, %p132
    %p134 = scmp.ne.s32.totalorder %s125, %s126
    %p135 = scmp.eq.s32.totalorder %s16, 0
    %p136 = por %p134, %p135
    %p137 = scmp.ne.s32.totalorder %s125, %s126
    %p138 = scmp.eq.s32.totalorder %s17, 3
    %p139 = por %p137, %p138
    %p141 = scmp.ne.s32.totalorder %s126, %s140
    %p142 = scmp.eq.s32.totalorder %s17, 0
    %p143 = por %p141, %p142
    %s145 = sadd.s32 %s144, 1
    %p148 = scmp.eq.s32.totalorder %s11, 3
    %p149 = scmp.ne.s32.totalorder %s144, %s146
    %p150 = scmp.eq.s32.totalorder %s11, 0
    %p151 = por %p149, %p150
    %p152 = scmp.ne.s32.totalorder %s144, %s146
    %p153 = scmp.eq.s32.totalorder %s16, 3
    %p154 = por %p152, %p153
    %p155 = scmp.ne.s32.totalorder %s146, %s147
    %p156 = scmp.eq.s32.totalorder %s16, 0
    %p157 = por %p155, %p156
    %p158 = scmp.ne.s32.totalorder %s146, %s147
    %p159 = scmp.eq.s32.totalorder %s17, 3
    %p160 = por %p158, %p159
    %p162 = scmp.ne.s32.totalorder %s147, %s161
    %p163 = scmp.eq.s32.totalorder %s17, 0
    %p164 = por %p162, %p163
    %s165 = ssub.s32 %s18, %s30
    %s166 = ssub.s32 %s19, %s26
    %s167 = sor.u32 %s165, %s166
    %p168 = scmp.eq.s32.totalorder %s167, 0
    %s170 = sadd.s32 %s169, 1
    %s171 = scalar_select %p168, %s169, %s170
    %p174 = pneg %p168
    %p175 = scmp.eq.s32.totalorder %s11, 3
    %p176 = por %p174, %p175
    %p177 = scmp.ne.s32.totalorder %s169, %s172
    %p178 = scmp.eq.s32.totalorder %s11, 0
    %p179 = por %p177, %p178
    %p180 = scmp.ne.s32.totalorder %s169, %s172
    %p181 = scmp.eq.s32.totalorder %s16, 3
    %p182 = por %p180, %p181
    %p183 = scmp.ne.s32.totalorder %s172, %s173
    %p184 = scmp.eq.s32.totalorder %s16, 0
    %p185 = por %p183, %p184
    %p186 = scmp.ne.s32.totalorder %s172, %s173
    %p187 = scmp.eq.s32.totalorder %s17, 3
    %p188 = por %p186, %p187
    %p190 = scmp.ne.s32.totalorder %s173, %s189
    %p191 = scmp.eq.s32.totalorder %s17, 0
    %p192 = por %p190, %p191
    %p193 = scmp.le.s32.totalorder 1, %s11
    %p194 = scmp.lt.s32.totalorder %s11, 5
    %p195 = pnand %p193, %p194
    %p196 = pneg %p195
    // Predicated region
    $region9: #{_lambda_.10} parent=5 // pred_check
      _
    $region10: #{_lambda_.10} parent=5 // pred_check_branch
      %198 = sbr.rel (%p195) target = $region12
    $region11: #{_lambda_.10} parent=5 // pred_region
      %s199 = ssub.s32 %s11, 1
      // Predicated region
      $region13: #{_lambda_.10} parent=11 // pred_check
        %p200 = pneg %p136
      $region14: #{_lambda_.10} parent=11 // pred_check_branch
        %202 = sbr.rel (%p200) target = $region16
      $region15: #{_lambda_.10} parent=11 // pred_region
        _
      $region16: #{_lambda_.10} parent=11 // pred_fallthru
        _
      // Predicated region
      $region17: #{_lambda_.10} parent=11 // pred_check
        %p203 = pneg %p157
      $region18: #{_lambda_.10} parent=11 // pred_check_branch
        %205 = sbr.rel (%p203) target = $region20
      $region19: #{_lambda_.10} parent=11 // pred_region
        _
      $region20: #{_lambda_.10} parent=11 // pred_fallthru
        _
    $region12: #{_lambda_.10} parent=5 // pred_fallthru
      _
    %p206 = scmp.lt.s32.totalorder %s11, 4
    // Predicated region
    $region21: #{_lambda_.10} parent=5 // pred_check
      %p207 = pneg %p206
    $region22: #{_lambda_.10} parent=5 // pred_check_branch
      %209 = sbr.rel (%p207) target = $region24
    $region23: #{_lambda_.10} parent=5 // pred_region
      // Predicated region
      $region25: #{_lambda_.10} parent=23 // pred_check
        %p210 = pneg %p45
      $region26: #{_lambda_.10} parent=23 // pred_check_branch
        %212 = sbr.rel (%p210) target = $region28
      $region27: #{_lambda_.10} parent=23 // pred_region
        %s213 = smul.u32 8, %s19
        %s214 = ssub.s32 10, %s213
        %p215 = scmp.lt.s32.totalorder %s214, 8
        %s216 = scalar_select %p215, %s214, 8
        %s217 = smul.u32 4, %s216
        %s218 = smul.u32 %s217, 2
        %p219 = scmp.lt.s32.totalorder %s18, 3
        %s220 = scalar_select %p219, %s18, 3
        %p221 = scmp.lt.s32.totalorder %s213, 9
        %s222 = scalar_select %p221, %s213, 9
        %s223 = smul.addr %s222, 2
        %s224 = smul.addr %s220, 20
        %s225 = sadd.s32 %s223, %s224
        %s226 = smul.addr %s225, 4
        %s227 = scalar_lea.vmem %s0, %s226
        %s228 = smul.u32 8, %s19
        %s229 = ssub.s32 10, %s228
        %p230 = scmp.lt.s32.totalorder %s229, 8
        %s231 = scalar_select %p230, %s229, 8
        %s232 = smul.u32 4, %s231
        %s233 = smul.u32 %s232, 2
      $region28: #{_lambda_.10} parent=23 // pred_fallthru
        _
      // Predicated region
      $region29: #{_lambda_.10} parent=23 // pred_check
        %p234 = pneg %p77
      $region30: #{_lambda_.10} parent=23 // pred_check_branch
        %236 = sbr.rel (%p234) target = $region32
      $region31: #{_lambda_.10} parent=23 // pred_region
        %s237 = smul.u32 %s19, 8
        %s238 = sadd.s32 %s237, 8
        %p239 = scmp.lt.s32.totalorder %s18, 3
        %s240 = scalar_select %p239, %s18, 3
        %p241 = scmp.lt.s32.totalorder %s238, 9
        %s242 = scalar_select %p241, %s238, 9
        %s243 = smul.addr %s242, 2
        %s244 = smul.addr %s240, 20
        %s245 = sadd.s32 %s243, %s244
        %s246 = smul.addr %s245, 4
        %s247 = scalar_lea.vmem %s1, %s246
        %s248 = smul.u32 %s19, 8
        %s249 = sadd.s32 %s248, 8
      $region32: #{_lambda_.10} parent=23 // pred_fallthru
        _
      // Predicated region
      $region33: #{_lambda_.10} parent=23 // pred_check
        %p250 = pneg %p109
      $region34: #{_lambda_.10} parent=23 // pred_check_branch
        %252 = sbr.rel (%p250) target = $region36
      $region35: #{_lambda_.10} parent=23 // pred_region
        %s253 = smul.u32 %s19, 8
        %s254 = sadd.s32 %s253, 9
        %p255 = scmp.lt.s32.totalorder %s18, 3
        %s256 = scalar_select %p255, %s18, 3
        %p257 = scmp.lt.s32.totalorder %s254, 9
        %s258 = scalar_select %p257, %s254, 9
        %s259 = smul.addr %s258, 2
        %s260 = smul.addr %s256, 20
        %s261 = sadd.s32 %s259, %s260
        %s262 = smul.addr %s261, 4
        %s263 = scalar_lea.vmem %s2, %s262
        %s264 = smul.u32 %s19, 8
        %s265 = sadd.s32 %s264, 9
      $region36: #{_lambda_.10} parent=23 // pred_fallthru
        _
    $region24: #{_lambda_.10} parent=5 // pred_fallthru
      _
    %p266 = scmp.le.s32.totalorder 1, %s11
    %p267 = scmp.lt.s32.totalorder %s11, 5
    %p268 = pnand %p266, %p267
    %p269 = pneg %p268
    // Predicated region
    $region37: #{_lambda_.10} parent=5 // pred_check
      _
    $region38: #{_lambda_.10} parent=5 // pred_check_branch
      %271 = sbr.rel (%p268) target = $region40
    $region39: #{_lambda_.10} parent=5 // pred_region
      %s272 = ssub.s32 %s11, 1
      %s273 = smul.u32 8, %s21
      %s274 = ssub.s32 10, %s273
      %p275 = scmp.lt.s32.totalorder %s274, 8
      %s276 = scalar_select %p275, %s274, 8
      %s277 = smul.u32 4, %s276
      %s278 = smul.u32 %s277, 2
      %p279 = scmp.lt.s32.totalorder %s20, 3
      %s280 = scalar_select %p279, %s20, 3
      %p281 = scmp.lt.s32.totalorder %s273, 9
      %s282 = scalar_select %p281, %s273, 9
      %s283 = smul.addr %s282, 2
      %s284 = smul.addr %s280, 20
      %s285 = sadd.s32 %s283, %s284
      %s286 = smul.addr %s285, 4
      %s287 = scalar_lea.vmem %s0, %s286
      %p288 = pneg %p51
      %p289 = pneg %p48
      %s290 = smul.u32 %s21, 8
      %s291 = sadd.s32 %s290, 8
      %p292 = scmp.lt.s32.totalorder %s20, 3
      %s293 = scalar_select %p292, %s20, 3
      %p294 = scmp.lt.s32.totalorder %s291, 9
      %s295 = scalar_select %p294, %s291, 9
      %s296 = smul.addr %s295, 2
      %s297 = smul.addr %s293, 20
      %s298 = sadd.s32 %s296, %s297
      %s299 = smul.addr %s298, 4
      %s300 = scalar_lea.vmem %s1, %s299
      %p301 = pneg %p83
      %p302 = pneg %p80
      %s303 = smul.u32 %s21, 8
      %s304 = sadd.s32 %s303, 9
      %p305 = scmp.lt.s32.totalorder %s20, 3
      %s306 = scalar_select %p305, %s20, 3
      %p307 = scmp.lt.s32.totalorder %s304, 9
      %s308 = scalar_select %p307, %s304, 9
      %s309 = smul.addr %s308, 2
      %s310 = smul.addr %s306, 20
      %s311 = sadd.s32 %s309, %s310
      %s312 = smul.addr %s311, 4
      %s313 = scalar_lea.vmem %s2, %s312
      %p314 = pneg %p115
      %p315 = pneg %p112
      %p316 = pneg %p136
      %p317 = pneg %p133
      %p318 = pneg %p157
      %p319 = pneg %p154
      %p320 = pneg %p185
      %p321 = pneg %p182
      %s322 = smul.u32 8, %s21
      %p323 = scmp.lt.s32.totalorder %s20, 3
      %s324 = scalar_select %p323, %s20, 3
      %p325 = scmp.lt.s32.totalorder %s322, 7
      %s326 = scalar_select %p325, %s322, 7
      %s327 = smul.addr %s324, 8
      %s328 = sadd.s32 %s326, %s327
      %s329 = smul.addr %s328, 4
      %s330 = scalar_lea.vmem %s5, %s329
      %s331 = smul.u32 8, %s21
      %s332 = ssub.s32 10, %s331
      %p333 = scmp.lt.s32.totalorder %s332, 8
      %s334 = scalar_select %p333, %s332, 8
      %s335 = smul.u32 4, %s334
      %s336 = smul.u32 %s335, 2
      %p337 = scmp.lt.s32.totalorder %s20, 3
      %s338 = scalar_select %p337, %s20, 3
      %p339 = scmp.lt.s32.totalorder %s331, 9
      %s340 = scalar_select %p339, %s331, 9
      %s341 = smul.addr %s340, 2
      %s342 = smul.addr %s338, 20
      %s343 = sadd.s32 %s341, %s342
      %s344 = smul.addr %s343, 4
      %s345 = scalar_lea.vmem %s0, %s344
      %s346 = smul.u32 8, %s21
      %s347 = ssub.s32 10, %s346
      %p348 = scmp.lt.s32.totalorder %s347, 8
      %s349 = scalar_select %p348, %s347, 8
      %s350 = smul.u32 4, %s349
      %s351 = smul.u32 %s350, 2
      %s352 = smul.u32 %s21, 8
      %s353 = sadd.s32 %s352, 8
      %p354 = scmp.lt.s32.totalorder %s20, 3
      %s355 = scalar_select %p354, %s20, 3
      %p356 = scmp.lt.s32.totalorder %s353, 9
      %s357 = scalar_select %p356, %s353, 9
      %s358 = smul.addr %s357, 2
      %s359 = smul.addr %s355, 20
      %s360 = sadd.s32 %s358, %s359
      %s361 = smul.addr %s360, 4
      %s362 = scalar_lea.vmem %s1, %s361
      %s363 = smul.u32 %s21, 8
      %s364 = sadd.s32 %s363, 8
      %s365 = smul.u32 %s21, 8
      %s366 = sadd.s32 %s365, 9
      %p367 = scmp.lt.s32.totalorder %s20, 3
      %s368 = scalar_select %p367, %s20, 3
      %p369 = scmp.lt.s32.totalorder %s366, 9
      %s370 = scalar_select %p369, %s366, 9
      %s371 = smul.addr %s370, 2
      %s372 = smul.addr %s368, 20
      %s373 = sadd.s32 %s371, %s372
      %s374 = smul.addr %s373, 4
      %s375 = scalar_lea.vmem %s2, %s374
      %s376 = smul.u32 %s21, 8
      %s377 = sadd.s32 %s376, 9
      %s378 = smul.u32 8, %s21
      %p379 = scmp.lt.s32.totalorder %s20, 3
      %s380 = scalar_select %p379, %s20, 3
      %p381 = scmp.lt.s32.totalorder %s378, 7
      %s382 = scalar_select %p381, %s378, 7
      %s383 = smul.addr %s380, 8
      %s384 = sadd.s32 %s382, %s383
      %s385 = smul.addr %s384, 4
      %s386 = scalar_lea.vmem %s5, %s385
      %s387 = smul.u32 8, %s21
      %v389 = vld [vmem:[%s345] sm:$0xf]
      %v390 = vld [vmem:[%s345 + $0x4] sm:$0x1]
      %v391 = vld [vmem:[%s345 + $0x8] sm:$0xf]
      %v392 = vld [vmem:[%s345 + $0xc] sm:$0x1]
      %v393 = vld [vmem:[%s345 + $0x10] sm:$0xf]
      %v394 = vld [vmem:[%s345 + $0x14] sm:$0x1]
      %v395 = vld [vmem:[%s345 + $0x18] sm:$0xf]
      %v396 = vld [vmem:[%s345 + $0x1c] sm:$0x1]
      %v397 = vld [vmem:[%s345 + $0x20] sm:$0xf]
      %v398 = vld [vmem:[%s345 + $0x24] sm:$0x1]
      %v399 = vld [vmem:[%s345 + $0x28] sm:$0xf]
      %v400 = vld [vmem:[%s345 + $0x2c] sm:$0x1]
      %v401 = vld [vmem:[%s345 + $0x30] sm:$0xf]
      %v402 = vld [vmem:[%s345 + $0x34] sm:$0x1]
      %v403 = vld [vmem:[%s345 + $0x38] sm:$0xf]
      %v404 = vld [vmem:[%s345 + $0x3c] sm:$0x1]
      %vm405 = vcmask 519168
      %406 = vst.msk [vmem:[#allocation2] sm:$0xf] %vm405, %v389
      %vm407 = vcmask 516096
      %408 = vst.msk [vmem:[#allocation2 + $0x4] sm:$0x1] %vm407, %v390
      %409 = vst.msk [vmem:[#allocation2 + $0x8] sm:$0xf] %vm405, %v391
      %410 = vst.msk [vmem:[#allocation2 + $0xc] sm:$0x1] %vm407, %v392
      %411 = vst.msk [vmem:[#allocation2 + $0x10] sm:$0xf] %vm405, %v393
      %412 = vst.msk [vmem:[#allocation2 + $0x14] sm:$0x1] %vm407, %v394
      %413 = vst.msk [vmem:[#allocation2 + $0x18] sm:$0xf] %vm405, %v395
      %414 = vst.msk [vmem:[#allocation2 + $0x1c] sm:$0x1] %vm407, %v396
      %415 = vst.msk [vmem:[#allocation2 + $0x20] sm:$0xf] %vm405, %v397
      %416 = vst.msk [vmem:[#allocation2 + $0x24] sm:$0x1] %vm407, %v398
      %417 = vst.msk [vmem:[#allocation2 + $0x28] sm:$0xf] %vm405, %v399
      %418 = vst.msk [vmem:[#allocation2 + $0x2c] sm:$0x1] %vm407, %v400
      %419 = vst.msk [vmem:[#allocation2 + $0x30] sm:$0xf] %vm405, %v401
      %420 = vst.msk [vmem:[#allocation2 + $0x34] sm:$0x1] %vm407, %v402
      %421 = vst.msk [vmem:[#allocation2 + $0x38] sm:$0xf] %vm405, %v403
      %422 = vst.msk [vmem:[#allocation2 + $0x3c] sm:$0x1] %vm407, %v404
      %v423 = vld [vmem:[%s362] sm:$0xf]
      %v424 = vld [vmem:[%s362 + $0x4] sm:$0x1]
      %s425 = scalar_lea.vmem [#allocation2], 64
      %426 = vst.msk [vmem:[%s425] sm:$0xf] %vm405, %v423
      %427 = vst.msk [vmem:[%s425 + $0x4] sm:$0x1] %vm407, %v424
      %v428 = vld [vmem:[%s375] sm:$0xf]
      %v429 = vld [vmem:[%s375 + $0x4] sm:$0x1]
      %s430 = scalar_lea.vmem [#allocation2], 72
      %431 = vst.msk [vmem:[%s430] sm:$0xf] %vm405, %v428
      %432 = vst.msk [vmem:[%s430 + $0x4] sm:$0x1] %vm407, %v429
      %v433 = vld [vmem:[#allocation2] sm:$0xf]
      %v434 = vld [vmem:[#allocation2 + $0x8] sm:$0xf]
      %v435 = vld [vmem:[#allocation2 + $0x10] sm:$0xf]
      %v436 = vld [vmem:[#allocation2 + $0x18] sm:$0xf]
      %v437 = vld [vmem:[#allocation2 + $0x20] sm:$0xf]
      %v438 = vld [vmem:[#allocation2 + $0x28] sm:$0xf]
      %v439 = vld [vmem:[#allocation2 + $0x30] sm:$0xf]
      %v440 = vld [vmem:[#allocation2 + $0x38] sm:$0xf]
      %v441 = vld [vmem:[#allocation2 + $0x4] sm:$0x1]
      %v442 = vld [vmem:[#allocation2 + $0xc] sm:$0x1]
      %v443 = vld [vmem:[#allocation2 + $0x14] sm:$0x1]
      %v444 = vld [vmem:[#allocation2 + $0x1c] sm:$0x1]
      %v445 = vld [vmem:[#allocation2 + $0x24] sm:$0x1]
      %v446 = vld [vmem:[#allocation2 + $0x2c] sm:$0x1]
      %v447 = vld [vmem:[#allocation2 + $0x34] sm:$0x1]
      %v448 = vld [vmem:[#allocation2 + $0x3c] sm:$0x1]
      %v449 = vld [vmem:[#allocation2] sm:$0xe]
      %v450 = vld [vmem:[#allocation2 + $0x8] sm:$0xe]
      %v451 = vld [vmem:[#allocation2 + $0x10] sm:$0xe]
      %v452 = vld [vmem:[#allocation2 + $0x18] sm:$0xe]
      %v453 = vld [vmem:[#allocation2 + $0x20] sm:$0xe]
      %v454 = vld [vmem:[#allocation2 + $0x28] sm:$0xe]
      %v455 = vld [vmem:[#allocation2 + $0x30] sm:$0xe]
      %v456 = vld [vmem:[#allocation2 + $0x38] sm:$0xe]
      %v473 = vunpack.c.l.b16 %v433
      %v474 = vunpack.c.l.b16 %v441
      %v475 = vunpack.c.l.b16 %v434
      %v476 = vunpack.c.l.b16 %v442
      %v477 = vunpack.c.l.b16 %v435
      %v478 = vunpack.c.l.b16 %v443
      %v479 = vunpack.c.l.b16 %v436
      %v480 = vunpack.c.l.b16 %v444
      %v481 = vunpack.c.l.b16 %v437
      %v482 = vunpack.c.l.b16 %v445
      %v483 = vunpack.c.l.b16 %v438
      %v484 = vunpack.c.l.b16 %v446
      %v485 = vunpack.c.l.b16 %v439
      %v486 = vunpack.c.l.b16 %v447
      %v487 = vunpack.c.l.b16 %v440
      %v488 = vunpack.c.l.b16 %v448
      %v489 = vpack.c.b16 %v474, %v473
      %v490 = vpack.c.b16 %v476, %v475
      %v491 = vpack.c.b16 %v478, %v477
      %v492 = vpack.c.b16 %v480, %v479
      %v493 = vpack.c.b16 %v482, %v481
      %v494 = vpack.c.b16 %v484, %v483
      %v495 = vpack.c.b16 %v486, %v485
      %v496 = vpack.c.b16 %v488, %v487
      %v498 = vshrl.u32 %v489, 16
      %v500 = vshll.u32 %v489, 16
      %v502 = vrot.slane %v500, 1
      %v503 = vor.u32 %v498, %v502
      %v505 = vshrl.u32 %v490, 16
      %v507 = vshll.u32 %v490, 16
      %v509 = vrot.slane %v507, 1
      %v510 = vor.u32 %v505, %v509
      %v512 = vshrl.u32 %v491, 16
      %v514 = vshll.u32 %v491, 16
      %v516 = vrot.slane %v514, 1
      %v517 = vor.u32 %v512, %v516
      %v519 = vshrl.u32 %v492, 16
      %v521 = vshll.u32 %v492, 16
      %v523 = vrot.slane %v521, 1
      %v524 = vor.u32 %v519, %v523
      %v526 = vshrl.u32 %v493, 16
      %v528 = vshll.u32 %v493, 16
      %v530 = vrot.slane %v528, 1
      %v531 = vor.u32 %v526, %v530
      %v533 = vshrl.u32 %v494, 16
      %v535 = vshll.u32 %v494, 16
      %v537 = vrot.slane %v535, 1
      %v538 = vor.u32 %v533, %v537
      %v540 = vshrl.u32 %v495, 16
      %v542 = vshll.u32 %v495, 16
      %v544 = vrot.slane %v542, 1
      %v545 = vor.u32 %v540, %v544
      %v547 = vshrl.u32 %v496, 16
      %v549 = vshll.u32 %v496, 16
      %v551 = vrot.slane %v549, 1
      %v552 = vor.u32 %v547, %v551
      %553 = vrot.lane.b32.xlu0 %v503, 64
      %v554 = vpop.permute.xlu0 %553
      %555 = vrot.lane.b32.xlu0 %v510, 64
      %v556 = vpop.permute.xlu0 %555
      %557 = vrot.lane.b32.xlu0 %v517, 64
      %v558 = vpop.permute.xlu0 %557
      %559 = vrot.lane.b32.xlu0 %v524, 64
      %v560 = vpop.permute.xlu0 %559
      %561 = vrot.lane.b32.xlu0 %v531, 64
      %v562 = vpop.permute.xlu0 %561
      %563 = vrot.lane.b32.xlu0 %v538, 64
      %v564 = vpop.permute.xlu0 %563
      %565 = vrot.lane.b32.xlu0 %v545, 64
      %v566 = vpop.permute.xlu0 %565
      %567 = vrot.lane.b32.xlu0 %v552, 64
      %v568 = vpop.permute.xlu0 %567
      %v577 = vunpack.c.l.b16 %v449
      %v578 = vunpack.c.l.b16 %v450
      %v579 = vunpack.c.l.b16 %v451
      %v580 = vunpack.c.l.b16 %v452
      %v581 = vunpack.c.l.b16 %v453
      %v582 = vunpack.c.l.b16 %v454
      %v583 = vunpack.c.l.b16 %v455
      %v584 = vunpack.c.l.b16 %v456
      %v585 = vpack.c.b16 %v474, %v577
      %v586 = vpack.c.b16 %v476, %v578
      %v587 = vpack.c.b16 %v478, %v579
      %v588 = vpack.c.b16 %v480, %v580
      %v589 = vpack.c.b16 %v482, %v581
      %v590 = vpack.c.b16 %v484, %v582
      %v591 = vpack.c.b16 %v486, %v583
      %v592 = vpack.c.b16 %v488, %v584
      %v593 = vrot.slane %v585, 1
      %v594 = vrot.slane %v586, 1
      %v595 = vrot.slane %v587, 1
      %v596 = vrot.slane %v588, 1
      %v597 = vrot.slane %v589, 1
      %v598 = vrot.slane %v590, 1
      %v599 = vrot.slane %v591, 1
      %v600 = vrot.slane %v592, 1
      %vm601 = vcmask 523264
      %v604 = vsel %vm601, %v433, %v554
      %v607 = vsel %vm601, %v434, %v556
      %v610 = vsel %vm601, %v435, %v558
      %v613 = vsel %vm601, %v436, %v560
      %v616 = vsel %vm601, %v437, %v562
      %v619 = vsel %vm601, %v438, %v564
      %v622 = vsel %vm601, %v439, %v566
      %v625 = vsel %vm601, %v440, %v568
      %v634 = vunpack.c.l.b16 %v604
      %v635 = vunpack.c.l.b16 %v593
      %v636 = vunpack.c.l.b16 %v607
      %v637 = vunpack.c.l.b16 %v594
      %v638 = vunpack.c.l.b16 %v610
      %v639 = vunpack.c.l.b16 %v595
      %v640 = vunpack.c.l.b16 %v613
      %v641 = vunpack.c.l.b16 %v596
      %v642 = vunpack.c.l.b16 %v616
      %v643 = vunpack.c.l.b16 %v597
      %v644 = vunpack.c.l.b16 %v619
      %v645 = vunpack.c.l.b16 %v598
      %v646 = vunpack.c.l.b16 %v622
      %v647 = vunpack.c.l.b16 %v599
      %v648 = vunpack.c.l.b16 %v625
      %v649 = vunpack.c.l.b16 %v600
      %v650 = vld [vmem:[%s3] sm:$0xf]
      %v651 = vld [vmem:[%s3 + $0x4] sm:$0xf]
      %v652 = vld [vmem:[%s3 + $0x8] sm:$0xf]
      %v653 = vld [vmem:[%s3 + $0xc] sm:$0xf]
      %v654 = vld [vmem:[%s3 + $0x10] sm:$0xf]
      %v655 = vld [vmem:[%s3 + $0x14] sm:$0xf]
      %v656 = vld [vmem:[%s3 + $0x18] sm:$0xf]
      %v657 = vld [vmem:[%s3 + $0x1c] sm:$0xf]
      %v658 = vld [vmem:[%s3 + $0x20] sm:$0xf]
      %v659 = vld [vmem:[%s3 + $0x24] sm:$0xf]
      %v660 = vld [vmem:[%s3 + $0x28] sm:$0xf]
      %v661 = vld [vmem:[%s3 + $0x2c] sm:$0xf]
      %v662 = vld [vmem:[%s3 + $0x30] sm:$0xf]
      %v663 = vld [vmem:[%s3 + $0x34] sm:$0xf]
      %v664 = vld [vmem:[%s3 + $0x38] sm:$0xf]
      %v665 = vld [vmem:[%s3 + $0x3c] sm:$0xf]
      %v666 = vld [vmem:[%s3 + $0x40] sm:$0xf]
      %v667 = vld [vmem:[%s3 + $0x44] sm:$0xf]
      %v668 = vld [vmem:[%s3 + $0x48] sm:$0xf]
      %v669 = vld [vmem:[%s3 + $0x4c] sm:$0xf]
      %v670 = vld [vmem:[%s3 + $0x50] sm:$0xf]
      %v671 = vld [vmem:[%s3 + $0x54] sm:$0xf]
      %v672 = vld [vmem:[%s3 + $0x58] sm:$0xf]
      %v673 = vld [vmem:[%s3 + $0x5c] sm:$0xf]
      %s674 = scalar_lea.vmem [#allocation2], 8
      %v675 = vld [vmem:[%s674] sm:$0xf]
      %v676 = vld [vmem:[%s674 + $0x8] sm:$0xf]
      %v677 = vld [vmem:[%s674 + $0x10] sm:$0xf]
      %v678 = vld [vmem:[%s674 + $0x18] sm:$0xf]
      %v679 = vld [vmem:[%s674 + $0x20] sm:$0xf]
      %v680 = vld [vmem:[%s674 + $0x28] sm:$0xf]
      %v681 = vld [vmem:[%s674 + $0x30] sm:$0xf]
      %v682 = vld [vmem:[%s674 + $0x38] sm:$0xf]
      %v683 = vld [vmem:[%s674 + $0x4] sm:$0x1]
      %v684 = vld [vmem:[%s674 + $0xc] sm:$0x1]
      %v685 = vld [vmem:[%s674 + $0x14] sm:$0x1]
      %v686 = vld [vmem:[%s674 + $0x1c] sm:$0x1]
      %v687 = vld [vmem:[%s674 + $0x24] sm:$0x1]
      %v688 = vld [vmem:[%s674 + $0x2c] sm:$0x1]
      %v689 = vld [vmem:[%s674 + $0x34] sm:$0x1]
      %v690 = vld [vmem:[%s674 + $0x3c] sm:$0x1]
      %v691 = vld [vmem:[%s674] sm:$0xe]
      %v692 = vld [vmem:[%s674 + $0x8] sm:$0xe]
      %v693 = vld [vmem:[%s674 + $0x10] sm:$0xe]
      %v694 = vld [vmem:[%s674 + $0x18] sm:$0xe]
      %v695 = vld [vmem:[%s674 + $0x20] sm:$0xe]
      %v696 = vld [vmem:[%s674 + $0x28] sm:$0xe]
      %v697 = vld [vmem:[%s674 + $0x30] sm:$0xe]
      %v698 = vld [vmem:[%s674 + $0x38] sm:$0xe]
      %v715 = vunpack.c.l.b16 %v675
      %v716 = vunpack.c.l.b16 %v683
      %v717 = vunpack.c.l.b16 %v676
      %v718 = vunpack.c.l.b16 %v684
      %v719 = vunpack.c.l.b16 %v677
      %v720 = vunpack.c.l.b16 %v685
      %v721 = vunpack.c.l.b16 %v678
      %v722 = vunpack.c.l.b16 %v686
      %v723 = vunpack.c.l.b16 %v679
      %v724 = vunpack.c.l.b16 %v687
      %v725 = vunpack.c.l.b16 %v680
      %v726 = vunpack.c.l.b16 %v688
      %v727 = vunpack.c.l.b16 %v681
      %v728 = vunpack.c.l.b16 %v689
      %v729 = vunpack.c.l.b16 %v682
      %v730 = vunpack.c.l.b16 %v690
      %v731 = vpack.c.b16 %v716, %v715
      %v732 = vpack.c.b16 %v718, %v717
      %v733 = vpack.c.b16 %v720, %v719
      %v734 = vpack.c.b16 %v722, %v721
      %v735 = vpack.c.b16 %v724, %v723
      %v736 = vpack.c.b16 %v726, %v725
      %v737 = vpack.c.b16 %v728, %v727
      %v738 = vpack.c.b16 %v730, %v729
      %v740 = vshrl.u32 %v731, 16
      %v742 = vshll.u32 %v731, 16
      %v744 = vrot.slane %v742, 1
      %v745 = vor.u32 %v740, %v744
      %v747 = vshrl.u32 %v732, 16
      %v749 = vshll.u32 %v732, 16
      %v751 = vrot.slane %v749, 1
      %v752 = vor.u32 %v747, %v751
      %v754 = vshrl.u32 %v733, 16
      %v756 = vshll.u32 %v733, 16
      %v758 = vrot.slane %v756, 1
      %v759 = vor.u32 %v754, %v758
      %v761 = vshrl.u32 %v734, 16
      %v763 = vshll.u32 %v734, 16
      %v765 = vrot.slane %v763, 1
      %v766 = vor.u32 %v761, %v765
      %v768 = vshrl.u32 %v735, 16
      %v770 = vshll.u32 %v735, 16
      %v772 = vrot.slane %v770, 1
      %v773 = vor.u32 %v768, %v772
      %v775 = vshrl.u32 %v736, 16
      %v777 = vshll.u32 %v736, 16
      %v779 = vrot.slane %v777, 1
      %v780 = vor.u32 %v775, %v779
      %v782 = vshrl.u32 %v737, 16
      %v784 = vshll.u32 %v737, 16
      %v786 = vrot.slane %v784, 1
      %v787 = vor.u32 %v782, %v786
      %v789 = vshrl.u32 %v738, 16
      %v791 = vshll.u32 %v738, 16
      %v793 = vrot.slane %v791, 1
      %v794 = vor.u32 %v789, %v793
      %795 = vrot.lane.b32.xlu0 %v745, 64
      %v796 = vpop.permute.xlu0 %795
      %797 = vrot.lane.b32.xlu0 %v752, 64
      %v798 = vpop.permute.xlu0 %797
      %799 = vrot.lane.b32.xlu0 %v759, 64
      %v800 = vpop.permute.xlu0 %799
      %801 = vrot.lane.b32.xlu0 %v766, 64
      %v802 = vpop.permute.xlu0 %801
      %803 = vrot.lane.b32.xlu0 %v773, 64
      %v804 = vpop.permute.xlu0 %803
      %805 = vrot.lane.b32.xlu0 %v780, 64
      %v806 = vpop.permute.xlu0 %805
      %807 = vrot.lane.b32.xlu0 %v787, 64
      %v808 = vpop.permute.xlu0 %807
      %809 = vrot.lane.b32.xlu0 %v794, 64
      %v810 = vpop.permute.xlu0 %809
      %v819 = vunpack.c.l.b16 %v691
      %v820 = vunpack.c.l.b16 %v692
      %v821 = vunpack.c.l.b16 %v693
      %v822 = vunpack.c.l.b16 %v694
      %v823 = vunpack.c.l.b16 %v695
      %v824 = vunpack.c.l.b16 %v696
      %v825 = vunpack.c.l.b16 %v697
      %v826 = vunpack.c.l.b16 %v698
      %v827 = vpack.c.b16 %v716, %v819
      %v828 = vpack.c.b16 %v718, %v820
      %v829 = vpack.c.b16 %v720, %v821
      %v830 = vpack.c.b16 %v722, %v822
      %v831 = vpack.c.b16 %v724, %v823
      %v832 = vpack.c.b16 %v726, %v824
      %v833 = vpack.c.b16 %v728, %v825
      %v834 = vpack.c.b16 %v730, %v826
      %v835 = vrot.slane %v827, 1
      %v836 = vrot.slane %v828, 1
      %v837 = vrot.slane %v829, 1
      %v838 = vrot.slane %v830, 1
      %v839 = vrot.slane %v831, 1
      %v840 = vrot.slane %v832, 1
      %v841 = vrot.slane %v833, 1
      %v842 = vrot.slane %v834, 1
      %v845 = vsel %vm601, %v675, %v796
      %v848 = vsel %vm601, %v676, %v798
      %v851 = vsel %vm601, %v677, %v800
      %v854 = vsel %vm601, %v678, %v802
      %v857 = vsel %vm601, %v679, %v804
      %v860 = vsel %vm601, %v680, %v806
      %v863 = vsel %vm601, %v681, %v808
      %v866 = vsel %vm601, %v682, %v810
      %v875 = vunpack.c.l.b16 %v845
      %v876 = vunpack.c.l.b16 %v835
      %v877 = vunpack.c.l.b16 %v848
      %v878 = vunpack.c.l.b16 %v836
      %v879 = vunpack.c.l.b16 %v851
      %v880 = vunpack.c.l.b16 %v837
      %v881 = vunpack.c.l.b16 %v854
      %v882 = vunpack.c.l.b16 %v838
      %v883 = vunpack.c.l.b16 %v857
      %v884 = vunpack.c.l.b16 %v839
      %v885 = vunpack.c.l.b16 %v860
      %v886 = vunpack.c.l.b16 %v840
      %v887 = vunpack.c.l.b16 %v863
      %v888 = vunpack.c.l.b16 %v841
      %v889 = vunpack.c.l.b16 %v866
      %v890 = vunpack.c.l.b16 %v842
      %s891 = scalar_lea.vmem %s3, 96
      %v892 = vld [vmem:[%s891] sm:$0xf]
      %v893 = vld [vmem:[%s891 + $0x4] sm:$0xf]
      %v894 = vld [vmem:[%s891 + $0x8] sm:$0xf]
      %v895 = vld [vmem:[%s891 + $0xc] sm:$0xf]
      %v896 = vld [vmem:[%s891 + $0x10] sm:$0xf]
      %v897 = vld [vmem:[%s891 + $0x14] sm:$0xf]
      %v898 = vld [vmem:[%s891 + $0x18] sm:$0xf]
      %v899 = vld [vmem:[%s891 + $0x1c] sm:$0xf]
      %v900 = vld [vmem:[%s891 + $0x20] sm:$0xf]
      %v901 = vld [vmem:[%s891 + $0x24] sm:$0xf]
      %v902 = vld [vmem:[%s891 + $0x28] sm:$0xf]
      %v903 = vld [vmem:[%s891 + $0x2c] sm:$0xf]
      %v904 = vld [vmem:[%s891 + $0x30] sm:$0xf]
      %v905 = vld [vmem:[%s891 + $0x34] sm:$0xf]
      %v906 = vld [vmem:[%s891 + $0x38] sm:$0xf]
      %v907 = vld [vmem:[%s891 + $0x3c] sm:$0xf]
      %v908 = vld [vmem:[%s891 + $0x40] sm:$0xf]
      %v909 = vld [vmem:[%s891 + $0x44] sm:$0xf]
      %v910 = vld [vmem:[%s891 + $0x48] sm:$0xf]
      %v911 = vld [vmem:[%s891 + $0x4c] sm:$0xf]
      %v912 = vld [vmem:[%s891 + $0x50] sm:$0xf]
      %v913 = vld [vmem:[%s891 + $0x54] sm:$0xf]
      %v914 = vld [vmem:[%s891 + $0x58] sm:$0xf]
      %v915 = vld [vmem:[%s891 + $0x5c] sm:$0xf]
      %v916 = vpack.c.b16 %v877, %v875
      %v917 = vpack.c.b16 %v878, %v876
      %v918 = vpack.c.b16 %v881, %v879
      %v919 = vpack.c.b16 %v882, %v880
      %v920 = vpack.c.b16 %v885, %v883
      %v921 = vpack.c.b16 %v886, %v884
      %v922 = vpack.c.b16 %v889, %v887
      %v923 = vpack.c.b16 %v890, %v888
      %v952 = vunpack.c.l.b16 %v892
      %v953 = vunpack.c.l.b16 %v893
      %v954 = vunpack.c.l.b16 %v894
      %v955 = vunpack.c.l.b16 %v895
      %v956 = vunpack.c.l.b16 %v896
      %v957 = vunpack.c.l.b16 %v897
      %v958 = vunpack.c.l.b16 %v898
      %v959 = vunpack.c.l.b16 %v899
      %v960 = vunpack.c.l.b16 %v900
      %v961 = vunpack.c.l.b16 %v901
      %v962 = vunpack.c.l.b16 %v902
      %v963 = vunpack.c.l.b16 %v903
      %v964 = vunpack.c.l.b16 %v904
      %v965 = vunpack.c.l.b16 %v905
      %v966 = vunpack.c.l.b16 %v906
      %v967 = vunpack.c.l.b16 %v907
      %v968 = vunpack.c.l.b16 %v908
      %v969 = vunpack.c.l.b16 %v909
      %v970 = vunpack.c.l.b16 %v910
      %v971 = vunpack.c.l.b16 %v911
      %v972 = vunpack.c.l.b16 %v912
      %v973 = vunpack.c.l.b16 %v913
      %v974 = vunpack.c.l.b16 %v914
      %v975 = vunpack.c.l.b16 %v915
      %v976 = vpack.c.b16 %v953, %v952
      %v977 = vpack.c.b16 %v955, %v954
      %v978 = vpack.c.b16 %v957, %v956
      %v979 = vpack.c.b16 %v959, %v958
      %v980 = vpack.c.b16 %v961, %v960
      %v981 = vpack.c.b16 %v963, %v962
      %v982 = vpack.c.b16 %v965, %v964
      %v983 = vpack.c.b16 %v967, %v966
      %v984 = vpack.c.b16 %v969, %v968
      %v985 = vpack.c.b16 %v971, %v970
      %v986 = vpack.c.b16 %v973, %v972
      %v987 = vpack.c.b16 %v975, %v974
      %v1001 = vsel %vm601, %v917, 0
      %v1004 = vsel %vm601, %v919, 0
      %v1007 = vsel %vm601, %v921, 0
      %v1010 = vsel %vm601, %v923, 0
      %1012 = vmatpush.bf16.msra.mxu0 %v983
      %1013 = vmatpush.bf16.msra.mxu0 %v982
      %1014 = vmatpush.bf16.msra.mxu0 %v981
      %1015 = vmatpush.bf16.msra.mxu0 %v980
      %1016 = vmatpush.bf16.msra.mxu0 %v979
      %1017 = vmatpush.bf16.msra.mxu0 %v978
      %1018 = vmatpush.bf16.msra.mxu0 %v977
      %1019 = vmatpush.bf16.msra.mxu0 %v976
      %1020 = vmatmul.bf16.gmra.mxu0 %v916
      %v1021 = vpop.f32.mrf.mxu0
      %v1022 = vadd.f32 0.0, %v1021
      %v1023 = vpop.f32.mrf.mxu0
      %v1024 = vadd.f32 0.0, %v1023
      %1025 = vmatmul.bf16.gmra.mxu0 %v918
      %v1026 = vpop.f32.mrf.mxu0
      %v1027 = vadd.f32 0.0, %v1026
      %v1028 = vpop.f32.mrf.mxu0
      %v1029 = vadd.f32 0.0, %v1028
      %1030 = vmatmul.bf16.gmra.mxu0 %v920
      %v1031 = vpop.f32.mrf.mxu0
      %v1032 = vadd.f32 0.0, %v1031
      %v1033 = vpop.f32.mrf.mxu0
      %v1034 = vadd.f32 0.0, %v1033
      %1035 = vmatmul.bf16.gmra.mxu0 %v922
      %v1036 = vpop.f32.mrf.mxu0
      %v1037 = vadd.f32 0.0, %v1036
      %v1038 = vpop.f32.mrf.mxu0
      %v1039 = vadd.f32 0.0, %v1038
      %1040 = vdwg.mxu0
      %1041 = vmatpush.bf16.msra.mxu0 0
      %1042 = vmatpush.bf16.msra.mxu0 0
      %1043 = vmatpush.bf16.msra.mxu0 0
      %1044 = vmatpush.bf16.msra.mxu0 0
      %1045 = vmatpush.bf16.msra.mxu0 %v987
      %1046 = vmatpush.bf16.msra.mxu0 %v986
      %1047 = vmatpush.bf16.msra.mxu0 %v985
      %1048 = vmatpush.bf16.msra.mxu0 %v984
      %1049 = vmatmul.bf16.gmra.mxu0 %v1001
      %v1050 = vpop.f32.mrf.mxu0
      %v1051 = vadd.f32 %v1022, %v1050
      %v1052 = vpop.f32.mrf.mxu0
      %v1053 = vadd.f32 %v1024, %v1052
      %1054 = vmatmul.bf16.gmra.mxu0 %v1004
      %v1055 = vpop.f32.mrf.mxu0
      %v1056 = vadd.f32 %v1027, %v1055
      %v1057 = vpop.f32.mrf.mxu0
      %v1058 = vadd.f32 %v1029, %v1057
      %1059 = vmatmul.bf16.gmra.mxu0 %v1007
      %v1060 = vpop.f32.mrf.mxu0
      %v1061 = vadd.f32 %v1032, %v1060
      %v1062 = vpop.f32.mrf.mxu0
      %v1063 = vadd.f32 %v1034, %v1062
      %1064 = vmatmul.bf16.gmra.mxu0 %v1010
      %v1065 = vpop.f32.mrf.mxu0
      %v1066 = vadd.f32 %v1037, %v1065
      %v1067 = vpop.f32.mrf.mxu0
      %v1068 = vadd.f32 %v1039, %v1067
      %1069 = vdwg.mxu0
      %v1070 = vpack.c.b16 %v636, %v634
      %v1071 = vpack.c.b16 %v637, %v635
      %v1072 = vpack.c.b16 %v640, %v638
      %v1073 = vpack.c.b16 %v641, %v639
      %v1074 = vpack.c.b16 %v644, %v642
      %v1075 = vpack.c.b16 %v645, %v643
      %v1076 = vpack.c.b16 %v648, %v646
      %v1077 = vpack.c.b16 %v649, %v647
      %v1106 = vunpack.c.l.b16 %v650
      %v1107 = vunpack.c.l.b16 %v651
      %v1108 = vunpack.c.l.b16 %v652
      %v1109 = vunpack.c.l.b16 %v653
      %v1110 = vunpack.c.l.b16 %v654
      %v1111 = vunpack.c.l.b16 %v655
      %v1112 = vunpack.c.l.b16 %v656
      %v1113 = vunpack.c.l.b16 %v657
      %v1114 = vunpack.c.l.b16 %v658
      %v1115 = vunpack.c.l.b16 %v659
      %v1116 = vunpack.c.l.b16 %v660
      %v1117 = vunpack.c.l.b16 %v661
      %v1118 = vunpack.c.l.b16 %v662
      %v1119 = vunpack.c.l.b16 %v663
      %v1120 = vunpack.c.l.b16 %v664
      %v1121 = vunpack.c.l.b16 %v665
      %v1122 = vunpack.c.l.b16 %v666
      %v1123 = vunpack.c.l.b16 %v667
      %v1124 = vunpack.c.l.b16 %v668
      %v1125 = vunpack.c.l.b16 %v669
      %v1126 = vunpack.c.l.b16 %v670
      %v1127 = vunpack.c.l.b16 %v671
      %v1128 = vunpack.c.l.b16 %v672
      %v1129 = vunpack.c.l.b16 %v673
      %v1130 = vpack.c.b16 %v1107, %v1106
      %v1131 = vpack.c.b16 %v1109, %v1108
      %v1132 = vpack.c.b16 %v1111, %v1110
      %v1133 = vpack.c.b16 %v1113, %v1112
      %v1134 = vpack.c.b16 %v1115, %v1114
      %v1135 = vpack.c.b16 %v1117, %v1116
      %v1136 = vpack.c.b16 %v1119, %v1118
      %v1137 = vpack.c.b16 %v1121, %v1120
      %v1138 = vpack.c.b16 %v1123, %v1122
      %v1139 = vpack.c.b16 %v1125, %v1124
      %v1140 = vpack.c.b16 %v1127, %v1126
      %v1141 = vpack.c.b16 %v1129, %v1128
      %v1155 = vsel %vm601, %v1071, 0
      %v1158 = vsel %vm601, %v1073, 0
      %v1161 = vsel %vm601, %v1075, 0
      %v1164 = vsel %vm601, %v1077, 0
      %1166 = vmatpush.bf16.msra.mxu0 %v1137
      %1167 = vmatpush.bf16.msra.mxu0 %v1136
      %1168 = vmatpush.bf16.msra.mxu0 %v1135
      %1169 = vmatpush.bf16.msra.mxu0 %v1134
      %1170 = vmatpush.bf16.msra.mxu0 %v1133
      %1171 = vmatpush.bf16.msra.mxu0 %v1132
      %1172 = vmatpush.bf16.msra.mxu0 %v1131
      %1173 = vmatpush.bf16.msra.mxu0 %v1130
      %1174 = vmatmul.bf16.gmra.mxu0 %v1070
      %v1175 = vpop.f32.mrf.mxu0
      %v1176 = vadd.f32 %v1051, %v1175
      %v1177 = vpop.f32.mrf.mxu0
      %v1178 = vadd.f32 %v1053, %v1177
      %1179 = vmatmul.bf16.gmra.mxu0 %v1072
      %v1180 = vpop.f32.mrf.mxu0
      %v1181 = vadd.f32 %v1056, %v1180
      %v1182 = vpop.f32.mrf.mxu0
      %v1183 = vadd.f32 %v1058, %v1182
      %1184 = vmatmul.bf16.gmra.mxu0 %v1074
      %v1185 = vpop.f32.mrf.mxu0
      %v1186 = vadd.f32 %v1061, %v1185
      %v1187 = vpop.f32.mrf.mxu0
      %v1188 = vadd.f32 %v1063, %v1187
      %1189 = vmatmul.bf16.gmra.mxu0 %v1076
      %v1190 = vpop.f32.mrf.mxu0
      %v1191 = vadd.f32 %v1066, %v1190
      %v1192 = vpop.f32.mrf.mxu0
      %v1193 = vadd.f32 %v1068, %v1192
      %1194 = vdwg.mxu0
      %1195 = vmatpush.bf16.msra.mxu0 0
      %1196 = vmatpush.bf16.msra.mxu0 0
      %1197 = vmatpush.bf16.msra.mxu0 0
      %1198 = vmatpush.bf16.msra.mxu0 0
      %1199 = vmatpush.bf16.msra.mxu0 %v1141
      %1200 = vmatpush.bf16.msra.mxu0 %v1140
      %1201 = vmatpush.bf16.msra.mxu0 %v1139
      %1202 = vmatpush.bf16.msra.mxu0 %v1138
      %1203 = vmatmul.bf16.gmra.mxu0 %v1155
      %v1204 = vpop.f32.mrf.mxu0
      %v1205 = vadd.f32 %v1176, %v1204
      %v1206 = vpop.f32.mrf.mxu0
      %v1207 = vadd.f32 %v1178, %v1206
      %1208 = vmatmul.bf16.gmra.mxu0 %v1158
      %v1209 = vpop.f32.mrf.mxu0
      %v1210 = vadd.f32 %v1181, %v1209
      %v1211 = vpop.f32.mrf.mxu0
      %v1212 = vadd.f32 %v1183, %v1211
      %1213 = vmatmul.bf16.gmra.mxu0 %v1161
      %v1214 = vpop.f32.mrf.mxu0
      %v1215 = vadd.f32 %v1186, %v1214
      %v1216 = vpop.f32.mrf.mxu0
      %v1217 = vadd.f32 %v1188, %v1216
      %1218 = vmatmul.bf16.gmra.mxu0 %v1164
      %v1219 = vpop.f32.mrf.mxu0
      %v1220 = vadd.f32 %v1191, %v1219
      %v1221 = vpop.f32.mrf.mxu0
      %v1222 = vadd.f32 %v1193, %v1221
      %1223 = vdwg.mxu0
      %s1224 = scalar_lea.vmem [#allocation2], 16
      %v1225 = vld [vmem:[%s1224] sm:$0xf]
      %v1226 = vld [vmem:[%s1224 + $0x8] sm:$0xf]
      %v1227 = vld [vmem:[%s1224 + $0x10] sm:$0xf]
      %v1228 = vld [vmem:[%s1224 + $0x18] sm:$0xf]
      %v1229 = vld [vmem:[%s1224 + $0x20] sm:$0xf]
      %v1230 = vld [vmem:[%s1224 + $0x28] sm:$0xf]
      %v1231 = vld [vmem:[%s1224 + $0x30] sm:$0xf]
      %v1232 = vld [vmem:[%s1224 + $0x38] sm:$0xf]
      %v1233 = vld [vmem:[%s1224 + $0x4] sm:$0x1]
      %v1234 = vld [vmem:[%s1224 + $0xc] sm:$0x1]
      %v1235 = vld [vmem:[%s1224 + $0x14] sm:$0x1]
      %v1236 = vld [vmem:[%s1224 + $0x1c] sm:$0x1]
      %v1237 = vld [vmem:[%s1224 + $0x24] sm:$0x1]
      %v1238 = vld [vmem:[%s1224 + $0x2c] sm:$0x1]
      %v1239 = vld [vmem:[%s1224 + $0x34] sm:$0x1]
      %v1240 = vld [vmem:[%s1224 + $0x3c] sm:$0x1]
      %v1241 = vld [vmem:[%s1224] sm:$0xe]
      %v1242 = vld [vmem:[%s1224 + $0x8] sm:$0xe]
      %v1243 = vld [vmem:[%s1224 + $0x10] sm:$0xe]
      %v1244 = vld [vmem:[%s1224 + $0x18] sm:$0xe]
      %v1245 = vld [vmem:[%s1224 + $0x20] sm:$0xe]
      %v1246 = vld [vmem:[%s1224 + $0x28] sm:$0xe]
      %v1247 = vld [vmem:[%s1224 + $0x30] sm:$0xe]
      %v1248 = vld [vmem:[%s1224 + $0x38] sm:$0xe]
      %v1265 = vunpack.c.l.b16 %v1225
      %v1266 = vunpack.c.l.b16 %v1233
      %v1267 = vunpack.c.l.b16 %v1226
      %v1268 = vunpack.c.l.b16 %v1234
      %v1269 = vunpack.c.l.b16 %v1227
      %v1270 = vunpack.c.l.b16 %v1235
      %v1271 = vunpack.c.l.b16 %v1228
      %v1272 = vunpack.c.l.b16 %v1236
      %v1273 = vunpack.c.l.b16 %v1229
      %v1274 = vunpack.c.l.b16 %v1237
      %v1275 = vunpack.c.l.b16 %v1230
      %v1276 = vunpack.c.l.b16 %v1238
      %v1277 = vunpack.c.l.b16 %v1231
      %v1278 = vunpack.c.l.b16 %v1239
      %v1279 = vunpack.c.l.b16 %v1232
      %v1280 = vunpack.c.l.b16 %v1240
      %v1281 = vpack.c.b16 %v1266, %v1265
      %v1282 = vpack.c.b16 %v1268, %v1267
      %v1283 = vpack.c.b16 %v1270, %v1269
      %v1284 = vpack.c.b16 %v1272, %v1271
      %v1285 = vpack.c.b16 %v1274, %v1273
      %v1286 = vpack.c.b16 %v1276, %v1275
      %v1287 = vpack.c.b16 %v1278, %v1277
      %v1288 = vpack.c.b16 %v1280, %v1279
      %v1290 = vshrl.u32 %v1281, 16
      %v1292 = vshll.u32 %v1281, 16
      %v1294 = vrot.slane %v1292, 1
      %v1295 = vor.u32 %v1290, %v1294
      %v1297 = vshrl.u32 %v1282, 16
      %v1299 = vshll.u32 %v1282, 16
      %v1301 = vrot.slane %v1299, 1
      %v1302 = vor.u32 %v1297, %v1301
      %v1304 = vshrl.u32 %v1283, 16
      %v1306 = vshll.u32 %v1283, 16
      %v1308 = vrot.slane %v1306, 1
      %v1309 = vor.u32 %v1304, %v1308
      %v1311 = vshrl.u32 %v1284, 16
      %v1313 = vshll.u32 %v1284, 16
      %v1315 = vrot.slane %v1313, 1
      %v1316 = vor.u32 %v1311, %v1315
      %v1318 = vshrl.u32 %v1285, 16
      %v1320 = vshll.u32 %v1285, 16
      %v1322 = vrot.slane %v1320, 1
      %v1323 = vor.u32 %v1318, %v1322
      %v1325 = vshrl.u32 %v1286, 16
      %v1327 = vshll.u32 %v1286, 16
      %v1329 = vrot.slane %v1327, 1
      %v1330 = vor.u32 %v1325, %v1329
      %v1332 = vshrl.u32 %v1287, 16
      %v1334 = vshll.u32 %v1287, 16
      %v1336 = vrot.slane %v1334, 1
      %v1337 = vor.u32 %v1332, %v1336
      %v1339 = vshrl.u32 %v1288, 16
      %v1341 = vshll.u32 %v1288, 16
      %v1343 = vrot.slane %v1341, 1
      %v1344 = vor.u32 %v1339, %v1343
      %1345 = vrot.lane.b32.xlu0 %v1295, 64
      %v1346 = vpop.permute.xlu0 %1345
      %1347 = vrot.lane.b32.xlu0 %v1302, 64
      %v1348 = vpop.permute.xlu0 %1347
      %1349 = vrot.lane.b32.xlu0 %v1309, 64
      %v1350 = vpop.permute.xlu0 %1349
      %1351 = vrot.lane.b32.xlu0 %v1316, 64
      %v1352 = vpop.permute.xlu0 %1351
      %1353 = vrot.lane.b32.xlu0 %v1323, 64
      %v1354 = vpop.permute.xlu0 %1353
      %1355 = vrot.lane.b32.xlu0 %v1330, 64
      %v1356 = vpop.permute.xlu0 %1355
      %1357 = vrot.lane.b32.xlu0 %v1337, 64
      %v1358 = vpop.permute.xlu0 %1357
      %1359 = vrot.lane.b32.xlu0 %v1344, 64
      %v1360 = vpop.permute.xlu0 %1359
      %v1369 = vunpack.c.l.b16 %v1241
      %v1370 = vunpack.c.l.b16 %v1242
      %v1371 = vunpack.c.l.b16 %v1243
      %v1372 = vunpack.c.l.b16 %v1244
      %v1373 = vunpack.c.l.b16 %v1245
      %v1374 = vunpack.c.l.b16 %v1246
      %v1375 = vunpack.c.l.b16 %v1247
      %v1376 = vunpack.c.l.b16 %v1248
      %v1377 = vpack.c.b16 %v1266, %v1369
      %v1378 = vpack.c.b16 %v1268, %v1370
      %v1379 = vpack.c.b16 %v1270, %v1371
      %v1380 = vpack.c.b16 %v1272, %v1372
      %v1381 = vpack.c.b16 %v1274, %v1373
      %v1382 = vpack.c.b16 %v1276, %v1374
      %v1383 = vpack.c.b16 %v1278, %v1375
      %v1384 = vpack.c.b16 %v1280, %v1376
      %v1385 = vrot.slane %v1377, 1
      %v1386 = vrot.slane %v1378, 1
      %v1387 = vrot.slane %v1379, 1
      %v1388 = vrot.slane %v1380, 1
      %v1389 = vrot.slane %v1381, 1
      %v1390 = vrot.slane %v1382, 1
      %v1391 = vrot.slane %v1383, 1
      %v1392 = vrot.slane %v1384, 1
      %v1395 = vsel %vm601, %v1225, %v1346
      %v1398 = vsel %vm601, %v1226, %v1348
      %v1401 = vsel %vm601, %v1227, %v1350
      %v1404 = vsel %vm601, %v1228, %v1352
      %v1407 = vsel %vm601, %v1229, %v1354
      %v1410 = vsel %vm601, %v1230, %v1356
      %v1413 = vsel %vm601, %v1231, %v1358
      %v1416 = vsel %vm601, %v1232, %v1360
      %v1425 = vunpack.c.l.b16 %v1395
      %v1426 = vunpack.c.l.b16 %v1385
      %v1427 = vunpack.c.l.b16 %v1398
      %v1428 = vunpack.c.l.b16 %v1386
      %v1429 = vunpack.c.l.b16 %v1401
      %v1430 = vunpack.c.l.b16 %v1387
      %v1431 = vunpack.c.l.b16 %v1404
      %v1432 = vunpack.c.l.b16 %v1388
      %v1433 = vunpack.c.l.b16 %v1407
      %v1434 = vunpack.c.l.b16 %v1389
      %v1435 = vunpack.c.l.b16 %v1410
      %v1436 = vunpack.c.l.b16 %v1390
      %v1437 = vunpack.c.l.b16 %v1413
      %v1438 = vunpack.c.l.b16 %v1391
      %v1439 = vunpack.c.l.b16 %v1416
      %v1440 = vunpack.c.l.b16 %v1392
      %s1441 = scalar_lea.vmem %s3, 192
      %v1442 = vld [vmem:[%s1441] sm:$0xf]
      %v1443 = vld [vmem:[%s1441 + $0x4] sm:$0xf]
      %v1444 = vld [vmem:[%s1441 + $0x8] sm:$0xf]
      %v1445 = vld [vmem:[%s1441 + $0xc] sm:$0xf]
      %v1446 = vld [vmem:[%s1441 + $0x10] sm:$0xf]
      %v1447 = vld [vmem:[%s1441 + $0x14] sm:$0xf]
      %v1448 = vld [vmem:[%s1441 + $0x18] sm:$0xf]
      %v1449 = vld [vmem:[%s1441 + $0x1c] sm:$0xf]
      %v1450 = vld [vmem:[%s1441 + $0x20] sm:$0xf]
      %v1451 = vld [vmem:[%s1441 + $0x24] sm:$0xf]
      %v1452 = vld [vmem:[%s1441 + $0x28] sm:$0xf]
      %v1453 = vld [vmem:[%s1441 + $0x2c] sm:$0xf]
      %v1454 = vld [vmem:[%s1441 + $0x30] sm:$0xf]
      %v1455 = vld [vmem:[%s1441 + $0x34] sm:$0xf]
      %v1456 = vld [vmem:[%s1441 + $0x38] sm:$0xf]
      %v1457 = vld [vmem:[%s1441 + $0x3c] sm:$0xf]
      %v1458 = vld [vmem:[%s1441 + $0x40] sm:$0xf]
      %v1459 = vld [vmem:[%s1441 + $0x44] sm:$0xf]
      %v1460 = vld [vmem:[%s1441 + $0x48] sm:$0xf]
      %v1461 = vld [vmem:[%s1441 + $0x4c] sm:$0xf]
      %v1462 = vld [vmem:[%s1441 + $0x50] sm:$0xf]
      %v1463 = vld [vmem:[%s1441 + $0x54] sm:$0xf]
      %v1464 = vld [vmem:[%s1441 + $0x58] sm:$0xf]
      %v1465 = vld [vmem:[%s1441 + $0x5c] sm:$0xf]
      %v1466 = vpack.c.b16 %v1427, %v1425
      %v1467 = vpack.c.b16 %v1428, %v1426
      %v1468 = vpack.c.b16 %v1431, %v1429
      %v1469 = vpack.c.b16 %v1432, %v1430
      %v1470 = vpack.c.b16 %v1435, %v1433
      %v1471 = vpack.c.b16 %v1436, %v1434
      %v1472 = vpack.c.b16 %v1439, %v1437
      %v1473 = vpack.c.b16 %v1440, %v1438
      %v1502 = vunpack.c.l.b16 %v1442
      %v1503 = vunpack.c.l.b16 %v1443
      %v1504 = vunpack.c.l.b16 %v1444
      %v1505 = vunpack.c.l.b16 %v1445
      %v1506 = vunpack.c.l.b16 %v1446
      %v1507 = vunpack.c.l.b16 %v1447
      %v1508 = vunpack.c.l.b16 %v1448
      %v1509 = vunpack.c.l.b16 %v1449
      %v1510 = vunpack.c.l.b16 %v1450
      %v1511 = vunpack.c.l.b16 %v1451
      %v1512 = vunpack.c.l.b16 %v1452
      %v1513 = vunpack.c.l.b16 %v1453
      %v1514 = vunpack.c.l.b16 %v1454
      %v1515 = vunpack.c.l.b16 %v1455
      %v1516 = vunpack.c.l.b16 %v1456
      %v1517 = vunpack.c.l.b16 %v1457
      %v1518 = vunpack.c.l.b16 %v1458
      %v1519 = vunpack.c.l.b16 %v1459
      %v1520 = vunpack.c.l.b16 %v1460
      %v1521 = vunpack.c.l.b16 %v1461
      %v1522 = vunpack.c.l.b16 %v1462
      %v1523 = vunpack.c.l.b16 %v1463
      %v1524 = vunpack.c.l.b16 %v1464
      %v1525 = vunpack.c.l.b16 %v1465
      %v1526 = vpack.c.b16 %v1503, %v1502
      %v1527 = vpack.c.b16 %v1505, %v1504
      %v1528 = vpack.c.b16 %v1507, %v1506
      %v1529 = vpack.c.b16 %v1509, %v1508
      %v1530 = vpack.c.b16 %v1511, %v1510
      %v1531 = vpack.c.b16 %v1513, %v1512
      %v1532 = vpack.c.b16 %v1515, %v1514
      %v1533 = vpack.c.b16 %v1517, %v1516
      %v1534 = vpack.c.b16 %v1519, %v1518
      %v1535 = vpack.c.b16 %v1521, %v1520
      %v1536 = vpack.c.b16 %v1523, %v1522
      %v1537 = vpack.c.b16 %v1525, %v1524
      %v1551 = vsel %vm601, %v1467, 0
      %v1554 = vsel %vm601, %v1469, 0
      %v1557 = vsel %vm601, %v1471, 0
      %v1560 = vsel %vm601, %v1473, 0
      %1562 = vmatpush.bf16.msra.mxu0 %v1533
      %1563 = vmatpush.bf16.msra.mxu0 %v1532
      %1564 = vmatpush.bf16.msra.mxu0 %v1531
      %1565 = vmatpush.bf16.msra.mxu0 %v1530
      %1566 = vmatpush.bf16.msra.mxu0 %v1529
      %1567 = vmatpush.bf16.msra.mxu0 %v1528
      %1568 = vmatpush.bf16.msra.mxu0 %v1527
      %1569 = vmatpush.bf16.msra.mxu0 %v1526
      %1570 = vmatmul.bf16.gmra.mxu0 %v1466
      %v1571 = vpop.f32.mrf.mxu0
      %v1572 = vadd.f32 0.0, %v1571
      %v1573 = vpop.f32.mrf.mxu0
      %v1574 = vadd.f32 0.0, %v1573
      %1575 = vmatmul.bf16.gmra.mxu0 %v1468
      %v1576 = vpop.f32.mrf.mxu0
      %v1577 = vadd.f32 0.0, %v1576
      %v1578 = vpop.f32.mrf.mxu0
      %v1579 = vadd.f32 0.0, %v1578
      %1580 = vmatmul.bf16.gmra.mxu0 %v1470
      %v1581 = vpop.f32.mrf.mxu0
      %v1582 = vadd.f32 0.0, %v1581
      %v1583 = vpop.f32.mrf.mxu0
      %v1584 = vadd.f32 0.0, %v1583
      %1585 = vmatmul.bf16.gmra.mxu0 %v1472
      %v1586 = vpop.f32.mrf.mxu0
      %v1587 = vadd.f32 0.0, %v1586
      %v1588 = vpop.f32.mrf.mxu0
      %v1589 = vadd.f32 0.0, %v1588
      %1590 = vdwg.mxu0
      %1591 = vmatpush.bf16.msra.mxu0 0
      %1592 = vmatpush.bf16.msra.mxu0 0
      %1593 = vmatpush.bf16.msra.mxu0 0
      %1594 = vmatpush.bf16.msra.mxu0 0
      %1595 = vmatpush.bf16.msra.mxu0 %v1537
      %1596 = vmatpush.bf16.msra.mxu0 %v1536
      %1597 = vmatpush.bf16.msra.mxu0 %v1535
      %1598 = vmatpush.bf16.msra.mxu0 %v1534
      %1599 = vmatmul.bf16.gmra.mxu0 %v1551
      %v1600 = vpop.f32.mrf.mxu0
      %v1601 = vadd.f32 %v1572, %v1600
      %v1602 = vpop.f32.mrf.mxu0
      %v1603 = vadd.f32 %v1574, %v1602
      %1604 = vmatmul.bf16.gmra.mxu0 %v1554
      %v1605 = vpop.f32.mrf.mxu0
      %v1606 = vadd.f32 %v1577, %v1605
      %v1607 = vpop.f32.mrf.mxu0
      %v1608 = vadd.f32 %v1579, %v1607
      %1609 = vmatmul.bf16.gmra.mxu0 %v1557
      %v1610 = vpop.f32.mrf.mxu0
      %v1611 = vadd.f32 %v1582, %v1610
      %v1612 = vpop.f32.mrf.mxu0
      %v1613 = vadd.f32 %v1584, %v1612
      %1614 = vmatmul.bf16.gmra.mxu0 %v1560
      %v1615 = vpop.f32.mrf.mxu0
      %v1616 = vadd.f32 %v1587, %v1615
      %v1617 = vpop.f32.mrf.mxu0
      %v1618 = vadd.f32 %v1589, %v1617
      %1619 = vdwg.mxu0
      %v1620 = vadd.f32 %v1205, %v1601
      %v1621 = vadd.f32 %v1207, %v1603
      %v1622 = vadd.f32 %v1210, %v1606
      %v1623 = vadd.f32 %v1212, %v1608
      %v1624 = vadd.f32 %v1215, %v1611
      %v1625 = vadd.f32 %v1217, %v1613
      %v1626 = vadd.f32 %v1220, %v1616
      %v1627 = vadd.f32 %v1222, %v1618
      %v1628 = vld [vmem:[%s4] sm:$0x1]
      %v1630 = vperm.slane %v1628, 0
      %v1632 = vadd.f32 %v1620, %v1630
      %v1633 = vadd.f32 %v1621, %v1630
      %v1634 = vadd.f32 %v1622, %v1630
      %v1635 = vadd.f32 %v1623, %v1630
      %v1636 = vadd.f32 %v1624, %v1630
      %v1637 = vadd.f32 %v1625, %v1630
      %v1638 = vadd.f32 %v1626, %v1630
      %v1639 = vadd.f32 %v1627, %v1630
      %v1640 = vmax.f32 %v1632, 0.0
      %v1641 = vmax.f32 %v1633, 0.0
      %v1642 = vmax.f32 %v1634, 0.0
      %v1643 = vmax.f32 %v1635, 0.0
      %v1644 = vmax.f32 %v1636, 0.0
      %v1645 = vmax.f32 %v1637, 0.0
      %v1646 = vmax.f32 %v1638, 0.0
      %v1647 = vmax.f32 %v1639, 0.0
      %v1648 = vpack.c.bf16 %v1640, %v1640
      %v1649 = vpack.c.bf16 %v1641, %v1641
      %v1650 = vpack.c.bf16 %v1642, %v1642
      %v1651 = vpack.c.bf16 %v1643, %v1643
      %v1652 = vpack.c.bf16 %v1644, %v1644
      %v1653 = vpack.c.bf16 %v1645, %v1645
      %v1654 = vpack.c.bf16 %v1646, %v1646
      %v1655 = vpack.c.bf16 %v1647, %v1647
      %1656 = vst [vmem:[%s386] sm:$0xf] %v1648
      %1657 = vst [vmem:[%s386 + $0x4] sm:$0xf] %v1649
      %1658 = vst [vmem:[%s386 + $0x8] sm:$0xf] %v1650
      %1659 = vst [vmem:[%s386 + $0xc] sm:$0xf] %v1651
      %1660 = vst [vmem:[%s386 + $0x10] sm:$0xf] %v1652
      %1661 = vst [vmem:[%s386 + $0x14] sm:$0xf] %v1653
      %1662 = vst [vmem:[%s386 + $0x18] sm:$0xf] %v1654
      %1663 = vst [vmem:[%s386 + $0x1c] sm:$0xf] %v1655
      %s1664 = smul.u32 8, %s21
      %p1665 = scmp.lt.s32.totalorder %s20, 3
      %s1666 = scalar_select %p1665, %s20, 3
      %p1667 = scmp.lt.s32.totalorder %s1664, 7
      %s1668 = scalar_select %p1667, %s1664, 7
      %s1669 = smul.addr %s1666, 8
      %s1670 = sadd.s32 %s1668, %s1669
      %s1671 = smul.addr %s1670, 4
      %s1672 = scalar_lea.vmem %s5, %s1671
      // Predicated region
      $region41: #{_lambda_.10} parent=39 // pred_check
        %p1673 = pneg %p182
      $region42: #{_lambda_.10} parent=39 // pred_check_branch
        %1675 = sbr.rel (%p1673) target = $region44
      $region43: #{_lambda_.10} parent=39 // pred_region
        %s1676 = smul.u32 8, %s21
      $region44: #{_lambda_.10} parent=39 // pred_fallthru
        _
    $region40: #{_lambda_.10} parent=5 // pred_fallthru
      _
    %p1677 = scmp.le.s32.totalorder 2, %s11
    // Predicated region
    $region45: #{_lambda_.10} parent=5 // pred_check
      %p1678 = pneg %p1677
    $region46: #{_lambda_.10} parent=5 // pred_check_branch
      %1680 = sbr.rel (%p1678) target = $region48
    $region47: #{_lambda_.10} parent=5 // pred_region
      %s1681 = ssub.s32 %s11, 2
      // Predicated region
      $region49: #{_lambda_.10} parent=47 // pred_check
        %p1682 = pneg %p188
      $region50: #{_lambda_.10} parent=47 // pred_check_branch
        %1684 = sbr.rel (%p1682) target = $region52
      $region51: #{_lambda_.10} parent=47 // pred_region
        %s1685 = smul.u32 8, %s23
        %p1686 = scmp.lt.s32.totalorder %s22, 3
        %s1687 = scalar_select %p1686, %s22, 3
        %p1688 = scmp.lt.s32.totalorder %s1685, 7
        %s1689 = scalar_select %p1688, %s1685, 7
        %s1690 = smul.addr %s1687, 8
        %s1691 = sadd.s32 %s1689, %s1690
        %s1692 = smul.addr %s1691, 4
        %s1693 = scalar_lea.vmem %s5, %s1692
      $region52: #{_lambda_.10} parent=47 // pred_fallthru
        _
    $region48: #{_lambda_.10} parent=5 // pred_fallthru
      _
  $region6: #{_lambda_.10} parent=0 // loop_footer
    %s15 = sadd.s32 1, %s11
  $region7: #{_lambda_.10} parent=0 // loop_footer_branch
    %10 = sbr.rel target = $region3
  $region8: #{_lambda_.10} parent=0 // loop_exit
    _

// kernel: _lambda_.13
$region0: #{_lambda_.13}
  #allocation0 [shape = 'u32[]', space=smem, size = 0x4, offset = 0x4, fixed_abs, tag = 'smem constant byte address 0x4 - core index']
  #allocation1 [shape = 'u32[72,128]{1,0:T(1,128)}', space=vmem, size = 0x9000, scoped, tag = 'internal scratch']
  %s0 = inlined_call_operand.vmem [shape: bf16[256,128], index: 0, kind: input, shape index: {}, may-alias: {0,1}]
  %s1 = inlined_call_operand.vmem [shape: bf16[256,128], index: 1, kind: input, shape index: {}, may-alias: {0,1}]
  %s2 = inlined_call_operand.hbm [shape: f32[1,1], index: 2, kind: output, shape index: {}]
  %s3 = sld [smem:[#allocation0]]
  $region22: #{_lambda_.13} parent=0
    _
  %s5 = ssub.s32 1, %s3
  %s6 = scalar_select 0, %s5, %s3
  $region1: #{_lambda_.13} parent=0
    #allocation2 [shape = 'u8[512]{0}', space=smem, size = 0x200, scoped, tag = 'output window, operand 0, single buffered']
    #allocation3 [shape = 's32[1]{0}', space=sflag, size = 0x4, scoped, tag = 'scoped memory for _lambda_.13']
    %7 = vsyncpa [#allocation3], 0
    // Predicated region
    $region2: #{_lambda_.13} parent=1 // pred_check
      _
    $region3: #{_lambda_.13} parent=1 // pred_check_branch
      %9 = sbr.rel (0) target = $region5
    $region4: #{_lambda_.13} parent=1 // pred_region
      _
    $region5: #{_lambda_.13} parent=1 // pred_fallthru
      _
    // Predicated region
    $region6: #{_lambda_.13} parent=1 // pred_check
      _
    $region7: #{_lambda_.13} parent=1 // pred_check_branch
      %11 = sbr.rel (0) target = $region9
    $region8: #{_lambda_.13} parent=1 // pred_region
      %s12 = sadd.s32 0, 1
      %s13 = smul.u32 16, %s12
      %p14 = scmp.lt.s32.totalorder %s13, 31
      %s15 = scalar_select %p14, %s13, 31
      %s16 = smul.addr %s15, 4
      %s17 = scalar_lea.vmem %s1, %s16
      %s18 = sadd.s32 0, 1
      %s19 = smul.u32 16, %s18
    $region9: #{_lambda_.13} parent=1 // pred_fallthru
      _
    %s20 = sadd.s32 0, 1
    %s21 = smul.u32 16, %s20
    %p22 = scmp.lt.s32.totalorder %s21, 31
    %s23 = scalar_select %p22, %s21, 31
    %s24 = smul.addr %s23, 4
    %s25 = scalar_lea.vmem %s1, %s24
    %s26 = sadd.s32 0, 1
    %s27 = smul.u32 16, %s26
    %p28 = scmp.lt.s32.totalorder %s27, 31
    %s29 = scalar_select %p28, %s27, 31
    %s30 = smul.addr %s29, 4
    %s31 = scalar_lea.vmem %s1, %s30
    %s32 = sadd.s32 0, 1
    %s33 = smul.u32 16, %s32
    %p34 = scmp.eq.s32.totalorder 0, 0
    // Predicated region
    $region10: #{_lambda_.13} parent=1 // pred_check
      %p35 = pneg %p34
    $region11: #{_lambda_.13} parent=1 // pred_check_branch
      %37 = sbr.rel (%p35) target = $region13
    $region12: #{_lambda_.13} parent=1 // pred_region
      %s38 = scalar_lea.smem [#allocation2], 0
      %39 = sst [smem:[%s38]] 0.0
    $region13: #{_lambda_.13} parent=1 // pred_fallthru
      _
    %v40 = vld [vmem:[%s0] sm:$0xf]
    %v41 = vld [vmem:[%s0 + $0x4] sm:$0xf]
    %v42 = vld [vmem:[%s0 + $0x8] sm:$0xf]
    %v43 = vld [vmem:[%s0 + $0xc] sm:$0xf]
    %v44 = vld [vmem:[%s0 + $0x10] sm:$0xf]
    %v45 = vld [vmem:[%s0 + $0x14] sm:$0xf]
    %v46 = vld [vmem:[%s0 + $0x18] sm:$0xf]
    %v47 = vld [vmem:[%s0 + $0x1c] sm:$0xf]
    %v48 = vld [vmem:[%s0 + $0x20] sm:$0xf]
    %v49 = vld [vmem:[%s0 + $0x24] sm:$0xf]
    %v50 = vld [vmem:[%s0 + $0x28] sm:$0xf]
    %v51 = vld [vmem:[%s0 + $0x2c] sm:$0xf]
    %v52 = vld [vmem:[%s0 + $0x30] sm:$0xf]
    %v53 = vld [vmem:[%s0 + $0x34] sm:$0xf]
    %v54 = vld [vmem:[%s0 + $0x38] sm:$0xf]
    %v55 = vld [vmem:[%s0 + $0x3c] sm:$0xf]
    %v56 = vunpack.c.l.bf16 %v40
    %v57 = vunpack.c.l.bf16 %v41
    %v58 = vunpack.c.l.bf16 %v42
    %v59 = vunpack.c.l.bf16 %v43
    %v60 = vunpack.c.l.bf16 %v44
    %v61 = vunpack.c.l.bf16 %v45
    %v62 = vunpack.c.l.bf16 %v46
    %v63 = vunpack.c.l.bf16 %v47
    %v64 = vunpack.c.l.bf16 %v48
    %v65 = vunpack.c.l.bf16 %v49
    %v66 = vunpack.c.l.bf16 %v50
    %v67 = vunpack.c.l.bf16 %v51
    %v68 = vunpack.c.l.bf16 %v52
    %v69 = vunpack.c.l.bf16 %v53
    %v70 = vunpack.c.l.bf16 %v54
    %v71 = vunpack.c.l.bf16 %v55
    %v72 = vld [vmem:[%s31] sm:$0xf]
    %v73 = vld [vmem:[%s31 + $0x4] sm:$0xf]
    %v74 = vld [vmem:[%s31 + $0x8] sm:$0xf]
    %v75 = vld [vmem:[%s31 + $0xc] sm:$0xf]
    %v76 = vld [vmem:[%s31 + $0x10] sm:$0xf]
    %v77 = vld [vmem:[%s31 + $0x14] sm:$0xf]
    %v78 = vld [vmem:[%s31 + $0x18] sm:$0xf]
    %v79 = vld [vmem:[%s31 + $0x1c] sm:$0xf]
    %v80 = vld [vmem:[%s31 + $0x20] sm:$0xf]
    %v81 = vld [vmem:[%s31 + $0x24] sm:$0xf]
    %v82 = vld [vmem:[%s31 + $0x28] sm:$0xf]
    %v83 = vld [vmem:[%s31 + $0x2c] sm:$0xf]
    %v84 = vld [vmem:[%s31 + $0x30] sm:$0xf]
    %v85 = vld [vmem:[%s31 + $0x34] sm:$0xf]
    %v86 = vld [vmem:[%s31 + $0x38] sm:$0xf]
    %v87 = vld [vmem:[%s31 + $0x3c] sm:$0xf]
    %v88 = vunpack.c.l.bf16 %v72
    %v89 = vunpack.c.l.bf16 %v73
    %v90 = vunpack.c.l.bf16 %v74
    %v91 = vunpack.c.l.bf16 %v75
    %v92 = vunpack.c.l.bf16 %v76
    %v93 = vunpack.c.l.bf16 %v77
    %v94 = vunpack.c.l.bf16 %v78
    %v95 = vunpack.c.l.bf16 %v79
    %v96 = vunpack.c.l.bf16 %v80
    %v97 = vunpack.c.l.bf16 %v81
    %v98 = vunpack.c.l.bf16 %v82
    %v99 = vunpack.c.l.bf16 %v83
    %v100 = vunpack.c.l.bf16 %v84
    %v101 = vunpack.c.l.bf16 %v85
    %v102 = vunpack.c.l.bf16 %v86
    %v103 = vunpack.c.l.bf16 %v87
    %v104 = vsub.f32 %v56, %v88
    %v105 = vsub.f32 %v57, %v89
    %v106 = vsub.f32 %v58, %v90
    %v107 = vsub.f32 %v59, %v91
    %v108 = vsub.f32 %v60, %v92
    %v109 = vsub.f32 %v61, %v93
    %v110 = vsub.f32 %v62, %v94
    %v111 = vsub.f32 %v63, %v95
    %v112 = vsub.f32 %v64, %v96
    %v113 = vsub.f32 %v65, %v97
    %v114 = vsub.f32 %v66, %v98
    %v115 = vsub.f32 %v67, %v99
    %v116 = vsub.f32 %v68, %v100
    %v117 = vsub.f32 %v69, %v101
    %v118 = vsub.f32 %v70, %v102
    %v119 = vsub.f32 %v71, %v103
    %s120 = sld [smem:[#allocation2]]
    %v121 = vmul.f32 %v104, %v104
    %v122 = vmul.f32 %v105, %v105
    %v123 = vmul.f32 %v106, %v106
    %v124 = vmul.f32 %v107, %v107
    %v125 = vmul.f32 %v108, %v108
    %v126 = vmul.f32 %v109, %v109
    %v127 = vmul.f32 %v110, %v110
    %v128 = vmul.f32 %v111, %v111
    %v129 = vmul.f32 %v112, %v112
    %v130 = vmul.f32 %v113, %v113
    %v131 = vmul.f32 %v114, %v114
    %v132 = vmul.f32 %v115, %v115
    %v133 = vmul.f32 %v116, %v116
    %v134 = vmul.f32 %v117, %v117
    %v135 = vmul.f32 %v118, %v118
    %v136 = vmul.f32 %v119, %v119
    %v137 = vadd.f32 %v121, %v122
    %v138 = vadd.f32 %v137, %v123
    %v139 = vadd.f32 %v138, %v124
    %v140 = vadd.f32 %v139, %v125
    %v141 = vadd.f32 %v140, %v126
    %v142 = vadd.f32 %v141, %v127
    %v143 = vadd.f32 %v142, %v128
    %v144 = vadd.f32 %v143, %v129
    %v145 = vadd.f32 %v144, %v130
    %v146 = vadd.f32 %v145, %v131
    %v147 = vadd.f32 %v146, %v132
    %v148 = vadd.f32 %v147, %v133
    %v149 = vadd.f32 %v148, %v134
    %v150 = vadd.f32 %v149, %v135
    %v151 = vadd.f32 %v150, %v136
    %152 = vadd.xlane.f32.xlu0 %v151
    %v153 = vpop.xlane.xlu0 %152
    %v154 = vrot.slane %v153, 4
    %v155 = vadd.f32 %v153, %v154
    %v156 = vrot.slane %v155, 2
    %v157 = vadd.f32 %v155, %v156
    %v158 = vrot.slane %v157, 1
    %v159 = vadd.f32 %v157, %v158
    %s160 = vtos %v159
    %s161 = sadd.f32 %s120, %s160
    %s162 = scalar_lea.smem [#allocation2], 0
    %163 = sst [smem:[%s162]] %s161
    // Predicated region
    $region14: #{_lambda_.13} parent=1 // pred_check
      _
    $region15: #{_lambda_.13} parent=1 // pred_check_branch
      %165 = sbr.rel (0) target = $region17
    $region16: #{_lambda_.13} parent=1 // pred_region
      %167 = vsyncadd [#allocation3], 0
      %s169 = sshll.u32 %s2, 4
      %s170 = int_to_ptr.hbm [resolvable:$true] %s169
      %172 = dma.smem_to_hbm [#allocation2], 16, %s170, [#allocation3]
    $region17: #{_lambda_.13} parent=1 // pred_fallthru
      _
    // Predicated region
    $region18: #{_lambda_.13} parent=1 // pred_check
      _
    $region19: #{_lambda_.13} parent=1 // pred_check_branch
      %174 = sbr.rel (0) target = $region21
    $region20: #{_lambda_.13} parent=1 // pred_region
      %176 = dma.done [#allocation3], 16
    $region21: #{_lambda_.13} parent=1 // pred_fallthru
      _
    %177 = sfence
    %178 = vsyncpa [#allocation3], 1

// kernel: _lambda_.11
$region0: #{_lambda_.11}
  #allocation0 [shape = 'u32[]', space=smem, size = 0x4, offset = 0x4, fixed_abs, tag = 'smem constant byte address 0x4 - core index']
  #allocation1 [shape = 'u32[72,128]{1,0:T(1,128)}', space=vmem, size = 0x9000, scoped, tag = 'internal scratch']
  #allocation2 [shape = 'bf16[10,10,128]{2,1,0:T(8,128)(2,1)}', space=vmem, size = 0xa000, scoped, tag = 'scratch operand']
  %s0 = inlined_call_operand.vmem [shape: bf16[4,10,10,128], index: 0, kind: input, shape index: {}, may-alias: {0,1,2}]
  %s1 = inlined_call_operand.vmem [shape: bf16[4,10,10,128], index: 1, kind: input, shape index: {}, may-alias: {0,1,2}]
  %s2 = inlined_call_operand.vmem [shape: bf16[4,10,10,128], index: 2, kind: input, shape index: {}, may-alias: {0,1,2}]
  %s3 = inlined_call_operand.vmem [shape: bf16[3,384,128], index: 3, kind: input, shape index: {}]
  %s4 = inlined_call_operand.vmem [shape: f32[1,128], index: 4, kind: input, shape index: {}]
  %s5 = inlined_call_operand.vmem [shape: bf16[4,8,8,128], index: 5, kind: output, shape index: {}]
  %s6 = sld [smem:[#allocation0]]
  $region53: #{_lambda_.11} parent=0
    _
  %s8 = ssub.s32 1, %s6
  %s9 = scalar_select 0, %s8, %s6
  loop: start=0, step=1, limit=6
  $region2: #{_lambda_.11} parent=0 // loop_pre_header
    _
  $region3: #{_lambda_.11} parent=0 // loop_header
    %s11 = sphi 0, %s15
    %p12 = scmp.ge.s32.totalorder %s11, 6
    %s18 = sphi 0, %s30
    %s19 = sphi 0, %s26
    %s20 = sphi 0, %s18
    %s21 = sphi 0, %s19
    %s22 = sphi 0, %s20
    %s23 = sphi 0, %s21
    %s35 = sphi 0, %s37
    %s38 = sphi 0, %s35
    %s39 = sphi 0, %s38
    %s55 = sphi 0, %s39
    %s67 = sphi 0, %s69
    %s70 = sphi 0, %s67
    %s71 = sphi 0, %s70
    %s87 = sphi 0, %s71
    %s99 = sphi 0, %s101
    %s102 = sphi 0, %s99
    %s103 = sphi 0, %s102
    %s119 = sphi 0, %s103
    %s123 = sphi 0, %s123
    %s125 = sphi 0, %s123
    %s126 = sphi 0, %s125
    %s140 = sphi 0, %s126
    %s144 = sphi 0, %s144
    %s146 = sphi 0, %s144
    %s147 = sphi 0, %s146
    %s161 = sphi 0, %s147
    %s169 = sphi 0, %s171
    %s172 = sphi 0, %s169
    %s173 = sphi 0, %s172
    %s189 = sphi 0, %s173
  $region4: #{_lambda_.11} parent=0 // loop_header_branch
    %14 = sbr.rel (%p12) target = $region8
  $region5: #{_lambda_.11} parent=0 // loop_body
    %s16 = ssub.s32 %s11, 1
    %s17 = ssub.s32 %s11, 2
    %s24 = sadd.s32 1, %s19
    %p25 = scmp.ge.s32.totalorder %s24, 1
    %s26 = scalar_select %p25, 0, %s24
    %s27 = sadd.s32 1, %s18
    %s28 = scalar_select %p25, %s27, %s18
    %p29 = scmp.ge.s32.totalorder %s28, 4
    %s30 = scalar_select %p29, 0, %s28
    %s31 = ssub.s32 %s18, %s30
    %s32 = ssub.s32 %s19, %s26
    %s33 = sor.u32 %s31, %s32
    %p34 = scmp.eq.s32.totalorder %s33, 0
    %s36 = sadd.s32 %s35, 1
    %s37 = scalar_select %p34, %s35, %s36
    %p40 = pneg %p34
    %p41 = scmp.eq.s32.totalorder %s11, 3
    %p42 = por %p40, %p41
    %p43 = scmp.ne.s32.totalorder %s35, %s38
    %p44 = scmp.eq.s32.totalorder %s11, 0
    %p45 = por %p43, %p44
    %p46 = scmp.ne.s32.totalorder %s35, %s38
    %p47 = scmp.eq.s32.totalorder %s16, 3
    %p48 = por %p46, %p47
    %p49 = scmp.ne.s32.totalorder %s38, %s39
    %p50 = scmp.eq.s32.totalorder %s16, 0
    %p51 = por %p49, %p50
    %p52 = scmp.ne.s32.totalorder %s38, %s39
    %p53 = scmp.eq.s32.totalorder %s17, 3
    %p54 = por %p52, %p53
    %p56 = scmp.ne.s32.totalorder %s39, %s55
    %p57 = scmp.eq.s32.totalorder %s17, 0
    %p58 = por %p56, %p57
    %s59 = smul.u32 %s19, 8
    %s60 = sadd.s32 %s59, 8
    %s61 = smul.u32 %s26, 8
    %s62 = sadd.s32 %s61, 8
    %s63 = ssub.s32 %s18, %s30
    %s64 = ssub.s32 %s60, %s62
    %s65 = sor.u32 %s63, %s64
    %p66 = scmp.eq.s32.totalorder %s65, 0
    %s68 = sadd.s32 %s67, 1
    %s69 = scalar_select %p66, %s67, %s68
    %p72 = pneg %p66
    %p73 = scmp.eq.s32.totalorder %s11, 3
    %p74 = por %p72, %p73
    %p75 = scmp.ne.s32.totalorder %s67, %s70
    %p76 = scmp.eq.s32.totalorder %s11, 0
    %p77 = por %p75, %p76
    %p78 = scmp.ne.s32.totalorder %s67, %s70
    %p79 = scmp.eq.s32.totalorder %s16, 3
    %p80 = por %p78, %p79
    %p81 = scmp.ne.s32.totalorder %s70, %s71
    %p82 = scmp.eq.s32.totalorder %s16, 0
    %p83 = por %p81, %p82
    %p84 = scmp.ne.s32.totalorder %s70, %s71
    %p85 = scmp.eq.s32.totalorder %s17, 3
    %p86 = por %p84, %p85
    %p88 = scmp.ne.s32.totalorder %s71, %s87
    %p89 = scmp.eq.s32.totalorder %s17, 0
    %p90 = por %p88, %p89
    %s91 = smul.u32 %s19, 8
    %s92 = sadd.s32 %s91, 9
    %s93 = smul.u32 %s26, 8
    %s94 = sadd.s32 %s93, 9
    %s95 = ssub.s32 %s18, %s30
    %s96 = ssub.s32 %s92, %s94
    %s97 = sor.u32 %s95, %s96
    %p98 = scmp.eq.s32.totalorder %s97, 0
    %s100 = sadd.s32 %s99, 1
    %s101 = scalar_select %p98, %s99, %s100
    %p104 = pneg %p98
    %p105 = scmp.eq.s32.totalorder %s11, 3
    %p106 = por %p104, %p105
    %p107 = scmp.ne.s32.totalorder %s99, %s102
    %p108 = scmp.eq.s32.totalorder %s11, 0
    %p109 = por %p107, %p108
    %p110 = scmp.ne.s32.totalorder %s99, %s102
    %p111 = scmp.eq.s32.totalorder %s16, 3
    %p112 = por %p110, %p111
    %p113 = scmp.ne.s32.totalorder %s102, %s103
    %p114 = scmp.eq.s32.totalorder %s16, 0
    %p115 = por %p113, %p114
    %p116 = scmp.ne.s32.totalorder %s102, %s103
    %p117 = scmp.eq.s32.totalorder %s17, 3
    %p118 = por %p116, %p117
    %p120 = scmp.ne.s32.totalorder %s103, %s119
    %p121 = scmp.eq.s32.totalorder %s17, 0
    %p122 = por %p120, %p121
    %s124 = sadd.s32 %s123, 1
    %p127 = scmp.eq.s32.totalorder %s11, 3
    %p128 = scmp.ne.s32.totalorder %s123, %s125
    %p129 = scmp.eq.s32.totalorder %s11, 0
    %p130 = por %p128, %p129
    %p131 = scmp.ne.s32.totalorder %s123, %s125
    %p132 = scmp.eq.s32.totalorder %s16, 3
    %p133 = por %p131, %p132
    %p134 = scmp.ne.s32.totalorder %s125, %s126
    %p135 = scmp.eq.s32.totalorder %s16, 0
    %p136 = por %p134, %p135
    %p137 = scmp.ne.s32.totalorder %s125, %s126
    %p138 = scmp.eq.s32.totalorder %s17, 3
    %p139 = por %p137, %p138
    %p141 = scmp.ne.s32.totalorder %s126, %s140
    %p142 = scmp.eq.s32.totalorder %s17, 0
    %p143 = por %p141, %p142
    %s145 = sadd.s32 %s144, 1
    %p148 = scmp.eq.s32.totalorder %s11, 3
    %p149 = scmp.ne.s32.totalorder %s144, %s146
    %p150 = scmp.eq.s32.totalorder %s11, 0
    %p151 = por %p149, %p150
    %p152 = scmp.ne.s32.totalorder %s144, %s146
    %p153 = scmp.eq.s32.totalorder %s16, 3
    %p154 = por %p152, %p153
    %p155 = scmp.ne.s32.totalorder %s146, %s147
    %p156 = scmp.eq.s32.totalorder %s16, 0
    %p157 = por %p155, %p156
    %p158 = scmp.ne.s32.totalorder %s146, %s147
    %p159 = scmp.eq.s32.totalorder %s17, 3
    %p160 = por %p158, %p159
    %p162 = scmp.ne.s32.totalorder %s147, %s161
    %p163 = scmp.eq.s32.totalorder %s17, 0
    %p164 = por %p162, %p163
    %s165 = ssub.s32 %s18, %s30
    %s166 = ssub.s32 %s19, %s26
    %s167 = sor.u32 %s165, %s166
    %p168 = scmp.eq.s32.totalorder %s167, 0
    %s170 = sadd.s32 %s169, 1
    %s171 = scalar_select %p168, %s169, %s170
    %p174 = pneg %p168
    %p175 = scmp.eq.s32.totalorder %s11, 3
    %p176 = por %p174, %p175
    %p177 = scmp.ne.s32.totalorder %s169, %s172
    %p178 = scmp.eq.s32.totalorder %s11, 0
    %p179 = por %p177, %p178
    %p180 = scmp.ne.s32.totalorder %s169, %s172
    %p181 = scmp.eq.s32.totalorder %s16, 3
    %p182 = por %p180, %p181
    %p183 = scmp.ne.s32.totalorder %s172, %s173
    %p184 = scmp.eq.s32.totalorder %s16, 0
    %p185 = por %p183, %p184
    %p186 = scmp.ne.s32.totalorder %s172, %s173
    %p187 = scmp.eq.s32.totalorder %s17, 3
    %p188 = por %p186, %p187
    %p190 = scmp.ne.s32.totalorder %s173, %s189
    %p191 = scmp.eq.s32.totalorder %s17, 0
    %p192 = por %p190, %p191
    %p193 = scmp.le.s32.totalorder 1, %s11
    %p194 = scmp.lt.s32.totalorder %s11, 5
    %p195 = pnand %p193, %p194
    %p196 = pneg %p195
    // Predicated region
    $region9: #{_lambda_.11} parent=5 // pred_check
      _
    $region10: #{_lambda_.11} parent=5 // pred_check_branch
      %198 = sbr.rel (%p195) target = $region12
    $region11: #{_lambda_.11} parent=5 // pred_region
      %s199 = ssub.s32 %s11, 1
      // Predicated region
      $region13: #{_lambda_.11} parent=11 // pred_check
        %p200 = pneg %p136
      $region14: #{_lambda_.11} parent=11 // pred_check_branch
        %202 = sbr.rel (%p200) target = $region16
      $region15: #{_lambda_.11} parent=11 // pred_region
        _
      $region16: #{_lambda_.11} parent=11 // pred_fallthru
        _
      // Predicated region
      $region17: #{_lambda_.11} parent=11 // pred_check
        %p203 = pneg %p157
      $region18: #{_lambda_.11} parent=11 // pred_check_branch
        %205 = sbr.rel (%p203) target = $region20
      $region19: #{_lambda_.11} parent=11 // pred_region
        _
      $region20: #{_lambda_.11} parent=11 // pred_fallthru
        _
    $region12: #{_lambda_.11} parent=5 // pred_fallthru
      _
    %p206 = scmp.lt.s32.totalorder %s11, 4
    // Predicated region
    $region21: #{_lambda_.11} parent=5 // pred_check
      %p207 = pneg %p206
    $region22: #{_lambda_.11} parent=5 // pred_check_branch
      %209 = sbr.rel (%p207) target = $region24
    $region23: #{_lambda_.11} parent=5 // pred_region
      // Predicated region
      $region25: #{_lambda_.11} parent=23 // pred_check
        %p210 = pneg %p45
      $region26: #{_lambda_.11} parent=23 // pred_check_branch
        %212 = sbr.rel (%p210) target = $region28
      $region27: #{_lambda_.11} parent=23 // pred_region
        %s213 = smul.u32 8, %s19
        %s214 = ssub.s32 10, %s213
        %p215 = scmp.lt.s32.totalorder %s214, 8
        %s216 = scalar_select %p215, %s214, 8
        %s217 = smul.u32 4, %s216
        %s218 = smul.u32 %s217, 2
        %p219 = scmp.lt.s32.totalorder %s18, 3
        %s220 = scalar_select %p219, %s18, 3
        %p221 = scmp.lt.s32.totalorder %s213, 9
        %s222 = scalar_select %p221, %s213, 9
        %s223 = smul.addr %s222, 2
        %s224 = smul.addr %s220, 20
        %s225 = sadd.s32 %s223, %s224
        %s226 = smul.addr %s225, 4
        %s227 = scalar_lea.vmem %s0, %s226
        %s228 = smul.u32 8, %s19
        %s229 = ssub.s32 10, %s228
        %p230 = scmp.lt.s32.totalorder %s229, 8
        %s231 = scalar_select %p230, %s229, 8
        %s232 = smul.u32 4, %s231
        %s233 = smul.u32 %s232, 2
      $region28: #{_lambda_.11} parent=23 // pred_fallthru
        _
      // Predicated region
      $region29: #{_lambda_.11} parent=23 // pred_check
        %p234 = pneg %p77
      $region30: #{_lambda_.11} parent=23 // pred_check_branch
        %236 = sbr.rel (%p234) target = $region32
      $region31: #{_lambda_.11} parent=23 // pred_region
        %s237 = smul.u32 %s19, 8
        %s238 = sadd.s32 %s237, 8
        %p239 = scmp.lt.s32.totalorder %s18, 3
        %s240 = scalar_select %p239, %s18, 3
        %p241 = scmp.lt.s32.totalorder %s238, 9
        %s242 = scalar_select %p241, %s238, 9
        %s243 = smul.addr %s242, 2
        %s244 = smul.addr %s240, 20
        %s245 = sadd.s32 %s243, %s244
        %s246 = smul.addr %s245, 4
        %s247 = scalar_lea.vmem %s1, %s246
        %s248 = smul.u32 %s19, 8
        %s249 = sadd.s32 %s248, 8
      $region32: #{_lambda_.11} parent=23 // pred_fallthru
        _
      // Predicated region
      $region33: #{_lambda_.11} parent=23 // pred_check
        %p250 = pneg %p109
      $region34: #{_lambda_.11} parent=23 // pred_check_branch
        %252 = sbr.rel (%p250) target = $region36
      $region35: #{_lambda_.11} parent=23 // pred_region
        %s253 = smul.u32 %s19, 8
        %s254 = sadd.s32 %s253, 9
        %p255 = scmp.lt.s32.totalorder %s18, 3
        %s256 = scalar_select %p255, %s18, 3
        %p257 = scmp.lt.s32.totalorder %s254, 9
        %s258 = scalar_select %p257, %s254, 9
        %s259 = smul.addr %s258, 2
        %s260 = smul.addr %s256, 20
        %s261 = sadd.s32 %s259, %s260
        %s262 = smul.addr %s261, 4
        %s263 = scalar_lea.vmem %s2, %s262
        %s264 = smul.u32 %s19, 8
        %s265 = sadd.s32 %s264, 9
      $region36: #{_lambda_.11} parent=23 // pred_fallthru
        _
    $region24: #{_lambda_.11} parent=5 // pred_fallthru
      _
    %p266 = scmp.le.s32.totalorder 1, %s11
    %p267 = scmp.lt.s32.totalorder %s11, 5
    %p268 = pnand %p266, %p267
    %p269 = pneg %p268
    // Predicated region
    $region37: #{_lambda_.11} parent=5 // pred_check
      _
    $region38: #{_lambda_.11} parent=5 // pred_check_branch
      %271 = sbr.rel (%p268) target = $region40
    $region39: #{_lambda_.11} parent=5 // pred_region
      %s272 = ssub.s32 %s11, 1
      %s273 = smul.u32 8, %s21
      %s274 = ssub.s32 10, %s273
      %p275 = scmp.lt.s32.totalorder %s274, 8
      %s276 = scalar_select %p275, %s274, 8
      %s277 = smul.u32 4, %s276
      %s278 = smul.u32 %s277, 2
      %p279 = scmp.lt.s32.totalorder %s20, 3
      %s280 = scalar_select %p279, %s20, 3
      %p281 = scmp.lt.s32.totalorder %s273, 9
      %s282 = scalar_select %p281, %s273, 9
      %s283 = smul.addr %s282, 2
      %s284 = smul.addr %s280, 20
      %s285 = sadd.s32 %s283, %s284
      %s286 = smul.addr %s285, 4
      %s287 = scalar_lea.vmem %s0, %s286
      %p288 = pneg %p51
      %p289 = pneg %p48
      %s290 = smul.u32 %s21, 8
      %s291 = sadd.s32 %s290, 8
      %p292 = scmp.lt.s32.totalorder %s20, 3
      %s293 = scalar_select %p292, %s20, 3
      %p294 = scmp.lt.s32.totalorder %s291, 9
      %s295 = scalar_select %p294, %s291, 9
      %s296 = smul.addr %s295, 2
      %s297 = smul.addr %s293, 20
      %s298 = sadd.s32 %s296, %s297
      %s299 = smul.addr %s298, 4
      %s300 = scalar_lea.vmem %s1, %s299
      %p301 = pneg %p83
      %p302 = pneg %p80
      %s303 = smul.u32 %s21, 8
      %s304 = sadd.s32 %s303, 9
      %p305 = scmp.lt.s32.totalorder %s20, 3
      %s306 = scalar_select %p305, %s20, 3
      %p307 = scmp.lt.s32.totalorder %s304, 9
      %s308 = scalar_select %p307, %s304, 9
      %s309 = smul.addr %s308, 2
      %s310 = smul.addr %s306, 20
      %s311 = sadd.s32 %s309, %s310
      %s312 = smul.addr %s311, 4
      %s313 = scalar_lea.vmem %s2, %s312
      %p314 = pneg %p115
      %p315 = pneg %p112
      %p316 = pneg %p136
      %p317 = pneg %p133
      %p318 = pneg %p157
      %p319 = pneg %p154
      %p320 = pneg %p185
      %p321 = pneg %p182
      %s322 = smul.u32 8, %s21
      %p323 = scmp.lt.s32.totalorder %s20, 3
      %s324 = scalar_select %p323, %s20, 3
      %p325 = scmp.lt.s32.totalorder %s322, 7
      %s326 = scalar_select %p325, %s322, 7
      %s327 = smul.addr %s324, 8
      %s328 = sadd.s32 %s326, %s327
      %s329 = smul.addr %s328, 4
      %s330 = scalar_lea.vmem %s5, %s329
      %s331 = smul.u32 8, %s21
      %s332 = ssub.s32 10, %s331
      %p333 = scmp.lt.s32.totalorder %s332, 8
      %s334 = scalar_select %p333, %s332, 8
      %s335 = smul.u32 4, %s334
      %s336 = smul.u32 %s335, 2
      %p337 = scmp.lt.s32.totalorder %s20, 3
      %s338 = scalar_select %p337, %s20, 3
      %p339 = scmp.lt.s32.totalorder %s331, 9
      %s340 = scalar_select %p339, %s331, 9
      %s341 = smul.addr %s340, 2
      %s342 = smul.addr %s338, 20
      %s343 = sadd.s32 %s341, %s342
      %s344 = smul.addr %s343, 4
      %s345 = scalar_lea.vmem %s0, %s344
      %s346 = smul.u32 8, %s21
      %s347 = ssub.s32 10, %s346
      %p348 = scmp.lt.s32.totalorder %s347, 8
      %s349 = scalar_select %p348, %s347, 8
      %s350 = smul.u32 4, %s349
      %s351 = smul.u32 %s350, 2
      %s352 = smul.u32 %s21, 8
      %s353 = sadd.s32 %s352, 8
      %p354 = scmp.lt.s32.totalorder %s20, 3
      %s355 = scalar_select %p354, %s20, 3
      %p356 = scmp.lt.s32.totalorder %s353, 9
      %s357 = scalar_select %p356, %s353, 9
      %s358 = smul.addr %s357, 2
      %s359 = smul.addr %s355, 20
      %s360 = sadd.s32 %s358, %s359
      %s361 = smul.addr %s360, 4
      %s362 = scalar_lea.vmem %s1, %s361
      %s363 = smul.u32 %s21, 8
      %s364 = sadd.s32 %s363, 8
      %s365 = smul.u32 %s21, 8
      %s366 = sadd.s32 %s365, 9
      %p367 = scmp.lt.s32.totalorder %s20, 3
      %s368 = scalar_select %p367, %s20, 3
      %p369 = scmp.lt.s32.totalorder %s366, 9
      %s370 = scalar_select %p369, %s366, 9
      %s371 = smul.addr %s370, 2
      %s372 = smul.addr %s368, 20
      %s373 = sadd.s32 %s371, %s372
      %s374 = smul.addr %s373, 4
      %s375 = scalar_lea.vmem %s2, %s374
      %s376 = smul.u32 %s21, 8
      %s377 = sadd.s32 %s376, 9
      %s378 = smul.u32 8, %s21
      %p379 = scmp.lt.s32.totalorder %s20, 3
      %s380 = scalar_select %p379, %s20, 3
      %p381 = scmp.lt.s32.totalorder %s378, 7
      %s382 = scalar_select %p381, %s378, 7
      %s383 = smul.addr %s380, 8
      %s384 = sadd.s32 %s382, %s383
      %s385 = smul.addr %s384, 4
      %s386 = scalar_lea.vmem %s5, %s385
      %s387 = smul.u32 8, %s21
      %v388 = vld [vmem:[%s345] sm:$0xf]
      %v389 = vld [vmem:[%s345 + $0x4] sm:$0x1]
      %v390 = vld [vmem:[%s345 + $0x8] sm:$0xf]
      %v391 = vld [vmem:[%s345 + $0xc] sm:$0x1]
      %v392 = vld [vmem:[%s345 + $0x10] sm:$0xf]
      %v393 = vld [vmem:[%s345 + $0x14] sm:$0x1]
      %v394 = vld [vmem:[%s345 + $0x18] sm:$0xf]
      %v395 = vld [vmem:[%s345 + $0x1c] sm:$0x1]
      %v396 = vld [vmem:[%s345 + $0x20] sm:$0xf]
      %v397 = vld [vmem:[%s345 + $0x24] sm:$0x1]
      %v398 = vld [vmem:[%s345 + $0x28] sm:$0xf]
      %v399 = vld [vmem:[%s345 + $0x2c] sm:$0x1]
      %v400 = vld [vmem:[%s345 + $0x30] sm:$0xf]
      %v401 = vld [vmem:[%s345 + $0x34] sm:$0x1]
      %v402 = vld [vmem:[%s345 + $0x38] sm:$0xf]
      %v403 = vld [vmem:[%s345 + $0x3c] sm:$0x1]
      %404 = vst [vmem:[#allocation2] sm:$0xf] %v388
      %405 = vst [vmem:[#allocation2 + $0x4] sm:$0x1] %v389
      %406 = vst [vmem:[#allocation2 + $0x8] sm:$0xf] %v390
      %407 = vst [vmem:[#allocation2 + $0xc] sm:$0x1] %v391
      %408 = vst [vmem:[#allocation2 + $0x10] sm:$0xf] %v392
      %409 = vst [vmem:[#allocation2 + $0x14] sm:$0x1] %v393
      %410 = vst [vmem:[#allocation2 + $0x18] sm:$0xf] %v394
      %411 = vst [vmem:[#allocation2 + $0x1c] sm:$0x1] %v395
      %412 = vst [vmem:[#allocation2 + $0x20] sm:$0xf] %v396
      %413 = vst [vmem:[#allocation2 + $0x24] sm:$0x1] %v397
      %414 = vst [vmem:[#allocation2 + $0x28] sm:$0xf] %v398
      %415 = vst [vmem:[#allocation2 + $0x2c] sm:$0x1] %v399
      %416 = vst [vmem:[#allocation2 + $0x30] sm:$0xf] %v400
      %417 = vst [vmem:[#allocation2 + $0x34] sm:$0x1] %v401
      %418 = vst [vmem:[#allocation2 + $0x38] sm:$0xf] %v402
      %419 = vst [vmem:[#allocation2 + $0x3c] sm:$0x1] %v403
      %v420 = vld [vmem:[%s362] sm:$0xf]
      %v421 = vld [vmem:[%s362 + $0x4] sm:$0x1]
      %s422 = scalar_lea.vmem [#allocation2], 64
      %423 = vst [vmem:[%s422] sm:$0xf] %v420
      %424 = vst [vmem:[%s422 + $0x4] sm:$0x1] %v421
      %v425 = vld [vmem:[%s375] sm:$0xf]
      %v426 = vld [vmem:[%s375 + $0x4] sm:$0x1]
      %s427 = scalar_lea.vmem [#allocation2], 72
      %428 = vst [vmem:[%s427] sm:$0xf] %v425
      %429 = vst [vmem:[%s427 + $0x4] sm:$0x1] %v426
      %v430 = vld [vmem:[#allocation2] sm:$0xf]
      %v431 = vld [vmem:[#allocation2 + $0x8] sm:$0xf]
      %v432 = vld [vmem:[#allocation2 + $0x10] sm:$0xf]
      %v433 = vld [vmem:[#allocation2 + $0x18] sm:$0xf]
      %v434 = vld [vmem:[#allocation2 + $0x20] sm:$0xf]
      %v435 = vld [vmem:[#allocation2 + $0x28] sm:$0xf]
      %v436 = vld [vmem:[#allocation2 + $0x30] sm:$0xf]
      %v437 = vld [vmem:[#allocation2 + $0x38] sm:$0xf]
      %v438 = vld [vmem:[#allocation2 + $0x4] sm:$0x1]
      %v439 = vld [vmem:[#allocation2 + $0xc] sm:$0x1]
      %v440 = vld [vmem:[#allocation2 + $0x14] sm:$0x1]
      %v441 = vld [vmem:[#allocation2 + $0x1c] sm:$0x1]
      %v442 = vld [vmem:[#allocation2 + $0x24] sm:$0x1]
      %v443 = vld [vmem:[#allocation2 + $0x2c] sm:$0x1]
      %v444 = vld [vmem:[#allocation2 + $0x34] sm:$0x1]
      %v445 = vld [vmem:[#allocation2 + $0x3c] sm:$0x1]
      %v446 = vld [vmem:[#allocation2] sm:$0xe]
      %v447 = vld [vmem:[#allocation2 + $0x8] sm:$0xe]
      %v448 = vld [vmem:[#allocation2 + $0x10] sm:$0xe]
      %v449 = vld [vmem:[#allocation2 + $0x18] sm:$0xe]
      %v450 = vld [vmem:[#allocation2 + $0x20] sm:$0xe]
      %v451 = vld [vmem:[#allocation2 + $0x28] sm:$0xe]
      %v452 = vld [vmem:[#allocation2 + $0x30] sm:$0xe]
      %v453 = vld [vmem:[#allocation2 + $0x38] sm:$0xe]
      %v470 = vunpack.c.l.b16 %v430
      %v471 = vunpack.c.l.b16 %v438
      %v472 = vunpack.c.l.b16 %v431
      %v473 = vunpack.c.l.b16 %v439
      %v474 = vunpack.c.l.b16 %v432
      %v475 = vunpack.c.l.b16 %v440
      %v476 = vunpack.c.l.b16 %v433
      %v477 = vunpack.c.l.b16 %v441
      %v478 = vunpack.c.l.b16 %v434
      %v479 = vunpack.c.l.b16 %v442
      %v480 = vunpack.c.l.b16 %v435
      %v481 = vunpack.c.l.b16 %v443
      %v482 = vunpack.c.l.b16 %v436
      %v483 = vunpack.c.l.b16 %v444
      %v484 = vunpack.c.l.b16 %v437
      %v485 = vunpack.c.l.b16 %v445
      %v486 = vpack.c.b16 %v471, %v470
      %v487 = vpack.c.b16 %v473, %v472
      %v488 = vpack.c.b16 %v475, %v474
      %v489 = vpack.c.b16 %v477, %v476
      %v490 = vpack.c.b16 %v479, %v478
      %v491 = vpack.c.b16 %v481, %v480
      %v492 = vpack.c.b16 %v483, %v482
      %v493 = vpack.c.b16 %v485, %v484
      %v495 = vshrl.u32 %v486, 16
      %v497 = vshll.u32 %v486, 16
      %v499 = vrot.slane %v497, 1
      %v500 = vor.u32 %v495, %v499
      %v502 = vshrl.u32 %v487, 16
      %v504 = vshll.u32 %v487, 16
      %v506 = vrot.slane %v504, 1
      %v507 = vor.u32 %v502, %v506
      %v509 = vshrl.u32 %v488, 16
      %v511 = vshll.u32 %v488, 16
      %v513 = vrot.slane %v511, 1
      %v514 = vor.u32 %v509, %v513
      %v516 = vshrl.u32 %v489, 16
      %v518 = vshll.u32 %v489, 16
      %v520 = vrot.slane %v518, 1
      %v521 = vor.u32 %v516, %v520
      %v523 = vshrl.u32 %v490, 16
      %v525 = vshll.u32 %v490, 16
      %v527 = vrot.slane %v525, 1
      %v528 = vor.u32 %v523, %v527
      %v530 = vshrl.u32 %v491, 16
      %v532 = vshll.u32 %v491, 16
      %v534 = vrot.slane %v532, 1
      %v535 = vor.u32 %v530, %v534
      %v537 = vshrl.u32 %v492, 16
      %v539 = vshll.u32 %v492, 16
      %v541 = vrot.slane %v539, 1
      %v542 = vor.u32 %v537, %v541
      %v544 = vshrl.u32 %v493, 16
      %v546 = vshll.u32 %v493, 16
      %v548 = vrot.slane %v546, 1
      %v549 = vor.u32 %v544, %v548
      %v558 = vunpack.c.l.b16 %v446
      %v559 = vunpack.c.l.b16 %v447
      %v560 = vunpack.c.l.b16 %v448
      %v561 = vunpack.c.l.b16 %v449
      %v562 = vunpack.c.l.b16 %v450
      %v563 = vunpack.c.l.b16 %v451
      %v564 = vunpack.c.l.b16 %v452
      %v565 = vunpack.c.l.b16 %v453
      %v566 = vpack.c.b16 %v471, %v558
      %v567 = vpack.c.b16 %v473, %v559
      %v568 = vpack.c.b16 %v475, %v560
      %v569 = vpack.c.b16 %v477, %v561
      %v570 = vpack.c.b16 %v479, %v562
      %v571 = vpack.c.b16 %v481, %v563
      %v572 = vpack.c.b16 %v483, %v564
      %v573 = vpack.c.b16 %v485, %v565
      %v574 = vrot.slane %v566, 1
      %v575 = vrot.slane %v567, 1
      %v576 = vrot.slane %v568, 1
      %v577 = vrot.slane %v569, 1
      %v578 = vrot.slane %v570, 1
      %v579 = vrot.slane %v571, 1
      %v580 = vrot.slane %v572, 1
      %v581 = vrot.slane %v573, 1
      %v582 = vunpack.c.l.b16 %v500
      %v583 = vunpack.c.l.b16 %v574
      %v584 = vunpack.c.l.b16 %v507
      %v585 = vunpack.c.l.b16 %v575
      %v586 = vunpack.c.l.b16 %v514
      %v587 = vunpack.c.l.b16 %v576
      %v588 = vunpack.c.l.b16 %v521
      %v589 = vunpack.c.l.b16 %v577
      %v590 = vunpack.c.l.b16 %v528
      %v591 = vunpack.c.l.b16 %v578
      %v592 = vunpack.c.l.b16 %v535
      %v593 = vunpack.c.l.b16 %v579
      %v594 = vunpack.c.l.b16 %v542
      %v595 = vunpack.c.l.b16 %v580
      %v596 = vunpack.c.l.b16 %v549
      %v597 = vunpack.c.l.b16 %v581
      %v598 = vld [vmem:[%s3] sm:$0xf]
      %v599 = vld [vmem:[%s3 + $0x4] sm:$0xf]
      %v600 = vld [vmem:[%s3 + $0x8] sm:$0xf]
      %v601 = vld [vmem:[%s3 + $0xc] sm:$0xf]
      %v602 = vld [vmem:[%s3 + $0x10] sm:$0xf]
      %v603 = vld [vmem:[%s3 + $0x14] sm:$0xf]
      %v604 = vld [vmem:[%s3 + $0x18] sm:$0xf]
      %v605 = vld [vmem:[%s3 + $0x1c] sm:$0xf]
      %v606 = vld [vmem:[%s3 + $0x20] sm:$0xf]
      %v607 = vld [vmem:[%s3 + $0x24] sm:$0xf]
      %v608 = vld [vmem:[%s3 + $0x28] sm:$0xf]
      %v609 = vld [vmem:[%s3 + $0x2c] sm:$0xf]
      %v610 = vld [vmem:[%s3 + $0x30] sm:$0xf]
      %v611 = vld [vmem:[%s3 + $0x34] sm:$0xf]
      %v612 = vld [vmem:[%s3 + $0x38] sm:$0xf]
      %v613 = vld [vmem:[%s3 + $0x3c] sm:$0xf]
      %v614 = vld [vmem:[%s3 + $0x40] sm:$0xf]
      %v615 = vld [vmem:[%s3 + $0x44] sm:$0xf]
      %v616 = vld [vmem:[%s3 + $0x48] sm:$0xf]
      %v617 = vld [vmem:[%s3 + $0x4c] sm:$0xf]
      %v618 = vld [vmem:[%s3 + $0x50] sm:$0xf]
      %v619 = vld [vmem:[%s3 + $0x54] sm:$0xf]
      %v620 = vld [vmem:[%s3 + $0x58] sm:$0xf]
      %v621 = vld [vmem:[%s3 + $0x5c] sm:$0xf]
      %v622 = vld [vmem:[%s3 + $0x60] sm:$0xf]
      %v623 = vld [vmem:[%s3 + $0x64] sm:$0xf]
      %v624 = vld [vmem:[%s3 + $0x68] sm:$0xf]
      %v625 = vld [vmem:[%s3 + $0x6c] sm:$0xf]
      %v626 = vld [vmem:[%s3 + $0x70] sm:$0xf]
      %v627 = vld [vmem:[%s3 + $0x74] sm:$0xf]
      %v628 = vld [vmem:[%s3 + $0x78] sm:$0xf]
      %v629 = vld [vmem:[%s3 + $0x7c] sm:$0xf]
      %v630 = vld [vmem:[%s3 + $0x80] sm:$0xf]
      %v631 = vld [vmem:[%s3 + $0x84] sm:$0xf]
      %v632 = vld [vmem:[%s3 + $0x88] sm:$0xf]
      %v633 = vld [vmem:[%s3 + $0x8c] sm:$0xf]
      %v634 = vld [vmem:[%s3 + $0x90] sm:$0xf]
      %v635 = vld [vmem:[%s3 + $0x94] sm:$0xf]
      %v636 = vld [vmem:[%s3 + $0x98] sm:$0xf]
      %v637 = vld [vmem:[%s3 + $0x9c] sm:$0xf]
      %v638 = vld [vmem:[%s3 + $0xa0] sm:$0xf]
      %v639 = vld [vmem:[%s3 + $0xa4] sm:$0xf]
      %v640 = vld [vmem:[%s3 + $0xa8] sm:$0xf]
      %v641 = vld [vmem:[%s3 + $0xac] sm:$0xf]
      %v642 = vld [vmem:[%s3 + $0xb0] sm:$0xf]
      %v643 = vld [vmem:[%s3 + $0xb4] sm:$0xf]
      %v644 = vld [vmem:[%s3 + $0xb8] sm:$0xf]
      %v645 = vld [vmem:[%s3 + $0xbc] sm:$0xf]
      %s646 = scalar_lea.vmem [#allocation2], 8
      %v647 = vld [vmem:[%s646] sm:$0xf]
      %v648 = vld [vmem:[%s646 + $0x8] sm:$0xf]
      %v649 = vld [vmem:[%s646 + $0x10] sm:$0xf]
      %v650 = vld [vmem:[%s646 + $0x18] sm:$0xf]
      %v651 = vld [vmem:[%s646 + $0x20] sm:$0xf]
      %v652 = vld [vmem:[%s646 + $0x28] sm:$0xf]
      %v653 = vld [vmem:[%s646 + $0x30] sm:$0xf]
      %v654 = vld [vmem:[%s646 + $0x38] sm:$0xf]
      %v655 = vld [vmem:[%s646 + $0x4] sm:$0x1]
      %v656 = vld [vmem:[%s646 + $0xc] sm:$0x1]
      %v657 = vld [vmem:[%s646 + $0x14] sm:$0x1]
      %v658 = vld [vmem:[%s646 + $0x1c] sm:$0x1]
      %v659 = vld [vmem:[%s646 + $0x24] sm:$0x1]
      %v660 = vld [vmem:[%s646 + $0x2c] sm:$0x1]
      %v661 = vld [vmem:[%s646 + $0x34] sm:$0x1]
      %v662 = vld [vmem:[%s646 + $0x3c] sm:$0x1]
      %v663 = vld [vmem:[%s646] sm:$0xe]
      %v664 = vld [vmem:[%s646 + $0x8] sm:$0xe]
      %v665 = vld [vmem:[%s646 + $0x10] sm:$0xe]
      %v666 = vld [vmem:[%s646 + $0x18] sm:$0xe]
      %v667 = vld [vmem:[%s646 + $0x20] sm:$0xe]
      %v668 = vld [vmem:[%s646 + $0x28] sm:$0xe]
      %v669 = vld [vmem:[%s646 + $0x30] sm:$0xe]
      %v670 = vld [vmem:[%s646 + $0x38] sm:$0xe]
      %v687 = vunpack.c.l.b16 %v647
      %v688 = vunpack.c.l.b16 %v655
      %v689 = vunpack.c.l.b16 %v648
      %v690 = vunpack.c.l.b16 %v656
      %v691 = vunpack.c.l.b16 %v649
      %v692 = vunpack.c.l.b16 %v657
      %v693 = vunpack.c.l.b16 %v650
      %v694 = vunpack.c.l.b16 %v658
      %v695 = vunpack.c.l.b16 %v651
      %v696 = vunpack.c.l.b16 %v659
      %v697 = vunpack.c.l.b16 %v652
      %v698 = vunpack.c.l.b16 %v660
      %v699 = vunpack.c.l.b16 %v653
      %v700 = vunpack.c.l.b16 %v661
      %v701 = vunpack.c.l.b16 %v654
      %v702 = vunpack.c.l.b16 %v662
      %v703 = vpack.c.b16 %v688, %v687
      %v704 = vpack.c.b16 %v690, %v689
      %v705 = vpack.c.b16 %v692, %v691
      %v706 = vpack.c.b16 %v694, %v693
      %v707 = vpack.c.b16 %v696, %v695
      %v708 = vpack.c.b16 %v698, %v697
      %v709 = vpack.c.b16 %v700, %v699
      %v710 = vpack.c.b16 %v702, %v701
      %v712 = vshrl.u32 %v703, 16
      %v714 = vshll.u32 %v703, 16
      %v716 = vrot.slane %v714, 1
      %v717 = vor.u32 %v712, %v716
      %v719 = vshrl.u32 %v704, 16
      %v721 = vshll.u32 %v704, 16
      %v723 = vrot.slane %v721, 1
      %v724 = vor.u32 %v719, %v723
      %v726 = vshrl.u32 %v705, 16
      %v728 = vshll.u32 %v705, 16
      %v730 = vrot.slane %v728, 1
      %v731 = vor.u32 %v726, %v730
      %v733 = vshrl.u32 %v706, 16
      %v735 = vshll.u32 %v706, 16
      %v737 = vrot.slane %v735, 1
      %v738 = vor.u32 %v733, %v737
      %v740 = vshrl.u32 %v707, 16
      %v742 = vshll.u32 %v707, 16
      %v744 = vrot.slane %v742, 1
      %v745 = vor.u32 %v740, %v744
      %v747 = vshrl.u32 %v708, 16
      %v749 = vshll.u32 %v708, 16
      %v751 = vrot.slane %v749, 1
      %v752 = vor.u32 %v747, %v751
      %v754 = vshrl.u32 %v709, 16
      %v756 = vshll.u32 %v709, 16
      %v758 = vrot.slane %v756, 1
      %v759 = vor.u32 %v754, %v758
      %v761 = vshrl.u32 %v710, 16
      %v763 = vshll.u32 %v710, 16
      %v765 = vrot.slane %v763, 1
      %v766 = vor.u32 %v761, %v765
      %v775 = vunpack.c.l.b16 %v663
      %v776 = vunpack.c.l.b16 %v664
      %v777 = vunpack.c.l.b16 %v665
      %v778 = vunpack.c.l.b16 %v666
      %v779 = vunpack.c.l.b16 %v667
      %v780 = vunpack.c.l.b16 %v668
      %v781 = vunpack.c.l.b16 %v669
      %v782 = vunpack.c.l.b16 %v670
      %v783 = vpack.c.b16 %v688, %v775
      %v784 = vpack.c.b16 %v690, %v776
      %v785 = vpack.c.b16 %v692, %v777
      %v786 = vpack.c.b16 %v694, %v778
      %v787 = vpack.c.b16 %v696, %v779
      %v788 = vpack.c.b16 %v698, %v780
      %v789 = vpack.c.b16 %v700, %v781
      %v790 = vpack.c.b16 %v702, %v782
      %v791 = vrot.slane %v783, 1
      %v792 = vrot.slane %v784, 1
      %v793 = vrot.slane %v785, 1
      %v794 = vrot.slane %v786, 1
      %v795 = vrot.slane %v787, 1
      %v796 = vrot.slane %v788, 1
      %v797 = vrot.slane %v789, 1
      %v798 = vrot.slane %v790, 1
      %v799 = vunpack.c.l.b16 %v717
      %v800 = vunpack.c.l.b16 %v791
      %v801 = vunpack.c.l.b16 %v724
      %v802 = vunpack.c.l.b16 %v792
      %v803 = vunpack.c.l.b16 %v731
      %v804 = vunpack.c.l.b16 %v793
      %v805 = vunpack.c.l.b16 %v738
      %v806 = vunpack.c.l.b16 %v794
      %v807 = vunpack.c.l.b16 %v745
      %v808 = vunpack.c.l.b16 %v795
      %v809 = vunpack.c.l.b16 %v752
      %v810 = vunpack.c.l.b16 %v796
      %v811 = vunpack.c.l.b16 %v759
      %v812 = vunpack.c.l.b16 %v797
      %v813 = vunpack.c.l.b16 %v766
      %v814 = vunpack.c.l.b16 %v798
      %s815 = scalar_lea.vmem %s3, 192
      %v816 = vld [vmem:[%s815] sm:$0xf]
      %v817 = vld [vmem:[%s815 + $0x4] sm:$0xf]
      %v818 = vld [vmem:[%s815 + $0x8] sm:$0xf]
      %v819 = vld [vmem:[%s815 + $0xc] sm:$0xf]
      %v820 = vld [vmem:[%s815 + $0x10] sm:$0xf]
      %v821 = vld [vmem:[%s815 + $0x14] sm:$0xf]
      %v822 = vld [vmem:[%s815 + $0x18] sm:$0xf]
      %v823 = vld [vmem:[%s815 + $0x1c] sm:$0xf]
      %v824 = vld [vmem:[%s815 + $0x20] sm:$0xf]
      %v825 = vld [vmem:[%s815 + $0x24] sm:$0xf]
      %v826 = vld [vmem:[%s815 + $0x28] sm:$0xf]
      %v827 = vld [vmem:[%s815 + $0x2c] sm:$0xf]
      %v828 = vld [vmem:[%s815 + $0x30] sm:$0xf]
      %v829 = vld [vmem:[%s815 + $0x34] sm:$0xf]
      %v830 = vld [vmem:[%s815 + $0x38] sm:$0xf]
      %v831 = vld [vmem:[%s815 + $0x3c] sm:$0xf]
      %v832 = vld [vmem:[%s815 + $0x40] sm:$0xf]
      %v833 = vld [vmem:[%s815 + $0x44] sm:$0xf]
      %v834 = vld [vmem:[%s815 + $0x48] sm:$0xf]
      %v835 = vld [vmem:[%s815 + $0x4c] sm:$0xf]
      %v836 = vld [vmem:[%s815 + $0x50] sm:$0xf]
      %v837 = vld [vmem:[%s815 + $0x54] sm:$0xf]
      %v838 = vld [vmem:[%s815 + $0x58] sm:$0xf]
      %v839 = vld [vmem:[%s815 + $0x5c] sm:$0xf]
      %v840 = vld [vmem:[%s815 + $0x60] sm:$0xf]
      %v841 = vld [vmem:[%s815 + $0x64] sm:$0xf]
      %v842 = vld [vmem:[%s815 + $0x68] sm:$0xf]
      %v843 = vld [vmem:[%s815 + $0x6c] sm:$0xf]
      %v844 = vld [vmem:[%s815 + $0x70] sm:$0xf]
      %v845 = vld [vmem:[%s815 + $0x74] sm:$0xf]
      %v846 = vld [vmem:[%s815 + $0x78] sm:$0xf]
      %v847 = vld [vmem:[%s815 + $0x7c] sm:$0xf]
      %v848 = vld [vmem:[%s815 + $0x80] sm:$0xf]
      %v849 = vld [vmem:[%s815 + $0x84] sm:$0xf]
      %v850 = vld [vmem:[%s815 + $0x88] sm:$0xf]
      %v851 = vld [vmem:[%s815 + $0x8c] sm:$0xf]
      %v852 = vld [vmem:[%s815 + $0x90] sm:$0xf]
      %v853 = vld [vmem:[%s815 + $0x94] sm:$0xf]
      %v854 = vld [vmem:[%s815 + $0x98] sm:$0xf]
      %v855 = vld [vmem:[%s815 + $0x9c] sm:$0xf]
      %v856 = vld [vmem:[%s815 + $0xa0] sm:$0xf]
      %v857 = vld [vmem:[%s815 + $0xa4] sm:$0xf]
      %v858 = vld [vmem:[%s815 + $0xa8] sm:$0xf]
      %v859 = vld [vmem:[%s815 + $0xac] sm:$0xf]
      %v860 = vld [vmem:[%s815 + $0xb0] sm:$0xf]
      %v861 = vld [vmem:[%s815 + $0xb4] sm:$0xf]
      %v862 = vld [vmem:[%s815 + $0xb8] sm:$0xf]
      %v863 = vld [vmem:[%s815 + $0xbc] sm:$0xf]
      %v864 = vpack.c.b16 %v689, %v687
      %v865 = vpack.c.b16 %v801, %v799
      %v866 = vpack.c.b16 %v802, %v800
      %v867 = vpack.c.b16 %v693, %v691
      %v868 = vpack.c.b16 %v805, %v803
      %v869 = vpack.c.b16 %v806, %v804
      %v870 = vpack.c.b16 %v697, %v695
      %v871 = vpack.c.b16 %v809, %v807
      %v872 = vpack.c.b16 %v810, %v808
      %v873 = vpack.c.b16 %v701, %v699
      %v874 = vpack.c.b16 %v813, %v811
      %v875 = vpack.c.b16 %v814, %v812
      %v936 = vunpack.c.l.b16 %v816
      %v937 = vunpack.c.l.b16 %v817
      %v938 = vunpack.c.l.b16 %v818
      %v939 = vunpack.c.l.b16 %v819
      %v940 = vunpack.c.l.b16 %v820
      %v941 = vunpack.c.l.b16 %v821
      %v942 = vunpack.c.l.b16 %v822
      %v943 = vunpack.c.l.b16 %v823
      %v944 = vunpack.c.l.b16 %v824
      %v945 = vunpack.c.l.b16 %v825
      %v946 = vunpack.c.l.b16 %v826
      %v947 = vunpack.c.l.b16 %v827
      %v948 = vunpack.c.l.b16 %v828
      %v949 = vunpack.c.l.b16 %v829
      %v950 = vunpack.c.l.b16 %v830
      %v951 = vunpack.c.l.b16 %v831
      %v952 = vunpack.c.l.b16 %v832
      %v953 = vunpack.c.l.b16 %v833
      %v954 = vunpack.c.l.b16 %v834
      %v955 = vunpack.c.l.b16 %v835
      %v956 = vunpack.c.l.b16 %v836
      %v957 = vunpack.c.l.b16 %v837
      %v958 = vunpack.c.l.b16 %v838
      %v959 = vunpack.c.l.b16 %v839
      %v960 = vunpack.c.l.b16 %v840
      %v961 = vunpack.c.l.b16 %v841
      %v962 = vunpack.c.l.b16 %v842
      %v963 = vunpack.c.l.b16 %v843
      %v964 = vunpack.c.l.b16 %v844
      %v965 = vunpack.c.l.b16 %v845
      %v966 = vunpack.c.l.b16 %v846
      %v967 = vunpack.c.l.b16 %v847
      %v968 = vunpack.c.l.b16 %v848
      %v969 = vunpack.c.l.b16 %v849
      %v970 = vunpack.c.l.b16 %v850
      %v971 = vunpack.c.l.b16 %v851
      %v972 = vunpack.c.l.b16 %v852
      %v973 = vunpack.c.l.b16 %v853
      %v974 = vunpack.c.l.b16 %v854
      %v975 = vunpack.c.l.b16 %v855
      %v976 = vunpack.c.l.b16 %v856
      %v977 = vunpack.c.l.b16 %v857
      %v978 = vunpack.c.l.b16 %v858
      %v979 = vunpack.c.l.b16 %v859
      %v980 = vunpack.c.l.b16 %v860
      %v981 = vunpack.c.l.b16 %v861
      %v982 = vunpack.c.l.b16 %v862
      %v983 = vunpack.c.l.b16 %v863
      %v984 = vpack.c.b16 %v937, %v936
      %v985 = vpack.c.b16 %v939, %v938
      %v986 = vpack.c.b16 %v941, %v940
      %v987 = vpack.c.b16 %v943, %v942
      %v988 = vpack.c.b16 %v945, %v944
      %v989 = vpack.c.b16 %v947, %v946
      %v990 = vpack.c.b16 %v949, %v948
      %v991 = vpack.c.b16 %v951, %v950
      %v992 = vpack.c.b16 %v953, %v952
      %v993 = vpack.c.b16 %v955, %v954
      %v994 = vpack.c.b16 %v957, %v956
      %v995 = vpack.c.b16 %v959, %v958
      %v996 = vpack.c.b16 %v961, %v960
      %v997 = vpack.c.b16 %v963, %v962
      %v998 = vpack.c.b16 %v965, %v964
      %v999 = vpack.c.b16 %v967, %v966
      %v1000 = vpack.c.b16 %v969, %v968
      %v1001 = vpack.c.b16 %v971, %v970
      %v1002 = vpack.c.b16 %v973, %v972
      %v1003 = vpack.c.b16 %v975, %v974
      %v1004 = vpack.c.b16 %v977, %v976
      %v1005 = vpack.c.b16 %v979, %v978
      %v1006 = vpack.c.b16 %v981, %v980
      %v1007 = vpack.c.b16 %v983, %v982
      %1032 = vmatpush.bf16.msra.mxu0 %v991
      %1033 = vmatpush.bf16.msra.mxu0 %v990
      %1034 = vmatpush.bf16.msra.mxu0 %v989
      %1035 = vmatpush.bf16.msra.mxu0 %v988
      %1036 = vmatpush.bf16.msra.mxu0 %v987
      %1037 = vmatpush.bf16.msra.mxu0 %v986
      %1038 = vmatpush.bf16.msra.mxu0 %v985
      %1039 = vmatpush.bf16.msra.mxu0 %v984
      %1040 = vmatmul.bf16.gmra.mxu0 %v864
      %v1041 = vpop.f32.mrf.mxu0
      %v1042 = vadd.f32 0.0, %v1041
      %v1043 = vpop.f32.mrf.mxu0
      %v1044 = vadd.f32 0.0, %v1043
      %1045 = vmatmul.bf16.gmra.mxu0 %v867
      %v1046 = vpop.f32.mrf.mxu0
      %v1047 = vadd.f32 0.0, %v1046
      %v1048 = vpop.f32.mrf.mxu0
      %v1049 = vadd.f32 0.0, %v1048
      %1050 = vmatmul.bf16.gmra.mxu0 %v870
      %v1051 = vpop.f32.mrf.mxu0
      %v1052 = vadd.f32 0.0, %v1051
      %v1053 = vpop.f32.mrf.mxu0
      %v1054 = vadd.f32 0.0, %v1053
      %1055 = vmatmul.bf16.gmra.mxu0 %v873
      %v1056 = vpop.f32.mrf.mxu0
      %v1057 = vadd.f32 0.0, %v1056
      %v1058 = vpop.f32.mrf.mxu0
      %v1059 = vadd.f32 0.0, %v1058
      %1060 = vdwg.mxu0
      %1061 = vmatpush.bf16.msra.mxu0 %v999
      %1062 = vmatpush.bf16.msra.mxu0 %v998
      %1063 = vmatpush.bf16.msra.mxu0 %v997
      %1064 = vmatpush.bf16.msra.mxu0 %v996
      %1065 = vmatpush.bf16.msra.mxu0 %v995
      %1066 = vmatpush.bf16.msra.mxu0 %v994
      %1067 = vmatpush.bf16.msra.mxu0 %v993
      %1068 = vmatpush.bf16.msra.mxu0 %v992
      %1069 = vmatmul.bf16.gmra.mxu0 %v865
      %v1070 = vpop.f32.mrf.mxu0
      %v1071 = vadd.f32 %v1042, %v1070
      %v1072 = vpop.f32.mrf.mxu0
      %v1073 = vadd.f32 %v1044, %v1072
      %1074 = vmatmul.bf16.gmra.mxu0 %v868
      %v1075 = vpop.f32.mrf.mxu0
      %v1076 = vadd.f32 %v1047, %v1075
      %v1077 = vpop.f32.mrf.mxu0
      %v1078 = vadd.f32 %v1049, %v1077
      %1079 = vmatmul.bf16.gmra.mxu0 %v871
      %v1080 = vpop.f32.mrf.mxu0
      %v1081 = vadd.f32 %v1052, %v1080
      %v1082 = vpop.f32.mrf.mxu0
      %v1083 = vadd.f32 %v1054, %v1082
      %1084 = vmatmul.bf16.gmra.mxu0 %v874
      %v1085 = vpop.f32.mrf.mxu0
      %v1086 = vadd.f32 %v1057, %v1085
      %v1087 = vpop.f32.mrf.mxu0
      %v1088 = vadd.f32 %v1059, %v1087
      %1089 = vdwg.mxu0
      %1090 = vmatpush.bf16.msra.mxu0 %v1007
      %1091 = vmatpush.bf16.msra.mxu0 %v1006
      %1092 = vmatpush.bf16.msra.mxu0 %v1005
      %1093 = vmatpush.bf16.msra.mxu0 %v1004
      %1094 = vmatpush.bf16.msra.mxu0 %v1003
      %1095 = vmatpush.bf16.msra.mxu0 %v1002
      %1096 = vmatpush.bf16.msra.mxu0 %v1001
      %1097 = vmatpush.bf16.msra.mxu0 %v1000
      %1098 = vmatmul.bf16.gmra.mxu0 %v866
      %v1099 = vpop.f32.mrf.mxu0
      %v1100 = vadd.f32 %v1071, %v1099
      %v1101 = vpop.f32.mrf.mxu0
      %v1102 = vadd.f32 %v1073, %v1101
      %1103 = vmatmul.bf16.gmra.mxu0 %v869
      %v1104 = vpop.f32.mrf.mxu0
      %v1105 = vadd.f32 %v1076, %v1104
      %v1106 = vpop.f32.mrf.mxu0
      %v1107 = vadd.f32 %v1078, %v1106
      %1108 = vmatmul.bf16.gmra.mxu0 %v872
      %v1109 = vpop.f32.mrf.mxu0
      %v1110 = vadd.f32 %v1081, %v1109
      %v1111 = vpop.f32.mrf.mxu0
      %v1112 = vadd.f32 %v1083, %v1111
      %1113 = vmatmul.bf16.gmra.mxu0 %v875
      %v1114 = vpop.f32.mrf.mxu0
      %v1115 = vadd.f32 %v1086, %v1114
      %v1116 = vpop.f32.mrf.mxu0
      %v1117 = vadd.f32 %v1088, %v1116
      %1118 = vdwg.mxu0
      %v1119 = vpack.c.b16 %v472, %v470
      %v1120 = vpack.c.b16 %v584, %v582
      %v1121 = vpack.c.b16 %v585, %v583
      %v1122 = vpack.c.b16 %v476, %v474
      %v1123 = vpack.c.b16 %v588, %v586
      %v1124 = vpack.c.b16 %v589, %v587
      %v1125 = vpack.c.b16 %v480, %v478
      %v1126 = vpack.c.b16 %v592, %v590
      %v1127 = vpack.c.b16 %v593, %v591
      %v1128 = vpack.c.b16 %v484, %v482
      %v1129 = vpack.c.b16 %v596, %v594
      %v1130 = vpack.c.b16 %v597, %v595
      %v1191 = vunpack.c.l.b16 %v598
      %v1192 = vunpack.c.l.b16 %v599
      %v1193 = vunpack.c.l.b16 %v600
      %v1194 = vunpack.c.l.b16 %v601
      %v1195 = vunpack.c.l.b16 %v602
      %v1196 = vunpack.c.l.b16 %v603
      %v1197 = vunpack.c.l.b16 %v604
      %v1198 = vunpack.c.l.b16 %v605
      %v1199 = vunpack.c.l.b16 %v606
      %v1200 = vunpack.c.l.b16 %v607
      %v1201 = vunpack.c.l.b16 %v608
      %v1202 = vunpack.c.l.b16 %v609
      %v1203 = vunpack.c.l.b16 %v610
      %v1204 = vunpack.c.l.b16 %v611
      %v1205 = vunpack.c.l.b16 %v612
      %v1206 = vunpack.c.l.b16 %v613
      %v1207 = vunpack.c.l.b16 %v614
      %v1208 = vunpack.c.l.b16 %v615
      %v1209 = vunpack.c.l.b16 %v616
      %v1210 = vunpack.c.l.b16 %v617
      %v1211 = vunpack.c.l.b16 %v618
      %v1212 = vunpack.c.l.b16 %v619
      %v1213 = vunpack.c.l.b16 %v620
      %v1214 = vunpack.c.l.b16 %v621
      %v1215 = vunpack.c.l.b16 %v622
      %v1216 = vunpack.c.l.b16 %v623
      %v1217 = vunpack.c.l.b16 %v624
      %v1218 = vunpack.c.l.b16 %v625
      %v1219 = vunpack.c.l.b16 %v626
      %v1220 = vunpack.c.l.b16 %v627
      %v1221 = vunpack.c.l.b16 %v628
      %v1222 = vunpack.c.l.b16 %v629
      %v1223 = vunpack.c.l.b16 %v630
      %v1224 = vunpack.c.l.b16 %v631
      %v1225 = vunpack.c.l.b16 %v632
      %v1226 = vunpack.c.l.b16 %v633
      %v1227 = vunpack.c.l.b16 %v634
      %v1228 = vunpack.c.l.b16 %v635
      %v1229 = vunpack.c.l.b16 %v636
      %v1230 = vunpack.c.l.b16 %v637
      %v1231 = vunpack.c.l.b16 %v638
      %v1232 = vunpack.c.l.b16 %v639
      %v1233 = vunpack.c.l.b16 %v640
      %v1234 = vunpack.c.l.b16 %v641
      %v1235 = vunpack.c.l.b16 %v642
      %v1236 = vunpack.c.l.b16 %v643
      %v1237 = vunpack.c.l.b16 %v644
      %v1238 = vunpack.c.l.b16 %v645
      %v1239 = vpack.c.b16 %v1192, %v1191
      %v1240 = vpack.c.b16 %v1194, %v1193
      %v1241 = vpack.c.b16 %v1196, %v1195
      %v1242 = vpack.c.b16 %v1198, %v1197
      %v1243 = vpack.c.b16 %v1200, %v1199
      %v1244 = vpack.c.b16 %v1202, %v1201
      %v1245 = vpack.c.b16 %v1204, %v1203
      %v1246 = vpack.c.b16 %v1206, %v1205
      %v1247 = vpack.c.b16 %v1208, %v1207
      %v1248 = vpack.c.b16 %v1210, %v1209
      %v1249 = vpack.c.b16 %v1212, %v1211
      %v1250 = vpack.c.b16 %v1214, %v1213
      %v1251 = vpack.c.b16 %v1216, %v1215
      %v1252 = vpack.c.b16 %v1218, %v1217
      %v1253 = vpack.c.b16 %v1220, %v1219
      %v1254 = vpack.c.b16 %v1222, %v1221
      %v1255 = vpack.c.b16 %v1224, %v1223
      %v1256 = vpack.c.b16 %v1226, %v1225
      %v1257 = vpack.c.b16 %v1228, %v1227
      %v1258 = vpack.c.b16 %v1230, %v1229
      %v1259 = vpack.c.b16 %v1232, %v1231
      %v1260 = vpack.c.b16 %v1234, %v1233
      %v1261 = vpack.c.b16 %v1236, %v1235
      %v1262 = vpack.c.b16 %v1238, %v1237
      %1287 = vmatpush.bf16.msra.mxu0 %v1246
      %1288 = vmatpush.bf16.msra.mxu0 %v1245
      %1289 = vmatpush.bf16.msra.mxu0 %v1244
      %1290 = vmatpush.bf16.msra.mxu0 %v1243
      %1291 = vmatpush.bf16.msra.mxu0 %v1242
      %1292 = vmatpush.bf16.msra.mxu0 %v1241
      %1293 = vmatpush.bf16.msra.mxu0 %v1240
      %1294 = vmatpush.bf16.msra.mxu0 %v1239
      %1295 = vmatmul.bf16.gmra.mxu0 %v1119
      %v1296 = vpop.f32.mrf.mxu0
      %v1297 = vadd.f32 %v1100, %v1296
      %v1298 = vpop.f32.mrf.mxu0
      %v1299 = vadd.f32 %v1102, %v1298
      %1300 = vmatmul.bf16.gmra.mxu0 %v1122
      %v1301 = vpop.f32.mrf.mxu0
      %v1302 = vadd.f32 %v1105, %v1301
      %v1303 = vpop.f32.mrf.mxu0
      %v1304 = vadd.f32 %v1107, %v1303
      %1305 = vmatmul.bf16.gmra.mxu0 %v1125
      %v1306 = vpop.f32.mrf.mxu0
      %v1307 = vadd.f32 %v1110, %v1306
      %v1308 = vpop.f32.mrf.mxu0
      %v1309 = vadd.f32 %v1112, %v1308
      %1310 = vmatmul.bf16.gmra.mxu0 %v1128
      %v1311 = vpop.f32.mrf.mxu0
      %v1312 = vadd.f32 %v1115, %v1311
      %v1313 = vpop.f32.mrf.mxu0
      %v1314 = vadd.f32 %v1117, %v1313
      %1315 = vdwg.mxu0
      %1316 = vmatpush.bf16.msra.mxu0 %v1254
      %1317 = vmatpush.bf16.msra.mxu0 %v1253
      %1318 = vmatpush.bf16.msra.mxu0 %v1252
      %1319 = vmatpush.bf16.msra.mxu0 %v1251
      %1320 = vmatpush.bf16.msra.mxu0 %v1250
      %1321 = vmatpush.bf16.msra.mxu0 %v1249
      %1322 = vmatpush.bf16.msra.mxu0 %v1248
      %1323 = vmatpush.bf16.msra.mxu0 %v1247
      %1324 = vmatmul.bf16.gmra.mxu0 %v1120
      %v1325 = vpop.f32.mrf.mxu0
      %v1326 = vadd.f32 %v1297, %v1325
      %v1327 = vpop.f32.mrf.mxu0
      %v1328 = vadd.f32 %v1299, %v1327
      %1329 = vmatmul.bf16.gmra.mxu0 %v1123
      %v1330 = vpop.f32.mrf.mxu0
      %v1331 = vadd.f32 %v1302, %v1330
      %v1332 = vpop.f32.mrf.mxu0
      %v1333 = vadd.f32 %v1304, %v1332
      %1334 = vmatmul.bf16.gmra.mxu0 %v1126
      %v1335 = vpop.f32.mrf.mxu0
      %v1336 = vadd.f32 %v1307, %v1335
      %v1337 = vpop.f32.mrf.mxu0
      %v1338 = vadd.f32 %v1309, %v1337
      %1339 = vmatmul.bf16.gmra.mxu0 %v1129
      %v1340 = vpop.f32.mrf.mxu0
      %v1341 = vadd.f32 %v1312, %v1340
      %v1342 = vpop.f32.mrf.mxu0
      %v1343 = vadd.f32 %v1314, %v1342
      %1344 = vdwg.mxu0
      %1345 = vmatpush.bf16.msra.mxu0 %v1262
      %1346 = vmatpush.bf16.msra.mxu0 %v1261
      %1347 = vmatpush.bf16.msra.mxu0 %v1260
      %1348 = vmatpush.bf16.msra.mxu0 %v1259
      %1349 = vmatpush.bf16.msra.mxu0 %v1258
      %1350 = vmatpush.bf16.msra.mxu0 %v1257
      %1351 = vmatpush.bf16.msra.mxu0 %v1256
      %1352 = vmatpush.bf16.msra.mxu0 %v1255
      %1353 = vmatmul.bf16.gmra.mxu0 %v1121
      %v1354 = vpop.f32.mrf.mxu0
      %v1355 = vadd.f32 %v1326, %v1354
      %v1356 = vpop.f32.mrf.mxu0
      %v1357 = vadd.f32 %v1328, %v1356
      %1358 = vmatmul.bf16.gmra.mxu0 %v1124
      %v1359 = vpop.f32.mrf.mxu0
      %v1360 = vadd.f32 %v1331, %v1359
      %v1361 = vpop.f32.mrf.mxu0
      %v1362 = vadd.f32 %v1333, %v1361
      %1363 = vmatmul.bf16.gmra.mxu0 %v1127
      %v1364 = vpop.f32.mrf.mxu0
      %v1365 = vadd.f32 %v1336, %v1364
      %v1366 = vpop.f32.mrf.mxu0
      %v1367 = vadd.f32 %v1338, %v1366
      %1368 = vmatmul.bf16.gmra.mxu0 %v1130
      %v1369 = vpop.f32.mrf.mxu0
      %v1370 = vadd.f32 %v1341, %v1369
      %v1371 = vpop.f32.mrf.mxu0
      %v1372 = vadd.f32 %v1343, %v1371
      %1373 = vdwg.mxu0
      %s1374 = scalar_lea.vmem [#allocation2], 16
      %v1375 = vld [vmem:[%s1374] sm:$0xf]
      %v1376 = vld [vmem:[%s1374 + $0x8] sm:$0xf]
      %v1377 = vld [vmem:[%s1374 + $0x10] sm:$0xf]
      %v1378 = vld [vmem:[%s1374 + $0x18] sm:$0xf]
      %v1379 = vld [vmem:[%s1374 + $0x20] sm:$0xf]
      %v1380 = vld [vmem:[%s1374 + $0x28] sm:$0xf]
      %v1381 = vld [vmem:[%s1374 + $0x30] sm:$0xf]
      %v1382 = vld [vmem:[%s1374 + $0x38] sm:$0xf]
      %v1383 = vld [vmem:[%s1374 + $0x4] sm:$0x1]
      %v1384 = vld [vmem:[%s1374 + $0xc] sm:$0x1]
      %v1385 = vld [vmem:[%s1374 + $0x14] sm:$0x1]
      %v1386 = vld [vmem:[%s1374 + $0x1c] sm:$0x1]
      %v1387 = vld [vmem:[%s1374 + $0x24] sm:$0x1]
      %v1388 = vld [vmem:[%s1374 + $0x2c] sm:$0x1]
      %v1389 = vld [vmem:[%s1374 + $0x34] sm:$0x1]
      %v1390 = vld [vmem:[%s1374 + $0x3c] sm:$0x1]
      %v1391 = vld [vmem:[%s1374] sm:$0xe]
      %v1392 = vld [vmem:[%s1374 + $0x8] sm:$0xe]
      %v1393 = vld [vmem:[%s1374 + $0x10] sm:$0xe]
      %v1394 = vld [vmem:[%s1374 + $0x18] sm:$0xe]
      %v1395 = vld [vmem:[%s1374 + $0x20] sm:$0xe]
      %v1396 = vld [vmem:[%s1374 + $0x28] sm:$0xe]
      %v1397 = vld [vmem:[%s1374 + $0x30] sm:$0xe]
      %v1398 = vld [vmem:[%s1374 + $0x38] sm:$0xe]
      %v1415 = vunpack.c.l.b16 %v1375
      %v1416 = vunpack.c.l.b16 %v1383
      %v1417 = vunpack.c.l.b16 %v1376
      %v1418 = vunpack.c.l.b16 %v1384
      %v1419 = vunpack.c.l.b16 %v1377
      %v1420 = vunpack.c.l.b16 %v1385
      %v1421 = vunpack.c.l.b16 %v1378
      %v1422 = vunpack.c.l.b16 %v1386
      %v1423 = vunpack.c.l.b16 %v1379
      %v1424 = vunpack.c.l.b16 %v1387
      %v1425 = vunpack.c.l.b16 %v1380
      %v1426 = vunpack.c.l.b16 %v1388
      %v1427 = vunpack.c.l.b16 %v1381
      %v1428 = vunpack.c.l.b16 %v1389
      %v1429 = vunpack.c.l.b16 %v1382
      %v1430 = vunpack.c.l.b16 %v1390
      %v1431 = vpack.c.b16 %v1416, %v1415
      %v1432 = vpack.c.b16 %v1418, %v1417
      %v1433 = vpack.c.b16 %v1420, %v1419
      %v1434 = vpack.c.b16 %v1422, %v1421
      %v1435 = vpack.c.b16 %v1424, %v1423
      %v1436 = vpack.c.b16 %v1426, %v1425
      %v1437 = vpack.c.b16 %v1428, %v1427
      %v1438 = vpack.c.b16 %v1430, %v1429
      %v1440 = vshrl.u32 %v1431, 16
      %v1442 = vshll.u32 %v1431, 16
      %v1444 = vrot.slane %v1442, 1
      %v1445 = vor.u32 %v1440, %v1444
      %v1447 = vshrl.u32 %v1432, 16
      %v1449 = vshll.u32 %v1432, 16
      %v1451 = vrot.slane %v1449, 1
      %v1452 = vor.u32 %v1447, %v1451
      %v1454 = vshrl.u32 %v1433, 16
      %v1456 = vshll.u32 %v1433, 16
      %v1458 = vrot.slane %v1456, 1
      %v1459 = vor.u32 %v1454, %v1458
      %v1461 = vshrl.u32 %v1434, 16
      %v1463 = vshll.u32 %v1434, 16
      %v1465 = vrot.slane %v1463, 1
      %v1466 = vor.u32 %v1461, %v1465
      %v1468 = vshrl.u32 %v1435, 16
      %v1470 = vshll.u32 %v1435, 16
      %v1472 = vrot.slane %v1470, 1
      %v1473 = vor.u32 %v1468, %v1472
      %v1475 = vshrl.u32 %v1436, 16
      %v1477 = vshll.u32 %v1436, 16
      %v1479 = vrot.slane %v1477, 1
      %v1480 = vor.u32 %v1475, %v1479
      %v1482 = vshrl.u32 %v1437, 16
      %v1484 = vshll.u32 %v1437, 16
      %v1486 = vrot.slane %v1484, 1
      %v1487 = vor.u32 %v1482, %v1486
      %v1489 = vshrl.u32 %v1438, 16
      %v1491 = vshll.u32 %v1438, 16
      %v1493 = vrot.slane %v1491, 1
      %v1494 = vor.u32 %v1489, %v1493
      %v1503 = vunpack.c.l.b16 %v1391
      %v1504 = vunpack.c.l.b16 %v1392
      %v1505 = vunpack.c.l.b16 %v1393
      %v1506 = vunpack.c.l.b16 %v1394
      %v1507 = vunpack.c.l.b16 %v1395
      %v1508 = vunpack.c.l.b16 %v1396
      %v1509 = vunpack.c.l.b16 %v1397
      %v1510 = vunpack.c.l.b16 %v1398
      %v1511 = vpack.c.b16 %v1416, %v1503
      %v1512 = vpack.c.b16 %v1418, %v1504
      %v1513 = vpack.c.b16 %v1420, %v1505
      %v1514 = vpack.c.b16 %v1422, %v1506
      %v1515 = vpack.c.b16 %v1424, %v1507
      %v1516 = vpack.c.b16 %v1426, %v1508
      %v1517 = vpack.c.b16 %v1428, %v1509
      %v1518 = vpack.c.b16 %v1430, %v1510
      %v1519 = vrot.slane %v1511, 1
      %v1520 = vrot.slane %v1512, 1
      %v1521 = vrot.slane %v1513, 1
      %v1522 = vrot.slane %v1514, 1
      %v1523 = vrot.slane %v1515, 1
      %v1524 = vrot.slane %v1516, 1
      %v1525 = vrot.slane %v1517, 1
      %v1526 = vrot.slane %v1518, 1
      %v1527 = vunpack.c.l.b16 %v1445
      %v1528 = vunpack.c.l.b16 %v1519
      %v1529 = vunpack.c.l.b16 %v1452
      %v1530 = vunpack.c.l.b16 %v1520
      %v1531 = vunpack.c.l.b16 %v1459
      %v1532 = vunpack.c.l.b16 %v1521
      %v1533 = vunpack.c.l.b16 %v1466
      %v1534 = vunpack.c.l.b16 %v1522
      %v1535 = vunpack.c.l.b16 %v1473
      %v1536 = vunpack.c.l.b16 %v1523
      %v1537 = vunpack.c.l.b16 %v1480
      %v1538 = vunpack.c.l.b16 %v1524
      %v1539 = vunpack.c.l.b16 %v1487
      %v1540 = vunpack.c.l.b16 %v1525
      %v1541 = vunpack.c.l.b16 %v1494
      %v1542 = vunpack.c.l.b16 %v1526
      %s1543 = scalar_lea.vmem %s3, 384
      %v1544 = vld [vmem:[%s1543] sm:$0xf]
      %v1545 = vld [vmem:[%s1543 + $0x4] sm:$0xf]
      %v1546 = vld [vmem:[%s1543 + $0x8] sm:$0xf]
      %v1547 = vld [vmem:[%s1543 + $0xc] sm:$0xf]
      %v1548 = vld [vmem:[%s1543 + $0x10] sm:$0xf]
      %v1549 = vld [vmem:[%s1543 + $0x14] sm:$0xf]
      %v1550 = vld [vmem:[%s1543 + $0x18] sm:$0xf]
      %v1551 = vld [vmem:[%s1543 + $0x1c] sm:$0xf]
      %v1552 = vld [vmem:[%s1543 + $0x20] sm:$0xf]
      %v1553 = vld [vmem:[%s1543 + $0x24] sm:$0xf]
      %v1554 = vld [vmem:[%s1543 + $0x28] sm:$0xf]
      %v1555 = vld [vmem:[%s1543 + $0x2c] sm:$0xf]
      %v1556 = vld [vmem:[%s1543 + $0x30] sm:$0xf]
      %v1557 = vld [vmem:[%s1543 + $0x34] sm:$0xf]
      %v1558 = vld [vmem:[%s1543 + $0x38] sm:$0xf]
      %v1559 = vld [vmem:[%s1543 + $0x3c] sm:$0xf]
      %v1560 = vld [vmem:[%s1543 + $0x40] sm:$0xf]
      %v1561 = vld [vmem:[%s1543 + $0x44] sm:$0xf]
      %v1562 = vld [vmem:[%s1543 + $0x48] sm:$0xf]
      %v1563 = vld [vmem:[%s1543 + $0x4c] sm:$0xf]
      %v1564 = vld [vmem:[%s1543 + $0x50] sm:$0xf]
      %v1565 = vld [vmem:[%s1543 + $0x54] sm:$0xf]
      %v1566 = vld [vmem:[%s1543 + $0x58] sm:$0xf]
      %v1567 = vld [vmem:[%s1543 + $0x5c] sm:$0xf]
      %v1568 = vld [vmem:[%s1543 + $0x60] sm:$0xf]
      %v1569 = vld [vmem:[%s1543 + $0x64] sm:$0xf]
      %v1570 = vld [vmem:[%s1543 + $0x68] sm:$0xf]
      %v1571 = vld [vmem:[%s1543 + $0x6c] sm:$0xf]
      %v1572 = vld [vmem:[%s1543 + $0x70] sm:$0xf]
      %v1573 = vld [vmem:[%s1543 + $0x74] sm:$0xf]
      %v1574 = vld [vmem:[%s1543 + $0x78] sm:$0xf]
      %v1575 = vld [vmem:[%s1543 + $0x7c] sm:$0xf]
      %v1576 = vld [vmem:[%s1543 + $0x80] sm:$0xf]
      %v1577 = vld [vmem:[%s1543 + $0x84] sm:$0xf]
      %v1578 = vld [vmem:[%s1543 + $0x88] sm:$0xf]
      %v1579 = vld [vmem:[%s1543 + $0x8c] sm:$0xf]
      %v1580 = vld [vmem:[%s1543 + $0x90] sm:$0xf]
      %v1581 = vld [vmem:[%s1543 + $0x94] sm:$0xf]
      %v1582 = vld [vmem:[%s1543 + $0x98] sm:$0xf]
      %v1583 = vld [vmem:[%s1543 + $0x9c] sm:$0xf]
      %v1584 = vld [vmem:[%s1543 + $0xa0] sm:$0xf]
      %v1585 = vld [vmem:[%s1543 + $0xa4] sm:$0xf]
      %v1586 = vld [vmem:[%s1543 + $0xa8] sm:$0xf]
      %v1587 = vld [vmem:[%s1543 + $0xac] sm:$0xf]
      %v1588 = vld [vmem:[%s1543 + $0xb0] sm:$0xf]
      %v1589 = vld [vmem:[%s1543 + $0xb4] sm:$0xf]
      %v1590 = vld [vmem:[%s1543 + $0xb8] sm:$0xf]
      %v1591 = vld [vmem:[%s1543 + $0xbc] sm:$0xf]
      %v1592 = vpack.c.b16 %v1417, %v1415
      %v1593 = vpack.c.b16 %v1529, %v1527
      %v1594 = vpack.c.b16 %v1530, %v1528
      %v1595 = vpack.c.b16 %v1421, %v1419
      %v1596 = vpack.c.b16 %v1533, %v1531
      %v1597 = vpack.c.b16 %v1534, %v1532
      %v1598 = vpack.c.b16 %v1425, %v1423
      %v1599 = vpack.c.b16 %v1537, %v1535
      %v1600 = vpack.c.b16 %v1538, %v1536
      %v1601 = vpack.c.b16 %v1429, %v1427
      %v1602 = vpack.c.b16 %v1541, %v1539
      %v1603 = vpack.c.b16 %v1542, %v1540
      %v1664 = vunpack.c.l.b16 %v1544
      %v1665 = vunpack.c.l.b16 %v1545
      %v1666 = vunpack.c.l.b16 %v1546
      %v1667 = vunpack.c.l.b16 %v1547
      %v1668 = vunpack.c.l.b16 %v1548
      %v1669 = vunpack.c.l.b16 %v1549
      %v1670 = vunpack.c.l.b16 %v1550
      %v1671 = vunpack.c.l.b16 %v1551
      %v1672 = vunpack.c.l.b16 %v1552
      %v1673 = vunpack.c.l.b16 %v1553
      %v1674 = vunpack.c.l.b16 %v1554
      %v1675 = vunpack.c.l.b16 %v1555
      %v1676 = vunpack.c.l.b16 %v1556
      %v1677 = vunpack.c.l.b16 %v1557
      %v1678 = vunpack.c.l.b16 %v1558
      %v1679 = vunpack.c.l.b16 %v1559
      %v1680 = vunpack.c.l.b16 %v1560
      %v1681 = vunpack.c.l.b16 %v1561
      %v1682 = vunpack.c.l.b16 %v1562
      %v1683 = vunpack.c.l.b16 %v1563
      %v1684 = vunpack.c.l.b16 %v1564
      %v1685 = vunpack.c.l.b16 %v1565
      %v1686 = vunpack.c.l.b16 %v1566
      %v1687 = vunpack.c.l.b16 %v1567
      %v1688 = vunpack.c.l.b16 %v1568
      %v1689 = vunpack.c.l.b16 %v1569
      %v1690 = vunpack.c.l.b16 %v1570
      %v1691 = vunpack.c.l.b16 %v1571
      %v1692 = vunpack.c.l.b16 %v1572
      %v1693 = vunpack.c.l.b16 %v1573
      %v1694 = vunpack.c.l.b16 %v1574
      %v1695 = vunpack.c.l.b16 %v1575
      %v1696 = vunpack.c.l.b16 %v1576
      %v1697 = vunpack.c.l.b16 %v1577
      %v1698 = vunpack.c.l.b16 %v1578
      %v1699 = vunpack.c.l.b16 %v1579
      %v1700 = vunpack.c.l.b16 %v1580
      %v1701 = vunpack.c.l.b16 %v1581
      %v1702 = vunpack.c.l.b16 %v1582
      %v1703 = vunpack.c.l.b16 %v1583
      %v1704 = vunpack.c.l.b16 %v1584
      %v1705 = vunpack.c.l.b16 %v1585
      %v1706 = vunpack.c.l.b16 %v1586
      %v1707 = vunpack.c.l.b16 %v1587
      %v1708 = vunpack.c.l.b16 %v1588
      %v1709 = vunpack.c.l.b16 %v1589
      %v1710 = vunpack.c.l.b16 %v1590
      %v1711 = vunpack.c.l.b16 %v1591
      %v1712 = vpack.c.b16 %v1665, %v1664
      %v1713 = vpack.c.b16 %v1667, %v1666
      %v1714 = vpack.c.b16 %v1669, %v1668
      %v1715 = vpack.c.b16 %v1671, %v1670
      %v1716 = vpack.c.b16 %v1673, %v1672
      %v1717 = vpack.c.b16 %v1675, %v1674
      %v1718 = vpack.c.b16 %v1677, %v1676
      %v1719 = vpack.c.b16 %v1679, %v1678
      %v1720 = vpack.c.b16 %v1681, %v1680
      %v1721 = vpack.c.b16 %v1683, %v1682
      %v1722 = vpack.c.b16 %v1685, %v1684
      %v1723 = vpack.c.b16 %v1687, %v1686
      %v1724 = vpack.c.b16 %v1689, %v1688
      %v1725 = vpack.c.b16 %v1691, %v1690
      %v1726 = vpack.c.b16 %v1693, %v1692
      %v1727 = vpack.c.b16 %v1695, %v1694
      %v1728 = vpack.c.b16 %v1697, %v1696
      %v1729 = vpack.c.b16 %v1699, %v1698
      %v1730 = vpack.c.b16 %v1701, %v1700
      %v1731 = vpack.c.b16 %v1703, %v1702
      %v1732 = vpack.c.b16 %v1705, %v1704
      %v1733 = vpack.c.b16 %v1707, %v1706
      %v1734 = vpack.c.b16 %v1709, %v1708
      %v1735 = vpack.c.b16 %v1711, %v1710
      %1760 = vmatpush.bf16.msra.mxu0 %v1719
      %1761 = vmatpush.bf16.msra.mxu0 %v1718
      %1762 = vmatpush.bf16.msra.mxu0 %v1717
      %1763 = vmatpush.bf16.msra.mxu0 %v1716
      %1764 = vmatpush.bf16.msra.mxu0 %v1715
      %1765 = vmatpush.bf16.msra.mxu0 %v1714
      %1766 = vmatpush.bf16.msra.mxu0 %v1713
      %1767 = vmatpush.bf16.msra.mxu0 %v1712
      %1768 = vmatmul.bf16.gmra.mxu0 %v1592
      %v1769 = vpop.f32.mrf.mxu0
      %v1770 = vadd.f32 0.0, %v1769
      %v1771 = vpop.f32.mrf.mxu0
      %v1772 = vadd.f32 0.0, %v1771
      %1773 = vmatmul.bf16.gmra.mxu0 %v1595
      %v1774 = vpop.f32.mrf.mxu0
      %v1775 = vadd.f32 0.0, %v1774
      %v1776 = vpop.f32.mrf.mxu0
      %v1777 = vadd.f32 0.0, %v1776
      %1778 = vmatmul.bf16.gmra.mxu0 %v1598
      %v1779 = vpop.f32.mrf.mxu0
      %v1780 = vadd.f32 0.0, %v1779
      %v1781 = vpop.f32.mrf.mxu0
      %v1782 = vadd.f32 0.0, %v1781
      %1783 = vmatmul.bf16.gmra.mxu0 %v1601
      %v1784 = vpop.f32.mrf.mxu0
      %v1785 = vadd.f32 0.0, %v1784
      %v1786 = vpop.f32.mrf.mxu0
      %v1787 = vadd.f32 0.0, %v1786
      %1788 = vdwg.mxu0
      %1789 = vmatpush.bf16.msra.mxu0 %v1727
      %1790 = vmatpush.bf16.msra.mxu0 %v1726
      %1791 = vmatpush.bf16.msra.mxu0 %v1725
      %1792 = vmatpush.bf16.msra.mxu0 %v1724
      %1793 = vmatpush.bf16.msra.mxu0 %v1723
      %1794 = vmatpush.bf16.msra.mxu0 %v1722
      %1795 = vmatpush.bf16.msra.mxu0 %v1721
      %1796 = vmatpush.bf16.msra.mxu0 %v1720
      %1797 = vmatmul.bf16.gmra.mxu0 %v1593
      %v1798 = vpop.f32.mrf.mxu0
      %v1799 = vadd.f32 %v1770, %v1798
      %v1800 = vpop.f32.mrf.mxu0
      %v1801 = vadd.f32 %v1772, %v1800
      %1802 = vmatmul.bf16.gmra.mxu0 %v1596
      %v1803 = vpop.f32.mrf.mxu0
      %v1804 = vadd.f32 %v1775, %v1803
      %v1805 = vpop.f32.mrf.mxu0
      %v1806 = vadd.f32 %v1777, %v1805
      %1807 = vmatmul.bf16.gmra.mxu0 %v1599
      %v1808 = vpop.f32.mrf.mxu0
      %v1809 = vadd.f32 %v1780, %v1808
      %v1810 = vpop.f32.mrf.mxu0
      %v1811 = vadd.f32 %v1782, %v1810
      %1812 = vmatmul.bf16.gmra.mxu0 %v1602
      %v1813 = vpop.f32.mrf.mxu0
      %v1814 = vadd.f32 %v1785, %v1813
      %v1815 = vpop.f32.mrf.mxu0
      %v1816 = vadd.f32 %v1787, %v1815
      %1817 = vdwg.mxu0
      %1818 = vmatpush.bf16.msra.mxu0 %v1735
      %1819 = vmatpush.bf16.msra.mxu0 %v1734
      %1820 = vmatpush.bf16.msra.mxu0 %v1733
      %1821 = vmatpush.bf16.msra.mxu0 %v1732
      %1822 = vmatpush.bf16.msra.mxu0 %v1731
      %1823 = vmatpush.bf16.msra.mxu0 %v1730
      %1824 = vmatpush.bf16.msra.mxu0 %v1729
      %1825 = vmatpush.bf16.msra.mxu0 %v1728
      %1826 = vmatmul.bf16.gmra.mxu0 %v1594
      %v1827 = vpop.f32.mrf.mxu0
      %v1828 = vadd.f32 %v1799, %v1827
      %v1829 = vpop.f32.mrf.mxu0
      %v1830 = vadd.f32 %v1801, %v1829
      %1831 = vmatmul.bf16.gmra.mxu0 %v1597
      %v1832 = vpop.f32.mrf.mxu0
      %v1833 = vadd.f32 %v1804, %v1832
      %v1834 = vpop.f32.mrf.mxu0
      %v1835 = vadd.f32 %v1806, %v1834
      %1836 = vmatmul.bf16.gmra.mxu0 %v1600
      %v1837 = vpop.f32.mrf.mxu0
      %v1838 = vadd.f32 %v1809, %v1837
      %v1839 = vpop.f32.mrf.mxu0
      %v1840 = vadd.f32 %v1811, %v1839
      %1841 = vmatmul.bf16.gmra.mxu0 %v1603
      %v1842 = vpop.f32.mrf.mxu0
      %v1843 = vadd.f32 %v1814, %v1842
      %v1844 = vpop.f32.mrf.mxu0
      %v1845 = vadd.f32 %v1816, %v1844
      %1846 = vdwg.mxu0
      %v1847 = vadd.f32 %v1355, %v1828
      %v1848 = vadd.f32 %v1357, %v1830
      %v1849 = vadd.f32 %v1360, %v1833
      %v1850 = vadd.f32 %v1362, %v1835
      %v1851 = vadd.f32 %v1365, %v1838
      %v1852 = vadd.f32 %v1367, %v1840
      %v1853 = vadd.f32 %v1370, %v1843
      %v1854 = vadd.f32 %v1372, %v1845
      %v1855 = vld [vmem:[%s4] sm:$0x1]
      %v1857 = vperm.slane %v1855, 0
      %v1859 = vadd.f32 %v1847, %v1857
      %v1860 = vadd.f32 %v1848, %v1857
      %v1861 = vadd.f32 %v1849, %v1857
      %v1862 = vadd.f32 %v1850, %v1857
      %v1863 = vadd.f32 %v1851, %v1857
      %v1864 = vadd.f32 %v1852, %v1857
      %v1865 = vadd.f32 %v1853, %v1857
      %v1866 = vadd.f32 %v1854, %v1857
      %v1867 = vmax.f32 %v1859, 0.0
      %v1868 = vmax.f32 %v1860, 0.0
      %v1869 = vmax.f32 %v1861, 0.0
      %v1870 = vmax.f32 %v1862, 0.0
      %v1871 = vmax.f32 %v1863, 0.0
      %v1872 = vmax.f32 %v1864, 0.0
      %v1873 = vmax.f32 %v1865, 0.0
      %v1874 = vmax.f32 %v1866, 0.0
      %v1875 = vpack.c.bf16 %v1867, %v1867
      %v1876 = vpack.c.bf16 %v1868, %v1868
      %v1877 = vpack.c.bf16 %v1869, %v1869
      %v1878 = vpack.c.bf16 %v1870, %v1870
      %v1879 = vpack.c.bf16 %v1871, %v1871
      %v1880 = vpack.c.bf16 %v1872, %v1872
      %v1881 = vpack.c.bf16 %v1873, %v1873
      %v1882 = vpack.c.bf16 %v1874, %v1874
      %1883 = vst [vmem:[%s386] sm:$0xf] %v1875
      %1884 = vst [vmem:[%s386 + $0x4] sm:$0xf] %v1876
      %1885 = vst [vmem:[%s386 + $0x8] sm:$0xf] %v1877
      %1886 = vst [vmem:[%s386 + $0xc] sm:$0xf] %v1878
      %1887 = vst [vmem:[%s386 + $0x10] sm:$0xf] %v1879
      %1888 = vst [vmem:[%s386 + $0x14] sm:$0xf] %v1880
      %1889 = vst [vmem:[%s386 + $0x18] sm:$0xf] %v1881
      %1890 = vst [vmem:[%s386 + $0x1c] sm:$0xf] %v1882
      %s1891 = smul.u32 8, %s21
      %p1892 = scmp.lt.s32.totalorder %s20, 3
      %s1893 = scalar_select %p1892, %s20, 3
      %p1894 = scmp.lt.s32.totalorder %s1891, 7
      %s1895 = scalar_select %p1894, %s1891, 7
      %s1896 = smul.addr %s1893, 8
      %s1897 = sadd.s32 %s1895, %s1896
      %s1898 = smul.addr %s1897, 4
      %s1899 = scalar_lea.vmem %s5, %s1898
      // Predicated region
      $region41: #{_lambda_.11} parent=39 // pred_check
        %p1900 = pneg %p182
      $region42: #{_lambda_.11} parent=39 // pred_check_branch
        %1902 = sbr.rel (%p1900) target = $region44
      $region43: #{_lambda_.11} parent=39 // pred_region
        %s1903 = smul.u32 8, %s21
      $region44: #{_lambda_.11} parent=39 // pred_fallthru
        _
    $region40: #{_lambda_.11} parent=5 // pred_fallthru
      _
    %p1904 = scmp.le.s32.totalorder 2, %s11
    // Predicated region
    $region45: #{_lambda_.11} parent=5 // pred_check
      %p1905 = pneg %p1904
    $region46: #{_lambda_.11} parent=5 // pred_check_branch
      %1907 = sbr.rel (%p1905) target = $region48
    $region47: #{_lambda_.11} parent=5 // pred_region
      %s1908 = ssub.s32 %s11, 2
      // Predicated region
      $region49: #{_lambda_.11} parent=47 // pred_check
        %p1909 = pneg %p188
      $region50: #{_lambda_.11} parent=47 // pred_check_branch
        %1911 = sbr.rel (%p1909) target = $region52
      $region51: #{_lambda_.11} parent=47 // pred_region
        %s1912 = smul.u32 8, %s23
        %p1913 = scmp.lt.s32.totalorder %s22, 3
        %s1914 = scalar_select %p1913, %s22, 3
        %p1915 = scmp.lt.s32.totalorder %s1912, 7
        %s1916 = scalar_select %p1915, %s1912, 7
        %s1917 = smul.addr %s1914, 8
        %s1918 = sadd.s32 %s1916, %s1917
        %s1919 = smul.addr %s1918, 4
        %s1920 = scalar_lea.vmem %s5, %s1919
      $region52: #{_lambda_.11} parent=47 // pred_fallthru
        _
    $region48: #{_lambda_.11} parent=5 // pred_fallthru
      _
  $region6: #{_lambda_.11} parent=0 // loop_footer
    %s15 = sadd.s32 1, %s11
  $region7: #{_lambda_.11} parent=0 // loop_footer_branch
    %10 = sbr.rel target = $region3
  $region8: #{_lambda_.11} parent=0 // loop_exit
    _

</llo_original>
